<compile_context>
chip_gen: v6e
topology: v6e:2x2x1
jax: 0.10.0
libtpu: 0.0.40
codegen_flags: <defaults>
</compile_context>

<pallas_src>
import functools

import jax
import jax.numpy as jnp
from jax.experimental import pallas as pl
from jax.experimental.pallas import tpu as pltpu


# ----------------------------------------------------------------------------
# Glue: fold the k+1 multi-scale normalized adjacencies into one operator.
# ----------------------------------------------------------------------------
def build_a_sum(A, k=8):
    N = A.shape[0]
    A_hat = A + jnp.eye(N, dtype=A.dtype)
    total = jnp.zeros((N, N), A.dtype)
    for kk in range(k + 1):
        A_k = jnp.linalg.matrix_power(A_hat, kk)
        A_k = (A_k >= 1).astype(A.dtype)
        d_inv_sqrt = 1.0 / jnp.sqrt(A_k.sum(axis=1))
        A_norm = d_inv_sqrt[:, None] * A_k * d_inv_sqrt[None, :]
        total = total + A_norm
    return total


# ----------------------------------------------------------------------------
# The fused Pallas kernel: one batch element per grid step.
# ----------------------------------------------------------------------------
def _msst_kernel(x_ref, a_ref, w1_ref, sh1_ref, wqkv_ref, bqkv_ref,
                 wo_ref, bo_ref, wt_ref, sh2_ref, wr_ref, br_ref,
                 out_ref,
                 *, num_heads, head_dim, tau, seq_len, num_nodes, cout):
    f32 = jnp.float32
    bf16 = jnp.bfloat16
    T, N, Dh, H = seq_len, num_nodes, head_dim, num_heads
    NT = N * T

    # ---- load NCHW block (flattened, lane-dense) and build node-major layout
    x_cn = x_ref[0]                              # (Cin, T*N) f32, lane = t*N+n
    cin = x_cn.shape[0]
    x_tnc = x_cn.T.reshape(T, N, cin)            # (T, N, Cin)
    # (t, n) -> (n, t) leading-dim swap via static slices + stack: lane dim is
    # untouched, so this is pure on-chip copy/relayout work (no HBM traffic).
    x_ntc = jnp.stack([x_tnc[:, n, :] for n in range(N)], axis=0)  # (N, T, Cin)
    x_ntc_bf = x_ntc.astype(bf16)
    x2d_bf = x_ntc_bf.reshape(NT, cin)           # node-major rows (n*T + t)

    # ---- residual 1x1 conv (dropout = identity in eval mode) ---------------
    res2d = jnp.dot(x2d_bf, wr_ref[...],
                    preferred_element_type=f32) + br_ref[...]       # (NT, Cout)

    # ---- SGCN: summed multi-scale graph mix + 1x1 conv (bias+BN folded) ----
    xg = jnp.einsum('nm,mtc->ntc', a_ref[...], x_ntc_bf,
                    preferred_element_type=f32)                     # (N, T, Cin)
    xg2d_bf = xg.reshape(NT, cin).astype(bf16)
    z2d = jnp.dot(xg2d_bf, w1_ref[...],
                  preferred_element_type=f32) + sh1_ref[...]
    z2d = jnp.maximum(z2d, 0.0)                                     # (NT, Cout)

    # ---- ATCN attention: fused QKV proj, per-head softmax, fused out-proj --
    qkv2d = jnp.dot(z2d.astype(bf16), wqkv_ref[...],
                    preferred_element_type=f32) + bqkv_ref[...]     # (NT, 3Cout)
    qkv = qkv2d.reshape(N, T, 3 * cout)
    inv_sqrt_d = 1.0 / jnp.sqrt(f32(Dh))
    ctx_heads = []
    for h in range(H):                                   # static unroll (H=4)
        lo = h * Dh
        qh = qkv[:, :, lo:lo + Dh].astype(bf16)
        kh = qkv[:, :, cout + lo:cout + lo + Dh].astype(bf16)
        vh = qkv[:, :, 2 * cout + lo:2 * cout + lo + Dh].astype(bf16)
        s = jnp.einsum('ntd,nsd->nts', qh, kh,
                       preferred_element_type=f32) * inv_sqrt_d
        s = s - jnp.max(s, axis=-1, keepdims=True)
        p = jnp.exp(s)
        p = p * pl.reciprocal(jnp.sum(p, axis=-1, keepdims=True), approx=True)
        ctx_heads.append(jnp.einsum('nts,nsd->ntd', p.astype(bf16), vh,
                                    preferred_element_type=f32))
    ctx2d = jnp.concatenate(ctx_heads, axis=-1).reshape(NT, cout)
    a2d = jnp.dot(ctx2d.astype(bf16), wo_ref[...],
                  preferred_element_type=f32) + bo_ref[...]         # (NT, Cout)

    # ---- ATCN: temporal (tau x 1) conv, SAME padding, folded bias+BN + ReLU
    pad = tau // 2
    a3 = a2d.reshape(N, T, cout)
    zpad = jnp.zeros((N, pad, cout), f32)
    ap = jnp.concatenate([zpad, a3, zpad], axis=1)                  # (N, T+2p, C)
    conv2d = jnp.zeros((NT, cout), f32)
    for dt in range(tau):                                           # static unroll
        sl = ap[:, dt:dt + T, :].reshape(NT, cout).astype(bf16)
        conv2d = conv2d + jnp.dot(sl, wt_ref[dt], preferred_element_type=f32)
    conv2d = jnp.maximum(conv2d + sh2_ref[...], 0.0)

    # ---- back to NCHW layout: lane-dense (Cout, T*N) store -----------------
    out3 = (conv2d + res2d).reshape(N, T, cout)
    out_tnc = jnp.stack([out3[:, t, :] for t in range(T)], axis=0)  # (T, N, C)
    out_ref[0] = out_tnc.reshape(NT, cout).T.astype(out_ref.dtype)  # (Cout, T*N)


# ----------------------------------------------------------------------------
# Wrapper: NCHW in / NCHW out; only free reshapes at the boundary.
# ----------------------------------------------------------------------------
def msst_block_pallas(x_nchw, params, *, num_heads=4, tau=9):
    B, Cin, T, N = x_nchw.shape
    Cout = params['wo'].shape[0]
    Dh = Cout // num_heads
    TN = T * N
    x_flat = x_nchw.reshape(B, Cin, TN).astype(jnp.float32)   # free reshape

    kernel = functools.partial(_msst_kernel, num_heads=num_heads, head_dim=Dh,
                               tau=tau, seq_len=T, num_nodes=N, cout=Cout)

    weight_args = (params['a_sum'], params['w1'], params['sh1'],
                   params['wqkv'], params['bqkv'], params['wo'], params['bo'],
                   params['wt'], params['sh2'], params['wr'], params['br'])

    def rep(a):                      # replicated (grid-invariant) weight spec
        nd = a.ndim
        return pl.BlockSpec(a.shape, lambda b, nd=nd: (0,) * nd)

    in_specs = [pl.BlockSpec((1, Cin, TN), lambda b: (b, 0, 0))]
    in_specs += [rep(a) for a in weight_args]

    out = pl.pallas_call(
        kernel,
        out_shape=jax.ShapeDtypeStruct((B, Cout, TN), jnp.float32),
        grid_spec=pltpu.PrefetchScalarGridSpec(
            num_scalar_prefetch=0,
            grid=(B,),
            in_specs=in_specs,
            out_specs=pl.BlockSpec((1, Cout, TN), lambda b: (b, 0, 0)),
        ),
        compiler_params=pltpu.CompilerParams(
            dimension_semantics=("parallel",),
            vmem_limit_bytes=32 * 1024 * 1024),
    )(x_flat, *weight_args)
    return out.reshape(B, Cout, T, N)                          # free reshape


# ----------------------------------------------------------------------------
# Deterministic parameter init (synthetic; matches module __init__ shapes).
# Kernel params are pre-transposed / bias+BN folded / bf16 for the MXU.
# ----------------------------------------------------------------------------
def init_params(key, Cin, Cout, N, num_heads=4, tau=9, k=8):
    f32 = jnp.float32
    bf16 = jnp.bfloat16
    keys = jax.random.split(key, 16)

    def w(kk, shape, scale=0.1):
        return scale * jax.random.normal(kk, shape, f32)

    # fixed graph adjacency (binary, symmetric)
    A = (jax.random.uniform(keys[0], (N, N)) < 0.3).astype(f32)
    A = jnp.maximum(A, A.T)
    a_sum = build_a_sum(A, k)

    w1 = w(keys[1], (Cout, Cin)); b1 = w(keys[2], (Cout,))
    g1 = 1.0 + w(keys[3], (Cout,)); be1 = w(keys[4], (Cout,))
    in_proj_w = w(keys[5], (3 * Cout, Cout)); in_proj_b = w(keys[6], (3 * Cout,))
    wo = w(keys[7], (Cout, Cout)); bo = w(keys[8], (Cout,))
    wt = w(keys[9], (Cout, Cout, tau))          # conv weight [:, :, dt, 0] squeezed
    bt = w(keys[10], (Cout,))
    g2 = 1.0 + w(keys[11], (Cout,)); be2 = w(keys[12], (Cout,))
    wr = w(keys[13], (Cout, Cin)); br = w(keys[14], (Cout,))

    eps = 1e-5                                   # BN eval fold (mean=0, var=1)
    s1 = g1 / jnp.sqrt(1.0 + eps); sh1 = be1
    s2 = g2 / jnp.sqrt(1.0 + eps); sh2 = be2

    wq, wk, wv = in_proj_w[:Cout], in_proj_w[Cout:2 * Cout], in_proj_w[2 * Cout:]
    bq, bk, bv = in_proj_b[:Cout], in_proj_b[Cout:2 * Cout], in_proj_b[2 * Cout:]

    kparams = dict(
        a_sum=a_sum.astype(bf16),
        # SGCN 1x1 conv: weight pre-transposed to (Cin, Cout), BN scale folded
        # in; bias folded into the shift.
        w1=(w1 * s1[:, None]).T.astype(bf16),
        sh1=(b1 * s1 + sh1).reshape(1, Cout),
        # fused QKV in-projection (Cout, 3*Cout)
        wqkv=in_proj_w.T.astype(bf16),
        bqkv=in_proj_b.reshape(1, 3 * Cout),
        # fused attention output projection
        wo=wo.T.astype(bf16),
        bo=bo.reshape(1, Cout),
        # temporal conv taps (tau, Cout_in, Cout_out), BN scale folded in
        wt=jnp.transpose(wt * s2[:, None, None], (2, 1, 0)).astype(bf16),
        sh2=(bt * s2 + sh2).reshape(1, Cout),
        # residual 1x1 conv
        wr=wr.T.astype(bf16),
        br=br.reshape(1, Cout),
    )
    ref_params = dict(a_sum=a_sum, w1=w1, b1=b1, s1=s1, sh1=sh1,
                      wq=wq, wk=wk, wv=wv, bq=bq, bk=bk, bv=bv, wo=wo, bo=bo,
                      wt=wt, bt=bt, s2=s2, sh2=sh2, wr=wr, br=br)
    return kparams, ref_params


# ----------------------------------------------------------------------------
# Pure-JAX f32 reference (mirrors the PyTorch forward in eval mode), NCHW io.
# ----------------------------------------------------------------------------
def msst_block_ref(x, p, *, num_heads=4, tau=9):
    B, Cin, T, N = x.shape
    Cout = p['w1'].shape[0]
    Dh = Cout // num_heads
    res = jnp.einsum('oc,bctn->botn', p['wr'], x) + p['br'][None, :, None, None]
    y = jnp.einsum('nm,bctm->bctn', p['a_sum'], x)
    z = jnp.einsum('oc,bctn->botn', p['w1'], y) + p['b1'][None, :, None, None]
    z = jnp.maximum(z * p['s1'][None, :, None, None]
                    + p['sh1'][None, :, None, None], 0.0)
    s = jnp.transpose(z, (0, 3, 2, 1))                            # (B, N, T, C)
    q = (jnp.einsum('bntc,ec->bnte', s, p['wq']) + p['bq']).reshape(B, N, T, num_heads, Dh)
    k = (jnp.einsum('bntc,ec->bnte', s, p['wk']) + p['bk']).reshape(B, N, T, num_heads, Dh)
    v = (jnp.einsum('bntc,ec->bnte', s, p['wv']) + p['bv']).reshape(B, N, T, num_heads, Dh)
    sc = jnp.einsum('bnthd,bnshd->bnhts', q, k) / jnp.sqrt(jnp.float32(Dh))
    att = jax.nn.softmax(sc, axis=-1)
    ctx = jnp.einsum('bnhts,bnshd->bnthd', att, v).reshape(B, N, T, Cout)
    a = jnp.einsum('bntc,oc->bnto', ctx, p['wo']) + p['bo']
    at = jnp.transpose(a, (0, 3, 2, 1))                           # (B, Cout, T, N)
    pad = tau // 2
    ap = jnp.pad(at, ((0, 0), (0, 0), (pad, pad), (0, 0)))
    conv = sum(jnp.einsum('oc,bctn->botn', p['wt'][:, :, dt],
                          ap[:, :, dt:dt + T, :]) for dt in range(tau))
    conv = conv + p['bt'][None, :, None, None]
    conv = jnp.maximum(conv * p['s2'][None, :, None, None]
                       + p['sh2'][None, :, None, None], 0.0)
    return conv + res


if __name__ == "__main__":
    key = jax.random.PRNGKey(0)
    # small shapes consistent with the module; num_heads=4 divides Cout,
    # and T*N = 128 so both input and output slabs are exactly lane-dense.
    B, Cin, Cout, T, N = 2, 4, 8, 16, 8
    num_heads, tau = 4, 9
    kx, kp = jax.random.split(key)
    x = jax.random.normal(kx, (B, Cin, T, N), jnp.float32)
    kparams, ref_params = init_params(kp, Cin, Cout, N, num_heads=num_heads, tau=tau)

    out = msst_block_pallas(x, kparams, num_heads=num_heads, tau=tau)
    out = jax.block_until_ready(out)
    assert out.shape == (B, Cout, T, N)

    ref = msst_block_ref(x, ref_params, num_heads=num_heads, tau=tau)
    err = float(jnp.max(jnp.abs(out - ref)))
    scale = float(jnp.max(jnp.abs(ref)))
    # bf16 matmul operands (f32 accumulation) + approx reciprocal => bf16-level
    # tolerance vs the f32 reference; structural bugs give O(1) relative error.
    if err > 1e-2 + 2e-2 * scale:
        raise SystemExit(f"mismatch vs reference: max abs err = {err} "
                         f"(ref max abs = {scale})")
    print("KERNEL_OK")
</pallas_src>

<mosaic_0001>
module attributes {stable_mosaic.version = 11 : i64} {
  func.func @_msst_kernel(%arg0: i32, %arg1: memref<1x4x128xf32, #tpu.memory_space<vmem>>, %arg2: memref<8x8xbf16, #tpu.memory_space<vmem>>, %arg3: memref<4x8xbf16, #tpu.memory_space<vmem>>, %arg4: memref<1x8xf32, #tpu.memory_space<vmem>>, %arg5: memref<8x24xbf16, #tpu.memory_space<vmem>>, %arg6: memref<1x24xf32, #tpu.memory_space<vmem>>, %arg7: memref<8x8xbf16, #tpu.memory_space<vmem>>, %arg8: memref<1x8xf32, #tpu.memory_space<vmem>>, %arg9: memref<9x8x8xbf16, #tpu.memory_space<vmem>>, %arg10: memref<1x8xf32, #tpu.memory_space<vmem>>, %arg11: memref<4x8xbf16, #tpu.memory_space<vmem>>, %arg12: memref<1x8xf32, #tpu.memory_space<vmem>>, %arg13: memref<1x8x128xf32, #tpu.memory_space<vmem>>) attributes {dimension_semantics = [#tpu.dimension_semantics<parallel>], iteration_bounds = array<i64: 2>, scalar_prefetch = 0 : i64, scratch_operands = 0 : i64, tpu.core_type = #tpu.core_type<tc>, window_params = [{transform_indices = @transform_0, window_bounds = array<i64: 1, 4, 128>}, {pipeline_mode = #tpu.pipeline_mode<synchronous>, transform_indices = @transform_1, window_bounds = array<i64: 8, 8>}, {pipeline_mode = #tpu.pipeline_mode<synchronous>, transform_indices = @transform_2, window_bounds = array<i64: 4, 8>}, {pipeline_mode = #tpu.pipeline_mode<synchronous>, transform_indices = @transform_3, window_bounds = array<i64: 1, 8>}, {pipeline_mode = #tpu.pipeline_mode<synchronous>, transform_indices = @transform_4, window_bounds = array<i64: 8, 24>}, {pipeline_mode = #tpu.pipeline_mode<synchronous>, transform_indices = @transform_5, window_bounds = array<i64: 1, 24>}, {pipeline_mode = #tpu.pipeline_mode<synchronous>, transform_indices = @transform_6, window_bounds = array<i64: 8, 8>}, {pipeline_mode = #tpu.pipeline_mode<synchronous>, transform_indices = @transform_7, window_bounds = array<i64: 1, 8>}, {pipeline_mode = #tpu.pipeline_mode<synchronous>, transform_indices = @transform_8, window_bounds = array<i64: 9, 8, 8>}, {pipeline_mode = #tpu.pipeline_mode<synchronous>, transform_indices = @transform_9, window_bounds = array<i64: 1, 8>}, {pipeline_mode = #tpu.pipeline_mode<synchronous>, transform_indices = @transform_10, window_bounds = array<i64: 4, 8>}, {pipeline_mode = #tpu.pipeline_mode<synchronous>, transform_indices = @transform_11, window_bounds = array<i64: 1, 8>}, {transform_indices = @transform_12, window_bounds = array<i64: 1, 8, 128>}]} {
    %c0 = arith.constant 0 : index
    %c0_0 = arith.constant 0 : index
    %c0_1 = arith.constant 0 : index
    %0 = vector.load %arg1[%c0, %c0_0, %c0_1] : memref<1x4x128xf32, #tpu.memory_space<vmem>>, vector<1x4x128xf32>
    %1 = vector.shape_cast %0 : vector<1x4x128xf32> to vector<4x128xf32>
    %2 = tpu.transpose %1, [1, 0] : vector<4x128xf32> -> vector<128x4xf32>
    %3 = vector.shape_cast %2 : vector<128x4xf32> to vector<16x8x4xf32>
    %4 = vector.extract_strided_slice %3 {offsets = [0, 0, 0], sizes = [16, 1, 4], strides = [1, 1, 1]} : vector<16x8x4xf32> to vector<16x1x4xf32>
    %5 = vector.shape_cast %4 : vector<16x1x4xf32> to vector<16x4xf32>
    %6 = vector.extract_strided_slice %3 {offsets = [0, 1, 0], sizes = [16, 1, 4], strides = [1, 1, 1]} : vector<16x8x4xf32> to vector<16x1x4xf32>
    %7 = vector.shape_cast %6 : vector<16x1x4xf32> to vector<16x4xf32>
    %8 = vector.extract_strided_slice %3 {offsets = [0, 2, 0], sizes = [16, 1, 4], strides = [1, 1, 1]} : vector<16x8x4xf32> to vector<16x1x4xf32>
    %9 = vector.shape_cast %8 : vector<16x1x4xf32> to vector<16x4xf32>
    %10 = vector.extract_strided_slice %3 {offsets = [0, 3, 0], sizes = [16, 1, 4], strides = [1, 1, 1]} : vector<16x8x4xf32> to vector<16x1x4xf32>
    %11 = vector.shape_cast %10 : vector<16x1x4xf32> to vector<16x4xf32>
    %12 = vector.extract_strided_slice %3 {offsets = [0, 4, 0], sizes = [16, 1, 4], strides = [1, 1, 1]} : vector<16x8x4xf32> to vector<16x1x4xf32>
    %13 = vector.shape_cast %12 : vector<16x1x4xf32> to vector<16x4xf32>
    %14 = vector.extract_strided_slice %3 {offsets = [0, 5, 0], sizes = [16, 1, 4], strides = [1, 1, 1]} : vector<16x8x4xf32> to vector<16x1x4xf32>
    %15 = vector.shape_cast %14 : vector<16x1x4xf32> to vector<16x4xf32>
    %16 = vector.extract_strided_slice %3 {offsets = [0, 6, 0], sizes = [16, 1, 4], strides = [1, 1, 1]} : vector<16x8x4xf32> to vector<16x1x4xf32>
    %17 = vector.shape_cast %16 : vector<16x1x4xf32> to vector<16x4xf32>
    %18 = vector.extract_strided_slice %3 {offsets = [0, 7, 0], sizes = [16, 1, 4], strides = [1, 1, 1]} : vector<16x8x4xf32> to vector<16x1x4xf32>
    %19 = vector.shape_cast %18 : vector<16x1x4xf32> to vector<16x4xf32>
    %20 = vector.shape_cast %5 : vector<16x4xf32> to vector<1x16x4xf32>
    %21 = vector.shape_cast %7 : vector<16x4xf32> to vector<1x16x4xf32>
    %22 = vector.shape_cast %9 : vector<16x4xf32> to vector<1x16x4xf32>
    %23 = vector.shape_cast %11 : vector<16x4xf32> to vector<1x16x4xf32>
    %24 = vector.shape_cast %13 : vector<16x4xf32> to vector<1x16x4xf32>
    %25 = vector.shape_cast %15 : vector<16x4xf32> to vector<1x16x4xf32>
    %26 = vector.shape_cast %17 : vector<16x4xf32> to vector<1x16x4xf32>
    %27 = vector.shape_cast %19 : vector<16x4xf32> to vector<1x16x4xf32>
    %28 = tpu.concatenate %20, %21, %22, %23, %24, %25, %26, %27 in 0 : vector<1x16x4xf32>, vector<1x16x4xf32>, vector<1x16x4xf32>, vector<1x16x4xf32>, vector<1x16x4xf32>, vector<1x16x4xf32>, vector<1x16x4xf32>, vector<1x16x4xf32> -> vector<8x16x4xf32>
    %29 = arith.truncf %28 : vector<8x16x4xf32> to vector<8x16x4xbf16>
    %30 = vector.shape_cast %29 : vector<8x16x4xbf16> to vector<128x4xbf16>
    %c0_2 = arith.constant 0 : index
    %c0_3 = arith.constant 0 : index
    %31 = vector.load %arg11[%c0_2, %c0_3] : memref<4x8xbf16, #tpu.memory_space<vmem>>, vector<4x8xbf16>
    %cst = arith.constant dense<0.000000e+00> : vector<128x8xf32>
    %32 = tpu.matmul %30, %31, %cst {dimension_numbers = #tpu.dot_dimension_numbers<[1], [0], [0], [1], [0, 0, 1, 1], [], []>} : vector<128x4xbf16>, vector<4x8xbf16>, vector<128x8xf32> -> vector<128x8xf32>
    %c0_4 = arith.constant 0 : index
    %c0_5 = arith.constant 0 : index
    %33 = vector.load %arg12[%c0_4, %c0_5] : memref<1x8xf32, #tpu.memory_space<vmem>>, vector<1x8xf32>
    %34 = vector.broadcast %33 : vector<1x8xf32> to vector<128x8xf32>
    %35 = arith.addf %32, %34 : vector<128x8xf32>
    %c0_6 = arith.constant 0 : index
    %c0_7 = arith.constant 0 : index
    %36 = vector.load %arg2[%c0_6, %c0_7] : memref<8x8xbf16, #tpu.memory_space<vmem>>, vector<8x8xbf16>
    "tpu.trace_start"() <{level = 10 : i32, message = "nm,mtc->ntc"}> : () -> ()
    %cst_8 = arith.constant dense<0.000000e+00> : vector<8x16x4xf32>
    %37 = tpu.matmul %36, %29, %cst_8 {dimension_numbers = #tpu.dot_dimension_numbers<[1], [0], [0], [1, 2], [0, 0, 1, 1, 1, 2], [], []>} : vector<8x8xbf16>, vector<8x16x4xbf16>, vector<8x16x4xf32> -> vector<8x16x4xf32>
    "tpu.trace_stop"() : () -> ()
    %38 = vector.shape_cast %37 : vector<8x16x4xf32> to vector<128x4xf32>
    %39 = arith.truncf %38 : vector<128x4xf32> to vector<128x4xbf16>
    %c0_9 = arith.constant 0 : index
    %c0_10 = arith.constant 0 : index
    %40 = vector.load %arg3[%c0_9, %c0_10] : memref<4x8xbf16, #tpu.memory_space<vmem>>, vector<4x8xbf16>
    %cst_11 = arith.constant dense<0.000000e+00> : vector<128x8xf32>
    %41 = tpu.matmul %39, %40, %cst_11 {dimension_numbers = #tpu.dot_dimension_numbers<[1], [0], [0], [1], [0, 0, 1, 1], [], []>} : vector<128x4xbf16>, vector<4x8xbf16>, vector<128x8xf32> -> vector<128x8xf32>
    %c0_12 = arith.constant 0 : index
    %c0_13 = arith.constant 0 : index
    %42 = vector.load %arg4[%c0_12, %c0_13] : memref<1x8xf32, #tpu.memory_space<vmem>>, vector<1x8xf32>
    %43 = vector.broadcast %42 : vector<1x8xf32> to vector<128x8xf32>
    %44 = arith.addf %41, %43 : vector<128x8xf32>
    %cst_14 = arith.constant 0.000000e+00 : f32
    %45 = vector.broadcast %cst_14 : f32 to vector<128x8xf32>
    %46 = arith.maximumf %44, %45 : vector<128x8xf32>
    %47 = arith.truncf %46 : vector<128x8xf32> to vector<128x8xbf16>
    %c0_15 = arith.constant 0 : index
    %c0_16 = arith.constant 0 : index
    %48 = vector.load %arg5[%c0_15, %c0_16] : memref<8x24xbf16, #tpu.memory_space<vmem>>, vector<8x24xbf16>
    %cst_17 = arith.constant dense<0.000000e+00> : vector<128x24xf32>
    %49 = tpu.matmul %47, %48, %cst_17 {dimension_numbers = #tpu.dot_dimension_numbers<[1], [0], [0], [1], [0, 0, 1, 1], [], []>} : vector<128x8xbf16>, vector<8x24xbf16>, vector<128x24xf32> -> vector<128x24xf32>
    %c0_18 = arith.constant 0 : index
    %c0_19 = arith.constant 0 : index
    %50 = vector.load %arg6[%c0_18, %c0_19] : memref<1x24xf32, #tpu.memory_space<vmem>>, vector<1x24xf32>
    %51 = vector.broadcast %50 : vector<1x24xf32> to vector<128x24xf32>
    %52 = arith.addf %49, %51 : vector<128x24xf32>
    %53 = vector.shape_cast %52 : vector<128x24xf32> to vector<8x16x24xf32>
    %cst_20 = arith.constant 2.000000e+00 : f32
    %54 = math.sqrt %cst_20 : f32
    %cst_21 = arith.constant 1.000000e+00 : f32
    %55 = arith.divf %cst_21, %54 : f32
    %56 = vector.extract_strided_slice %53 {offsets = [0, 0, 0], sizes = [8, 16, 2], strides = [1, 1, 1]} : vector<8x16x24xf32> to vector<8x16x2xf32>
    %57 = arith.truncf %56 : vector<8x16x2xf32> to vector<8x16x2xbf16>
    %58 = vector.extract_strided_slice %53 {offsets = [0, 0, 8], sizes = [8, 16, 2], strides = [1, 1, 1]} : vector<8x16x24xf32> to vector<8x16x2xf32>
    %59 = arith.truncf %58 : vector<8x16x2xf32> to vector<8x16x2xbf16>
    %60 = vector.extract_strided_slice %53 {offsets = [0, 0, 16], sizes = [8, 16, 2], strides = [1, 1, 1]} : vector<8x16x24xf32> to vector<8x16x2xf32>
    %61 = arith.truncf %60 : vector<8x16x2xf32> to vector<8x16x2xbf16>
    "tpu.trace_start"() <{level = 10 : i32, message = "ntd,nsd->nts"}> : () -> ()
    %cst_22 = arith.constant dense<0.000000e+00> : vector<8x16x16xf32>
    %62 = tpu.matmul %57, %59, %cst_22 {dimension_numbers = #tpu.dot_dimension_numbers<[2], [2], [1], [1], [0, 0, 0, 1, 1, 1], [0], [0]>} : vector<8x16x2xbf16>, vector<8x16x2xbf16>, vector<8x16x16xf32> -> vector<8x16x16xf32>
    "tpu.trace_stop"() : () -> ()
    %63 = vector.broadcast %55 : f32 to vector<8x16x16xf32>
    %64 = arith.mulf %62, %63 : vector<8x16x16xf32>
    %cst_23 = arith.constant dense<0xFF800000> : vector<8x16xf32>
    %65 = vector.multi_reduction <maximumf>, %64, %cst_23 [2] : vector<8x16x16xf32> to vector<8x16xf32>
    %66 = vector.shape_cast %65 : vector<8x16xf32> to vector<8x16x1xf32>
    %67 = vector.broadcast %66 : vector<8x16x1xf32> to vector<8x16x16xf32>
    %68 = arith.subf %64, %67 : vector<8x16x16xf32>
    %69 = math.exp %68 : vector<8x16x16xf32>
    %cst_24 = arith.constant dense<0.000000e+00> : vector<8x16xf32>
    %70 = vector.multi_reduction <add>, %69, %cst_24 [2] : vector<8x16x16xf32> to vector<8x16xf32>
    %71 = vector.shape_cast %70 : vector<8x16xf32> to vector<8x16x1xf32>
    %72 = tpu.reciprocal %71 {approx = true} : vector<8x16x1xf32> -> vector<8x16x1xf32>
    %73 = vector.broadcast %72 : vector<8x16x1xf32> to vector<8x16x16xf32>
    %74 = arith.mulf %69, %73 : vector<8x16x16xf32>
    %75 = arith.truncf %74 : vector<8x16x16xf32> to vector<8x16x16xbf16>
    "tpu.trace_start"() <{level = 10 : i32, message = "nts,nsd->ntd"}> : () -> ()
    %cst_25 = arith.constant dense<0.000000e+00> : vector<8x16x2xf32>
    %76 = tpu.matmul %75, %61, %cst_25 {dimension_numbers = #tpu.dot_dimension_numbers<[2], [1], [1], [2], [0, 0, 0, 1, 1, 2], [0], [0]>} : vector<8x16x16xbf16>, vector<8x16x2xbf16>, vector<8x16x2xf32> -> vector<8x16x2xf32>
    "tpu.trace_stop"() : () -> ()
    %77 = vector.extract_strided_slice %53 {offsets = [0, 0, 2], sizes = [8, 16, 2], strides = [1, 1, 1]} : vector<8x16x24xf32> to vector<8x16x2xf32>
    %78 = arith.truncf %77 : vector<8x16x2xf32> to vector<8x16x2xbf16>
    %79 = vector.extract_strided_slice %53 {offsets = [0, 0, 10], sizes = [8, 16, 2], strides = [1, 1, 1]} : vector<8x16x24xf32> to vector<8x16x2xf32>
    %80 = arith.truncf %79 : vector<8x16x2xf32> to vector<8x16x2xbf16>
    %81 = vector.extract_strided_slice %53 {offsets = [0, 0, 18], sizes = [8, 16, 2], strides = [1, 1, 1]} : vector<8x16x24xf32> to vector<8x16x2xf32>
    %82 = arith.truncf %81 : vector<8x16x2xf32> to vector<8x16x2xbf16>
    "tpu.trace_start"() <{level = 10 : i32, message = "ntd,nsd->nts"}> : () -> ()
    %cst_26 = arith.constant dense<0.000000e+00> : vector<8x16x16xf32>
    %83 = tpu.matmul %78, %80, %cst_26 {dimension_numbers = #tpu.dot_dimension_numbers<[2], [2], [1], [1], [0, 0, 0, 1, 1, 1], [0], [0]>} : vector<8x16x2xbf16>, vector<8x16x2xbf16>, vector<8x16x16xf32> -> vector<8x16x16xf32>
    "tpu.trace_stop"() : () -> ()
    %84 = vector.broadcast %55 : f32 to vector<8x16x16xf32>
    %85 = arith.mulf %83, %84 : vector<8x16x16xf32>
    %cst_27 = arith.constant dense<0xFF800000> : vector<8x16xf32>
    %86 = vector.multi_reduction <maximumf>, %85, %cst_27 [2] : vector<8x16x16xf32> to vector<8x16xf32>
    %87 = vector.shape_cast %86 : vector<8x16xf32> to vector<8x16x1xf32>
    %88 = vector.broadcast %87 : vector<8x16x1xf32> to vector<8x16x16xf32>
    %89 = arith.subf %85, %88 : vector<8x16x16xf32>
    %90 = math.exp %89 : vector<8x16x16xf32>
    %cst_28 = arith.constant dense<0.000000e+00> : vector<8x16xf32>
    %91 = vector.multi_reduction <add>, %90, %cst_28 [2] : vector<8x16x16xf32> to vector<8x16xf32>
    %92 = vector.shape_cast %91 : vector<8x16xf32> to vector<8x16x1xf32>
    %93 = tpu.reciprocal %92 {approx = true} : vector<8x16x1xf32> -> vector<8x16x1xf32>
    %94 = vector.broadcast %93 : vector<8x16x1xf32> to vector<8x16x16xf32>
    %95 = arith.mulf %90, %94 : vector<8x16x16xf32>
    %96 = arith.truncf %95 : vector<8x16x16xf32> to vector<8x16x16xbf16>
    "tpu.trace_start"() <{level = 10 : i32, message = "nts,nsd->ntd"}> : () -> ()
    %cst_29 = arith.constant dense<0.000000e+00> : vector<8x16x2xf32>
    %97 = tpu.matmul %96, %82, %cst_29 {dimension_numbers = #tpu.dot_dimension_numbers<[2], [1], [1], [2], [0, 0, 0, 1, 1, 2], [0], [0]>} : vector<8x16x16xbf16>, vector<8x16x2xbf16>, vector<8x16x2xf32> -> vector<8x16x2xf32>
    "tpu.trace_stop"() : () -> ()
    %98 = vector.extract_strided_slice %53 {offsets = [0, 0, 4], sizes = [8, 16, 2], strides = [1, 1, 1]} : vector<8x16x24xf32> to vector<8x16x2xf32>
    %99 = arith.truncf %98 : vector<8x16x2xf32> to vector<8x16x2xbf16>
    %100 = vector.extract_strided_slice %53 {offsets = [0, 0, 12], sizes = [8, 16, 2], strides = [1, 1, 1]} : vector<8x16x24xf32> to vector<8x16x2xf32>
    %101 = arith.truncf %100 : vector<8x16x2xf32> to vector<8x16x2xbf16>
    %102 = vector.extract_strided_slice %53 {offsets = [0, 0, 20], sizes = [8, 16, 2], strides = [1, 1, 1]} : vector<8x16x24xf32> to vector<8x16x2xf32>
    %103 = arith.truncf %102 : vector<8x16x2xf32> to vector<8x16x2xbf16>
    "tpu.trace_start"() <{level = 10 : i32, message = "ntd,nsd->nts"}> : () -> ()
    %cst_30 = arith.constant dense<0.000000e+00> : vector<8x16x16xf32>
    %104 = tpu.matmul %99, %101, %cst_30 {dimension_numbers = #tpu.dot_dimension_numbers<[2], [2], [1], [1], [0, 0, 0, 1, 1, 1], [0], [0]>} : vector<8x16x2xbf16>, vector<8x16x2xbf16>, vector<8x16x16xf32> -> vector<8x16x16xf32>
    "tpu.trace_stop"() : () -> ()
    %105 = vector.broadcast %55 : f32 to vector<8x16x16xf32>
    %106 = arith.mulf %104, %105 : vector<8x16x16xf32>
    %cst_31 = arith.constant dense<0xFF800000> : vector<8x16xf32>
    %107 = vector.multi_reduction <maximumf>, %106, %cst_31 [2] : vector<8x16x16xf32> to vector<8x16xf32>
    %108 = vector.shape_cast %107 : vector<8x16xf32> to vector<8x16x1xf32>
    %109 = vector.broadcast %108 : vector<8x16x1xf32> to vector<8x16x16xf32>
    %110 = arith.subf %106, %109 : vector<8x16x16xf32>
    %111 = math.exp %110 : vector<8x16x16xf32>
    %cst_32 = arith.constant dense<0.000000e+00> : vector<8x16xf32>
    %112 = vector.multi_reduction <add>, %111, %cst_32 [2] : vector<8x16x16xf32> to vector<8x16xf32>
    %113 = vector.shape_cast %112 : vector<8x16xf32> to vector<8x16x1xf32>
    %114 = tpu.reciprocal %113 {approx = true} : vector<8x16x1xf32> -> vector<8x16x1xf32>
    %115 = vector.broadcast %114 : vector<8x16x1xf32> to vector<8x16x16xf32>
    %116 = arith.mulf %111, %115 : vector<8x16x16xf32>
    %117 = arith.truncf %116 : vector<8x16x16xf32> to vector<8x16x16xbf16>
    "tpu.trace_start"() <{level = 10 : i32, message = "nts,nsd->ntd"}> : () -> ()
    %cst_33 = arith.constant dense<0.000000e+00> : vector<8x16x2xf32>
    %118 = tpu.matmul %117, %103, %cst_33 {dimension_numbers = #tpu.dot_dimension_numbers<[2], [1], [1], [2], [0, 0, 0, 1, 1, 2], [0], [0]>} : vector<8x16x16xbf16>, vector<8x16x2xbf16>, vector<8x16x2xf32> -> vector<8x16x2xf32>
    "tpu.trace_stop"() : () -> ()
    %119 = vector.extract_strided_slice %53 {offsets = [0, 0, 6], sizes = [8, 16, 2], strides = [1, 1, 1]} : vector<8x16x24xf32> to vector<8x16x2xf32>
    %120 = arith.truncf %119 : vector<8x16x2xf32> to vector<8x16x2xbf16>
    %121 = vector.extract_strided_slice %53 {offsets = [0, 0, 14], sizes = [8, 16, 2], strides = [1, 1, 1]} : vector<8x16x24xf32> to vector<8x16x2xf32>
    %122 = arith.truncf %121 : vector<8x16x2xf32> to vector<8x16x2xbf16>
    %123 = vector.extract_strided_slice %53 {offsets = [0, 0, 22], sizes = [8, 16, 2], strides = [1, 1, 1]} : vector<8x16x24xf32> to vector<8x16x2xf32>
    %124 = arith.truncf %123 : vector<8x16x2xf32> to vector<8x16x2xbf16>
    "tpu.trace_start"() <{level = 10 : i32, message = "ntd,nsd->nts"}> : () -> ()
    %cst_34 = arith.constant dense<0.000000e+00> : vector<8x16x16xf32>
    %125 = tpu.matmul %120, %122, %cst_34 {dimension_numbers = #tpu.dot_dimension_numbers<[2], [2], [1], [1], [0, 0, 0, 1, 1, 1], [0], [0]>} : vector<8x16x2xbf16>, vector<8x16x2xbf16>, vector<8x16x16xf32> -> vector<8x16x16xf32>
    "tpu.trace_stop"() : () -> ()
    %126 = vector.broadcast %55 : f32 to vector<8x16x16xf32>
    %127 = arith.mulf %125, %126 : vector<8x16x16xf32>
    %cst_35 = arith.constant dense<0xFF800000> : vector<8x16xf32>
    %128 = vector.multi_reduction <maximumf>, %127, %cst_35 [2] : vector<8x16x16xf32> to vector<8x16xf32>
    %129 = vector.shape_cast %128 : vector<8x16xf32> to vector<8x16x1xf32>
    %130 = vector.broadcast %129 : vector<8x16x1xf32> to vector<8x16x16xf32>
    %131 = arith.subf %127, %130 : vector<8x16x16xf32>
    %132 = math.exp %131 : vector<8x16x16xf32>
    %cst_36 = arith.constant dense<0.000000e+00> : vector<8x16xf32>
    %133 = vector.multi_reduction <add>, %132, %cst_36 [2] : vector<8x16x16xf32> to vector<8x16xf32>
    %134 = vector.shape_cast %133 : vector<8x16xf32> to vector<8x16x1xf32>
    %135 = tpu.reciprocal %134 {approx = true} : vector<8x16x1xf32> -> vector<8x16x1xf32>
    %136 = vector.broadcast %135 : vector<8x16x1xf32> to vector<8x16x16xf32>
    %137 = arith.mulf %132, %136 : vector<8x16x16xf32>
    %138 = arith.truncf %137 : vector<8x16x16xf32> to vector<8x16x16xbf16>
    "tpu.trace_start"() <{level = 10 : i32, message = "nts,nsd->ntd"}> : () -> ()
    %cst_37 = arith.constant dense<0.000000e+00> : vector<8x16x2xf32>
    %139 = tpu.matmul %138, %124, %cst_37 {dimension_numbers = #tpu.dot_dimension_numbers<[2], [1], [1], [2], [0, 0, 0, 1, 1, 2], [0], [0]>} : vector<8x16x16xbf16>, vector<8x16x2xbf16>, vector<8x16x2xf32> -> vector<8x16x2xf32>
    "tpu.trace_stop"() : () -> ()
    %140 = tpu.concatenate %76, %97, %118, %139 in 2 : vector<8x16x2xf32>, vector<8x16x2xf32>, vector<8x16x2xf32>, vector<8x16x2xf32> -> vector<8x16x8xf32>
    %141 = vector.shape_cast %140 : vector<8x16x8xf32> to vector<128x8xf32>
    %142 = arith.truncf %141 : vector<128x8xf32> to vector<128x8xbf16>
    %c0_38 = arith.constant 0 : index
    %c0_39 = arith.constant 0 : index
    %143 = vector.load %arg7[%c0_38, %c0_39] : memref<8x8xbf16, #tpu.memory_space<vmem>>, vector<8x8xbf16>
    %cst_40 = arith.constant dense<0.000000e+00> : vector<128x8xf32>
    %144 = tpu.matmul %142, %143, %cst_40 {dimension_numbers = #tpu.dot_dimension_numbers<[1], [0], [0], [1], [0, 0, 1, 1], [], []>} : vector<128x8xbf16>, vector<8x8xbf16>, vector<128x8xf32> -> vector<128x8xf32>
    %c0_41 = arith.constant 0 : index
    %c0_42 = arith.constant 0 : index
    %145 = vector.load %arg8[%c0_41, %c0_42] : memref<1x8xf32, #tpu.memory_space<vmem>>, vector<1x8xf32>
    %146 = vector.broadcast %145 : vector<1x8xf32> to vector<128x8xf32>
    %147 = arith.addf %144, %146 : vector<128x8xf32>
    %148 = vector.shape_cast %147 : vector<128x8xf32> to vector<8x16x8xf32>
    %cst_43 = arith.constant 0.000000e+00 : f32
    %149 = vector.broadcast %cst_43 : f32 to vector<8x4x8xf32>
    %150 = tpu.concatenate %149, %148, %149 in 1 : vector<8x4x8xf32>, vector<8x16x8xf32>, vector<8x4x8xf32> -> vector<8x24x8xf32>
    %cst_44 = arith.constant 0.000000e+00 : f32
    %151 = vector.broadcast %cst_44 : f32 to vector<128x8xf32>
    %152 = vector.extract_strided_slice %150 {offsets = [0, 0, 0], sizes = [8, 16, 8], strides = [1, 1, 1]} : vector<8x24x8xf32> to vector<8x16x8xf32>
    %153 = vector.shape_cast %152 : vector<8x16x8xf32> to vector<128x8xf32>
    %154 = arith.truncf %153 : vector<128x8xf32> to vector<128x8xbf16>
    %c0_45 = arith.constant 0 : index
    %c0_46 = arith.constant 0 : index
    %c0_47 = arith.constant 0 : index
    %155 = vector.load %arg9[%c0_45, %c0_46, %c0_47] : memref<9x8x8xbf16, #tpu.memory_space<vmem>>, vector<1x8x8xbf16>
    %156 = vector.shape_cast %155 : vector<1x8x8xbf16> to vector<8x8xbf16>
    %cst_48 = arith.constant dense<0.000000e+00> : vector<128x8xf32>
    %157 = tpu.matmul %154, %156, %cst_48 {dimension_numbers = #tpu.dot_dimension_numbers<[1], [0], [0], [1], [0, 0, 1, 1], [], []>} : vector<128x8xbf16>, vector<8x8xbf16>, vector<128x8xf32> -> vector<128x8xf32>
    %158 = arith.addf %151, %157 : vector<128x8xf32>
    %159 = vector.extract_strided_slice %150 {offsets = [0, 1, 0], sizes = [8, 16, 8], strides = [1, 1, 1]} : vector<8x24x8xf32> to vector<8x16x8xf32>
    %160 = vector.shape_cast %159 : vector<8x16x8xf32> to vector<128x8xf32>
    %161 = arith.truncf %160 : vector<128x8xf32> to vector<128x8xbf16>
    %c1 = arith.constant 1 : index
    %c0_49 = arith.constant 0 : index
    %c0_50 = arith.constant 0 : index
    %162 = vector.load %arg9[%c1, %c0_49, %c0_50] : memref<9x8x8xbf16, #tpu.memory_space<vmem>>, vector<1x8x8xbf16>
    %163 = vector.shape_cast %162 : vector<1x8x8xbf16> to vector<8x8xbf16>
    %cst_51 = arith.constant dense<0.000000e+00> : vector<128x8xf32>
    %164 = tpu.matmul %161, %163, %cst_51 {dimension_numbers = #tpu.dot_dimension_numbers<[1], [0], [0], [1], [0, 0, 1, 1], [], []>} : vector<128x8xbf16>, vector<8x8xbf16>, vector<128x8xf32> -> vector<128x8xf32>
    %165 = arith.addf %158, %164 : vector<128x8xf32>
    %166 = vector.extract_strided_slice %150 {offsets = [0, 2, 0], sizes = [8, 16, 8], strides = [1, 1, 1]} : vector<8x24x8xf32> to vector<8x16x8xf32>
    %167 = vector.shape_cast %166 : vector<8x16x8xf32> to vector<128x8xf32>
    %168 = arith.truncf %167 : vector<128x8xf32> to vector<128x8xbf16>
    %c2 = arith.constant 2 : index
    %c0_52 = arith.constant 0 : index
    %c0_53 = arith.constant 0 : index
    %169 = vector.load %arg9[%c2, %c0_52, %c0_53] : memref<9x8x8xbf16, #tpu.memory_space<vmem>>, vector<1x8x8xbf16>
    %170 = vector.shape_cast %169 : vector<1x8x8xbf16> to vector<8x8xbf16>
    %cst_54 = arith.constant dense<0.000000e+00> : vector<128x8xf32>
    %171 = tpu.matmul %168, %170, %cst_54 {dimension_numbers = #tpu.dot_dimension_numbers<[1], [0], [0], [1], [0, 0, 1, 1], [], []>} : vector<128x8xbf16>, vector<8x8xbf16>, vector<128x8xf32> -> vector<128x8xf32>
    %172 = arith.addf %165, %171 : vector<128x8xf32>
    %173 = vector.extract_strided_slice %150 {offsets = [0, 3, 0], sizes = [8, 16, 8], strides = [1, 1, 1]} : vector<8x24x8xf32> to vector<8x16x8xf32>
    %174 = vector.shape_cast %173 : vector<8x16x8xf32> to vector<128x8xf32>
    %175 = arith.truncf %174 : vector<128x8xf32> to vector<128x8xbf16>
    %c3 = arith.constant 3 : index
    %c0_55 = arith.constant 0 : index
    %c0_56 = arith.constant 0 : index
    %176 = vector.load %arg9[%c3, %c0_55, %c0_56] : memref<9x8x8xbf16, #tpu.memory_space<vmem>>, vector<1x8x8xbf16>
    %177 = vector.shape_cast %176 : vector<1x8x8xbf16> to vector<8x8xbf16>
    %cst_57 = arith.constant dense<0.000000e+00> : vector<128x8xf32>
    %178 = tpu.matmul %175, %177, %cst_57 {dimension_numbers = #tpu.dot_dimension_numbers<[1], [0], [0], [1], [0, 0, 1, 1], [], []>} : vector<128x8xbf16>, vector<8x8xbf16>, vector<128x8xf32> -> vector<128x8xf32>
    %179 = arith.addf %172, %178 : vector<128x8xf32>
    %180 = vector.extract_strided_slice %150 {offsets = [0, 4, 0], sizes = [8, 16, 8], strides = [1, 1, 1]} : vector<8x24x8xf32> to vector<8x16x8xf32>
    %181 = vector.shape_cast %180 : vector<8x16x8xf32> to vector<128x8xf32>
    %182 = arith.truncf %181 : vector<128x8xf32> to vector<128x8xbf16>
    %c4 = arith.constant 4 : index
    %c0_58 = arith.constant 0 : index
    %c0_59 = arith.constant 0 : index
    %183 = vector.load %arg9[%c4, %c0_58, %c0_59] : memref<9x8x8xbf16, #tpu.memory_space<vmem>>, vector<1x8x8xbf16>
    %184 = vector.shape_cast %183 : vector<1x8x8xbf16> to vector<8x8xbf16>
    %cst_60 = arith.constant dense<0.000000e+00> : vector<128x8xf32>
    %185 = tpu.matmul %182, %184, %cst_60 {dimension_numbers = #tpu.dot_dimension_numbers<[1], [0], [0], [1], [0, 0, 1, 1], [], []>} : vector<128x8xbf16>, vector<8x8xbf16>, vector<128x8xf32> -> vector<128x8xf32>
    %186 = arith.addf %179, %185 : vector<128x8xf32>
    %187 = vector.extract_strided_slice %150 {offsets = [0, 5, 0], sizes = [8, 16, 8], strides = [1, 1, 1]} : vector<8x24x8xf32> to vector<8x16x8xf32>
    %188 = vector.shape_cast %187 : vector<8x16x8xf32> to vector<128x8xf32>
    %189 = arith.truncf %188 : vector<128x8xf32> to vector<128x8xbf16>
    %c5 = arith.constant 5 : index
    %c0_61 = arith.constant 0 : index
    %c0_62 = arith.constant 0 : index
    %190 = vector.load %arg9[%c5, %c0_61, %c0_62] : memref<9x8x8xbf16, #tpu.memory_space<vmem>>, vector<1x8x8xbf16>
    %191 = vector.shape_cast %190 : vector<1x8x8xbf16> to vector<8x8xbf16>
    %cst_63 = arith.constant dense<0.000000e+00> : vector<128x8xf32>
    %192 = tpu.matmul %189, %191, %cst_63 {dimension_numbers = #tpu.dot_dimension_numbers<[1], [0], [0], [1], [0, 0, 1, 1], [], []>} : vector<128x8xbf16>, vector<8x8xbf16>, vector<128x8xf32> -> vector<128x8xf32>
    %193 = arith.addf %186, %192 : vector<128x8xf32>
    %194 = vector.extract_strided_slice %150 {offsets = [0, 6, 0], sizes = [8, 16, 8], strides = [1, 1, 1]} : vector<8x24x8xf32> to vector<8x16x8xf32>
    %195 = vector.shape_cast %194 : vector<8x16x8xf32> to vector<128x8xf32>
    %196 = arith.truncf %195 : vector<128x8xf32> to vector<128x8xbf16>
    %c6 = arith.constant 6 : index
    %c0_64 = arith.constant 0 : index
    %c0_65 = arith.constant 0 : index
    %197 = vector.load %arg9[%c6, %c0_64, %c0_65] : memref<9x8x8xbf16, #tpu.memory_space<vmem>>, vector<1x8x8xbf16>
    %198 = vector.shape_cast %197 : vector<1x8x8xbf16> to vector<8x8xbf16>
    %cst_66 = arith.constant dense<0.000000e+00> : vector<128x8xf32>
    %199 = tpu.matmul %196, %198, %cst_66 {dimension_numbers = #tpu.dot_dimension_numbers<[1], [0], [0], [1], [0, 0, 1, 1], [], []>} : vector<128x8xbf16>, vector<8x8xbf16>, vector<128x8xf32> -> vector<128x8xf32>
    %200 = arith.addf %193, %199 : vector<128x8xf32>
    %201 = vector.extract_strided_slice %150 {offsets = [0, 7, 0], sizes = [8, 16, 8], strides = [1, 1, 1]} : vector<8x24x8xf32> to vector<8x16x8xf32>
    %202 = vector.shape_cast %201 : vector<8x16x8xf32> to vector<128x8xf32>
    %203 = arith.truncf %202 : vector<128x8xf32> to vector<128x8xbf16>
    %c7 = arith.constant 7 : index
    %c0_67 = arith.constant 0 : index
    %c0_68 = arith.constant 0 : index
    %204 = vector.load %arg9[%c7, %c0_67, %c0_68] : memref<9x8x8xbf16, #tpu.memory_space<vmem>>, vector<1x8x8xbf16>
    %205 = vector.shape_cast %204 : vector<1x8x8xbf16> to vector<8x8xbf16>
    %cst_69 = arith.constant dense<0.000000e+00> : vector<128x8xf32>
    %206 = tpu.matmul %203, %205, %cst_69 {dimension_numbers = #tpu.dot_dimension_numbers<[1], [0], [0], [1], [0, 0, 1, 1], [], []>} : vector<128x8xbf16>, vector<8x8xbf16>, vector<128x8xf32> -> vector<128x8xf32>
    %207 = arith.addf %200, %206 : vector<128x8xf32>
    %208 = vector.extract_strided_slice %150 {offsets = [0, 8, 0], sizes = [8, 16, 8], strides = [1, 1, 1]} : vector<8x24x8xf32> to vector<8x16x8xf32>
    %209 = vector.shape_cast %208 : vector<8x16x8xf32> to vector<128x8xf32>
    %210 = arith.truncf %209 : vector<128x8xf32> to vector<128x8xbf16>
    %c8 = arith.constant 8 : index
    %c0_70 = arith.constant 0 : index
    %c0_71 = arith.constant 0 : index
    %211 = vector.load %arg9[%c8, %c0_70, %c0_71] : memref<9x8x8xbf16, #tpu.memory_space<vmem>>, vector<1x8x8xbf16>
    %212 = vector.shape_cast %211 : vector<1x8x8xbf16> to vector<8x8xbf16>
    %cst_72 = arith.constant dense<0.000000e+00> : vector<128x8xf32>
    %213 = tpu.matmul %210, %212, %cst_72 {dimension_numbers = #tpu.dot_dimension_numbers<[1], [0], [0], [1], [0, 0, 1, 1], [], []>} : vector<128x8xbf16>, vector<8x8xbf16>, vector<128x8xf32> -> vector<128x8xf32>
    %214 = arith.addf %207, %213 : vector<128x8xf32>
    %c0_73 = arith.constant 0 : index
    %c0_74 = arith.constant 0 : index
    %215 = vector.load %arg10[%c0_73, %c0_74] : memref<1x8xf32, #tpu.memory_space<vmem>>, vector<1x8xf32>
    %216 = vector.broadcast %215 : vector<1x8xf32> to vector<128x8xf32>
    %217 = arith.addf %214, %216 : vector<128x8xf32>
    %cst_75 = arith.constant 0.000000e+00 : f32
    %218 = vector.broadcast %cst_75 : f32 to vector<128x8xf32>
    %219 = arith.maximumf %217, %218 : vector<128x8xf32>
    %220 = arith.addf %219, %35 : vector<128x8xf32>
    %221 = vector.shape_cast %220 : vector<128x8xf32> to vector<8x16x8xf32>
    %222 = vector.extract_strided_slice %221 {offsets = [0, 0, 0], sizes = [8, 1, 8], strides = [1, 1, 1]} : vector<8x16x8xf32> to vector<8x1x8xf32>
    %223 = vector.shape_cast %222 : vector<8x1x8xf32> to vector<8x8xf32>
    %224 = vector.extract_strided_slice %221 {offsets = [0, 1, 0], sizes = [8, 1, 8], strides = [1, 1, 1]} : vector<8x16x8xf32> to vector<8x1x8xf32>
    %225 = vector.shape_cast %224 : vector<8x1x8xf32> to vector<8x8xf32>
    %226 = vector.extract_strided_slice %221 {offsets = [0, 2, 0], sizes = [8, 1, 8], strides = [1, 1, 1]} : vector<8x16x8xf32> to vector<8x1x8xf32>
    %227 = vector.shape_cast %226 : vector<8x1x8xf32> to vector<8x8xf32>
    %228 = vector.extract_strided_slice %221 {offsets = [0, 3, 0], sizes = [8, 1, 8], strides = [1, 1, 1]} : vector<8x16x8xf32> to vector<8x1x8xf32>
    %229 = vector.shape_cast %228 : vector<8x1x8xf32> to vector<8x8xf32>
    %230 = vector.extract_strided_slice %221 {offsets = [0, 4, 0], sizes = [8, 1, 8], strides = [1, 1, 1]} : vector<8x16x8xf32> to vector<8x1x8xf32>
    %231 = vector.shape_cast %230 : vector<8x1x8xf32> to vector<8x8xf32>
    %232 = vector.extract_strided_slice %221 {offsets = [0, 5, 0], sizes = [8, 1, 8], strides = [1, 1, 1]} : vector<8x16x8xf32> to vector<8x1x8xf32>
    %233 = vector.shape_cast %232 : vector<8x1x8xf32> to vector<8x8xf32>
    %234 = vector.extract_strided_slice %221 {offsets = [0, 6, 0], sizes = [8, 1, 8], strides = [1, 1, 1]} : vector<8x16x8xf32> to vector<8x1x8xf32>
    %235 = vector.shape_cast %234 : vector<8x1x8xf32> to vector<8x8xf32>
    %236 = vector.extract_strided_slice %221 {offsets = [0, 7, 0], sizes = [8, 1, 8], strides = [1, 1, 1]} : vector<8x16x8xf32> to vector<8x1x8xf32>
    %237 = vector.shape_cast %236 : vector<8x1x8xf32> to vector<8x8xf32>
    %238 = vector.extract_strided_slice %221 {offsets = [0, 8, 0], sizes = [8, 1, 8], strides = [1, 1, 1]} : vector<8x16x8xf32> to vector<8x1x8xf32>
    %239 = vector.shape_cast %238 : vector<8x1x8xf32> to vector<8x8xf32>
    %240 = vector.extract_strided_slice %221 {offsets = [0, 9, 0], sizes = [8, 1, 8], strides = [1, 1, 1]} : vector<8x16x8xf32> to vector<8x1x8xf32>
    %241 = vector.shape_cast %240 : vector<8x1x8xf32> to vector<8x8xf32>
    %242 = vector.extract_strided_slice %221 {offsets = [0, 10, 0], sizes = [8, 1, 8], strides = [1, 1, 1]} : vector<8x16x8xf32> to vector<8x1x8xf32>
    %243 = vector.shape_cast %242 : vector<8x1x8xf32> to vector<8x8xf32>
    %244 = vector.extract_strided_slice %221 {offsets = [0, 11, 0], sizes = [8, 1, 8], strides = [1, 1, 1]} : vector<8x16x8xf32> to vector<8x1x8xf32>
    %245 = vector.shape_cast %244 : vector<8x1x8xf32> to vector<8x8xf32>
    %246 = vector.extract_strided_slice %221 {offsets = [0, 12, 0], sizes = [8, 1, 8], strides = [1, 1, 1]} : vector<8x16x8xf32> to vector<8x1x8xf32>
    %247 = vector.shape_cast %246 : vector<8x1x8xf32> to vector<8x8xf32>
    %248 = vector.extract_strided_slice %221 {offsets = [0, 13, 0], sizes = [8, 1, 8], strides = [1, 1, 1]} : vector<8x16x8xf32> to vector<8x1x8xf32>
    %249 = vector.shape_cast %248 : vector<8x1x8xf32> to vector<8x8xf32>
    %250 = vector.extract_strided_slice %221 {offsets = [0, 14, 0], sizes = [8, 1, 8], strides = [1, 1, 1]} : vector<8x16x8xf32> to vector<8x1x8xf32>
    %251 = vector.shape_cast %250 : vector<8x1x8xf32> to vector<8x8xf32>
    %252 = vector.extract_strided_slice %221 {offsets = [0, 15, 0], sizes = [8, 1, 8], strides = [1, 1, 1]} : vector<8x16x8xf32> to vector<8x1x8xf32>
    %253 = vector.shape_cast %252 : vector<8x1x8xf32> to vector<8x8xf32>
    %254 = vector.shape_cast %223 : vector<8x8xf32> to vector<1x8x8xf32>
    %255 = vector.shape_cast %225 : vector<8x8xf32> to vector<1x8x8xf32>
    %256 = vector.shape_cast %227 : vector<8x8xf32> to vector<1x8x8xf32>
    %257 = vector.shape_cast %229 : vector<8x8xf32> to vector<1x8x8xf32>
    %258 = vector.shape_cast %231 : vector<8x8xf32> to vector<1x8x8xf32>
    %259 = vector.shape_cast %233 : vector<8x8xf32> to vector<1x8x8xf32>
    %260 = vector.shape_cast %235 : vector<8x8xf32> to vector<1x8x8xf32>
    %261 = vector.shape_cast %237 : vector<8x8xf32> to vector<1x8x8xf32>
    %262 = vector.shape_cast %239 : vector<8x8xf32> to vector<1x8x8xf32>
    %263 = vector.shape_cast %241 : vector<8x8xf32> to vector<1x8x8xf32>
    %264 = vector.shape_cast %243 : vector<8x8xf32> to vector<1x8x8xf32>
    %265 = vector.shape_cast %245 : vector<8x8xf32> to vector<1x8x8xf32>
    %266 = vector.shape_cast %247 : vector<8x8xf32> to vector<1x8x8xf32>
    %267 = vector.shape_cast %249 : vector<8x8xf32> to vector<1x8x8xf32>
    %268 = vector.shape_cast %251 : vector<8x8xf32> to vector<1x8x8xf32>
    %269 = vector.shape_cast %253 : vector<8x8xf32> to vector<1x8x8xf32>
    %270 = tpu.concatenate %254, %255, %256, %257, %258, %259, %260, %261, %262, %263, %264, %265, %266, %267, %268, %269 in 0 : vector<1x8x8xf32>, vector<1x8x8xf32>, vector<1x8x8xf32>, vector<1x8x8xf32>, vector<1x8x8xf32>, vector<1x8x8xf32>, vector<1x8x8xf32>, vector<1x8x8xf32>, vector<1x8x8xf32>, vector<1x8x8xf32>, vector<1x8x8xf32>, vector<1x8x8xf32>, vector<1x8x8xf32>, vector<1x8x8xf32>, vector<1x8x8xf32>, vector<1x8x8xf32> -> vector<16x8x8xf32>
    %271 = vector.shape_cast %270 : vector<16x8x8xf32> to vector<128x8xf32>
    %272 = tpu.transpose %271, [1, 0] : vector<128x8xf32> -> vector<8x128xf32>
    %c0_76 = arith.constant 0 : index
    %c0_77 = arith.constant 0 : index
    %c0_78 = arith.constant 0 : index
    %273 = vector.load %arg13[%c0_76, %c0_77, %c0_78] : memref<1x8x128xf32, #tpu.memory_space<vmem>>, vector<1x8x128xf32>
    %274 = vector.shape_cast %273 : vector<1x8x128xf32> to vector<8x128xf32>
    %275 = vector.shape_cast %272 : vector<8x128xf32> to vector<1x8x128xf32>
    tpu.vector_store %arg13[%c0_76, %c0_77, %c0_78], %275 {strides = array<i32>} : memref<1x8x128xf32, #tpu.memory_space<vmem>>, vector<1x8x128xf32>,
    return
  }
  func.func @transform_0(%arg0: i32) -> (i32, i32, i32) {
    %c0_i32 = arith.constant 0 : i32
    %c0_i32_0 = arith.constant 0 : i32
    %c0_i32_1 = arith.constant 0 : i32
    return %arg0, %c0_i32, %c0_i32_0 : i32, i32, i32
  }
  func.func @transform_1(%arg0: i32) -> (i32, i32) {
    %c0_i32 = arith.constant 0 : i32
    %c0_i32_0 = arith.constant 0 : i32
    %c0_i32_1 = arith.constant 0 : i32
    return %c0_i32, %c0_i32_0 : i32, i32
  }
  func.func @transform_2(%arg0: i32) -> (i32, i32) {
    %c0_i32 = arith.constant 0 : i32
    %c0_i32_0 = arith.constant 0 : i32
    %c0_i32_1 = arith.constant 0 : i32
    return %c0_i32, %c0_i32_0 : i32, i32
  }
  func.func @transform_3(%arg0: i32) -> (i32, i32) {
    %c0_i32 = arith.constant 0 : i32
    %c0_i32_0 = arith.constant 0 : i32
    %c0_i32_1 = arith.constant 0 : i32
    return %c0_i32, %c0_i32_0 : i32, i32
  }
  func.func @transform_4(%arg0: i32) -> (i32, i32) {
    %c0_i32 = arith.constant 0 : i32
    %c0_i32_0 = arith.constant 0 : i32
    %c0_i32_1 = arith.constant 0 : i32
    return %c0_i32, %c0_i32_0 : i32, i32
  }
  func.func @transform_5(%arg0: i32) -> (i32, i32) {
    %c0_i32 = arith.constant 0 : i32
    %c0_i32_0 = arith.constant 0 : i32
    %c0_i32_1 = arith.constant 0 : i32
    return %c0_i32, %c0_i32_0 : i32, i32
  }
  func.func @transform_6(%arg0: i32) -> (i32, i32) {
    %c0_i32 = arith.constant 0 : i32
    %c0_i32_0 = arith.constant 0 : i32
    %c0_i32_1 = arith.constant 0 : i32
    return %c0_i32, %c0_i32_0 : i32, i32
  }
  func.func @transform_7(%arg0: i32) -> (i32, i32) {
    %c0_i32 = arith.constant 0 : i32
    %c0_i32_0 = arith.constant 0 : i32
    %c0_i32_1 = arith.constant 0 : i32
    return %c0_i32, %c0_i32_0 : i32, i32
  }
  func.func @transform_8(%arg0: i32) -> (i32, i32, i32) {
    %c0_i32 = arith.constant 0 : i32
    %c0_i32_0 = arith.constant 0 : i32
    %c0_i32_1 = arith.constant 0 : i32
    %c0_i32_2 = arith.constant 0 : i32
    return %c0_i32, %c0_i32_0, %c0_i32_1 : i32, i32, i32
  }
  func.func @transform_9(%arg0: i32) -> (i32, i32) {
    %c0_i32 = arith.constant 0 : i32
    %c0_i32_0 = arith.constant 0 : i32
    %c0_i32_1 = arith.constant 0 : i32
    return %c0_i32, %c0_i32_0 : i32, i32
  }
  func.func @transform_10(%arg0: i32) -> (i32, i32) {
    %c0_i32 = arith.constant 0 : i32
    %c0_i32_0 = arith.constant 0 : i32
    %c0_i32_1 = arith.constant 0 : i32
    return %c0_i32, %c0_i32_0 : i32, i32
  }
  func.func @transform_11(%arg0: i32) -> (i32, i32) {
    %c0_i32 = arith.constant 0 : i32
    %c0_i32_0 = arith.constant 0 : i32
    %c0_i32_1 = arith.constant 0 : i32
    return %c0_i32, %c0_i32_0 : i32, i32
  }
  func.func @transform_12(%arg0: i32) -> (i32, i32, i32) {
    %c0_i32 = arith.constant 0 : i32
    %c0_i32_0 = arith.constant 0 : i32
    %c0_i32_1 = arith.constant 0 : i32
    return %arg0, %c0_i32, %c0_i32_0 : i32, i32, i32
  }
}

</mosaic_0001>

<llo_original>
// kernel: tpu_custom_call.1
$region0: #{tpu_custom_call.1}
  #allocation0 [shape = 'u32[]', space=smem, size = 0x4, offset = 0x4, fixed_abs, tag = 'smem constant byte address 0x4 - core index']
  #allocation1 [shape = 'u32[144,128]{1,0:T(1,128)}', space=vmem, size = 0x12000, scoped, tag = 'internal scratch']
  %s0 = inlined_call_operand.vmem [shape: f32[2,4,128], index: 0, kind: input, shape index: {}]
  %s1 = inlined_call_operand.vmem [shape: bf16[8,8], index: 1, kind: input, shape index: {}]
  %s2 = inlined_call_operand.vmem [shape: bf16[4,8], index: 2, kind: input, shape index: {}]
  %s3 = inlined_call_operand.vmem [shape: f32[1,8], index: 3, kind: input, shape index: {}]
  %s4 = inlined_call_operand.vmem [shape: bf16[8,24], index: 4, kind: input, shape index: {}]
  %s5 = inlined_call_operand.vmem [shape: f32[1,24], index: 5, kind: input, shape index: {}]
  %s6 = inlined_call_operand.vmem [shape: bf16[8,8], index: 6, kind: input, shape index: {}]
  %s7 = inlined_call_operand.vmem [shape: f32[1,8], index: 7, kind: input, shape index: {}]
  %s8 = inlined_call_operand.vmem [shape: bf16[9,8,8], index: 8, kind: input, shape index: {}]
  %s9 = inlined_call_operand.vmem [shape: f32[1,8], index: 9, kind: input, shape index: {}]
  %s10 = inlined_call_operand.vmem [shape: bf16[4,8], index: 10, kind: input, shape index: {}]
  %s11 = inlined_call_operand.vmem [shape: f32[1,8], index: 11, kind: input, shape index: {}]
  %s12 = inlined_call_operand.hbm [shape: f32[2,8,128], index: 12, kind: output, shape index: {}]
  %s13 = sld [smem:[#allocation0]]
  $region81: #{tpu_custom_call.1} parent=0
    _
  %s15 = ssub.s32 1, %s13
  %s16 = scalar_select 0, %s15, %s13
  $region1: #{tpu_custom_call.1} parent=0
    #allocation2 [shape = 'u8[8192]{0}', space=vmem, size = 0x2000, scoped, tag = 'output window, operand 0']
    #allocation3 [shape = 's32[2]{0}', space=sflag, size = 0x8, scoped, tag = 'scoped memory for tpu_custom_call.1']
    %17 = vsyncpa [#allocation3], 0
    %s18 = scalar_lea.sflag [#allocation3], 1
    %19 = vsyncpa %s18, 0
    loop: start=0, step=1, limit=4
    $region2: #{tpu_custom_call.1} parent=1 // loop_pre_header
      _
    $region3: #{tpu_custom_call.1} parent=1 // loop_header
      %s21 = sphi 0, %s25
      %p22 = scmp.ge.s32.totalorder %s21, 4
      %s31 = sphi 0, %s33
      %s34 = sphi 0, %s31
      %s35 = sphi 0, %s34
      %s51 = sphi 0, %s35
      %s55 = sphi 0, %s55
      %s57 = sphi 0, %s55
      %s58 = sphi 0, %s57
      %s72 = sphi 0, %s58
      %s76 = sphi 0, %s76
      %s78 = sphi 0, %s76
      %s79 = sphi 0, %s78
      %s93 = sphi 0, %s79
      %s97 = sphi 0, %s97
      %s99 = sphi 0, %s97
      %s100 = sphi 0, %s99
      %s114 = sphi 0, %s100
      %s118 = sphi 0, %s118
      %s120 = sphi 0, %s118
      %s121 = sphi 0, %s120
      %s135 = sphi 0, %s121
      %s139 = sphi 0, %s139
      %s141 = sphi 0, %s139
      %s142 = sphi 0, %s141
      %s156 = sphi 0, %s142
      %s160 = sphi 0, %s160
      %s162 = sphi 0, %s160
      %s163 = sphi 0, %s162
      %s177 = sphi 0, %s163
      %s181 = sphi 0, %s181
      %s183 = sphi 0, %s181
      %s184 = sphi 0, %s183
      %s198 = sphi 0, %s184
      %s202 = sphi 0, %s202
      %s204 = sphi 0, %s202
      %s205 = sphi 0, %s204
      %s219 = sphi 0, %s205
      %s223 = sphi 0, %s223
      %s225 = sphi 0, %s223
      %s226 = sphi 0, %s225
      %s240 = sphi 0, %s226
      %s244 = sphi 0, %s244
      %s246 = sphi 0, %s244
      %s247 = sphi 0, %s246
      %s261 = sphi 0, %s247
      %s265 = sphi 0, %s265
      %s267 = sphi 0, %s265
      %s268 = sphi 0, %s267
      %s282 = sphi 0, %s268
      %s288 = sphi 0, %s290
      %s291 = sphi 0, %s288
      %s292 = sphi 0, %s291
      %s308 = sphi 0, %s292
    $region4: #{tpu_custom_call.1} parent=1 // loop_header_branch
      %24 = sbr.rel (%p22) target = $region8
    $region5: #{tpu_custom_call.1} parent=1 // loop_body
      %s26 = ssub.s32 %s21, 1
      %s27 = ssub.s32 %s21, 2
      %s28 = sadd.s32 %s21, 1
      %s29 = ssub.s32 %s21, %s28
      %p30 = scmp.eq.s32.totalorder %s29, 0
      %s32 = sadd.s32 %s31, 1
      %s33 = scalar_select %p30, %s31, %s32
      %p36 = pneg %p30
      %p37 = scmp.eq.s32.totalorder %s21, 1
      %p38 = por %p36, %p37
      %p39 = scmp.ne.s32.totalorder %s31, %s34
      %p40 = scmp.eq.s32.totalorder %s21, 0
      %p41 = por %p39, %p40
      %p42 = scmp.ne.s32.totalorder %s31, %s34
      %p43 = scmp.eq.s32.totalorder %s26, 1
      %p44 = por %p42, %p43
      %p45 = scmp.ne.s32.totalorder %s34, %s35
      %p46 = scmp.eq.s32.totalorder %s26, 0
      %p47 = por %p45, %p46
      %p48 = scmp.ne.s32.totalorder %s34, %s35
      %p49 = scmp.eq.s32.totalorder %s27, 1
      %p50 = por %p48, %p49
      %p52 = scmp.ne.s32.totalorder %s35, %s51
      %p53 = scmp.eq.s32.totalorder %s27, 0
      %p54 = por %p52, %p53
      %s56 = sadd.s32 %s55, 1
      %p59 = scmp.eq.s32.totalorder %s21, 1
      %p60 = scmp.ne.s32.totalorder %s55, %s57
      %p61 = scmp.eq.s32.totalorder %s21, 0
      %p62 = por %p60, %p61
      %p63 = scmp.ne.s32.totalorder %s55, %s57
      %p64 = scmp.eq.s32.totalorder %s26, 1
      %p65 = por %p63, %p64
      %p66 = scmp.ne.s32.totalorder %s57, %s58
      %p67 = scmp.eq.s32.totalorder %s26, 0
      %p68 = por %p66, %p67
      %p69 = scmp.ne.s32.totalorder %s57, %s58
      %p70 = scmp.eq.s32.totalorder %s27, 1
      %p71 = por %p69, %p70
      %p73 = scmp.ne.s32.totalorder %s58, %s72
      %p74 = scmp.eq.s32.totalorder %s27, 0
      %p75 = por %p73, %p74
      %s77 = sadd.s32 %s76, 1
      %p80 = scmp.eq.s32.totalorder %s21, 1
      %p81 = scmp.ne.s32.totalorder %s76, %s78
      %p82 = scmp.eq.s32.totalorder %s21, 0
      %p83 = por %p81, %p82
      %p84 = scmp.ne.s32.totalorder %s76, %s78
      %p85 = scmp.eq.s32.totalorder %s26, 1
      %p86 = por %p84, %p85
      %p87 = scmp.ne.s32.totalorder %s78, %s79
      %p88 = scmp.eq.s32.totalorder %s26, 0
      %p89 = por %p87, %p88
      %p90 = scmp.ne.s32.totalorder %s78, %s79
      %p91 = scmp.eq.s32.totalorder %s27, 1
      %p92 = por %p90, %p91
      %p94 = scmp.ne.s32.totalorder %s79, %s93
      %p95 = scmp.eq.s32.totalorder %s27, 0
      %p96 = por %p94, %p95
      %s98 = sadd.s32 %s97, 1
      %p101 = scmp.eq.s32.totalorder %s21, 1
      %p102 = scmp.ne.s32.totalorder %s97, %s99
      %p103 = scmp.eq.s32.totalorder %s21, 0
      %p104 = por %p102, %p103
      %p105 = scmp.ne.s32.totalorder %s97, %s99
      %p106 = scmp.eq.s32.totalorder %s26, 1
      %p107 = por %p105, %p106
      %p108 = scmp.ne.s32.totalorder %s99, %s100
      %p109 = scmp.eq.s32.totalorder %s26, 0
      %p110 = por %p108, %p109
      %p111 = scmp.ne.s32.totalorder %s99, %s100
      %p112 = scmp.eq.s32.totalorder %s27, 1
      %p113 = por %p111, %p112
      %p115 = scmp.ne.s32.totalorder %s100, %s114
      %p116 = scmp.eq.s32.totalorder %s27, 0
      %p117 = por %p115, %p116
      %s119 = sadd.s32 %s118, 1
      %p122 = scmp.eq.s32.totalorder %s21, 1
      %p123 = scmp.ne.s32.totalorder %s118, %s120
      %p124 = scmp.eq.s32.totalorder %s21, 0
      %p125 = por %p123, %p124
      %p126 = scmp.ne.s32.totalorder %s118, %s120
      %p127 = scmp.eq.s32.totalorder %s26, 1
      %p128 = por %p126, %p127
      %p129 = scmp.ne.s32.totalorder %s120, %s121
      %p130 = scmp.eq.s32.totalorder %s26, 0
      %p131 = por %p129, %p130
      %p132 = scmp.ne.s32.totalorder %s120, %s121
      %p133 = scmp.eq.s32.totalorder %s27, 1
      %p134 = por %p132, %p133
      %p136 = scmp.ne.s32.totalorder %s121, %s135
      %p137 = scmp.eq.s32.totalorder %s27, 0
      %p138 = por %p136, %p137
      %s140 = sadd.s32 %s139, 1
      %p143 = scmp.eq.s32.totalorder %s21, 1
      %p144 = scmp.ne.s32.totalorder %s139, %s141
      %p145 = scmp.eq.s32.totalorder %s21, 0
      %p146 = por %p144, %p145
      %p147 = scmp.ne.s32.totalorder %s139, %s141
      %p148 = scmp.eq.s32.totalorder %s26, 1
      %p149 = por %p147, %p148
      %p150 = scmp.ne.s32.totalorder %s141, %s142
      %p151 = scmp.eq.s32.totalorder %s26, 0
      %p152 = por %p150, %p151
      %p153 = scmp.ne.s32.totalorder %s141, %s142
      %p154 = scmp.eq.s32.totalorder %s27, 1
      %p155 = por %p153, %p154
      %p157 = scmp.ne.s32.totalorder %s142, %s156
      %p158 = scmp.eq.s32.totalorder %s27, 0
      %p159 = por %p157, %p158
      %s161 = sadd.s32 %s160, 1
      %p164 = scmp.eq.s32.totalorder %s21, 1
      %p165 = scmp.ne.s32.totalorder %s160, %s162
      %p166 = scmp.eq.s32.totalorder %s21, 0
      %p167 = por %p165, %p166
      %p168 = scmp.ne.s32.totalorder %s160, %s162
      %p169 = scmp.eq.s32.totalorder %s26, 1
      %p170 = por %p168, %p169
      %p171 = scmp.ne.s32.totalorder %s162, %s163
      %p172 = scmp.eq.s32.totalorder %s26, 0
      %p173 = por %p171, %p172
      %p174 = scmp.ne.s32.totalorder %s162, %s163
      %p175 = scmp.eq.s32.totalorder %s27, 1
      %p176 = por %p174, %p175
      %p178 = scmp.ne.s32.totalorder %s163, %s177
      %p179 = scmp.eq.s32.totalorder %s27, 0
      %p180 = por %p178, %p179
      %s182 = sadd.s32 %s181, 1
      %p185 = scmp.eq.s32.totalorder %s21, 1
      %p186 = scmp.ne.s32.totalorder %s181, %s183
      %p187 = scmp.eq.s32.totalorder %s21, 0
      %p188 = por %p186, %p187
      %p189 = scmp.ne.s32.totalorder %s181, %s183
      %p190 = scmp.eq.s32.totalorder %s26, 1
      %p191 = por %p189, %p190
      %p192 = scmp.ne.s32.totalorder %s183, %s184
      %p193 = scmp.eq.s32.totalorder %s26, 0
      %p194 = por %p192, %p193
      %p195 = scmp.ne.s32.totalorder %s183, %s184
      %p196 = scmp.eq.s32.totalorder %s27, 1
      %p197 = por %p195, %p196
      %p199 = scmp.ne.s32.totalorder %s184, %s198
      %p200 = scmp.eq.s32.totalorder %s27, 0
      %p201 = por %p199, %p200
      %s203 = sadd.s32 %s202, 1
      %p206 = scmp.eq.s32.totalorder %s21, 1
      %p207 = scmp.ne.s32.totalorder %s202, %s204
      %p208 = scmp.eq.s32.totalorder %s21, 0
      %p209 = por %p207, %p208
      %p210 = scmp.ne.s32.totalorder %s202, %s204
      %p211 = scmp.eq.s32.totalorder %s26, 1
      %p212 = por %p210, %p211
      %p213 = scmp.ne.s32.totalorder %s204, %s205
      %p214 = scmp.eq.s32.totalorder %s26, 0
      %p215 = por %p213, %p214
      %p216 = scmp.ne.s32.totalorder %s204, %s205
      %p217 = scmp.eq.s32.totalorder %s27, 1
      %p218 = por %p216, %p217
      %p220 = scmp.ne.s32.totalorder %s205, %s219
      %p221 = scmp.eq.s32.totalorder %s27, 0
      %p222 = por %p220, %p221
      %s224 = sadd.s32 %s223, 1
      %p227 = scmp.eq.s32.totalorder %s21, 1
      %p228 = scmp.ne.s32.totalorder %s223, %s225
      %p229 = scmp.eq.s32.totalorder %s21, 0
      %p230 = por %p228, %p229
      %p231 = scmp.ne.s32.totalorder %s223, %s225
      %p232 = scmp.eq.s32.totalorder %s26, 1
      %p233 = por %p231, %p232
      %p234 = scmp.ne.s32.totalorder %s225, %s226
      %p235 = scmp.eq.s32.totalorder %s26, 0
      %p236 = por %p234, %p235
      %p237 = scmp.ne.s32.totalorder %s225, %s226
      %p238 = scmp.eq.s32.totalorder %s27, 1
      %p239 = por %p237, %p238
      %p241 = scmp.ne.s32.totalorder %s226, %s240
      %p242 = scmp.eq.s32.totalorder %s27, 0
      %p243 = por %p241, %p242
      %s245 = sadd.s32 %s244, 1
      %p248 = scmp.eq.s32.totalorder %s21, 1
      %p249 = scmp.ne.s32.totalorder %s244, %s246
      %p250 = scmp.eq.s32.totalorder %s21, 0
      %p251 = por %p249, %p250
      %p252 = scmp.ne.s32.totalorder %s244, %s246
      %p253 = scmp.eq.s32.totalorder %s26, 1
      %p254 = por %p252, %p253
      %p255 = scmp.ne.s32.totalorder %s246, %s247
      %p256 = scmp.eq.s32.totalorder %s26, 0
      %p257 = por %p255, %p256
      %p258 = scmp.ne.s32.totalorder %s246, %s247
      %p259 = scmp.eq.s32.totalorder %s27, 1
      %p260 = por %p258, %p259
      %p262 = scmp.ne.s32.totalorder %s247, %s261
      %p263 = scmp.eq.s32.totalorder %s27, 0
      %p264 = por %p262, %p263
      %s266 = sadd.s32 %s265, 1
      %p269 = scmp.eq.s32.totalorder %s21, 1
      %p270 = scmp.ne.s32.totalorder %s265, %s267
      %p271 = scmp.eq.s32.totalorder %s21, 0
      %p272 = por %p270, %p271
      %p273 = scmp.ne.s32.totalorder %s265, %s267
      %p274 = scmp.eq.s32.totalorder %s26, 1
      %p275 = por %p273, %p274
      %p276 = scmp.ne.s32.totalorder %s267, %s268
      %p277 = scmp.eq.s32.totalorder %s26, 0
      %p278 = por %p276, %p277
      %p279 = scmp.ne.s32.totalorder %s267, %s268
      %p280 = scmp.eq.s32.totalorder %s27, 1
      %p281 = por %p279, %p280
      %p283 = scmp.ne.s32.totalorder %s268, %s282
      %p284 = scmp.eq.s32.totalorder %s27, 0
      %p285 = por %p283, %p284
      %s286 = ssub.s32 %s21, %s28
      %p287 = scmp.eq.s32.totalorder %s286, 0
      %s289 = sadd.s32 %s288, 1
      %s290 = scalar_select %p287, %s288, %s289
      %p293 = pneg %p287
      %p294 = scmp.eq.s32.totalorder %s21, 1
      %p295 = por %p293, %p294
      %p296 = scmp.ne.s32.totalorder %s288, %s291
      %p297 = scmp.eq.s32.totalorder %s21, 0
      %p298 = por %p296, %p297
      %p299 = scmp.ne.s32.totalorder %s288, %s291
      %p300 = scmp.eq.s32.totalorder %s26, 1
      %p301 = por %p299, %p300
      %p302 = scmp.ne.s32.totalorder %s291, %s292
      %p303 = scmp.eq.s32.totalorder %s26, 0
      %p304 = por %p302, %p303
      %p305 = scmp.ne.s32.totalorder %s291, %s292
      %p306 = scmp.eq.s32.totalorder %s27, 1
      %p307 = por %p305, %p306
      %p309 = scmp.ne.s32.totalorder %s292, %s308
      %p310 = scmp.eq.s32.totalorder %s27, 0
      %p311 = por %p309, %p310
      %p312 = scmp.le.s32.totalorder 1, %s21
      %p313 = scmp.lt.s32.totalorder %s21, 3
      %p314 = pnand %p312, %p313
      %p315 = pneg %p314
      // Predicated region
      $region9: #{tpu_custom_call.1} parent=5 // pred_check
        _
      $region10: #{tpu_custom_call.1} parent=5 // pred_check_branch
        %317 = sbr.rel (%p314) target = $region12
      $region11: #{tpu_custom_call.1} parent=5 // pred_region
        %s318 = ssub.s32 %s21, 1
        // Predicated region
        $region13: #{tpu_custom_call.1} parent=11 // pred_check
          %p319 = pneg %p68
        $region14: #{tpu_custom_call.1} parent=11 // pred_check_branch
          %321 = sbr.rel (%p319) target = $region16
        $region15: #{tpu_custom_call.1} parent=11 // pred_region
          _
        $region16: #{tpu_custom_call.1} parent=11 // pred_fallthru
          _
        // Predicated region
        $region17: #{tpu_custom_call.1} parent=11 // pred_check
          %p322 = pneg %p89
        $region18: #{tpu_custom_call.1} parent=11 // pred_check_branch
          %324 = sbr.rel (%p322) target = $region20
        $region19: #{tpu_custom_call.1} parent=11 // pred_region
          _
        $region20: #{tpu_custom_call.1} parent=11 // pred_fallthru
          _
        // Predicated region
        $region21: #{tpu_custom_call.1} parent=11 // pred_check
          %p325 = pneg %p110
        $region22: #{tpu_custom_call.1} parent=11 // pred_check_branch
          %327 = sbr.rel (%p325) target = $region24
        $region23: #{tpu_custom_call.1} parent=11 // pred_region
          _
        $region24: #{tpu_custom_call.1} parent=11 // pred_fallthru
          _
        // Predicated region
        $region25: #{tpu_custom_call.1} parent=11 // pred_check
          %p328 = pneg %p131
        $region26: #{tpu_custom_call.1} parent=11 // pred_check_branch
          %330 = sbr.rel (%p328) target = $region28
        $region27: #{tpu_custom_call.1} parent=11 // pred_region
          _
        $region28: #{tpu_custom_call.1} parent=11 // pred_fallthru
          _
        // Predicated region
        $region29: #{tpu_custom_call.1} parent=11 // pred_check
          %p331 = pneg %p152
        $region30: #{tpu_custom_call.1} parent=11 // pred_check_branch
          %333 = sbr.rel (%p331) target = $region32
        $region31: #{tpu_custom_call.1} parent=11 // pred_region
          _
        $region32: #{tpu_custom_call.1} parent=11 // pred_fallthru
          _
        // Predicated region
        $region33: #{tpu_custom_call.1} parent=11 // pred_check
          %p334 = pneg %p173
        $region34: #{tpu_custom_call.1} parent=11 // pred_check_branch
          %336 = sbr.rel (%p334) target = $region36
        $region35: #{tpu_custom_call.1} parent=11 // pred_region
          _
        $region36: #{tpu_custom_call.1} parent=11 // pred_fallthru
          _
        // Predicated region
        $region37: #{tpu_custom_call.1} parent=11 // pred_check
          %p337 = pneg %p194
        $region38: #{tpu_custom_call.1} parent=11 // pred_check_branch
          %339 = sbr.rel (%p337) target = $region40
        $region39: #{tpu_custom_call.1} parent=11 // pred_region
          _
        $region40: #{tpu_custom_call.1} parent=11 // pred_fallthru
          _
        // Predicated region
        $region41: #{tpu_custom_call.1} parent=11 // pred_check
          %p340 = pneg %p215
        $region42: #{tpu_custom_call.1} parent=11 // pred_check_branch
          %342 = sbr.rel (%p340) target = $region44
        $region43: #{tpu_custom_call.1} parent=11 // pred_region
          _
        $region44: #{tpu_custom_call.1} parent=11 // pred_fallthru
          _
        // Predicated region
        $region45: #{tpu_custom_call.1} parent=11 // pred_check
          %p343 = pneg %p236
        $region46: #{tpu_custom_call.1} parent=11 // pred_check_branch
          %345 = sbr.rel (%p343) target = $region48
        $region47: #{tpu_custom_call.1} parent=11 // pred_region
          _
        $region48: #{tpu_custom_call.1} parent=11 // pred_fallthru
          _
        // Predicated region
        $region49: #{tpu_custom_call.1} parent=11 // pred_check
          %p346 = pneg %p257
        $region50: #{tpu_custom_call.1} parent=11 // pred_check_branch
          %348 = sbr.rel (%p346) target = $region52
        $region51: #{tpu_custom_call.1} parent=11 // pred_region
          _
        $region52: #{tpu_custom_call.1} parent=11 // pred_fallthru
          _
        // Predicated region
        $region53: #{tpu_custom_call.1} parent=11 // pred_check
          %p349 = pneg %p278
        $region54: #{tpu_custom_call.1} parent=11 // pred_check_branch
          %351 = sbr.rel (%p349) target = $region56
        $region55: #{tpu_custom_call.1} parent=11 // pred_region
          _
        $region56: #{tpu_custom_call.1} parent=11 // pred_fallthru
          _
      $region12: #{tpu_custom_call.1} parent=5 // pred_fallthru
        _
      %p352 = scmp.lt.s32.totalorder %s21, 2
      // Predicated region
      $region57: #{tpu_custom_call.1} parent=5 // pred_check
        %p353 = pneg %p352
      $region58: #{tpu_custom_call.1} parent=5 // pred_check_branch
        %355 = sbr.rel (%p353) target = $region60
      $region59: #{tpu_custom_call.1} parent=5 // pred_region
        // Predicated region
        $region61: #{tpu_custom_call.1} parent=59 // pred_check
          %p356 = pneg %p41
        $region62: #{tpu_custom_call.1} parent=59 // pred_check_branch
          %358 = sbr.rel (%p356) target = $region64
        $region63: #{tpu_custom_call.1} parent=59 // pred_region
          %p359 = scmp.lt.s32.totalorder %s21, 1
          %s360 = scalar_select %p359, %s21, 1
          %s361 = smul.addr %s360, 4
          %s362 = scalar_lea.vmem %s0, %s361
        $region64: #{tpu_custom_call.1} parent=59 // pred_fallthru
          _
      $region60: #{tpu_custom_call.1} parent=5 // pred_fallthru
        _
      %p363 = scmp.le.s32.totalorder 1, %s21
      %p364 = scmp.lt.s32.totalorder %s21, 3
      %p365 = pnand %p363, %p364
      %p366 = pneg %p365
      // Predicated region
      $region65: #{tpu_custom_call.1} parent=5 // pred_check
        _
      $region66: #{tpu_custom_call.1} parent=5 // pred_check_branch
        %368 = sbr.rel (%p365) target = $region68
      $region67: #{tpu_custom_call.1} parent=5 // pred_region
        %s369 = ssub.s32 %s21, 1
        %p370 = scmp.lt.s32.totalorder %s26, 1
        %s371 = scalar_select %p370, %s26, 1
        %s372 = smul.addr %s371, 4
        %s373 = scalar_lea.vmem %s0, %s372
        %p374 = pneg %p47
        %p375 = pneg %p44
        %p376 = pneg %p68
        %p377 = pneg %p65
        %p378 = pneg %p89
        %p379 = pneg %p86
        %p380 = pneg %p110
        %p381 = pneg %p107
        %p382 = pneg %p131
        %p383 = pneg %p128
        %p384 = pneg %p152
        %p385 = pneg %p149
        %p386 = pneg %p173
        %p387 = pneg %p170
        %p388 = pneg %p194
        %p389 = pneg %p191
        %p390 = pneg %p215
        %p391 = pneg %p212
        %p392 = pneg %p236
        %p393 = pneg %p233
        %p394 = pneg %p257
        %p395 = pneg %p254
        %p396 = pneg %p278
        %p397 = pneg %p275
        %p398 = pneg %p304
        %p399 = pneg %p301
        %s400 = sand.u32 %s291, 1
        %s401 = scalar_lea.sflag [#allocation3], %s400
        %s402 = sand.u32 %s291, 1
        %s403 = smul.addr %s402, 8
        %s404 = scalar_lea.vmem [#allocation2], %s403
        %p405 = scmp.lt.s32.totalorder %s26, 1
        %s406 = scalar_select %p405, %s26, 1
        %s407 = smul.addr %s406, 4
        %s408 = scalar_lea.vmem %s0, %s407
        %v410 = vld [vmem:[%s408] sm:$0xf]
        %411 = vxpose.xlu0.b32.start [1/16] %v410, 128
        %412 = vxpose.xlu0.b32.cont [2/16] 0.0, 128
        %413 = vxpose.xlu0.b32.cont [3/16] 0.0, 128
        %414 = vxpose.xlu0.b32.cont [4/16] 0.0, 128
        %415 = vxpose.xlu0.b32.cont [5/16] 0.0, 128
        %416 = vxpose.xlu0.b32.cont [6/16] 0.0, 128
        %417 = vxpose.xlu0.b32.cont [7/16] 0.0, 128
        %418 = vxpose.xlu0.b32.cont [8/16] 0.0, 128
        %419 = vxpose.xlu0.b32.cont [9/16] 0.0, 128
        %420 = vxpose.xlu0.b32.cont [10/16] 0.0, 128
        %421 = vxpose.xlu0.b32.cont [11/16] 0.0, 128
        %422 = vxpose.xlu0.b32.cont [12/16] 0.0, 128
        %423 = vxpose.xlu0.b32.cont [13/16] 0.0, 128
        %424 = vxpose.xlu0.b32.cont [14/16] 0.0, 128
        %425 = vxpose.xlu0.b32.cont [15/16] 0.0, 128
        %426 = vxpose.xlu0.b32.end [16/16] 0.0, 128
        %v427 = vpop.trf.xlu0
        %v428 = vpop.trf.xlu0
        %v429 = vpop.trf.xlu0
        %v430 = vpop.trf.xlu0
        %v431 = vpop.trf.xlu0
        %v432 = vpop.trf.xlu0
        %v433 = vpop.trf.xlu0
        %v434 = vpop.trf.xlu0
        %v435 = vpop.trf.xlu0
        %v436 = vpop.trf.xlu0
        %v437 = vpop.trf.xlu0
        %v438 = vpop.trf.xlu0
        %v439 = vpop.trf.xlu0
        %v440 = vpop.trf.xlu0
        %v441 = vpop.trf.xlu0
        %v442 = vpop.trf.xlu0
        %v459 = vrot.slane %v427, 1
        %v460 = vrot.slane %v428, 1
        %v461 = vrot.slane %v429, 1
        %v462 = vrot.slane %v430, 1
        %v463 = vrot.slane %v431, 1
        %v464 = vrot.slane %v432, 1
        %v465 = vrot.slane %v433, 1
        %v466 = vrot.slane %v434, 1
        %v467 = vrot.slane %v435, 1
        %v468 = vrot.slane %v436, 1
        %v469 = vrot.slane %v437, 1
        %v470 = vrot.slane %v438, 1
        %v471 = vrot.slane %v439, 1
        %v472 = vrot.slane %v440, 1
        %v473 = vrot.slane %v441, 1
        %v474 = vrot.slane %v442, 1
        %v491 = vrot.slane %v427, 2
        %v492 = vrot.slane %v428, 2
        %v493 = vrot.slane %v429, 2
        %v494 = vrot.slane %v430, 2
        %v495 = vrot.slane %v431, 2
        %v496 = vrot.slane %v432, 2
        %v497 = vrot.slane %v433, 2
        %v498 = vrot.slane %v434, 2
        %v499 = vrot.slane %v435, 2
        %v500 = vrot.slane %v436, 2
        %v501 = vrot.slane %v437, 2
        %v502 = vrot.slane %v438, 2
        %v503 = vrot.slane %v439, 2
        %v504 = vrot.slane %v440, 2
        %v505 = vrot.slane %v441, 2
        %v506 = vrot.slane %v442, 2
        %v523 = vrot.slane %v427, 3
        %v524 = vrot.slane %v428, 3
        %v525 = vrot.slane %v429, 3
        %v526 = vrot.slane %v430, 3
        %v527 = vrot.slane %v431, 3
        %v528 = vrot.slane %v432, 3
        %v529 = vrot.slane %v433, 3
        %v530 = vrot.slane %v434, 3
        %v531 = vrot.slane %v435, 3
        %v532 = vrot.slane %v436, 3
        %v533 = vrot.slane %v437, 3
        %v534 = vrot.slane %v438, 3
        %v535 = vrot.slane %v439, 3
        %v536 = vrot.slane %v440, 3
        %v537 = vrot.slane %v441, 3
        %v538 = vrot.slane %v442, 3
        %v555 = vrot.slane %v427, 4
        %v556 = vrot.slane %v428, 4
        %v557 = vrot.slane %v429, 4
        %v558 = vrot.slane %v430, 4
        %v559 = vrot.slane %v431, 4
        %v560 = vrot.slane %v432, 4
        %v561 = vrot.slane %v433, 4
        %v562 = vrot.slane %v434, 4
        %v563 = vrot.slane %v435, 4
        %v564 = vrot.slane %v436, 4
        %v565 = vrot.slane %v437, 4
        %v566 = vrot.slane %v438, 4
        %v567 = vrot.slane %v439, 4
        %v568 = vrot.slane %v440, 4
        %v569 = vrot.slane %v441, 4
        %v570 = vrot.slane %v442, 4
        %v587 = vrot.slane %v427, 5
        %v588 = vrot.slane %v428, 5
        %v589 = vrot.slane %v429, 5
        %v590 = vrot.slane %v430, 5
        %v591 = vrot.slane %v431, 5
        %v592 = vrot.slane %v432, 5
        %v593 = vrot.slane %v433, 5
        %v594 = vrot.slane %v434, 5
        %v595 = vrot.slane %v435, 5
        %v596 = vrot.slane %v436, 5
        %v597 = vrot.slane %v437, 5
        %v598 = vrot.slane %v438, 5
        %v599 = vrot.slane %v439, 5
        %v600 = vrot.slane %v440, 5
        %v601 = vrot.slane %v441, 5
        %v602 = vrot.slane %v442, 5
        %v619 = vrot.slane %v427, 6
        %v620 = vrot.slane %v428, 6
        %v621 = vrot.slane %v429, 6
        %v622 = vrot.slane %v430, 6
        %v623 = vrot.slane %v431, 6
        %v624 = vrot.slane %v432, 6
        %v625 = vrot.slane %v433, 6
        %v626 = vrot.slane %v434, 6
        %v627 = vrot.slane %v435, 6
        %v628 = vrot.slane %v436, 6
        %v629 = vrot.slane %v437, 6
        %v630 = vrot.slane %v438, 6
        %v631 = vrot.slane %v439, 6
        %v632 = vrot.slane %v440, 6
        %v633 = vrot.slane %v441, 6
        %v634 = vrot.slane %v442, 6
        %v651 = vrot.slane %v427, 7
        %v652 = vrot.slane %v428, 7
        %v653 = vrot.slane %v429, 7
        %v654 = vrot.slane %v430, 7
        %v655 = vrot.slane %v431, 7
        %v656 = vrot.slane %v432, 7
        %v657 = vrot.slane %v433, 7
        %v658 = vrot.slane %v434, 7
        %v659 = vrot.slane %v435, 7
        %v660 = vrot.slane %v436, 7
        %v661 = vrot.slane %v437, 7
        %v662 = vrot.slane %v438, 7
        %v663 = vrot.slane %v439, 7
        %v664 = vrot.slane %v440, 7
        %v665 = vrot.slane %v441, 7
        %v666 = vrot.slane %v442, 7
        %v683 = vpack.c.bf16 %v427, %v427
        %v684 = vpack.c.bf16 %v428, %v428
        %v685 = vpack.c.bf16 %v429, %v429
        %v686 = vpack.c.bf16 %v430, %v430
        %v687 = vpack.c.bf16 %v431, %v431
        %v688 = vpack.c.bf16 %v432, %v432
        %v689 = vpack.c.bf16 %v433, %v433
        %v690 = vpack.c.bf16 %v434, %v434
        %v691 = vpack.c.bf16 %v435, %v435
        %v692 = vpack.c.bf16 %v436, %v436
        %v693 = vpack.c.bf16 %v437, %v437
        %v694 = vpack.c.bf16 %v438, %v438
        %v695 = vpack.c.bf16 %v439, %v439
        %v696 = vpack.c.bf16 %v440, %v440
        %v697 = vpack.c.bf16 %v441, %v441
        %v698 = vpack.c.bf16 %v442, %v442
        %v699 = vpack.c.bf16 %v459, %v459
        %v700 = vpack.c.bf16 %v460, %v460
        %v701 = vpack.c.bf16 %v461, %v461
        %v702 = vpack.c.bf16 %v462, %v462
        %v703 = vpack.c.bf16 %v463, %v463
        %v704 = vpack.c.bf16 %v464, %v464
        %v705 = vpack.c.bf16 %v465, %v465
        %v706 = vpack.c.bf16 %v466, %v466
        %v707 = vpack.c.bf16 %v467, %v467
        %v708 = vpack.c.bf16 %v468, %v468
        %v709 = vpack.c.bf16 %v469, %v469
        %v710 = vpack.c.bf16 %v470, %v470
        %v711 = vpack.c.bf16 %v471, %v471
        %v712 = vpack.c.bf16 %v472, %v472
        %v713 = vpack.c.bf16 %v473, %v473
        %v714 = vpack.c.bf16 %v474, %v474
        %v715 = vpack.c.bf16 %v491, %v491
        %v716 = vpack.c.bf16 %v492, %v492
        %v717 = vpack.c.bf16 %v493, %v493
        %v718 = vpack.c.bf16 %v494, %v494
        %v719 = vpack.c.bf16 %v495, %v495
        %v720 = vpack.c.bf16 %v496, %v496
        %v721 = vpack.c.bf16 %v497, %v497
        %v722 = vpack.c.bf16 %v498, %v498
        %v723 = vpack.c.bf16 %v499, %v499
        %v724 = vpack.c.bf16 %v500, %v500
        %v725 = vpack.c.bf16 %v501, %v501
        %v726 = vpack.c.bf16 %v502, %v502
        %v727 = vpack.c.bf16 %v503, %v503
        %v728 = vpack.c.bf16 %v504, %v504
        %v729 = vpack.c.bf16 %v505, %v505
        %v730 = vpack.c.bf16 %v506, %v506
        %v731 = vpack.c.bf16 %v523, %v523
        %v732 = vpack.c.bf16 %v524, %v524
        %v733 = vpack.c.bf16 %v525, %v525
        %v734 = vpack.c.bf16 %v526, %v526
        %v735 = vpack.c.bf16 %v527, %v527
        %v736 = vpack.c.bf16 %v528, %v528
        %v737 = vpack.c.bf16 %v529, %v529
        %v738 = vpack.c.bf16 %v530, %v530
        %v739 = vpack.c.bf16 %v531, %v531
        %v740 = vpack.c.bf16 %v532, %v532
        %v741 = vpack.c.bf16 %v533, %v533
        %v742 = vpack.c.bf16 %v534, %v534
        %v743 = vpack.c.bf16 %v535, %v535
        %v744 = vpack.c.bf16 %v536, %v536
        %v745 = vpack.c.bf16 %v537, %v537
        %v746 = vpack.c.bf16 %v538, %v538
        %v747 = vpack.c.bf16 %v555, %v555
        %v748 = vpack.c.bf16 %v556, %v556
        %v749 = vpack.c.bf16 %v557, %v557
        %v750 = vpack.c.bf16 %v558, %v558
        %v751 = vpack.c.bf16 %v559, %v559
        %v752 = vpack.c.bf16 %v560, %v560
        %v753 = vpack.c.bf16 %v561, %v561
        %v754 = vpack.c.bf16 %v562, %v562
        %v755 = vpack.c.bf16 %v563, %v563
        %v756 = vpack.c.bf16 %v564, %v564
        %v757 = vpack.c.bf16 %v565, %v565
        %v758 = vpack.c.bf16 %v566, %v566
        %v759 = vpack.c.bf16 %v567, %v567
        %v760 = vpack.c.bf16 %v568, %v568
        %v761 = vpack.c.bf16 %v569, %v569
        %v762 = vpack.c.bf16 %v570, %v570
        %v763 = vpack.c.bf16 %v587, %v587
        %v764 = vpack.c.bf16 %v588, %v588
        %v765 = vpack.c.bf16 %v589, %v589
        %v766 = vpack.c.bf16 %v590, %v590
        %v767 = vpack.c.bf16 %v591, %v591
        %v768 = vpack.c.bf16 %v592, %v592
        %v769 = vpack.c.bf16 %v593, %v593
        %v770 = vpack.c.bf16 %v594, %v594
        %v771 = vpack.c.bf16 %v595, %v595
        %v772 = vpack.c.bf16 %v596, %v596
        %v773 = vpack.c.bf16 %v597, %v597
        %v774 = vpack.c.bf16 %v598, %v598
        %v775 = vpack.c.bf16 %v599, %v599
        %v776 = vpack.c.bf16 %v600, %v600
        %v777 = vpack.c.bf16 %v601, %v601
        %v778 = vpack.c.bf16 %v602, %v602
        %v779 = vpack.c.bf16 %v619, %v619
        %v780 = vpack.c.bf16 %v620, %v620
        %v781 = vpack.c.bf16 %v621, %v621
        %v782 = vpack.c.bf16 %v622, %v622
        %v783 = vpack.c.bf16 %v623, %v623
        %v784 = vpack.c.bf16 %v624, %v624
        %v785 = vpack.c.bf16 %v625, %v625
        %v786 = vpack.c.bf16 %v626, %v626
        %v787 = vpack.c.bf16 %v627, %v627
        %v788 = vpack.c.bf16 %v628, %v628
        %v789 = vpack.c.bf16 %v629, %v629
        %v790 = vpack.c.bf16 %v630, %v630
        %v791 = vpack.c.bf16 %v631, %v631
        %v792 = vpack.c.bf16 %v632, %v632
        %v793 = vpack.c.bf16 %v633, %v633
        %v794 = vpack.c.bf16 %v634, %v634
        %v795 = vpack.c.bf16 %v651, %v651
        %v796 = vpack.c.bf16 %v652, %v652
        %v797 = vpack.c.bf16 %v653, %v653
        %v798 = vpack.c.bf16 %v654, %v654
        %v799 = vpack.c.bf16 %v655, %v655
        %v800 = vpack.c.bf16 %v656, %v656
        %v801 = vpack.c.bf16 %v657, %v657
        %v802 = vpack.c.bf16 %v658, %v658
        %v803 = vpack.c.bf16 %v659, %v659
        %v804 = vpack.c.bf16 %v660, %v660
        %v805 = vpack.c.bf16 %v661, %v661
        %v806 = vpack.c.bf16 %v662, %v662
        %v807 = vpack.c.bf16 %v663, %v663
        %v808 = vpack.c.bf16 %v664, %v664
        %v809 = vpack.c.bf16 %v665, %v665
        %v810 = vpack.c.bf16 %v666, %v666
        %v811 = vld [vmem:[%s10] sm:$0x3]
        %v812 = vld [vmem:[%s11] sm:$0x1]
        %v814 = vlaneseq
        %v815 = vshrl.u32 %v814, 7
        %v816 = vsub.s32 0, %v815
        %v817 = vrot.slane %v812, %v816
        %v947 = vunpack.c.l.b16 %v683
        %v948 = vunpack.c.l.b16 %v684
        %v949 = vunpack.c.l.b16 %v685
        %v950 = vunpack.c.l.b16 %v686
        %v951 = vunpack.c.l.b16 %v687
        %v952 = vunpack.c.l.b16 %v688
        %v953 = vunpack.c.l.b16 %v689
        %v954 = vunpack.c.l.b16 %v690
        %v955 = vunpack.c.l.b16 %v691
        %v956 = vunpack.c.l.b16 %v692
        %v957 = vunpack.c.l.b16 %v693
        %v958 = vunpack.c.l.b16 %v694
        %v959 = vunpack.c.l.b16 %v695
        %v960 = vunpack.c.l.b16 %v696
        %v961 = vunpack.c.l.b16 %v697
        %v962 = vunpack.c.l.b16 %v698
        %v963 = vunpack.c.l.b16 %v699
        %v964 = vunpack.c.l.b16 %v700
        %v965 = vunpack.c.l.b16 %v701
        %v966 = vunpack.c.l.b16 %v702
        %v967 = vunpack.c.l.b16 %v703
        %v968 = vunpack.c.l.b16 %v704
        %v969 = vunpack.c.l.b16 %v705
        %v970 = vunpack.c.l.b16 %v706
        %v971 = vunpack.c.l.b16 %v707
        %v972 = vunpack.c.l.b16 %v708
        %v973 = vunpack.c.l.b16 %v709
        %v974 = vunpack.c.l.b16 %v710
        %v975 = vunpack.c.l.b16 %v711
        %v976 = vunpack.c.l.b16 %v712
        %v977 = vunpack.c.l.b16 %v713
        %v978 = vunpack.c.l.b16 %v714
        %v979 = vunpack.c.l.b16 %v715
        %v980 = vunpack.c.l.b16 %v716
        %v981 = vunpack.c.l.b16 %v717
        %v982 = vunpack.c.l.b16 %v718
        %v983 = vunpack.c.l.b16 %v719
        %v984 = vunpack.c.l.b16 %v720
        %v985 = vunpack.c.l.b16 %v721
        %v986 = vunpack.c.l.b16 %v722
        %v987 = vunpack.c.l.b16 %v723
        %v988 = vunpack.c.l.b16 %v724
        %v989 = vunpack.c.l.b16 %v725
        %v990 = vunpack.c.l.b16 %v726
        %v991 = vunpack.c.l.b16 %v727
        %v992 = vunpack.c.l.b16 %v728
        %v993 = vunpack.c.l.b16 %v729
        %v994 = vunpack.c.l.b16 %v730
        %v995 = vunpack.c.l.b16 %v731
        %v996 = vunpack.c.l.b16 %v732
        %v997 = vunpack.c.l.b16 %v733
        %v998 = vunpack.c.l.b16 %v734
        %v999 = vunpack.c.l.b16 %v735
        %v1000 = vunpack.c.l.b16 %v736
        %v1001 = vunpack.c.l.b16 %v737
        %v1002 = vunpack.c.l.b16 %v738
        %v1003 = vunpack.c.l.b16 %v739
        %v1004 = vunpack.c.l.b16 %v740
        %v1005 = vunpack.c.l.b16 %v741
        %v1006 = vunpack.c.l.b16 %v742
        %v1007 = vunpack.c.l.b16 %v743
        %v1008 = vunpack.c.l.b16 %v744
        %v1009 = vunpack.c.l.b16 %v745
        %v1010 = vunpack.c.l.b16 %v746
        %v1011 = vunpack.c.l.b16 %v747
        %v1012 = vunpack.c.l.b16 %v748
        %v1013 = vunpack.c.l.b16 %v749
        %v1014 = vunpack.c.l.b16 %v750
        %v1015 = vunpack.c.l.b16 %v751
        %v1016 = vunpack.c.l.b16 %v752
        %v1017 = vunpack.c.l.b16 %v753
        %v1018 = vunpack.c.l.b16 %v754
        %v1019 = vunpack.c.l.b16 %v755
        %v1020 = vunpack.c.l.b16 %v756
        %v1021 = vunpack.c.l.b16 %v757
        %v1022 = vunpack.c.l.b16 %v758
        %v1023 = vunpack.c.l.b16 %v759
        %v1024 = vunpack.c.l.b16 %v760
        %v1025 = vunpack.c.l.b16 %v761
        %v1026 = vunpack.c.l.b16 %v762
        %v1027 = vunpack.c.l.b16 %v763
        %v1028 = vunpack.c.l.b16 %v764
        %v1029 = vunpack.c.l.b16 %v765
        %v1030 = vunpack.c.l.b16 %v766
        %v1031 = vunpack.c.l.b16 %v767
        %v1032 = vunpack.c.l.b16 %v768
        %v1033 = vunpack.c.l.b16 %v769
        %v1034 = vunpack.c.l.b16 %v770
        %v1035 = vunpack.c.l.b16 %v771
        %v1036 = vunpack.c.l.b16 %v772
        %v1037 = vunpack.c.l.b16 %v773
        %v1038 = vunpack.c.l.b16 %v774
        %v1039 = vunpack.c.l.b16 %v775
        %v1040 = vunpack.c.l.b16 %v776
        %v1041 = vunpack.c.l.b16 %v777
        %v1042 = vunpack.c.l.b16 %v778
        %v1043 = vunpack.c.l.b16 %v779
        %v1044 = vunpack.c.l.b16 %v780
        %v1045 = vunpack.c.l.b16 %v781
        %v1046 = vunpack.c.l.b16 %v782
        %v1047 = vunpack.c.l.b16 %v783
        %v1048 = vunpack.c.l.b16 %v784
        %v1049 = vunpack.c.l.b16 %v785
        %v1050 = vunpack.c.l.b16 %v786
        %v1051 = vunpack.c.l.b16 %v787
        %v1052 = vunpack.c.l.b16 %v788
        %v1053 = vunpack.c.l.b16 %v789
        %v1054 = vunpack.c.l.b16 %v790
        %v1055 = vunpack.c.l.b16 %v791
        %v1056 = vunpack.c.l.b16 %v792
        %v1057 = vunpack.c.l.b16 %v793
        %v1058 = vunpack.c.l.b16 %v794
        %v1059 = vunpack.c.l.b16 %v795
        %v1060 = vunpack.c.l.b16 %v796
        %v1061 = vunpack.c.l.b16 %v797
        %v1062 = vunpack.c.l.b16 %v798
        %v1063 = vunpack.c.l.b16 %v799
        %v1064 = vunpack.c.l.b16 %v800
        %v1065 = vunpack.c.l.b16 %v801
        %v1066 = vunpack.c.l.b16 %v802
        %v1067 = vunpack.c.l.b16 %v803
        %v1068 = vunpack.c.l.b16 %v804
        %v1069 = vunpack.c.l.b16 %v805
        %v1070 = vunpack.c.l.b16 %v806
        %v1071 = vunpack.c.l.b16 %v807
        %v1072 = vunpack.c.l.b16 %v808
        %v1073 = vunpack.c.l.b16 %v809
        %v1074 = vunpack.c.l.b16 %v810
        %v1075 = vrot.slane %v948, 7
        %vm1076 = vcmask 1041409
        %v1077 = vsel %vm1076, %v1075, %v947
        %v1078 = vrot.slane %v949, 6
        %vm1079 = vcmask 1042434
        %v1080 = vsel %vm1079, %v1078, %v1077
        %v1081 = vrot.slane %v950, 5
        %vm1082 = vcmask 1043459
        %v1083 = vsel %vm1082, %v1081, %v1080
        %v1084 = vrot.slane %v951, 4
        %vm1085 = vcmask 1044484
        %v1086 = vsel %vm1085, %v1084, %v1083
        %v1087 = vrot.slane %v952, 3
        %vm1088 = vcmask 1045509
        %v1089 = vsel %vm1088, %v1087, %v1086
        %v1090 = vrot.slane %v953, 2
        %vm1091 = vcmask 1046534
        %v1092 = vsel %vm1091, %v1090, %v1089
        %v1093 = vrot.slane %v954, 1
        %vm1094 = vcmask 1047559
        %v1095 = vsel %vm1094, %v1093, %v1092
        %v1096 = vrot.slane %v956, 7
        %v1097 = vsel %vm1076, %v1096, %v955
        %v1098 = vrot.slane %v957, 6
        %v1099 = vsel %vm1079, %v1098, %v1097
        %v1100 = vrot.slane %v958, 5
        %v1101 = vsel %vm1082, %v1100, %v1099
        %v1102 = vrot.slane %v959, 4
        %v1103 = vsel %vm1085, %v1102, %v1101
        %v1104 = vrot.slane %v960, 3
        %v1105 = vsel %vm1088, %v1104, %v1103
        %v1106 = vrot.slane %v961, 2
        %v1107 = vsel %vm1091, %v1106, %v1105
        %v1108 = vrot.slane %v962, 1
        %v1109 = vsel %vm1094, %v1108, %v1107
        %v1110 = vrot.slane %v964, 7
        %v1111 = vsel %vm1076, %v1110, %v963
        %v1112 = vrot.slane %v965, 6
        %v1113 = vsel %vm1079, %v1112, %v1111
        %v1114 = vrot.slane %v966, 5
        %v1115 = vsel %vm1082, %v1114, %v1113
        %v1116 = vrot.slane %v967, 4
        %v1117 = vsel %vm1085, %v1116, %v1115
        %v1118 = vrot.slane %v968, 3
        %v1119 = vsel %vm1088, %v1118, %v1117
        %v1120 = vrot.slane %v969, 2
        %v1121 = vsel %vm1091, %v1120, %v1119
        %v1122 = vrot.slane %v970, 1
        %v1123 = vsel %vm1094, %v1122, %v1121
        %v1124 = vrot.slane %v972, 7
        %v1125 = vsel %vm1076, %v1124, %v971
        %v1126 = vrot.slane %v973, 6
        %v1127 = vsel %vm1079, %v1126, %v1125
        %v1128 = vrot.slane %v974, 5
        %v1129 = vsel %vm1082, %v1128, %v1127
        %v1130 = vrot.slane %v975, 4
        %v1131 = vsel %vm1085, %v1130, %v1129
        %v1132 = vrot.slane %v976, 3
        %v1133 = vsel %vm1088, %v1132, %v1131
        %v1134 = vrot.slane %v977, 2
        %v1135 = vsel %vm1091, %v1134, %v1133
        %v1136 = vrot.slane %v978, 1
        %v1137 = vsel %vm1094, %v1136, %v1135
        %v1138 = vrot.slane %v980, 7
        %v1139 = vsel %vm1076, %v1138, %v979
        %v1140 = vrot.slane %v981, 6
        %v1141 = vsel %vm1079, %v1140, %v1139
        %v1142 = vrot.slane %v982, 5
        %v1143 = vsel %vm1082, %v1142, %v1141
        %v1144 = vrot.slane %v983, 4
        %v1145 = vsel %vm1085, %v1144, %v1143
        %v1146 = vrot.slane %v984, 3
        %v1147 = vsel %vm1088, %v1146, %v1145
        %v1148 = vrot.slane %v985, 2
        %v1149 = vsel %vm1091, %v1148, %v1147
        %v1150 = vrot.slane %v986, 1
        %v1151 = vsel %vm1094, %v1150, %v1149
        %v1152 = vrot.slane %v988, 7
        %v1153 = vsel %vm1076, %v1152, %v987
        %v1154 = vrot.slane %v989, 6
        %v1155 = vsel %vm1079, %v1154, %v1153
        %v1156 = vrot.slane %v990, 5
        %v1157 = vsel %vm1082, %v1156, %v1155
        %v1158 = vrot.slane %v991, 4
        %v1159 = vsel %vm1085, %v1158, %v1157
        %v1160 = vrot.slane %v992, 3
        %v1161 = vsel %vm1088, %v1160, %v1159
        %v1162 = vrot.slane %v993, 2
        %v1163 = vsel %vm1091, %v1162, %v1161
        %v1164 = vrot.slane %v994, 1
        %v1165 = vsel %vm1094, %v1164, %v1163
        %v1166 = vrot.slane %v996, 7
        %v1167 = vsel %vm1076, %v1166, %v995
        %v1168 = vrot.slane %v997, 6
        %v1169 = vsel %vm1079, %v1168, %v1167
        %v1170 = vrot.slane %v998, 5
        %v1171 = vsel %vm1082, %v1170, %v1169
        %v1172 = vrot.slane %v999, 4
        %v1173 = vsel %vm1085, %v1172, %v1171
        %v1174 = vrot.slane %v1000, 3
        %v1175 = vsel %vm1088, %v1174, %v1173
        %v1176 = vrot.slane %v1001, 2
        %v1177 = vsel %vm1091, %v1176, %v1175
        %v1178 = vrot.slane %v1002, 1
        %v1179 = vsel %vm1094, %v1178, %v1177
        %v1180 = vrot.slane %v1004, 7
        %v1181 = vsel %vm1076, %v1180, %v1003
        %v1182 = vrot.slane %v1005, 6
        %v1183 = vsel %vm1079, %v1182, %v1181
        %v1184 = vrot.slane %v1006, 5
        %v1185 = vsel %vm1082, %v1184, %v1183
        %v1186 = vrot.slane %v1007, 4
        %v1187 = vsel %vm1085, %v1186, %v1185
        %v1188 = vrot.slane %v1008, 3
        %v1189 = vsel %vm1088, %v1188, %v1187
        %v1190 = vrot.slane %v1009, 2
        %v1191 = vsel %vm1091, %v1190, %v1189
        %v1192 = vrot.slane %v1010, 1
        %v1193 = vsel %vm1094, %v1192, %v1191
        %v1194 = vrot.slane %v1012, 7
        %v1195 = vsel %vm1076, %v1194, %v1011
        %v1196 = vrot.slane %v1013, 6
        %v1197 = vsel %vm1079, %v1196, %v1195
        %v1198 = vrot.slane %v1014, 5
        %v1199 = vsel %vm1082, %v1198, %v1197
        %v1200 = vrot.slane %v1015, 4
        %v1201 = vsel %vm1085, %v1200, %v1199
        %v1202 = vrot.slane %v1016, 3
        %v1203 = vsel %vm1088, %v1202, %v1201
        %v1204 = vrot.slane %v1017, 2
        %v1205 = vsel %vm1091, %v1204, %v1203
        %v1206 = vrot.slane %v1018, 1
        %v1207 = vsel %vm1094, %v1206, %v1205
        %v1208 = vrot.slane %v1020, 7
        %v1209 = vsel %vm1076, %v1208, %v1019
        %v1210 = vrot.slane %v1021, 6
        %v1211 = vsel %vm1079, %v1210, %v1209
        %v1212 = vrot.slane %v1022, 5
        %v1213 = vsel %vm1082, %v1212, %v1211
        %v1214 = vrot.slane %v1023, 4
        %v1215 = vsel %vm1085, %v1214, %v1213
        %v1216 = vrot.slane %v1024, 3
        %v1217 = vsel %vm1088, %v1216, %v1215
        %v1218 = vrot.slane %v1025, 2
        %v1219 = vsel %vm1091, %v1218, %v1217
        %v1220 = vrot.slane %v1026, 1
        %v1221 = vsel %vm1094, %v1220, %v1219
        %v1222 = vrot.slane %v1028, 7
        %v1223 = vsel %vm1076, %v1222, %v1027
        %v1224 = vrot.slane %v1029, 6
        %v1225 = vsel %vm1079, %v1224, %v1223
        %v1226 = vrot.slane %v1030, 5
        %v1227 = vsel %vm1082, %v1226, %v1225
        %v1228 = vrot.slane %v1031, 4
        %v1229 = vsel %vm1085, %v1228, %v1227
        %v1230 = vrot.slane %v1032, 3
        %v1231 = vsel %vm1088, %v1230, %v1229
        %v1232 = vrot.slane %v1033, 2
        %v1233 = vsel %vm1091, %v1232, %v1231
        %v1234 = vrot.slane %v1034, 1
        %v1235 = vsel %vm1094, %v1234, %v1233
        %v1236 = vrot.slane %v1036, 7
        %v1237 = vsel %vm1076, %v1236, %v1035
        %v1238 = vrot.slane %v1037, 6
        %v1239 = vsel %vm1079, %v1238, %v1237
        %v1240 = vrot.slane %v1038, 5
        %v1241 = vsel %vm1082, %v1240, %v1239
        %v1242 = vrot.slane %v1039, 4
        %v1243 = vsel %vm1085, %v1242, %v1241
        %v1244 = vrot.slane %v1040, 3
        %v1245 = vsel %vm1088, %v1244, %v1243
        %v1246 = vrot.slane %v1041, 2
        %v1247 = vsel %vm1091, %v1246, %v1245
        %v1248 = vrot.slane %v1042, 1
        %v1249 = vsel %vm1094, %v1248, %v1247
        %v1250 = vrot.slane %v1044, 7
        %v1251 = vsel %vm1076, %v1250, %v1043
        %v1252 = vrot.slane %v1045, 6
        %v1253 = vsel %vm1079, %v1252, %v1251
        %v1254 = vrot.slane %v1046, 5
        %v1255 = vsel %vm1082, %v1254, %v1253
        %v1256 = vrot.slane %v1047, 4
        %v1257 = vsel %vm1085, %v1256, %v1255
        %v1258 = vrot.slane %v1048, 3
        %v1259 = vsel %vm1088, %v1258, %v1257
        %v1260 = vrot.slane %v1049, 2
        %v1261 = vsel %vm1091, %v1260, %v1259
        %v1262 = vrot.slane %v1050, 1
        %v1263 = vsel %vm1094, %v1262, %v1261
        %v1264 = vrot.slane %v1052, 7
        %v1265 = vsel %vm1076, %v1264, %v1051
        %v1266 = vrot.slane %v1053, 6
        %v1267 = vsel %vm1079, %v1266, %v1265
        %v1268 = vrot.slane %v1054, 5
        %v1269 = vsel %vm1082, %v1268, %v1267
        %v1270 = vrot.slane %v1055, 4
        %v1271 = vsel %vm1085, %v1270, %v1269
        %v1272 = vrot.slane %v1056, 3
        %v1273 = vsel %vm1088, %v1272, %v1271
        %v1274 = vrot.slane %v1057, 2
        %v1275 = vsel %vm1091, %v1274, %v1273
        %v1276 = vrot.slane %v1058, 1
        %v1277 = vsel %vm1094, %v1276, %v1275
        %v1278 = vrot.slane %v1060, 7
        %v1279 = vsel %vm1076, %v1278, %v1059
        %v1280 = vrot.slane %v1061, 6
        %v1281 = vsel %vm1079, %v1280, %v1279
        %v1282 = vrot.slane %v1062, 5
        %v1283 = vsel %vm1082, %v1282, %v1281
        %v1284 = vrot.slane %v1063, 4
        %v1285 = vsel %vm1085, %v1284, %v1283
        %v1286 = vrot.slane %v1064, 3
        %v1287 = vsel %vm1088, %v1286, %v1285
        %v1288 = vrot.slane %v1065, 2
        %v1289 = vsel %vm1091, %v1288, %v1287
        %v1290 = vrot.slane %v1066, 1
        %v1291 = vsel %vm1094, %v1290, %v1289
        %v1292 = vrot.slane %v1068, 7
        %v1293 = vsel %vm1076, %v1292, %v1067
        %v1294 = vrot.slane %v1069, 6
        %v1295 = vsel %vm1079, %v1294, %v1293
        %v1296 = vrot.slane %v1070, 5
        %v1297 = vsel %vm1082, %v1296, %v1295
        %v1298 = vrot.slane %v1071, 4
        %v1299 = vsel %vm1085, %v1298, %v1297
        %v1300 = vrot.slane %v1072, 3
        %v1301 = vsel %vm1088, %v1300, %v1299
        %v1302 = vrot.slane %v1073, 2
        %v1303 = vsel %vm1091, %v1302, %v1301
        %v1304 = vrot.slane %v1074, 1
        %v1305 = vsel %vm1094, %v1304, %v1303
        %v1306 = vpack.c.b16 %v1109, %v1095
        %v1307 = vpack.c.b16 %v1137, %v1123
        %v1308 = vpack.c.b16 %v1165, %v1151
        %v1309 = vpack.c.b16 %v1193, %v1179
        %v1310 = vpack.c.b16 %v1221, %v1207
        %v1311 = vpack.c.b16 %v1249, %v1235
        %v1312 = vpack.c.b16 %v1277, %v1263
        %v1313 = vpack.c.b16 %v1305, %v1291
        %vm1314 = vcmask 31744
        %v1316 = vsel %vm1314, %v1306, 0
        %v1319 = vsel %vm1314, %v1307, 0
        %v1322 = vsel %vm1314, %v1308, 0
        %v1325 = vsel %vm1314, %v1309, 0
        %v1328 = vsel %vm1314, %v1310, 0
        %v1331 = vsel %vm1314, %v1311, 0
        %v1334 = vsel %vm1314, %v1312, 0
        %v1337 = vsel %vm1314, %v1313, 0
        %vm1339 = vcmask 1041408
        %v1341 = vsel %vm1339, %v811, 0
        %1343 = vmatprep.subr.bf16.mxu0 0
        %1344 = vmatpush1.bf16.msra.mxu0 0
        %1345 = vmatprep.subr.bf16.mxu0 0
        %1346 = vmatpush1.bf16.msra.mxu0 0
        %1347 = vmatprep.subr.bf16.mxu0 0
        %1348 = vmatpush1.bf16.msra.mxu0 0
        %1349 = vmatprep.subr.bf16.mxu0 0
        %1350 = vmatpush1.bf16.msra.mxu0 0
        %1351 = vmatprep.subr.bf16.mxu0 0
        %1352 = vmatpush1.bf16.msra.mxu0 0
        %1353 = vmatprep.subr.bf16.mxu0 0
        %1354 = vmatpush1.bf16.msra.mxu0 0
        %1355 = vmatprep.subr.bf16.mxu0 0
        %1356 = vmatpush1.bf16.msra.mxu0 0
        %1357 = vmatprep.subr.bf16.mxu0 0
        %1358 = vmatpush1.bf16.msra.mxu0 %v1341
        %1359 = vmatprep.subr.bf16.mxu0 0
        %1360 = vmatpush2.bf16.msra.mxu0 0
        %1361 = vmatprep.subr.bf16.mxu0 0
        %1362 = vmatpush2.bf16.msra.mxu0 0
        %1363 = vmatprep.subr.bf16.mxu0 0
        %1364 = vmatpush2.bf16.msra.mxu0 0
        %1365 = vmatprep.subr.bf16.mxu0 0
        %1366 = vmatpush2.bf16.msra.mxu0 0
        %1367 = vmatprep.subr.bf16.mxu0 0
        %1368 = vmatpush2.bf16.msra.mxu0 0
        %1369 = vmatprep.subr.bf16.mxu0 0
        %1370 = vmatpush2.bf16.msra.mxu0 0
        %1371 = vmatprep.subr.bf16.mxu0 0
        %1372 = vmatpush2.bf16.msra.mxu0 0
        %1373 = vmatprep.subr.bf16.mxu0 0
        %1374 = vmatpush2.bf16.msra.mxu0 0
        %1375 = vmatprep.mubr.bf16.mxu0 0
        %1376 = vmatmul.mubr.bf16.gmra.mxu0 %v1316
        %v1377 = vpop.f32.mrf.mxu0
        %v1378 = vadd.f32 %v817, %v1377
        %v1379 = vpop.f32.mrf.mxu0
        %v1380 = vpop.f32.mrf.mxu0
        %v1381 = vadd.f32 %v817, %v1380
        %v1382 = vpop.f32.mrf.mxu0
        %1383 = vmatprep.mubr.bf16.mxu0 0
        %1384 = vmatmul.mubr.bf16.gmra.mxu0 %v1319
        %v1385 = vpop.f32.mrf.mxu0
        %v1386 = vadd.f32 %v817, %v1385
        %v1387 = vpop.f32.mrf.mxu0
        %v1388 = vpop.f32.mrf.mxu0
        %v1389 = vadd.f32 %v817, %v1388
        %v1390 = vpop.f32.mrf.mxu0
        %1391 = vmatprep.mubr.bf16.mxu0 0
        %1392 = vmatmul.mubr.bf16.gmra.mxu0 %v1322
        %v1393 = vpop.f32.mrf.mxu0
        %v1394 = vadd.f32 %v817, %v1393
        %v1395 = vpop.f32.mrf.mxu0
        %v1396 = vpop.f32.mrf.mxu0
        %v1397 = vadd.f32 %v817, %v1396
        %v1398 = vpop.f32.mrf.mxu0
        %1399 = vmatprep.mubr.bf16.mxu0 0
        %1400 = vmatmul.mubr.bf16.gmra.mxu0 %v1325
        %v1401 = vpop.f32.mrf.mxu0
        %v1402 = vadd.f32 %v817, %v1401
        %v1403 = vpop.f32.mrf.mxu0
        %v1404 = vpop.f32.mrf.mxu0
        %v1405 = vadd.f32 %v817, %v1404
        %v1406 = vpop.f32.mrf.mxu0
        %1407 = vmatprep.mubr.bf16.mxu0 0
        %1408 = vmatmul.mubr.bf16.gmra.mxu0 %v1328
        %v1409 = vpop.f32.mrf.mxu0
        %v1410 = vadd.f32 %v817, %v1409
        %v1411 = vpop.f32.mrf.mxu0
        %v1412 = vpop.f32.mrf.mxu0
        %v1413 = vadd.f32 %v817, %v1412
        %v1414 = vpop.f32.mrf.mxu0
        %1415 = vmatprep.mubr.bf16.mxu0 0
        %1416 = vmatmul.mubr.bf16.gmra.mxu0 %v1331
        %v1417 = vpop.f32.mrf.mxu0
        %v1418 = vadd.f32 %v817, %v1417
        %v1419 = vpop.f32.mrf.mxu0
        %v1420 = vpop.f32.mrf.mxu0
        %v1421 = vadd.f32 %v817, %v1420
        %v1422 = vpop.f32.mrf.mxu0
        %1423 = vmatprep.mubr.bf16.mxu0 0
        %1424 = vmatmul.mubr.bf16.gmra.mxu0 %v1334
        %v1425 = vpop.f32.mrf.mxu0
        %v1426 = vadd.f32 %v817, %v1425
        %v1427 = vpop.f32.mrf.mxu0
        %v1428 = vpop.f32.mrf.mxu0
        %v1429 = vadd.f32 %v817, %v1428
        %v1430 = vpop.f32.mrf.mxu0
        %1431 = vmatprep.mubr.bf16.mxu0 0
        %1432 = vmatmul.mubr.bf16.gmra.mxu0 %v1337
        %v1433 = vpop.f32.mrf.mxu0
        %v1434 = vadd.f32 %v817, %v1433
        %v1435 = vpop.f32.mrf.mxu0
        %v1436 = vpop.f32.mrf.mxu0
        %v1437 = vadd.f32 %v817, %v1436
        %v1438 = vpop.f32.mrf.mxu0
        %1439 = vdwg.mxu0
        %v1440 = vld [vmem:[%s1] sm:$0xf]
        %v1441 = vpack.i.b16 %v1307, %v1306
        %v1443 = vshrl.u32 %v1306, 16
        %v1444 = vshrl.u32 %v1307, 16
        %v1445 = vpack.i.b16 %v1444, %v1443
        %v1447 = vpack.i.b16 %v1309, %v1308
        %v1449 = vshrl.u32 %v1308, 16
        %v1450 = vshrl.u32 %v1309, 16
        %v1451 = vpack.i.b16 %v1450, %v1449
        %v1453 = vpack.i.b16 %v1311, %v1310
        %v1455 = vshrl.u32 %v1310, 16
        %v1456 = vshrl.u32 %v1311, 16
        %v1457 = vpack.i.b16 %v1456, %v1455
        %v1459 = vpack.i.b16 %v1313, %v1312
        %v1461 = vshrl.u32 %v1312, 16
        %v1462 = vshrl.u32 %v1313, 16
        %v1463 = vpack.i.b16 %v1462, %v1461
        %v1465 = vcombine.low %v1441, %v1453
        %v1466 = vcombine.high %v1441, %v1453
        %v1468 = vunpack.c.l.s4 1983009808
        %v1469 = vunpack.c.0.s8 %v1468
        %v1470 = vlaneseq
        %v1471 = vshrl.u32 %v1470, 7
        %v1472 = vsub.s32 %v1469, %v1471
        %v1473 = vrot.slane %v1465, %v1472
        %v1475 = vunpack.c.l.s4 1983009808
        %v1476 = vunpack.c.0.s8 %v1475
        %v1477 = vlaneseq
        %v1478 = vshrl.u32 %v1477, 7
        %v1479 = vsub.s32 %v1476, %v1478
        %v1480 = vrot.slane %v1466, %v1479
        %v1481 = vcombine.low %v1447, %v1459
        %v1482 = vcombine.high %v1447, %v1459
        %v1484 = vunpack.c.l.s4 1983009808
        %v1485 = vunpack.c.0.s8 %v1484
        %v1486 = vlaneseq
        %v1487 = vshrl.u32 %v1486, 7
        %v1488 = vsub.s32 %v1485, %v1487
        %v1489 = vrot.slane %v1481, %v1488
        %v1491 = vunpack.c.l.s4 1983009808
        %v1492 = vunpack.c.0.s8 %v1491
        %v1493 = vlaneseq
        %v1494 = vshrl.u32 %v1493, 7
        %v1495 = vsub.s32 %v1492, %v1494
        %v1496 = vrot.slane %v1482, %v1495
        %v1497 = vcombine.low %v1473, %v1489
        %v1498 = vcombine.high %v1473, %v1489
        %v1500 = vunpack.c.l.s4 1934713408
        %v1501 = vunpack.c.0.s8 %v1500
        %v1502 = vlaneseq
        %v1503 = vshrl.u32 %v1502, 7
        %v1504 = vsub.s32 %v1501, %v1503
        %v1505 = vrot.slane %v1497, %v1504
        %v1507 = vunpack.c.l.s4 1934713408
        %v1508 = vunpack.c.0.s8 %v1507
        %v1509 = vlaneseq
        %v1510 = vshrl.u32 %v1509, 7
        %v1511 = vsub.s32 %v1508, %v1510
        %v1512 = vrot.slane %v1498, %v1511
        %v1513 = vcombine.low %v1480, %v1496
        %v1514 = vcombine.high %v1480, %v1496
        %v1516 = vunpack.c.l.s4 1934713408
        %v1517 = vunpack.c.0.s8 %v1516
        %v1518 = vlaneseq
        %v1519 = vshrl.u32 %v1518, 7
        %v1520 = vsub.s32 %v1517, %v1519
        %v1521 = vrot.slane %v1513, %v1520
        %v1523 = vunpack.c.l.s4 1934713408
        %v1524 = vunpack.c.0.s8 %v1523
        %v1525 = vlaneseq
        %v1526 = vshrl.u32 %v1525, 7
        %v1527 = vsub.s32 %v1524, %v1526
        %v1528 = vrot.slane %v1514, %v1527
        %v1529 = vcombine.high %v1505, 0
        %v1530 = vcombine.high %v1512, 0
        %v1531 = vcombine.high %v1521, 0
        %v1532 = vcombine.high %v1528, 0
        %v1533 = vcombine.low %v1445, %v1457
        %v1534 = vcombine.high %v1445, %v1457
        %v1536 = vunpack.c.l.s4 1983009808
        %v1537 = vunpack.c.0.s8 %v1536
        %v1538 = vlaneseq
        %v1539 = vshrl.u32 %v1538, 7
        %v1540 = vsub.s32 %v1537, %v1539
        %v1541 = vrot.slane %v1533, %v1540
        %v1543 = vunpack.c.l.s4 1983009808
        %v1544 = vunpack.c.0.s8 %v1543
        %v1545 = vlaneseq
        %v1546 = vshrl.u32 %v1545, 7
        %v1547 = vsub.s32 %v1544, %v1546
        %v1548 = vrot.slane %v1534, %v1547
        %v1549 = vcombine.low %v1451, %v1463
        %v1550 = vcombine.high %v1451, %v1463
        %v1552 = vunpack.c.l.s4 1983009808
        %v1553 = vunpack.c.0.s8 %v1552
        %v1554 = vlaneseq
        %v1555 = vshrl.u32 %v1554, 7
        %v1556 = vsub.s32 %v1553, %v1555
        %v1557 = vrot.slane %v1549, %v1556
        %v1559 = vunpack.c.l.s4 1983009808
        %v1560 = vunpack.c.0.s8 %v1559
        %v1561 = vlaneseq
        %v1562 = vshrl.u32 %v1561, 7
        %v1563 = vsub.s32 %v1560, %v1562
        %v1564 = vrot.slane %v1550, %v1563
        %v1565 = vcombine.low %v1541, %v1557
        %v1566 = vcombine.high %v1541, %v1557
        %v1568 = vunpack.c.l.s4 1934713408
        %v1569 = vunpack.c.0.s8 %v1568
        %v1570 = vlaneseq
        %v1571 = vshrl.u32 %v1570, 7
        %v1572 = vsub.s32 %v1569, %v1571
        %v1573 = vrot.slane %v1565, %v1572
        %v1575 = vunpack.c.l.s4 1934713408
        %v1576 = vunpack.c.0.s8 %v1575
        %v1577 = vlaneseq
        %v1578 = vshrl.u32 %v1577, 7
        %v1579 = vsub.s32 %v1576, %v1578
        %v1580 = vrot.slane %v1566, %v1579
        %v1581 = vcombine.low %v1548, %v1564
        %v1582 = vcombine.high %v1548, %v1564
        %v1584 = vunpack.c.l.s4 1934713408
        %v1585 = vunpack.c.0.s8 %v1584
        %v1586 = vlaneseq
        %v1587 = vshrl.u32 %v1586, 7
        %v1588 = vsub.s32 %v1585, %v1587
        %v1589 = vrot.slane %v1581, %v1588
        %v1591 = vunpack.c.l.s4 1934713408
        %v1592 = vunpack.c.0.s8 %v1591
        %v1593 = vlaneseq
        %v1594 = vshrl.u32 %v1593, 7
        %v1595 = vsub.s32 %v1592, %v1594
        %v1596 = vrot.slane %v1582, %v1595
        %v1597 = vcombine.high %v1573, 0
        %v1598 = vcombine.high %v1580, 0
        %v1599 = vcombine.high %v1589, 0
        %v1600 = vcombine.high %v1596, 0
        %1602 = vrot.lane.b32.xlu0 %v1573, 4
        %v1603 = vpop.permute.xlu0 %1602
        %1605 = vrot.lane.b32.xlu0 %v1529, 8
        %v1606 = vpop.permute.xlu0 %1605
        %1608 = vrot.lane.b32.xlu0 %v1597, 12
        %v1609 = vpop.permute.xlu0 %1608
        %1611 = vrot.lane.b32.xlu0 %v1512, 16
        %v1612 = vpop.permute.xlu0 %1611
        %1614 = vrot.lane.b32.xlu0 %v1580, 20
        %v1615 = vpop.permute.xlu0 %1614
        %1617 = vrot.lane.b32.xlu0 %v1530, 24
        %v1618 = vpop.permute.xlu0 %1617
        %1620 = vrot.lane.b32.xlu0 %v1598, 28
        %v1621 = vpop.permute.xlu0 %1620
        %1623 = vrot.lane.b32.xlu0 %v1521, 32
        %v1624 = vpop.permute.xlu0 %1623
        %1626 = vrot.lane.b32.xlu0 %v1589, 36
        %v1627 = vpop.permute.xlu0 %1626
        %1629 = vrot.lane.b32.xlu0 %v1531, 40
        %v1630 = vpop.permute.xlu0 %1629
        %1632 = vrot.lane.b32.xlu0 %v1599, 44
        %v1633 = vpop.permute.xlu0 %1632
        %1635 = vrot.lane.b32.xlu0 %v1528, 48
        %v1636 = vpop.permute.xlu0 %1635
        %1638 = vrot.lane.b32.xlu0 %v1596, 52
        %v1639 = vpop.permute.xlu0 %1638
        %1641 = vrot.lane.b32.xlu0 %v1532, 56
        %v1642 = vpop.permute.xlu0 %1641
        %1644 = vrot.lane.b32.xlu0 %v1600, 60
        %v1645 = vpop.permute.xlu0 %1644
        %v1648 = vsel %vm1314, %v1505, %v1603
        %vm1649 = vcmask 64512
        %v1651 = vsel %vm1649, %v1648, %v1606
        %vm1652 = vcmask 97280
        %v1654 = vsel %vm1652, %v1651, %v1609
        %vm1655 = vcmask 130048
        %v1657 = vsel %vm1655, %v1654, %v1612
        %vm1658 = vcmask 162816
        %v1660 = vsel %vm1658, %v1657, %v1615
        %vm1661 = vcmask 195584
        %v1663 = vsel %vm1661, %v1660, %v1618
        %vm1664 = vcmask 228352
        %v1666 = vsel %vm1664, %v1663, %v1621
        %vm1667 = vcmask 261120
        %v1669 = vsel %vm1667, %v1666, %v1624
        %vm1670 = vcmask 293888
        %v1672 = vsel %vm1670, %v1669, %v1627
        %vm1673 = vcmask 326656
        %v1675 = vsel %vm1673, %v1672, %v1630
        %vm1676 = vcmask 359424
        %v1678 = vsel %vm1676, %v1675, %v1633
        %vm1679 = vcmask 392192
        %v1681 = vsel %vm1679, %v1678, %v1636
        %vm1682 = vcmask 424960
        %v1684 = vsel %vm1682, %v1681, %v1639
        %vm1685 = vcmask 457728
        %v1687 = vsel %vm1685, %v1684, %v1642
        %vm1688 = vcmask 490496
        %v1690 = vsel %vm1688, %v1687, %v1645
        %v1691 = vcombine.low 0.0, 0.0
        %v1692 = vcombine.high 0.0, 0.0
        %v1694 = vunpack.c.l.s4 1983009808
        %v1695 = vunpack.c.0.s8 %v1694
        %v1696 = vlaneseq
        %v1697 = vshrl.u32 %v1696, 7
        %v1698 = vsub.s32 %v1695, %v1697
        %v1699 = vrot.slane %v1691, %v1698
        %v1701 = vunpack.c.l.s4 1983009808
        %v1702 = vunpack.c.0.s8 %v1701
        %v1703 = vlaneseq
        %v1704 = vshrl.u32 %v1703, 7
        %v1705 = vsub.s32 %v1702, %v1704
        %v1706 = vrot.slane %v1692, %v1705
        %v1707 = vcombine.low %v1699, %v1699
        %v1708 = vcombine.high %v1699, %v1699
        %v1710 = vunpack.c.l.s4 1934713408
        %v1711 = vunpack.c.0.s8 %v1710
        %v1712 = vlaneseq
        %v1713 = vshrl.u32 %v1712, 7
        %v1714 = vsub.s32 %v1711, %v1713
        %v1715 = vrot.slane %v1707, %v1714
        %v1717 = vunpack.c.l.s4 1934713408
        %v1718 = vunpack.c.0.s8 %v1717
        %v1719 = vlaneseq
        %v1720 = vshrl.u32 %v1719, 7
        %v1721 = vsub.s32 %v1718, %v1720
        %v1722 = vrot.slane %v1708, %v1721
        %v1723 = vcombine.low %v1706, %v1706
        %v1724 = vcombine.high %v1706, %v1706
        %v1726 = vunpack.c.l.s4 1934713408
        %v1727 = vunpack.c.0.s8 %v1726
        %v1728 = vlaneseq
        %v1729 = vshrl.u32 %v1728, 7
        %v1730 = vsub.s32 %v1727, %v1729
        %v1731 = vrot.slane %v1723, %v1730
        %v1733 = vunpack.c.l.s4 1934713408
        %v1734 = vunpack.c.0.s8 %v1733
        %v1735 = vlaneseq
        %v1736 = vshrl.u32 %v1735, 7
        %v1737 = vsub.s32 %v1734, %v1736
        %v1738 = vrot.slane %v1724, %v1737
        %v1739 = vcombine.low %v1715, %v1715
        %v1740 = vcombine.high %v1715, %v1715
        %v1741 = vcombine.low %v1722, %v1722
        %v1742 = vcombine.high %v1722, %v1722
        %v1743 = vcombine.low %v1731, %v1731
        %v1744 = vcombine.high %v1731, %v1731
        %v1745 = vcombine.low %v1738, %v1738
        %v1746 = vcombine.high %v1738, %v1738
        %1748 = vrot.lane.b32.xlu0 %v1740, 4
        %v1749 = vpop.permute.xlu0 %1748
        %1752 = vrot.lane.b32.xlu0 %v1741, 8
        %v1753 = vpop.permute.xlu0 %1752
        %1756 = vrot.lane.b32.xlu0 %v1742, 12
        %v1757 = vpop.permute.xlu0 %1756
        %1760 = vrot.lane.b32.xlu0 %v1743, 16
        %v1761 = vpop.permute.xlu0 %1760
        %1764 = vrot.lane.b32.xlu0 %v1744, 20
        %v1765 = vpop.permute.xlu0 %1764
        %1768 = vrot.lane.b32.xlu0 %v1745, 24
        %v1769 = vpop.permute.xlu0 %1768
        %1772 = vrot.lane.b32.xlu0 %v1746, 28
        %v1773 = vpop.permute.xlu0 %1772
        %1776 = vrot.lane.b32.xlu0 %v1739, 32
        %v1777 = vpop.permute.xlu0 %1776
        %1779 = vrot.lane.b32.xlu0 %v1740, 36
        %v1780 = vpop.permute.xlu0 %1779
        %1782 = vrot.lane.b32.xlu0 %v1741, 40
        %v1783 = vpop.permute.xlu0 %1782
        %1785 = vrot.lane.b32.xlu0 %v1742, 44
        %v1786 = vpop.permute.xlu0 %1785
        %1788 = vrot.lane.b32.xlu0 %v1743, 48
        %v1789 = vpop.permute.xlu0 %1788
        %1791 = vrot.lane.b32.xlu0 %v1744, 52
        %v1792 = vpop.permute.xlu0 %1791
        %1794 = vrot.lane.b32.xlu0 %v1745, 56
        %v1795 = vpop.permute.xlu0 %1794
        %1797 = vrot.lane.b32.xlu0 %v1746, 60
        %v1798 = vpop.permute.xlu0 %1797
        %v1800 = vsel %vm1314, %v1739, %v1749
        %v1801 = vsel %vm1649, %v1800, %v1753
        %v1802 = vsel %vm1652, %v1801, %v1757
        %v1803 = vsel %vm1655, %v1802, %v1761
        %v1804 = vsel %vm1658, %v1803, %v1765
        %v1805 = vsel %vm1661, %v1804, %v1769
        %v1806 = vsel %vm1664, %v1805, %v1773
        %v1807 = vsel %vm1667, %v1806, %v1777
        %v1808 = vsel %vm1670, %v1807, %v1780
        %v1809 = vsel %vm1673, %v1808, %v1783
        %v1810 = vsel %vm1676, %v1809, %v1786
        %v1811 = vsel %vm1679, %v1810, %v1789
        %v1812 = vsel %vm1682, %v1811, %v1792
        %v1813 = vsel %vm1685, %v1812, %v1795
        %v1814 = vsel %vm1688, %v1813, %v1798
        %v1816 = vsel %vm1649, %v1440, 0
        %vm1818 = vcmask 1043456
        %v1819 = vsel %vm1818, %v1690, 0
        %1821 = vmatprep.subr.bf16.mxu0 0
        %1822 = vmatpush1.bf16.msra.mxu0 0
        %1823 = vmatprep.subr.bf16.mxu0 0
        %1824 = vmatpush1.bf16.msra.mxu0 0
        %1825 = vmatprep.subr.bf16.mxu0 0
        %1826 = vmatpush1.bf16.msra.mxu0 0
        %1827 = vmatprep.subr.bf16.mxu0 0
        %1828 = vmatpush1.bf16.msra.mxu0 0
        %1829 = vmatprep.subr.bf16.mxu0 0
        %1830 = vmatpush1.bf16.msra.mxu0 0
        %1831 = vmatprep.subr.bf16.mxu0 0
        %1832 = vmatpush1.bf16.msra.mxu0 0
        %1833 = vmatprep.subr.bf16.mxu0 0
        %1834 = vmatpush1.bf16.msra.mxu0 0
        %1835 = vmatprep.subr.bf16.mxu0 0
        %1836 = vmatpush1.bf16.msra.mxu0 %v1819
        %1837 = vmatprep.subr.bf16.mxu0 0
        %1838 = vmatpush2.bf16.msra.mxu0 0
        %1839 = vmatprep.subr.bf16.mxu0 0
        %1840 = vmatpush2.bf16.msra.mxu0 0
        %1841 = vmatprep.subr.bf16.mxu0 0
        %1842 = vmatpush2.bf16.msra.mxu0 0
        %1843 = vmatprep.subr.bf16.mxu0 0
        %1844 = vmatpush2.bf16.msra.mxu0 0
        %1845 = vmatprep.subr.bf16.mxu0 0
        %1846 = vmatpush2.bf16.msra.mxu0 0
        %1847 = vmatprep.subr.bf16.mxu0 0
        %1848 = vmatpush2.bf16.msra.mxu0 0
        %1849 = vmatprep.subr.bf16.mxu0 0
        %1850 = vmatpush2.bf16.msra.mxu0 0
        %1851 = vmatprep.subr.bf16.mxu0 0
        %1852 = vmatpush2.bf16.msra.mxu0 0
        %1853 = vmatprep.mubr.bf16.mxu0 0
        %1854 = vmatmul.mubr.bf16.gmra.mxu0 %v1816
        %v1855 = vpop.f32.mrf.mxu0
        %v1856 = vadd.f32 %v1814, %v1855
        %v1857 = vpop.f32.mrf.mxu0
        %v1858 = vpop.f32.mrf.mxu0
        %v1859 = vpop.f32.mrf.mxu0
        %1860 = vdwg.mxu0
        %1862 = vrot.lane.b32.xlu0 %v1856, 124
        %v1863 = vpop.permute.xlu0 %1862
        %1865 = vrot.lane.b32.xlu0 %v1856, 120
        %v1866 = vpop.permute.xlu0 %1865
        %1868 = vrot.lane.b32.xlu0 %v1856, 116
        %v1869 = vpop.permute.xlu0 %1868
        %1871 = vrot.lane.b32.xlu0 %v1856, 112
        %v1872 = vpop.permute.xlu0 %1871
        %1874 = vrot.lane.b32.xlu0 %v1856, 108
        %v1875 = vpop.permute.xlu0 %1874
        %1877 = vrot.lane.b32.xlu0 %v1856, 104
        %v1878 = vpop.permute.xlu0 %1877
        %1880 = vrot.lane.b32.xlu0 %v1856, 100
        %v1881 = vpop.permute.xlu0 %1880
        %1883 = vrot.lane.b32.xlu0 %v1856, 96
        %v1884 = vpop.permute.xlu0 %1883
        %1886 = vrot.lane.b32.xlu0 %v1856, 92
        %v1887 = vpop.permute.xlu0 %1886
        %1889 = vrot.lane.b32.xlu0 %v1856, 88
        %v1890 = vpop.permute.xlu0 %1889
        %1892 = vrot.lane.b32.xlu0 %v1856, 84
        %v1893 = vpop.permute.xlu0 %1892
        %1895 = vrot.lane.b32.xlu0 %v1856, 80
        %v1896 = vpop.permute.xlu0 %1895
        %1898 = vrot.lane.b32.xlu0 %v1856, 76
        %v1899 = vpop.permute.xlu0 %1898
        %1901 = vrot.lane.b32.xlu0 %v1856, 72
        %v1902 = vpop.permute.xlu0 %1901
        %1904 = vrot.lane.b32.xlu0 %v1856, 68
        %v1905 = vpop.permute.xlu0 %1904
        %v1907 = vcombine.low %v1856, %v1866
        %v1908 = vcombine.high %v1856, %v1866
        %v1910 = vunpack.c.l.s4 1983009808
        %v1911 = vunpack.c.0.s8 %v1910
        %v1912 = vlaneseq
        %v1913 = vshrl.u32 %v1912, 7
        %v1914 = vsub.s32 %v1911, %v1913
        %v1915 = vrot.slane %v1907, %v1914
        %v1917 = vunpack.c.l.s4 1983009808
        %v1918 = vunpack.c.0.s8 %v1917
        %v1919 = vlaneseq
        %v1920 = vshrl.u32 %v1919, 7
        %v1921 = vsub.s32 %v1918, %v1920
        %v1922 = vrot.slane %v1908, %v1921
        %v1923 = vcombine.low %v1863, %v1869
        %v1924 = vcombine.high %v1863, %v1869
        %v1926 = vunpack.c.l.s4 1983009808
        %v1927 = vunpack.c.0.s8 %v1926
        %v1928 = vlaneseq
        %v1929 = vshrl.u32 %v1928, 7
        %v1930 = vsub.s32 %v1927, %v1929
        %v1931 = vrot.slane %v1923, %v1930
        %v1933 = vunpack.c.l.s4 1983009808
        %v1934 = vunpack.c.0.s8 %v1933
        %v1935 = vlaneseq
        %v1936 = vshrl.u32 %v1935, 7
        %v1937 = vsub.s32 %v1934, %v1936
        %v1938 = vrot.slane %v1924, %v1937
        %v1939 = vcombine.low %v1872, %v1878
        %v1940 = vcombine.high %v1872, %v1878
        %v1942 = vunpack.c.l.s4 1983009808
        %v1943 = vunpack.c.0.s8 %v1942
        %v1944 = vlaneseq
        %v1945 = vshrl.u32 %v1944, 7
        %v1946 = vsub.s32 %v1943, %v1945
        %v1947 = vrot.slane %v1939, %v1946
        %v1949 = vunpack.c.l.s4 1983009808
        %v1950 = vunpack.c.0.s8 %v1949
        %v1951 = vlaneseq
        %v1952 = vshrl.u32 %v1951, 7
        %v1953 = vsub.s32 %v1950, %v1952
        %v1954 = vrot.slane %v1940, %v1953
        %v1955 = vcombine.low %v1875, %v1881
        %v1956 = vcombine.high %v1875, %v1881
        %v1958 = vunpack.c.l.s4 1983009808
        %v1959 = vunpack.c.0.s8 %v1958
        %v1960 = vlaneseq
        %v1961 = vshrl.u32 %v1960, 7
        %v1962 = vsub.s32 %v1959, %v1961
        %v1963 = vrot.slane %v1955, %v1962
        %v1965 = vunpack.c.l.s4 1983009808
        %v1966 = vunpack.c.0.s8 %v1965
        %v1967 = vlaneseq
        %v1968 = vshrl.u32 %v1967, 7
        %v1969 = vsub.s32 %v1966, %v1968
        %v1970 = vrot.slane %v1956, %v1969
        %v1971 = vcombine.low %v1915, %v1931
        %v1972 = vcombine.high %v1915, %v1931
        %v1974 = vunpack.c.l.s4 1934713408
        %v1975 = vunpack.c.0.s8 %v1974
        %v1976 = vlaneseq
        %v1977 = vshrl.u32 %v1976, 7
        %v1978 = vsub.s32 %v1975, %v1977
        %v1979 = vrot.slane %v1971, %v1978
        %v1981 = vunpack.c.l.s4 1934713408
        %v1982 = vunpack.c.0.s8 %v1981
        %v1983 = vlaneseq
        %v1984 = vshrl.u32 %v1983, 7
        %v1985 = vsub.s32 %v1982, %v1984
        %v1986 = vrot.slane %v1972, %v1985
        %v1987 = vcombine.low %v1922, %v1938
        %v1988 = vcombine.high %v1922, %v1938
        %v1990 = vunpack.c.l.s4 1934713408
        %v1991 = vunpack.c.0.s8 %v1990
        %v1992 = vlaneseq
        %v1993 = vshrl.u32 %v1992, 7
        %v1994 = vsub.s32 %v1991, %v1993
        %v1995 = vrot.slane %v1987, %v1994
        %v1997 = vunpack.c.l.s4 1934713408
        %v1998 = vunpack.c.0.s8 %v1997
        %v1999 = vlaneseq
        %v2000 = vshrl.u32 %v1999, 7
        %v2001 = vsub.s32 %v1998, %v2000
        %v2002 = vrot.slane %v1988, %v2001
        %v2003 = vcombine.low %v1947, %v1963
        %v2004 = vcombine.high %v1947, %v1963
        %v2006 = vunpack.c.l.s4 1934713408
        %v2007 = vunpack.c.0.s8 %v2006
        %v2008 = vlaneseq
        %v2009 = vshrl.u32 %v2008, 7
        %v2010 = vsub.s32 %v2007, %v2009
        %v2011 = vrot.slane %v2003, %v2010
        %v2013 = vunpack.c.l.s4 1934713408
        %v2014 = vunpack.c.0.s8 %v2013
        %v2015 = vlaneseq
        %v2016 = vshrl.u32 %v2015, 7
        %v2017 = vsub.s32 %v2014, %v2016
        %v2018 = vrot.slane %v2004, %v2017
        %v2019 = vcombine.low %v1954, %v1970
        %v2020 = vcombine.high %v1954, %v1970
        %v2022 = vunpack.c.l.s4 1934713408
        %v2023 = vunpack.c.0.s8 %v2022
        %v2024 = vlaneseq
        %v2025 = vshrl.u32 %v2024, 7
        %v2026 = vsub.s32 %v2023, %v2025
        %v2027 = vrot.slane %v2019, %v2026
        %v2029 = vunpack.c.l.s4 1934713408
        %v2030 = vunpack.c.0.s8 %v2029
        %v2031 = vlaneseq
        %v2032 = vshrl.u32 %v2031, 7
        %v2033 = vsub.s32 %v2030, %v2032
        %v2034 = vrot.slane %v2020, %v2033
        %v2035 = vcombine.low %v1979, %v2011
        %v2036 = vcombine.high %v1979, %v2011
        %v2037 = vcombine.low %v1986, %v2018
        %v2038 = vcombine.high %v1986, %v2018
        %v2039 = vcombine.low %v1995, %v2027
        %v2040 = vcombine.high %v1995, %v2027
        %v2041 = vcombine.low %v2002, %v2034
        %v2042 = vcombine.high %v2002, %v2034
        %v2043 = vcombine.low %v1884, %v1890
        %v2044 = vcombine.high %v1884, %v1890
        %v2046 = vunpack.c.l.s4 1983009808
        %v2047 = vunpack.c.0.s8 %v2046
        %v2048 = vlaneseq
        %v2049 = vshrl.u32 %v2048, 7
        %v2050 = vsub.s32 %v2047, %v2049
        %v2051 = vrot.slane %v2043, %v2050
        %v2053 = vunpack.c.l.s4 1983009808
        %v2054 = vunpack.c.0.s8 %v2053
        %v2055 = vlaneseq
        %v2056 = vshrl.u32 %v2055, 7
        %v2057 = vsub.s32 %v2054, %v2056
        %v2058 = vrot.slane %v2044, %v2057
        %v2059 = vcombine.low %v1887, %v1893
        %v2060 = vcombine.high %v1887, %v1893
        %v2062 = vunpack.c.l.s4 1983009808
        %v2063 = vunpack.c.0.s8 %v2062
        %v2064 = vlaneseq
        %v2065 = vshrl.u32 %v2064, 7
        %v2066 = vsub.s32 %v2063, %v2065
        %v2067 = vrot.slane %v2059, %v2066
        %v2069 = vunpack.c.l.s4 1983009808
        %v2070 = vunpack.c.0.s8 %v2069
        %v2071 = vlaneseq
        %v2072 = vshrl.u32 %v2071, 7
        %v2073 = vsub.s32 %v2070, %v2072
        %v2074 = vrot.slane %v2060, %v2073
        %v2075 = vcombine.low %v1896, %v1902
        %v2076 = vcombine.high %v1896, %v1902
        %v2078 = vunpack.c.l.s4 1983009808
        %v2079 = vunpack.c.0.s8 %v2078
        %v2080 = vlaneseq
        %v2081 = vshrl.u32 %v2080, 7
        %v2082 = vsub.s32 %v2079, %v2081
        %v2083 = vrot.slane %v2075, %v2082
        %v2085 = vunpack.c.l.s4 1983009808
        %v2086 = vunpack.c.0.s8 %v2085
        %v2087 = vlaneseq
        %v2088 = vshrl.u32 %v2087, 7
        %v2089 = vsub.s32 %v2086, %v2088
        %v2090 = vrot.slane %v2076, %v2089
        %v2091 = vcombine.low %v1899, %v1905
        %v2092 = vcombine.high %v1899, %v1905
        %v2094 = vunpack.c.l.s4 1983009808
        %v2095 = vunpack.c.0.s8 %v2094
        %v2096 = vlaneseq
        %v2097 = vshrl.u32 %v2096, 7
        %v2098 = vsub.s32 %v2095, %v2097
        %v2099 = vrot.slane %v2091, %v2098
        %v2101 = vunpack.c.l.s4 1983009808
        %v2102 = vunpack.c.0.s8 %v2101
        %v2103 = vlaneseq
        %v2104 = vshrl.u32 %v2103, 7
        %v2105 = vsub.s32 %v2102, %v2104
        %v2106 = vrot.slane %v2092, %v2105
        %v2107 = vcombine.low %v2051, %v2067
        %v2108 = vcombine.high %v2051, %v2067
        %v2110 = vunpack.c.l.s4 1934713408
        %v2111 = vunpack.c.0.s8 %v2110
        %v2112 = vlaneseq
        %v2113 = vshrl.u32 %v2112, 7
        %v2114 = vsub.s32 %v2111, %v2113
        %v2115 = vrot.slane %v2107, %v2114
        %v2117 = vunpack.c.l.s4 1934713408
        %v2118 = vunpack.c.0.s8 %v2117
        %v2119 = vlaneseq
        %v2120 = vshrl.u32 %v2119, 7
        %v2121 = vsub.s32 %v2118, %v2120
        %v2122 = vrot.slane %v2108, %v2121
        %v2123 = vcombine.low %v2058, %v2074
        %v2124 = vcombine.high %v2058, %v2074
        %v2126 = vunpack.c.l.s4 1934713408
        %v2127 = vunpack.c.0.s8 %v2126
        %v2128 = vlaneseq
        %v2129 = vshrl.u32 %v2128, 7
        %v2130 = vsub.s32 %v2127, %v2129
        %v2131 = vrot.slane %v2123, %v2130
        %v2133 = vunpack.c.l.s4 1934713408
        %v2134 = vunpack.c.0.s8 %v2133
        %v2135 = vlaneseq
        %v2136 = vshrl.u32 %v2135, 7
        %v2137 = vsub.s32 %v2134, %v2136
        %v2138 = vrot.slane %v2124, %v2137
        %v2139 = vcombine.low %v2083, %v2099
        %v2140 = vcombine.high %v2083, %v2099
        %v2142 = vunpack.c.l.s4 1934713408
        %v2143 = vunpack.c.0.s8 %v2142
        %v2144 = vlaneseq
        %v2145 = vshrl.u32 %v2144, 7
        %v2146 = vsub.s32 %v2143, %v2145
        %v2147 = vrot.slane %v2139, %v2146
        %v2149 = vunpack.c.l.s4 1934713408
        %v2150 = vunpack.c.0.s8 %v2149
        %v2151 = vlaneseq
        %v2152 = vshrl.u32 %v2151, 7
        %v2153 = vsub.s32 %v2150, %v2152
        %v2154 = vrot.slane %v2140, %v2153
        %v2155 = vcombine.low %v2090, %v2106
        %v2156 = vcombine.high %v2090, %v2106
        %v2158 = vunpack.c.l.s4 1934713408
        %v2159 = vunpack.c.0.s8 %v2158
        %v2160 = vlaneseq
        %v2161 = vshrl.u32 %v2160, 7
        %v2162 = vsub.s32 %v2159, %v2161
        %v2163 = vrot.slane %v2155, %v2162
        %v2165 = vunpack.c.l.s4 1934713408
        %v2166 = vunpack.c.0.s8 %v2165
        %v2167 = vlaneseq
        %v2168 = vshrl.u32 %v2167, 7
        %v2169 = vsub.s32 %v2166, %v2168
        %v2170 = vrot.slane %v2156, %v2169
        %v2171 = vcombine.low %v2115, %v2147
        %v2172 = vcombine.high %v2115, %v2147
        %v2173 = vcombine.low %v2122, %v2154
        %v2174 = vcombine.high %v2122, %v2154
        %v2175 = vcombine.low %v2131, %v2163
        %v2176 = vcombine.high %v2131, %v2163
        %v2177 = vcombine.low %v2138, %v2170
        %v2178 = vcombine.high %v2138, %v2170
        %v2179 = vpack.c.bf16 %v2171, %v2035
        %v2180 = vpack.c.bf16 %v2172, %v2036
        %v2181 = vpack.c.bf16 %v2173, %v2037
        %v2182 = vpack.c.bf16 %v2174, %v2038
        %v2183 = vpack.c.bf16 %v2175, %v2039
        %v2184 = vpack.c.bf16 %v2176, %v2040
        %v2185 = vpack.c.bf16 %v2177, %v2041
        %v2186 = vpack.c.bf16 %v2178, %v2042
        %v2187 = vld [vmem:[%s2] sm:$0x3]
        %v2188 = vld [vmem:[%s3] sm:$0x1]
        %v2190 = vlaneseq
        %v2191 = vshrl.u32 %v2190, 7
        %v2192 = vsub.s32 0, %v2191
        %v2193 = vrot.slane %v2188, %v2192
        %v2196 = vsel %vm1314, %v2179, 0
        %v2199 = vsel %vm1314, %v2180, 0
        %v2202 = vsel %vm1314, %v2181, 0
        %v2205 = vsel %vm1314, %v2182, 0
        %v2208 = vsel %vm1314, %v2183, 0
        %v2211 = vsel %vm1314, %v2184, 0
        %v2214 = vsel %vm1314, %v2185, 0
        %v2217 = vsel %vm1314, %v2186, 0
        %v2220 = vsel %vm1339, %v2187, 0
        %2222 = vmatprep.subr.bf16.mxu0 0
        %2223 = vmatpush1.bf16.msra.mxu0 0
        %2224 = vmatprep.subr.bf16.mxu0 0
        %2225 = vmatpush1.bf16.msra.mxu0 0
        %2226 = vmatprep.subr.bf16.mxu0 0
        %2227 = vmatpush1.bf16.msra.mxu0 0
        %2228 = vmatprep.subr.bf16.mxu0 0
        %2229 = vmatpush1.bf16.msra.mxu0 0
        %2230 = vmatprep.subr.bf16.mxu0 0
        %2231 = vmatpush1.bf16.msra.mxu0 0
        %2232 = vmatprep.subr.bf16.mxu0 0
        %2233 = vmatpush1.bf16.msra.mxu0 0
        %2234 = vmatprep.subr.bf16.mxu0 0
        %2235 = vmatpush1.bf16.msra.mxu0 0
        %2236 = vmatprep.subr.bf16.mxu0 0
        %2237 = vmatpush1.bf16.msra.mxu0 %v2220
        %2238 = vmatprep.subr.bf16.mxu0 0
        %2239 = vmatpush2.bf16.msra.mxu0 0
        %2240 = vmatprep.subr.bf16.mxu0 0
        %2241 = vmatpush2.bf16.msra.mxu0 0
        %2242 = vmatprep.subr.bf16.mxu0 0
        %2243 = vmatpush2.bf16.msra.mxu0 0
        %2244 = vmatprep.subr.bf16.mxu0 0
        %2245 = vmatpush2.bf16.msra.mxu0 0
        %2246 = vmatprep.subr.bf16.mxu0 0
        %2247 = vmatpush2.bf16.msra.mxu0 0
        %2248 = vmatprep.subr.bf16.mxu0 0
        %2249 = vmatpush2.bf16.msra.mxu0 0
        %2250 = vmatprep.subr.bf16.mxu0 0
        %2251 = vmatpush2.bf16.msra.mxu0 0
        %2252 = vmatprep.subr.bf16.mxu0 0
        %2253 = vmatpush2.bf16.msra.mxu0 0
        %2254 = vmatprep.mubr.bf16.mxu0 0
        %2255 = vmatmul.mubr.bf16.gmra.mxu0 %v2196
        %v2256 = vpop.f32.mrf.mxu0
        %v2257 = vadd.f32 %v2193, %v2256
        %v2258 = vpop.f32.mrf.mxu0
        %v2259 = vpop.f32.mrf.mxu0
        %v2260 = vadd.f32 %v2193, %v2259
        %v2261 = vpop.f32.mrf.mxu0
        %2262 = vmatprep.mubr.bf16.mxu0 0
        %2263 = vmatmul.mubr.bf16.gmra.mxu0 %v2199
        %v2264 = vpop.f32.mrf.mxu0
        %v2265 = vadd.f32 %v2193, %v2264
        %v2266 = vpop.f32.mrf.mxu0
        %v2267 = vpop.f32.mrf.mxu0
        %v2268 = vadd.f32 %v2193, %v2267
        %v2269 = vpop.f32.mrf.mxu0
        %2270 = vmatprep.mubr.bf16.mxu0 0
        %2271 = vmatmul.mubr.bf16.gmra.mxu0 %v2202
        %v2272 = vpop.f32.mrf.mxu0
        %v2273 = vadd.f32 %v2193, %v2272
        %v2274 = vpop.f32.mrf.mxu0
        %v2275 = vpop.f32.mrf.mxu0
        %v2276 = vadd.f32 %v2193, %v2275
        %v2277 = vpop.f32.mrf.mxu0
        %2278 = vmatprep.mubr.bf16.mxu0 0
        %2279 = vmatmul.mubr.bf16.gmra.mxu0 %v2205
        %v2280 = vpop.f32.mrf.mxu0
        %v2281 = vadd.f32 %v2193, %v2280
        %v2282 = vpop.f32.mrf.mxu0
        %v2283 = vpop.f32.mrf.mxu0
        %v2284 = vadd.f32 %v2193, %v2283
        %v2285 = vpop.f32.mrf.mxu0
        %2286 = vmatprep.mubr.bf16.mxu0 0
        %2287 = vmatmul.mubr.bf16.gmra.mxu0 %v2208
        %v2288 = vpop.f32.mrf.mxu0
        %v2289 = vadd.f32 %v2193, %v2288
        %v2290 = vpop.f32.mrf.mxu0
        %v2291 = vpop.f32.mrf.mxu0
        %v2292 = vadd.f32 %v2193, %v2291
        %v2293 = vpop.f32.mrf.mxu0
        %2294 = vmatprep.mubr.bf16.mxu0 0
        %2295 = vmatmul.mubr.bf16.gmra.mxu0 %v2211
        %v2296 = vpop.f32.mrf.mxu0
        %v2297 = vadd.f32 %v2193, %v2296
        %v2298 = vpop.f32.mrf.mxu0
        %v2299 = vpop.f32.mrf.mxu0
        %v2300 = vadd.f32 %v2193, %v2299
        %v2301 = vpop.f32.mrf.mxu0
        %2302 = vmatprep.mubr.bf16.mxu0 0
        %2303 = vmatmul.mubr.bf16.gmra.mxu0 %v2214
        %v2304 = vpop.f32.mrf.mxu0
        %v2305 = vadd.f32 %v2193, %v2304
        %v2306 = vpop.f32.mrf.mxu0
        %v2307 = vpop.f32.mrf.mxu0
        %v2308 = vadd.f32 %v2193, %v2307
        %v2309 = vpop.f32.mrf.mxu0
        %2310 = vmatprep.mubr.bf16.mxu0 0
        %2311 = vmatmul.mubr.bf16.gmra.mxu0 %v2217
        %v2312 = vpop.f32.mrf.mxu0
        %v2313 = vadd.f32 %v2193, %v2312
        %v2314 = vpop.f32.mrf.mxu0
        %v2315 = vpop.f32.mrf.mxu0
        %v2316 = vadd.f32 %v2193, %v2315
        %v2317 = vpop.f32.mrf.mxu0
        %2318 = vdwg.mxu0
        %v2319 = vmax.f32 %v2257, 0.0
        %v2320 = vmax.f32 %v2260, 0.0
        %v2321 = vmax.f32 %v2265, 0.0
        %v2322 = vmax.f32 %v2268, 0.0
        %v2323 = vmax.f32 %v2273, 0.0
        %v2324 = vmax.f32 %v2276, 0.0
        %v2325 = vmax.f32 %v2281, 0.0
        %v2326 = vmax.f32 %v2284, 0.0
        %v2327 = vmax.f32 %v2289, 0.0
        %v2328 = vmax.f32 %v2292, 0.0
        %v2329 = vmax.f32 %v2297, 0.0
        %v2330 = vmax.f32 %v2300, 0.0
        %v2331 = vmax.f32 %v2305, 0.0
        %v2332 = vmax.f32 %v2308, 0.0
        %v2333 = vmax.f32 %v2313, 0.0
        %v2334 = vmax.f32 %v2316, 0.0
        %v2335 = vpack.c.bf16 %v2320, %v2319
        %v2336 = vpack.c.bf16 %v2322, %v2321
        %v2337 = vpack.c.bf16 %v2324, %v2323
        %v2338 = vpack.c.bf16 %v2326, %v2325
        %v2339 = vpack.c.bf16 %v2328, %v2327
        %v2340 = vpack.c.bf16 %v2330, %v2329
        %v2341 = vpack.c.bf16 %v2332, %v2331
        %v2342 = vpack.c.bf16 %v2334, %v2333
        %v2343 = vld [vmem:[%s4] sm:$0xf]
        %v2344 = vld [vmem:[%s5] sm:$0x1]
        %v2346 = vlaneseq
        %v2347 = vshrl.u32 %v2346, 7
        %v2348 = vsub.s32 0, %v2347
        %v2349 = vrot.slane %v2344, %v2348
        %v2352 = vsel %vm1649, %v2335, 0
        %v2355 = vsel %vm1649, %v2336, 0
        %v2358 = vsel %vm1649, %v2337, 0
        %v2361 = vsel %vm1649, %v2338, 0
        %v2364 = vsel %vm1649, %v2339, 0
        %v2367 = vsel %vm1649, %v2340, 0
        %v2370 = vsel %vm1649, %v2341, 0
        %v2373 = vsel %vm1649, %v2342, 0
        %v2376 = vsel %vm1818, %v2343, 0
        %2378 = vmatprep.subr.bf16.mxu0 0
        %2379 = vmatpush1.bf16.msra.mxu0 0
        %2380 = vmatprep.subr.bf16.mxu0 0
        %2381 = vmatpush1.bf16.msra.mxu0 0
        %2382 = vmatprep.subr.bf16.mxu0 0
        %2383 = vmatpush1.bf16.msra.mxu0 0
        %2384 = vmatprep.subr.bf16.mxu0 0
        %2385 = vmatpush1.bf16.msra.mxu0 0
        %2386 = vmatprep.subr.bf16.mxu0 0
        %2387 = vmatpush1.bf16.msra.mxu0 0
        %2388 = vmatprep.subr.bf16.mxu0 0
        %2389 = vmatpush1.bf16.msra.mxu0 0
        %2390 = vmatprep.subr.bf16.mxu0 0
        %2391 = vmatpush1.bf16.msra.mxu0 0
        %2392 = vmatprep.subr.bf16.mxu0 0
        %2393 = vmatpush1.bf16.msra.mxu0 %v2376
        %2394 = vmatprep.subr.bf16.mxu0 0
        %2395 = vmatpush2.bf16.msra.mxu0 0
        %2396 = vmatprep.subr.bf16.mxu0 0
        %2397 = vmatpush2.bf16.msra.mxu0 0
        %2398 = vmatprep.subr.bf16.mxu0 0
        %2399 = vmatpush2.bf16.msra.mxu0 0
        %2400 = vmatprep.subr.bf16.mxu0 0
        %2401 = vmatpush2.bf16.msra.mxu0 0
        %2402 = vmatprep.subr.bf16.mxu0 0
        %2403 = vmatpush2.bf16.msra.mxu0 0
        %2404 = vmatprep.subr.bf16.mxu0 0
        %2405 = vmatpush2.bf16.msra.mxu0 0
        %2406 = vmatprep.subr.bf16.mxu0 0
        %2407 = vmatpush2.bf16.msra.mxu0 0
        %2408 = vmatprep.subr.bf16.mxu0 0
        %2409 = vmatpush2.bf16.msra.mxu0 0
        %2410 = vmatprep.mubr.bf16.mxu0 0
        %2411 = vmatmul.mubr.bf16.gmra.mxu0 %v2352
        %v2412 = vpop.f32.mrf.mxu0
        %v2413 = vadd.f32 %v2349, %v2412
        %v2414 = vpop.f32.mrf.mxu0
        %v2415 = vpop.f32.mrf.mxu0
        %v2416 = vadd.f32 %v2349, %v2415
        %v2417 = vpop.f32.mrf.mxu0
        %2418 = vmatprep.mubr.bf16.mxu0 0
        %2419 = vmatmul.mubr.bf16.gmra.mxu0 %v2355
        %v2420 = vpop.f32.mrf.mxu0
        %v2421 = vadd.f32 %v2349, %v2420
        %v2422 = vpop.f32.mrf.mxu0
        %v2423 = vpop.f32.mrf.mxu0
        %v2424 = vadd.f32 %v2349, %v2423
        %v2425 = vpop.f32.mrf.mxu0
        %2426 = vmatprep.mubr.bf16.mxu0 0
        %2427 = vmatmul.mubr.bf16.gmra.mxu0 %v2358
        %v2428 = vpop.f32.mrf.mxu0
        %v2429 = vadd.f32 %v2349, %v2428
        %v2430 = vpop.f32.mrf.mxu0
        %v2431 = vpop.f32.mrf.mxu0
        %v2432 = vadd.f32 %v2349, %v2431
        %v2433 = vpop.f32.mrf.mxu0
        %2434 = vmatprep.mubr.bf16.mxu0 0
        %2435 = vmatmul.mubr.bf16.gmra.mxu0 %v2361
        %v2436 = vpop.f32.mrf.mxu0
        %v2437 = vadd.f32 %v2349, %v2436
        %v2438 = vpop.f32.mrf.mxu0
        %v2439 = vpop.f32.mrf.mxu0
        %v2440 = vadd.f32 %v2349, %v2439
        %v2441 = vpop.f32.mrf.mxu0
        %2442 = vmatprep.mubr.bf16.mxu0 0
        %2443 = vmatmul.mubr.bf16.gmra.mxu0 %v2364
        %v2444 = vpop.f32.mrf.mxu0
        %v2445 = vadd.f32 %v2349, %v2444
        %v2446 = vpop.f32.mrf.mxu0
        %v2447 = vpop.f32.mrf.mxu0
        %v2448 = vadd.f32 %v2349, %v2447
        %v2449 = vpop.f32.mrf.mxu0
        %2450 = vmatprep.mubr.bf16.mxu0 0
        %2451 = vmatmul.mubr.bf16.gmra.mxu0 %v2367
        %v2452 = vpop.f32.mrf.mxu0
        %v2453 = vadd.f32 %v2349, %v2452
        %v2454 = vpop.f32.mrf.mxu0
        %v2455 = vpop.f32.mrf.mxu0
        %v2456 = vadd.f32 %v2349, %v2455
        %v2457 = vpop.f32.mrf.mxu0
        %2458 = vmatprep.mubr.bf16.mxu0 0
        %2459 = vmatmul.mubr.bf16.gmra.mxu0 %v2370
        %v2460 = vpop.f32.mrf.mxu0
        %v2461 = vadd.f32 %v2349, %v2460
        %v2462 = vpop.f32.mrf.mxu0
        %v2463 = vpop.f32.mrf.mxu0
        %v2464 = vadd.f32 %v2349, %v2463
        %v2465 = vpop.f32.mrf.mxu0
        %2466 = vmatprep.mubr.bf16.mxu0 0
        %2467 = vmatmul.mubr.bf16.gmra.mxu0 %v2373
        %v2468 = vpop.f32.mrf.mxu0
        %v2469 = vadd.f32 %v2349, %v2468
        %v2470 = vpop.f32.mrf.mxu0
        %v2471 = vpop.f32.mrf.mxu0
        %v2472 = vadd.f32 %v2349, %v2471
        %v2473 = vpop.f32.mrf.mxu0
        %2474 = vdwg.mxu0
        %v2475 = vpack.c.bf16 %v2416, %v2413
        %v2476 = vpack.c.bf16 %v2424, %v2421
        %v2477 = vpack.c.bf16 %v2432, %v2429
        %v2478 = vpack.c.bf16 %v2440, %v2437
        %v2479 = vpack.c.bf16 %v2448, %v2445
        %v2480 = vpack.c.bf16 %v2456, %v2453
        %v2481 = vpack.c.bf16 %v2464, %v2461
        %v2482 = vpack.c.bf16 %v2472, %v2469
        %2484 = vrot.lane.b32.xlu0 %v2475, 120
        %v2485 = vpop.permute.xlu0 %2484
        %vm2486 = vcmask 15360
        %v2488 = vsel %vm2486, %v2475, 0
        %v2491 = vsel %vm2486, %v2485, 0
        %2493 = vmatprep.subr.bf16.mxu0 0
        %2494 = vmatpush1.bf16.xpose.msra.mxu0 0
        %2495 = vmatprep.subr.bf16.mxu0 0
        %2496 = vmatpush1.bf16.xpose.msra.mxu0 0
        %2497 = vmatprep.subr.bf16.mxu0 0
        %2498 = vmatpush1.bf16.xpose.msra.mxu0 0
        %2499 = vmatprep.subr.bf16.mxu0 0
        %2500 = vmatpush1.bf16.xpose.msra.mxu0 0
        %2501 = vmatprep.subr.bf16.mxu0 0
        %2502 = vmatpush1.bf16.xpose.msra.mxu0 0
        %2503 = vmatprep.subr.bf16.mxu0 0
        %2504 = vmatpush1.bf16.xpose.msra.mxu0 0
        %2505 = vmatprep.subr.bf16.mxu0 0
        %2506 = vmatpush1.bf16.xpose.msra.mxu0 0
        %2507 = vmatprep.subr.bf16.mxu0 0
        %2508 = vmatpush1.bf16.xpose.msra.mxu0 %v2491
        %2509 = vmatprep.subr.bf16.mxu0 0
        %2510 = vmatpush2.bf16.xpose.msra.mxu0 0
        %2511 = vmatprep.subr.bf16.mxu0 0
        %2512 = vmatpush2.bf16.xpose.msra.mxu0 0
        %2513 = vmatprep.subr.bf16.mxu0 0
        %2514 = vmatpush2.bf16.xpose.msra.mxu0 0
        %2515 = vmatprep.subr.bf16.mxu0 0
        %2516 = vmatpush2.bf16.xpose.msra.mxu0 0
        %2517 = vmatprep.subr.bf16.mxu0 0
        %2518 = vmatpush2.bf16.xpose.msra.mxu0 0
        %2519 = vmatprep.subr.bf16.mxu0 0
        %2520 = vmatpush2.bf16.xpose.msra.mxu0 0
        %2521 = vmatprep.subr.bf16.mxu0 0
        %2522 = vmatpush2.bf16.xpose.msra.mxu0 0
        %2523 = vmatprep.subr.bf16.mxu0 0
        %2524 = vmatpush2.bf16.xpose.msra.mxu0 0
        %2525 = vmatprep.mubr.bf16.mxu0 0
        %2526 = vmatmul.mubr.bf16.gmra.mxu0 %v2488
        %v2527 = vpop.f32.mrf.mxu0
        %v2528 = vadd.f32 0.0, %v2527
        %v2529 = vpop.f32.mrf.mxu0
        %v2530 = vpop.f32.mrf.mxu0
        %v2531 = vadd.f32 0.0, %v2530
        %v2532 = vpop.f32.mrf.mxu0
        %2533 = vdwg.mxu0
        %2535 = vrot.lane.b32.xlu0 %v2476, 120
        %v2536 = vpop.permute.xlu0 %2535
        %v2538 = vsel %vm2486, %v2476, 0
        %v2541 = vsel %vm2486, %v2536, 0
        %2543 = vmatprep.subr.bf16.mxu0 0
        %2544 = vmatpush1.bf16.xpose.msra.mxu0 0
        %2545 = vmatprep.subr.bf16.mxu0 0
        %2546 = vmatpush1.bf16.xpose.msra.mxu0 0
        %2547 = vmatprep.subr.bf16.mxu0 0
        %2548 = vmatpush1.bf16.xpose.msra.mxu0 0
        %2549 = vmatprep.subr.bf16.mxu0 0
        %2550 = vmatpush1.bf16.xpose.msra.mxu0 0
        %2551 = vmatprep.subr.bf16.mxu0 0
        %2552 = vmatpush1.bf16.xpose.msra.mxu0 0
        %2553 = vmatprep.subr.bf16.mxu0 0
        %2554 = vmatpush1.bf16.xpose.msra.mxu0 0
        %2555 = vmatprep.subr.bf16.mxu0 0
        %2556 = vmatpush1.bf16.xpose.msra.mxu0 0
        %2557 = vmatprep.subr.bf16.mxu0 0
        %2558 = vmatpush1.bf16.xpose.msra.mxu0 %v2541
        %2559 = vmatprep.subr.bf16.mxu0 0
        %2560 = vmatpush2.bf16.xpose.msra.mxu0 0
        %2561 = vmatprep.subr.bf16.mxu0 0
        %2562 = vmatpush2.bf16.xpose.msra.mxu0 0
        %2563 = vmatprep.subr.bf16.mxu0 0
        %2564 = vmatpush2.bf16.xpose.msra.mxu0 0
        %2565 = vmatprep.subr.bf16.mxu0 0
        %2566 = vmatpush2.bf16.xpose.msra.mxu0 0
        %2567 = vmatprep.subr.bf16.mxu0 0
        %2568 = vmatpush2.bf16.xpose.msra.mxu0 0
        %2569 = vmatprep.subr.bf16.mxu0 0
        %2570 = vmatpush2.bf16.xpose.msra.mxu0 0
        %2571 = vmatprep.subr.bf16.mxu0 0
        %2572 = vmatpush2.bf16.xpose.msra.mxu0 0
        %2573 = vmatprep.subr.bf16.mxu0 0
        %2574 = vmatpush2.bf16.xpose.msra.mxu0 0
        %2575 = vmatprep.mubr.bf16.mxu0 0
        %2576 = vmatmul.mubr.bf16.gmra.mxu0 %v2538
        %v2577 = vpop.f32.mrf.mxu0
        %v2578 = vadd.f32 0.0, %v2577
        %v2579 = vpop.f32.mrf.mxu0
        %v2580 = vpop.f32.mrf.mxu0
        %v2581 = vadd.f32 0.0, %v2580
        %v2582 = vpop.f32.mrf.mxu0
        %2583 = vdwg.mxu0
        %2585 = vrot.lane.b32.xlu0 %v2477, 120
        %v2586 = vpop.permute.xlu0 %2585
        %v2588 = vsel %vm2486, %v2477, 0
        %v2591 = vsel %vm2486, %v2586, 0
        %2593 = vmatprep.subr.bf16.mxu0 0
        %2594 = vmatpush1.bf16.xpose.msra.mxu0 0
        %2595 = vmatprep.subr.bf16.mxu0 0
        %2596 = vmatpush1.bf16.xpose.msra.mxu0 0
        %2597 = vmatprep.subr.bf16.mxu0 0
        %2598 = vmatpush1.bf16.xpose.msra.mxu0 0
        %2599 = vmatprep.subr.bf16.mxu0 0
        %2600 = vmatpush1.bf16.xpose.msra.mxu0 0
        %2601 = vmatprep.subr.bf16.mxu0 0
        %2602 = vmatpush1.bf16.xpose.msra.mxu0 0
        %2603 = vmatprep.subr.bf16.mxu0 0
        %2604 = vmatpush1.bf16.xpose.msra.mxu0 0
        %2605 = vmatprep.subr.bf16.mxu0 0
        %2606 = vmatpush1.bf16.xpose.msra.mxu0 0
        %2607 = vmatprep.subr.bf16.mxu0 0
        %2608 = vmatpush1.bf16.xpose.msra.mxu0 %v2591
        %2609 = vmatprep.subr.bf16.mxu0 0
        %2610 = vmatpush2.bf16.xpose.msra.mxu0 0
        %2611 = vmatprep.subr.bf16.mxu0 0
        %2612 = vmatpush2.bf16.xpose.msra.mxu0 0
        %2613 = vmatprep.subr.bf16.mxu0 0
        %2614 = vmatpush2.bf16.xpose.msra.mxu0 0
        %2615 = vmatprep.subr.bf16.mxu0 0
        %2616 = vmatpush2.bf16.xpose.msra.mxu0 0
        %2617 = vmatprep.subr.bf16.mxu0 0
        %2618 = vmatpush2.bf16.xpose.msra.mxu0 0
        %2619 = vmatprep.subr.bf16.mxu0 0
        %2620 = vmatpush2.bf16.xpose.msra.mxu0 0
        %2621 = vmatprep.subr.bf16.mxu0 0
        %2622 = vmatpush2.bf16.xpose.msra.mxu0 0
        %2623 = vmatprep.subr.bf16.mxu0 0
        %2624 = vmatpush2.bf16.xpose.msra.mxu0 0
        %2625 = vmatprep.mubr.bf16.mxu0 0
        %2626 = vmatmul.mubr.bf16.gmra.mxu0 %v2588
        %v2627 = vpop.f32.mrf.mxu0
        %v2628 = vadd.f32 0.0, %v2627
        %v2629 = vpop.f32.mrf.mxu0
        %v2630 = vpop.f32.mrf.mxu0
        %v2631 = vadd.f32 0.0, %v2630
        %v2632 = vpop.f32.mrf.mxu0
        %2633 = vdwg.mxu0
        %2635 = vrot.lane.b32.xlu0 %v2478, 120
        %v2636 = vpop.permute.xlu0 %2635
        %v2638 = vsel %vm2486, %v2478, 0
        %v2641 = vsel %vm2486, %v2636, 0
        %2643 = vmatprep.subr.bf16.mxu0 0
        %2644 = vmatpush1.bf16.xpose.msra.mxu0 0
        %2645 = vmatprep.subr.bf16.mxu0 0
        %2646 = vmatpush1.bf16.xpose.msra.mxu0 0
        %2647 = vmatprep.subr.bf16.mxu0 0
        %2648 = vmatpush1.bf16.xpose.msra.mxu0 0
        %2649 = vmatprep.subr.bf16.mxu0 0
        %2650 = vmatpush1.bf16.xpose.msra.mxu0 0
        %2651 = vmatprep.subr.bf16.mxu0 0
        %2652 = vmatpush1.bf16.xpose.msra.mxu0 0
        %2653 = vmatprep.subr.bf16.mxu0 0
        %2654 = vmatpush1.bf16.xpose.msra.mxu0 0
        %2655 = vmatprep.subr.bf16.mxu0 0
        %2656 = vmatpush1.bf16.xpose.msra.mxu0 0
        %2657 = vmatprep.subr.bf16.mxu0 0
        %2658 = vmatpush1.bf16.xpose.msra.mxu0 %v2641
        %2659 = vmatprep.subr.bf16.mxu0 0
        %2660 = vmatpush2.bf16.xpose.msra.mxu0 0
        %2661 = vmatprep.subr.bf16.mxu0 0
        %2662 = vmatpush2.bf16.xpose.msra.mxu0 0
        %2663 = vmatprep.subr.bf16.mxu0 0
        %2664 = vmatpush2.bf16.xpose.msra.mxu0 0
        %2665 = vmatprep.subr.bf16.mxu0 0
        %2666 = vmatpush2.bf16.xpose.msra.mxu0 0
        %2667 = vmatprep.subr.bf16.mxu0 0
        %2668 = vmatpush2.bf16.xpose.msra.mxu0 0
        %2669 = vmatprep.subr.bf16.mxu0 0
        %2670 = vmatpush2.bf16.xpose.msra.mxu0 0
        %2671 = vmatprep.subr.bf16.mxu0 0
        %2672 = vmatpush2.bf16.xpose.msra.mxu0 0
        %2673 = vmatprep.subr.bf16.mxu0 0
        %2674 = vmatpush2.bf16.xpose.msra.mxu0 0
        %2675 = vmatprep.mubr.bf16.mxu0 0
        %2676 = vmatmul.mubr.bf16.gmra.mxu0 %v2638
        %v2677 = vpop.f32.mrf.mxu0
        %v2678 = vadd.f32 0.0, %v2677
        %v2679 = vpop.f32.mrf.mxu0
        %v2680 = vpop.f32.mrf.mxu0
        %v2681 = vadd.f32 0.0, %v2680
        %v2682 = vpop.f32.mrf.mxu0
        %2683 = vdwg.mxu0
        %2685 = vrot.lane.b32.xlu0 %v2479, 120
        %v2686 = vpop.permute.xlu0 %2685
        %v2688 = vsel %vm2486, %v2479, 0
        %v2691 = vsel %vm2486, %v2686, 0
        %2693 = vmatprep.subr.bf16.mxu0 0
        %2694 = vmatpush1.bf16.xpose.msra.mxu0 0
        %2695 = vmatprep.subr.bf16.mxu0 0
        %2696 = vmatpush1.bf16.xpose.msra.mxu0 0
        %2697 = vmatprep.subr.bf16.mxu0 0
        %2698 = vmatpush1.bf16.xpose.msra.mxu0 0
        %2699 = vmatprep.subr.bf16.mxu0 0
        %2700 = vmatpush1.bf16.xpose.msra.mxu0 0
        %2701 = vmatprep.subr.bf16.mxu0 0
        %2702 = vmatpush1.bf16.xpose.msra.mxu0 0
        %2703 = vmatprep.subr.bf16.mxu0 0
        %2704 = vmatpush1.bf16.xpose.msra.mxu0 0
        %2705 = vmatprep.subr.bf16.mxu0 0
        %2706 = vmatpush1.bf16.xpose.msra.mxu0 0
        %2707 = vmatprep.subr.bf16.mxu0 0
        %2708 = vmatpush1.bf16.xpose.msra.mxu0 %v2691
        %2709 = vmatprep.subr.bf16.mxu0 0
        %2710 = vmatpush2.bf16.xpose.msra.mxu0 0
        %2711 = vmatprep.subr.bf16.mxu0 0
        %2712 = vmatpush2.bf16.xpose.msra.mxu0 0
        %2713 = vmatprep.subr.bf16.mxu0 0
        %2714 = vmatpush2.bf16.xpose.msra.mxu0 0
        %2715 = vmatprep.subr.bf16.mxu0 0
        %2716 = vmatpush2.bf16.xpose.msra.mxu0 0
        %2717 = vmatprep.subr.bf16.mxu0 0
        %2718 = vmatpush2.bf16.xpose.msra.mxu0 0
        %2719 = vmatprep.subr.bf16.mxu0 0
        %2720 = vmatpush2.bf16.xpose.msra.mxu0 0
        %2721 = vmatprep.subr.bf16.mxu0 0
        %2722 = vmatpush2.bf16.xpose.msra.mxu0 0
        %2723 = vmatprep.subr.bf16.mxu0 0
        %2724 = vmatpush2.bf16.xpose.msra.mxu0 0
        %2725 = vmatprep.mubr.bf16.mxu0 0
        %2726 = vmatmul.mubr.bf16.gmra.mxu0 %v2688
        %v2727 = vpop.f32.mrf.mxu0
        %v2728 = vadd.f32 0.0, %v2727
        %v2729 = vpop.f32.mrf.mxu0
        %v2730 = vpop.f32.mrf.mxu0
        %v2731 = vadd.f32 0.0, %v2730
        %v2732 = vpop.f32.mrf.mxu0
        %2733 = vdwg.mxu0
        %2735 = vrot.lane.b32.xlu0 %v2480, 120
        %v2736 = vpop.permute.xlu0 %2735
        %v2738 = vsel %vm2486, %v2480, 0
        %v2741 = vsel %vm2486, %v2736, 0
        %2743 = vmatprep.subr.bf16.mxu0 0
        %2744 = vmatpush1.bf16.xpose.msra.mxu0 0
        %2745 = vmatprep.subr.bf16.mxu0 0
        %2746 = vmatpush1.bf16.xpose.msra.mxu0 0
        %2747 = vmatprep.subr.bf16.mxu0 0
        %2748 = vmatpush1.bf16.xpose.msra.mxu0 0
        %2749 = vmatprep.subr.bf16.mxu0 0
        %2750 = vmatpush1.bf16.xpose.msra.mxu0 0
        %2751 = vmatprep.subr.bf16.mxu0 0
        %2752 = vmatpush1.bf16.xpose.msra.mxu0 0
        %2753 = vmatprep.subr.bf16.mxu0 0
        %2754 = vmatpush1.bf16.xpose.msra.mxu0 0
        %2755 = vmatprep.subr.bf16.mxu0 0
        %2756 = vmatpush1.bf16.xpose.msra.mxu0 0
        %2757 = vmatprep.subr.bf16.mxu0 0
        %2758 = vmatpush1.bf16.xpose.msra.mxu0 %v2741
        %2759 = vmatprep.subr.bf16.mxu0 0
        %2760 = vmatpush2.bf16.xpose.msra.mxu0 0
        %2761 = vmatprep.subr.bf16.mxu0 0
        %2762 = vmatpush2.bf16.xpose.msra.mxu0 0
        %2763 = vmatprep.subr.bf16.mxu0 0
        %2764 = vmatpush2.bf16.xpose.msra.mxu0 0
        %2765 = vmatprep.subr.bf16.mxu0 0
        %2766 = vmatpush2.bf16.xpose.msra.mxu0 0
        %2767 = vmatprep.subr.bf16.mxu0 0
        %2768 = vmatpush2.bf16.xpose.msra.mxu0 0
        %2769 = vmatprep.subr.bf16.mxu0 0
        %2770 = vmatpush2.bf16.xpose.msra.mxu0 0
        %2771 = vmatprep.subr.bf16.mxu0 0
        %2772 = vmatpush2.bf16.xpose.msra.mxu0 0
        %2773 = vmatprep.subr.bf16.mxu0 0
        %2774 = vmatpush2.bf16.xpose.msra.mxu0 0
        %2775 = vmatprep.mubr.bf16.mxu0 0
        %2776 = vmatmul.mubr.bf16.gmra.mxu0 %v2738
        %v2777 = vpop.f32.mrf.mxu0
        %v2778 = vadd.f32 0.0, %v2777
        %v2779 = vpop.f32.mrf.mxu0
        %v2780 = vpop.f32.mrf.mxu0
        %v2781 = vadd.f32 0.0, %v2780
        %v2782 = vpop.f32.mrf.mxu0
        %2783 = vdwg.mxu0
        %2785 = vrot.lane.b32.xlu0 %v2481, 120
        %v2786 = vpop.permute.xlu0 %2785
        %v2788 = vsel %vm2486, %v2481, 0
        %v2791 = vsel %vm2486, %v2786, 0
        %2793 = vmatprep.subr.bf16.mxu0 0
        %2794 = vmatpush1.bf16.xpose.msra.mxu0 0
        %2795 = vmatprep.subr.bf16.mxu0 0
        %2796 = vmatpush1.bf16.xpose.msra.mxu0 0
        %2797 = vmatprep.subr.bf16.mxu0 0
        %2798 = vmatpush1.bf16.xpose.msra.mxu0 0
        %2799 = vmatprep.subr.bf16.mxu0 0
        %2800 = vmatpush1.bf16.xpose.msra.mxu0 0
        %2801 = vmatprep.subr.bf16.mxu0 0
        %2802 = vmatpush1.bf16.xpose.msra.mxu0 0
        %2803 = vmatprep.subr.bf16.mxu0 0
        %2804 = vmatpush1.bf16.xpose.msra.mxu0 0
        %2805 = vmatprep.subr.bf16.mxu0 0
        %2806 = vmatpush1.bf16.xpose.msra.mxu0 0
        %2807 = vmatprep.subr.bf16.mxu0 0
        %2808 = vmatpush1.bf16.xpose.msra.mxu0 %v2791
        %2809 = vmatprep.subr.bf16.mxu0 0
        %2810 = vmatpush2.bf16.xpose.msra.mxu0 0
        %2811 = vmatprep.subr.bf16.mxu0 0
        %2812 = vmatpush2.bf16.xpose.msra.mxu0 0
        %2813 = vmatprep.subr.bf16.mxu0 0
        %2814 = vmatpush2.bf16.xpose.msra.mxu0 0
        %2815 = vmatprep.subr.bf16.mxu0 0
        %2816 = vmatpush2.bf16.xpose.msra.mxu0 0
        %2817 = vmatprep.subr.bf16.mxu0 0
        %2818 = vmatpush2.bf16.xpose.msra.mxu0 0
        %2819 = vmatprep.subr.bf16.mxu0 0
        %2820 = vmatpush2.bf16.xpose.msra.mxu0 0
        %2821 = vmatprep.subr.bf16.mxu0 0
        %2822 = vmatpush2.bf16.xpose.msra.mxu0 0
        %2823 = vmatprep.subr.bf16.mxu0 0
        %2824 = vmatpush2.bf16.xpose.msra.mxu0 0
        %2825 = vmatprep.mubr.bf16.mxu0 0
        %2826 = vmatmul.mubr.bf16.gmra.mxu0 %v2788
        %v2827 = vpop.f32.mrf.mxu0
        %v2828 = vadd.f32 0.0, %v2827
        %v2829 = vpop.f32.mrf.mxu0
        %v2830 = vpop.f32.mrf.mxu0
        %v2831 = vadd.f32 0.0, %v2830
        %v2832 = vpop.f32.mrf.mxu0
        %2833 = vdwg.mxu0
        %2835 = vrot.lane.b32.xlu0 %v2482, 120
        %v2836 = vpop.permute.xlu0 %2835
        %v2838 = vsel %vm2486, %v2482, 0
        %v2841 = vsel %vm2486, %v2836, 0
        %2843 = vmatprep.subr.bf16.mxu0 0
        %2844 = vmatpush1.bf16.xpose.msra.mxu0 0
        %2845 = vmatprep.subr.bf16.mxu0 0
        %2846 = vmatpush1.bf16.xpose.msra.mxu0 0
        %2847 = vmatprep.subr.bf16.mxu0 0
        %2848 = vmatpush1.bf16.xpose.msra.mxu0 0
        %2849 = vmatprep.subr.bf16.mxu0 0
        %2850 = vmatpush1.bf16.xpose.msra.mxu0 0
        %2851 = vmatprep.subr.bf16.mxu0 0
        %2852 = vmatpush1.bf16.xpose.msra.mxu0 0
        %2853 = vmatprep.subr.bf16.mxu0 0
        %2854 = vmatpush1.bf16.xpose.msra.mxu0 0
        %2855 = vmatprep.subr.bf16.mxu0 0
        %2856 = vmatpush1.bf16.xpose.msra.mxu0 0
        %2857 = vmatprep.subr.bf16.mxu0 0
        %2858 = vmatpush1.bf16.xpose.msra.mxu0 %v2841
        %2859 = vmatprep.subr.bf16.mxu0 0
        %2860 = vmatpush2.bf16.xpose.msra.mxu0 0
        %2861 = vmatprep.subr.bf16.mxu0 0
        %2862 = vmatpush2.bf16.xpose.msra.mxu0 0
        %2863 = vmatprep.subr.bf16.mxu0 0
        %2864 = vmatpush2.bf16.xpose.msra.mxu0 0
        %2865 = vmatprep.subr.bf16.mxu0 0
        %2866 = vmatpush2.bf16.xpose.msra.mxu0 0
        %2867 = vmatprep.subr.bf16.mxu0 0
        %2868 = vmatpush2.bf16.xpose.msra.mxu0 0
        %2869 = vmatprep.subr.bf16.mxu0 0
        %2870 = vmatpush2.bf16.xpose.msra.mxu0 0
        %2871 = vmatprep.subr.bf16.mxu0 0
        %2872 = vmatpush2.bf16.xpose.msra.mxu0 0
        %2873 = vmatprep.subr.bf16.mxu0 0
        %2874 = vmatpush2.bf16.xpose.msra.mxu0 0
        %2875 = vmatprep.mubr.bf16.mxu0 0
        %2876 = vmatmul.mubr.bf16.gmra.mxu0 %v2838
        %v2877 = vpop.f32.mrf.mxu0
        %v2878 = vadd.f32 0.0, %v2877
        %v2879 = vpop.f32.mrf.mxu0
        %v2880 = vpop.f32.mrf.mxu0
        %v2881 = vadd.f32 0.0, %v2880
        %v2882 = vpop.f32.mrf.mxu0
        %2883 = vdwg.mxu0
        %v2884 = vmul.f32 %v2528, 0.70710677
        %v2885 = vmul.f32 %v2531, 0.70710677
        %v2886 = vmul.f32 %v2578, 0.70710677
        %v2887 = vmul.f32 %v2581, 0.70710677
        %v2888 = vmul.f32 %v2628, 0.70710677
        %v2889 = vmul.f32 %v2631, 0.70710677
        %v2890 = vmul.f32 %v2678, 0.70710677
        %v2891 = vmul.f32 %v2681, 0.70710677
        %v2892 = vmul.f32 %v2728, 0.70710677
        %v2893 = vmul.f32 %v2731, 0.70710677
        %v2894 = vmul.f32 %v2778, 0.70710677
        %v2895 = vmul.f32 %v2781, 0.70710677
        %v2896 = vmul.f32 %v2828, 0.70710677
        %v2897 = vmul.f32 %v2831, 0.70710677
        %v2898 = vmul.f32 %v2878, 0.70710677
        %v2899 = vmul.f32 %v2881, 0.70710677
        %v2900 = vsel %vm1655, %v2884, -inf
        %2901 = vmax.xlane.f32.xlu0 %v2900
        %v2902 = vpop.xlane.xlu0 %2901
        %v2903 = vsel %vm1655, %v2885, -inf
        %2904 = vmax.xlane.f32.xlu0 %v2903
        %v2905 = vpop.xlane.xlu0 %2904
        %v2906 = vsel %vm1655, %v2886, -inf
        %2907 = vmax.xlane.f32.xlu0 %v2906
        %v2908 = vpop.xlane.xlu0 %2907
        %v2909 = vsel %vm1655, %v2887, -inf
        %2910 = vmax.xlane.f32.xlu0 %v2909
        %v2911 = vpop.xlane.xlu0 %2910
        %v2912 = vsel %vm1655, %v2888, -inf
        %2913 = vmax.xlane.f32.xlu0 %v2912
        %v2914 = vpop.xlane.xlu0 %2913
        %v2915 = vsel %vm1655, %v2889, -inf
        %2916 = vmax.xlane.f32.xlu0 %v2915
        %v2917 = vpop.xlane.xlu0 %2916
        %v2918 = vsel %vm1655, %v2890, -inf
        %2919 = vmax.xlane.f32.xlu0 %v2918
        %v2920 = vpop.xlane.xlu0 %2919
        %v2921 = vsel %vm1655, %v2891, -inf
        %2922 = vmax.xlane.f32.xlu0 %v2921
        %v2923 = vpop.xlane.xlu0 %2922
        %v2924 = vsel %vm1655, %v2892, -inf
        %2925 = vmax.xlane.f32.xlu0 %v2924
        %v2926 = vpop.xlane.xlu0 %2925
        %v2927 = vsel %vm1655, %v2893, -inf
        %2928 = vmax.xlane.f32.xlu0 %v2927
        %v2929 = vpop.xlane.xlu0 %2928
        %v2930 = vsel %vm1655, %v2894, -inf
        %2931 = vmax.xlane.f32.xlu0 %v2930
        %v2932 = vpop.xlane.xlu0 %2931
        %v2933 = vsel %vm1655, %v2895, -inf
        %2934 = vmax.xlane.f32.xlu0 %v2933
        %v2935 = vpop.xlane.xlu0 %2934
        %v2936 = vsel %vm1655, %v2896, -inf
        %2937 = vmax.xlane.f32.xlu0 %v2936
        %v2938 = vpop.xlane.xlu0 %2937
        %v2939 = vsel %vm1655, %v2897, -inf
        %2940 = vmax.xlane.f32.xlu0 %v2939
        %v2941 = vpop.xlane.xlu0 %2940
        %v2942 = vsel %vm1655, %v2898, -inf
        %2943 = vmax.xlane.f32.xlu0 %v2942
        %v2944 = vpop.xlane.xlu0 %2943
        %v2945 = vsel %vm1655, %v2899, -inf
        %2946 = vmax.xlane.f32.xlu0 %v2945
        %v2947 = vpop.xlane.xlu0 %2946
        %v2948 = vsub.f32 %v2884, %v2902
        %v2949 = vsub.f32 %v2885, %v2905
        %v2950 = vsub.f32 %v2886, %v2908
        %v2951 = vsub.f32 %v2887, %v2911
        %v2952 = vsub.f32 %v2888, %v2914
        %v2953 = vsub.f32 %v2889, %v2917
        %v2954 = vsub.f32 %v2890, %v2920
        %v2955 = vsub.f32 %v2891, %v2923
        %v2956 = vsub.f32 %v2892, %v2926
        %v2957 = vsub.f32 %v2893, %v2929
        %v2958 = vsub.f32 %v2894, %v2932
        %v2959 = vsub.f32 %v2895, %v2935
        %v2960 = vsub.f32 %v2896, %v2938
        %v2961 = vsub.f32 %v2897, %v2941
        %v2962 = vsub.f32 %v2898, %v2944
        %v2963 = vsub.f32 %v2899, %v2947
        %v2964 = vmul.f32 %v2948, 1.442695
        %v2965 = vpow.pop %v2964
        %v2966 = vmul.f32 %v2949, 1.442695
        %v2967 = vpow.pop %v2966
        %v2968 = vmul.f32 %v2950, 1.442695
        %v2969 = vpow.pop %v2968
        %v2970 = vmul.f32 %v2951, 1.442695
        %v2971 = vpow.pop %v2970
        %v2972 = vmul.f32 %v2952, 1.442695
        %v2973 = vpow.pop %v2972
        %v2974 = vmul.f32 %v2953, 1.442695
        %v2975 = vpow.pop %v2974
        %v2976 = vmul.f32 %v2954, 1.442695
        %v2977 = vpow.pop %v2976
        %v2978 = vmul.f32 %v2955, 1.442695
        %v2979 = vpow.pop %v2978
        %v2980 = vmul.f32 %v2956, 1.442695
        %v2981 = vpow.pop %v2980
        %v2982 = vmul.f32 %v2957, 1.442695
        %v2983 = vpow.pop %v2982
        %v2984 = vmul.f32 %v2958, 1.442695
        %v2985 = vpow.pop %v2984
        %v2986 = vmul.f32 %v2959, 1.442695
        %v2987 = vpow.pop %v2986
        %v2988 = vmul.f32 %v2960, 1.442695
        %v2989 = vpow.pop %v2988
        %v2990 = vmul.f32 %v2961, 1.442695
        %v2991 = vpow.pop %v2990
        %v2992 = vmul.f32 %v2962, 1.442695
        %v2993 = vpow.pop %v2992
        %v2994 = vmul.f32 %v2963, 1.442695
        %v2995 = vpow.pop %v2994
        %v2996 = vsel %vm1655, %v2965, 0.0
        %2997 = vadd.xlane.f32.xlu0 %v2996
        %v2998 = vpop.xlane.xlu0 %2997
        %v2999 = vsel %vm1655, %v2967, 0.0
        %3000 = vadd.xlane.f32.xlu0 %v2999
        %v3001 = vpop.xlane.xlu0 %3000
        %v3002 = vsel %vm1655, %v2969, 0.0
        %3003 = vadd.xlane.f32.xlu0 %v3002
        %v3004 = vpop.xlane.xlu0 %3003
        %v3005 = vsel %vm1655, %v2971, 0.0
        %3006 = vadd.xlane.f32.xlu0 %v3005
        %v3007 = vpop.xlane.xlu0 %3006
        %v3008 = vsel %vm1655, %v2973, 0.0
        %3009 = vadd.xlane.f32.xlu0 %v3008
        %v3010 = vpop.xlane.xlu0 %3009
        %v3011 = vsel %vm1655, %v2975, 0.0
        %3012 = vadd.xlane.f32.xlu0 %v3011
        %v3013 = vpop.xlane.xlu0 %3012
        %v3014 = vsel %vm1655, %v2977, 0.0
        %3015 = vadd.xlane.f32.xlu0 %v3014
        %v3016 = vpop.xlane.xlu0 %3015
        %v3017 = vsel %vm1655, %v2979, 0.0
        %3018 = vadd.xlane.f32.xlu0 %v3017
        %v3019 = vpop.xlane.xlu0 %3018
        %v3020 = vsel %vm1655, %v2981, 0.0
        %3021 = vadd.xlane.f32.xlu0 %v3020
        %v3022 = vpop.xlane.xlu0 %3021
        %v3023 = vsel %vm1655, %v2983, 0.0
        %3024 = vadd.xlane.f32.xlu0 %v3023
        %v3025 = vpop.xlane.xlu0 %3024
        %v3026 = vsel %vm1655, %v2985, 0.0
        %3027 = vadd.xlane.f32.xlu0 %v3026
        %v3028 = vpop.xlane.xlu0 %3027
        %v3029 = vsel %vm1655, %v2987, 0.0
        %3030 = vadd.xlane.f32.xlu0 %v3029
        %v3031 = vpop.xlane.xlu0 %3030
        %v3032 = vsel %vm1655, %v2989, 0.0
        %3033 = vadd.xlane.f32.xlu0 %v3032
        %v3034 = vpop.xlane.xlu0 %3033
        %v3035 = vsel %vm1655, %v2991, 0.0
        %3036 = vadd.xlane.f32.xlu0 %v3035
        %v3037 = vpop.xlane.xlu0 %3036
        %v3038 = vsel %vm1655, %v2993, 0.0
        %3039 = vadd.xlane.f32.xlu0 %v3038
        %v3040 = vpop.xlane.xlu0 %3039
        %v3041 = vsel %vm1655, %v2995, 0.0
        %3042 = vadd.xlane.f32.xlu0 %v3041
        %v3043 = vpop.xlane.xlu0 %3042
        %v3044 = vrcp.pop %v2998
        %v3045 = vrcp.pop %v3001
        %v3046 = vrcp.pop %v3004
        %v3047 = vrcp.pop %v3007
        %v3048 = vrcp.pop %v3010
        %v3049 = vrcp.pop %v3013
        %v3050 = vrcp.pop %v3016
        %v3051 = vrcp.pop %v3019
        %v3052 = vrcp.pop %v3022
        %v3053 = vrcp.pop %v3025
        %v3054 = vrcp.pop %v3028
        %v3055 = vrcp.pop %v3031
        %v3056 = vrcp.pop %v3034
        %v3057 = vrcp.pop %v3037
        %v3058 = vrcp.pop %v3040
        %v3059 = vrcp.pop %v3043
        %v3060 = vmul.f32 %v2965, %v3044
        %v3061 = vmul.f32 %v2967, %v3045
        %v3062 = vmul.f32 %v2969, %v3046
        %v3063 = vmul.f32 %v2971, %v3047
        %v3064 = vmul.f32 %v2973, %v3048
        %v3065 = vmul.f32 %v2975, %v3049
        %v3066 = vmul.f32 %v2977, %v3050
        %v3067 = vmul.f32 %v2979, %v3051
        %v3068 = vmul.f32 %v2981, %v3052
        %v3069 = vmul.f32 %v2983, %v3053
        %v3070 = vmul.f32 %v2985, %v3054
        %v3071 = vmul.f32 %v2987, %v3055
        %v3072 = vmul.f32 %v2989, %v3056
        %v3073 = vmul.f32 %v2991, %v3057
        %v3074 = vmul.f32 %v2993, %v3058
        %v3075 = vmul.f32 %v2995, %v3059
        %v3076 = vpack.c.bf16 %v3061, %v3060
        %v3077 = vpack.c.bf16 %v3063, %v3062
        %v3078 = vpack.c.bf16 %v3065, %v3064
        %v3079 = vpack.c.bf16 %v3067, %v3066
        %v3080 = vpack.c.bf16 %v3069, %v3068
        %v3081 = vpack.c.bf16 %v3071, %v3070
        %v3082 = vpack.c.bf16 %v3073, %v3072
        %v3083 = vpack.c.bf16 %v3075, %v3074
        %3084 = vrot.lane.b32.xlu0 %v2475, 112
        %v3085 = vpop.permute.xlu0 %3084
        %v3088 = vsel %vm1655, %v3076, 0
        %3090 = vmatprep.subr.bf16.mxu0 0
        %3091 = vmatpush1.bf16.msra.mxu0 0
        %3092 = vmatprep.subr.bf16.mxu0 0
        %3093 = vmatpush1.bf16.msra.mxu0 0
        %3094 = vmatprep.subr.bf16.mxu0 0
        %3095 = vmatpush1.bf16.msra.mxu0 0
        %3096 = vmatprep.subr.bf16.mxu0 0
        %3097 = vmatpush1.bf16.msra.mxu0 0
        %3098 = vmatprep.subr.bf16.mxu0 0
        %3099 = vmatpush1.bf16.msra.mxu0 0
        %3100 = vmatprep.subr.bf16.mxu0 0
        %3101 = vmatpush1.bf16.msra.mxu0 0
        %3102 = vmatprep.subr.bf16.mxu0 0
        %3103 = vmatpush1.bf16.msra.mxu0 0
        %3104 = vmatprep.subr.bf16.mxu0 0
        %3105 = vmatpush1.bf16.msra.mxu0 %v3085
        %3106 = vmatprep.subr.bf16.mxu0 0
        %3107 = vmatpush2.bf16.msra.mxu0 0
        %3108 = vmatprep.subr.bf16.mxu0 0
        %3109 = vmatpush2.bf16.msra.mxu0 0
        %3110 = vmatprep.subr.bf16.mxu0 0
        %3111 = vmatpush2.bf16.msra.mxu0 0
        %3112 = vmatprep.subr.bf16.mxu0 0
        %3113 = vmatpush2.bf16.msra.mxu0 0
        %3114 = vmatprep.subr.bf16.mxu0 0
        %3115 = vmatpush2.bf16.msra.mxu0 0
        %3116 = vmatprep.subr.bf16.mxu0 0
        %3117 = vmatpush2.bf16.msra.mxu0 0
        %3118 = vmatprep.subr.bf16.mxu0 0
        %3119 = vmatpush2.bf16.msra.mxu0 0
        %3120 = vmatprep.subr.bf16.mxu0 0
        %3121 = vmatpush2.bf16.msra.mxu0 0
        %3122 = vmatprep.mubr.bf16.mxu0 0
        %3123 = vmatmul.mubr.bf16.gmra.mxu0 %v3088
        %v3124 = vpop.f32.mrf.mxu0
        %v3125 = vadd.f32 0.0, %v3124
        %v3126 = vpop.f32.mrf.mxu0
        %v3127 = vpop.f32.mrf.mxu0
        %v3128 = vadd.f32 0.0, %v3127
        %v3129 = vpop.f32.mrf.mxu0
        %3130 = vdwg.mxu0
        %3131 = vrot.lane.b32.xlu0 %v2476, 112
        %v3132 = vpop.permute.xlu0 %3131
        %v3135 = vsel %vm1655, %v3077, 0
        %3137 = vmatprep.subr.bf16.mxu0 0
        %3138 = vmatpush1.bf16.msra.mxu0 0
        %3139 = vmatprep.subr.bf16.mxu0 0
        %3140 = vmatpush1.bf16.msra.mxu0 0
        %3141 = vmatprep.subr.bf16.mxu0 0
        %3142 = vmatpush1.bf16.msra.mxu0 0
        %3143 = vmatprep.subr.bf16.mxu0 0
        %3144 = vmatpush1.bf16.msra.mxu0 0
        %3145 = vmatprep.subr.bf16.mxu0 0
        %3146 = vmatpush1.bf16.msra.mxu0 0
        %3147 = vmatprep.subr.bf16.mxu0 0
        %3148 = vmatpush1.bf16.msra.mxu0 0
        %3149 = vmatprep.subr.bf16.mxu0 0
        %3150 = vmatpush1.bf16.msra.mxu0 0
        %3151 = vmatprep.subr.bf16.mxu0 0
        %3152 = vmatpush1.bf16.msra.mxu0 %v3132
        %3153 = vmatprep.subr.bf16.mxu0 0
        %3154 = vmatpush2.bf16.msra.mxu0 0
        %3155 = vmatprep.subr.bf16.mxu0 0
        %3156 = vmatpush2.bf16.msra.mxu0 0
        %3157 = vmatprep.subr.bf16.mxu0 0
        %3158 = vmatpush2.bf16.msra.mxu0 0
        %3159 = vmatprep.subr.bf16.mxu0 0
        %3160 = vmatpush2.bf16.msra.mxu0 0
        %3161 = vmatprep.subr.bf16.mxu0 0
        %3162 = vmatpush2.bf16.msra.mxu0 0
        %3163 = vmatprep.subr.bf16.mxu0 0
        %3164 = vmatpush2.bf16.msra.mxu0 0
        %3165 = vmatprep.subr.bf16.mxu0 0
        %3166 = vmatpush2.bf16.msra.mxu0 0
        %3167 = vmatprep.subr.bf16.mxu0 0
        %3168 = vmatpush2.bf16.msra.mxu0 0
        %3169 = vmatprep.mubr.bf16.mxu0 0
        %3170 = vmatmul.mubr.bf16.gmra.mxu0 %v3135
        %v3171 = vpop.f32.mrf.mxu0
        %v3172 = vadd.f32 0.0, %v3171
        %v3173 = vpop.f32.mrf.mxu0
        %v3174 = vpop.f32.mrf.mxu0
        %v3175 = vadd.f32 0.0, %v3174
        %v3176 = vpop.f32.mrf.mxu0
        %3177 = vdwg.mxu0
        %3178 = vrot.lane.b32.xlu0 %v2477, 112
        %v3179 = vpop.permute.xlu0 %3178
        %v3182 = vsel %vm1655, %v3078, 0
        %3184 = vmatprep.subr.bf16.mxu0 0
        %3185 = vmatpush1.bf16.msra.mxu0 0
        %3186 = vmatprep.subr.bf16.mxu0 0
        %3187 = vmatpush1.bf16.msra.mxu0 0
        %3188 = vmatprep.subr.bf16.mxu0 0
        %3189 = vmatpush1.bf16.msra.mxu0 0
        %3190 = vmatprep.subr.bf16.mxu0 0
        %3191 = vmatpush1.bf16.msra.mxu0 0
        %3192 = vmatprep.subr.bf16.mxu0 0
        %3193 = vmatpush1.bf16.msra.mxu0 0
        %3194 = vmatprep.subr.bf16.mxu0 0
        %3195 = vmatpush1.bf16.msra.mxu0 0
        %3196 = vmatprep.subr.bf16.mxu0 0
        %3197 = vmatpush1.bf16.msra.mxu0 0
        %3198 = vmatprep.subr.bf16.mxu0 0
        %3199 = vmatpush1.bf16.msra.mxu0 %v3179
        %3200 = vmatprep.subr.bf16.mxu0 0
        %3201 = vmatpush2.bf16.msra.mxu0 0
        %3202 = vmatprep.subr.bf16.mxu0 0
        %3203 = vmatpush2.bf16.msra.mxu0 0
        %3204 = vmatprep.subr.bf16.mxu0 0
        %3205 = vmatpush2.bf16.msra.mxu0 0
        %3206 = vmatprep.subr.bf16.mxu0 0
        %3207 = vmatpush2.bf16.msra.mxu0 0
        %3208 = vmatprep.subr.bf16.mxu0 0
        %3209 = vmatpush2.bf16.msra.mxu0 0
        %3210 = vmatprep.subr.bf16.mxu0 0
        %3211 = vmatpush2.bf16.msra.mxu0 0
        %3212 = vmatprep.subr.bf16.mxu0 0
        %3213 = vmatpush2.bf16.msra.mxu0 0
        %3214 = vmatprep.subr.bf16.mxu0 0
        %3215 = vmatpush2.bf16.msra.mxu0 0
        %3216 = vmatprep.mubr.bf16.mxu0 0
        %3217 = vmatmul.mubr.bf16.gmra.mxu0 %v3182
        %v3218 = vpop.f32.mrf.mxu0
        %v3219 = vadd.f32 0.0, %v3218
        %v3220 = vpop.f32.mrf.mxu0
        %v3221 = vpop.f32.mrf.mxu0
        %v3222 = vadd.f32 0.0, %v3221
        %v3223 = vpop.f32.mrf.mxu0
        %3224 = vdwg.mxu0
        %3225 = vrot.lane.b32.xlu0 %v2478, 112
        %v3226 = vpop.permute.xlu0 %3225
        %v3229 = vsel %vm1655, %v3079, 0
        %3231 = vmatprep.subr.bf16.mxu0 0
        %3232 = vmatpush1.bf16.msra.mxu0 0
        %3233 = vmatprep.subr.bf16.mxu0 0
        %3234 = vmatpush1.bf16.msra.mxu0 0
        %3235 = vmatprep.subr.bf16.mxu0 0
        %3236 = vmatpush1.bf16.msra.mxu0 0
        %3237 = vmatprep.subr.bf16.mxu0 0
        %3238 = vmatpush1.bf16.msra.mxu0 0
        %3239 = vmatprep.subr.bf16.mxu0 0
        %3240 = vmatpush1.bf16.msra.mxu0 0
        %3241 = vmatprep.subr.bf16.mxu0 0
        %3242 = vmatpush1.bf16.msra.mxu0 0
        %3243 = vmatprep.subr.bf16.mxu0 0
        %3244 = vmatpush1.bf16.msra.mxu0 0
        %3245 = vmatprep.subr.bf16.mxu0 0
        %3246 = vmatpush1.bf16.msra.mxu0 %v3226
        %3247 = vmatprep.subr.bf16.mxu0 0
        %3248 = vmatpush2.bf16.msra.mxu0 0
        %3249 = vmatprep.subr.bf16.mxu0 0
        %3250 = vmatpush2.bf16.msra.mxu0 0
        %3251 = vmatprep.subr.bf16.mxu0 0
        %3252 = vmatpush2.bf16.msra.mxu0 0
        %3253 = vmatprep.subr.bf16.mxu0 0
        %3254 = vmatpush2.bf16.msra.mxu0 0
        %3255 = vmatprep.subr.bf16.mxu0 0
        %3256 = vmatpush2.bf16.msra.mxu0 0
        %3257 = vmatprep.subr.bf16.mxu0 0
        %3258 = vmatpush2.bf16.msra.mxu0 0
        %3259 = vmatprep.subr.bf16.mxu0 0
        %3260 = vmatpush2.bf16.msra.mxu0 0
        %3261 = vmatprep.subr.bf16.mxu0 0
        %3262 = vmatpush2.bf16.msra.mxu0 0
        %3263 = vmatprep.mubr.bf16.mxu0 0
        %3264 = vmatmul.mubr.bf16.gmra.mxu0 %v3229
        %v3265 = vpop.f32.mrf.mxu0
        %v3266 = vadd.f32 0.0, %v3265
        %v3267 = vpop.f32.mrf.mxu0
        %v3268 = vpop.f32.mrf.mxu0
        %v3269 = vadd.f32 0.0, %v3268
        %v3270 = vpop.f32.mrf.mxu0
        %3271 = vdwg.mxu0
        %3272 = vrot.lane.b32.xlu0 %v2479, 112
        %v3273 = vpop.permute.xlu0 %3272
        %v3276 = vsel %vm1655, %v3080, 0
        %3278 = vmatprep.subr.bf16.mxu0 0
        %3279 = vmatpush1.bf16.msra.mxu0 0
        %3280 = vmatprep.subr.bf16.mxu0 0
        %3281 = vmatpush1.bf16.msra.mxu0 0
        %3282 = vmatprep.subr.bf16.mxu0 0
        %3283 = vmatpush1.bf16.msra.mxu0 0
        %3284 = vmatprep.subr.bf16.mxu0 0
        %3285 = vmatpush1.bf16.msra.mxu0 0
        %3286 = vmatprep.subr.bf16.mxu0 0
        %3287 = vmatpush1.bf16.msra.mxu0 0
        %3288 = vmatprep.subr.bf16.mxu0 0
        %3289 = vmatpush1.bf16.msra.mxu0 0
        %3290 = vmatprep.subr.bf16.mxu0 0
        %3291 = vmatpush1.bf16.msra.mxu0 0
        %3292 = vmatprep.subr.bf16.mxu0 0
        %3293 = vmatpush1.bf16.msra.mxu0 %v3273
        %3294 = vmatprep.subr.bf16.mxu0 0
        %3295 = vmatpush2.bf16.msra.mxu0 0
        %3296 = vmatprep.subr.bf16.mxu0 0
        %3297 = vmatpush2.bf16.msra.mxu0 0
        %3298 = vmatprep.subr.bf16.mxu0 0
        %3299 = vmatpush2.bf16.msra.mxu0 0
        %3300 = vmatprep.subr.bf16.mxu0 0
        %3301 = vmatpush2.bf16.msra.mxu0 0
        %3302 = vmatprep.subr.bf16.mxu0 0
        %3303 = vmatpush2.bf16.msra.mxu0 0
        %3304 = vmatprep.subr.bf16.mxu0 0
        %3305 = vmatpush2.bf16.msra.mxu0 0
        %3306 = vmatprep.subr.bf16.mxu0 0
        %3307 = vmatpush2.bf16.msra.mxu0 0
        %3308 = vmatprep.subr.bf16.mxu0 0
        %3309 = vmatpush2.bf16.msra.mxu0 0
        %3310 = vmatprep.mubr.bf16.mxu0 0
        %3311 = vmatmul.mubr.bf16.gmra.mxu0 %v3276
        %v3312 = vpop.f32.mrf.mxu0
        %v3313 = vadd.f32 0.0, %v3312
        %v3314 = vpop.f32.mrf.mxu0
        %v3315 = vpop.f32.mrf.mxu0
        %v3316 = vadd.f32 0.0, %v3315
        %v3317 = vpop.f32.mrf.mxu0
        %3318 = vdwg.mxu0
        %3319 = vrot.lane.b32.xlu0 %v2480, 112
        %v3320 = vpop.permute.xlu0 %3319
        %v3323 = vsel %vm1655, %v3081, 0
        %3325 = vmatprep.subr.bf16.mxu0 0
        %3326 = vmatpush1.bf16.msra.mxu0 0
        %3327 = vmatprep.subr.bf16.mxu0 0
        %3328 = vmatpush1.bf16.msra.mxu0 0
        %3329 = vmatprep.subr.bf16.mxu0 0
        %3330 = vmatpush1.bf16.msra.mxu0 0
        %3331 = vmatprep.subr.bf16.mxu0 0
        %3332 = vmatpush1.bf16.msra.mxu0 0
        %3333 = vmatprep.subr.bf16.mxu0 0
        %3334 = vmatpush1.bf16.msra.mxu0 0
        %3335 = vmatprep.subr.bf16.mxu0 0
        %3336 = vmatpush1.bf16.msra.mxu0 0
        %3337 = vmatprep.subr.bf16.mxu0 0
        %3338 = vmatpush1.bf16.msra.mxu0 0
        %3339 = vmatprep.subr.bf16.mxu0 0
        %3340 = vmatpush1.bf16.msra.mxu0 %v3320
        %3341 = vmatprep.subr.bf16.mxu0 0
        %3342 = vmatpush2.bf16.msra.mxu0 0
        %3343 = vmatprep.subr.bf16.mxu0 0
        %3344 = vmatpush2.bf16.msra.mxu0 0
        %3345 = vmatprep.subr.bf16.mxu0 0
        %3346 = vmatpush2.bf16.msra.mxu0 0
        %3347 = vmatprep.subr.bf16.mxu0 0
        %3348 = vmatpush2.bf16.msra.mxu0 0
        %3349 = vmatprep.subr.bf16.mxu0 0
        %3350 = vmatpush2.bf16.msra.mxu0 0
        %3351 = vmatprep.subr.bf16.mxu0 0
        %3352 = vmatpush2.bf16.msra.mxu0 0
        %3353 = vmatprep.subr.bf16.mxu0 0
        %3354 = vmatpush2.bf16.msra.mxu0 0
        %3355 = vmatprep.subr.bf16.mxu0 0
        %3356 = vmatpush2.bf16.msra.mxu0 0
        %3357 = vmatprep.mubr.bf16.mxu0 0
        %3358 = vmatmul.mubr.bf16.gmra.mxu0 %v3323
        %v3359 = vpop.f32.mrf.mxu0
        %v3360 = vadd.f32 0.0, %v3359
        %v3361 = vpop.f32.mrf.mxu0
        %v3362 = vpop.f32.mrf.mxu0
        %v3363 = vadd.f32 0.0, %v3362
        %v3364 = vpop.f32.mrf.mxu0
        %3365 = vdwg.mxu0
        %3366 = vrot.lane.b32.xlu0 %v2481, 112
        %v3367 = vpop.permute.xlu0 %3366
        %v3370 = vsel %vm1655, %v3082, 0
        %3372 = vmatprep.subr.bf16.mxu0 0
        %3373 = vmatpush1.bf16.msra.mxu0 0
        %3374 = vmatprep.subr.bf16.mxu0 0
        %3375 = vmatpush1.bf16.msra.mxu0 0
        %3376 = vmatprep.subr.bf16.mxu0 0
        %3377 = vmatpush1.bf16.msra.mxu0 0
        %3378 = vmatprep.subr.bf16.mxu0 0
        %3379 = vmatpush1.bf16.msra.mxu0 0
        %3380 = vmatprep.subr.bf16.mxu0 0
        %3381 = vmatpush1.bf16.msra.mxu0 0
        %3382 = vmatprep.subr.bf16.mxu0 0
        %3383 = vmatpush1.bf16.msra.mxu0 0
        %3384 = vmatprep.subr.bf16.mxu0 0
        %3385 = vmatpush1.bf16.msra.mxu0 0
        %3386 = vmatprep.subr.bf16.mxu0 0
        %3387 = vmatpush1.bf16.msra.mxu0 %v3367
        %3388 = vmatprep.subr.bf16.mxu0 0
        %3389 = vmatpush2.bf16.msra.mxu0 0
        %3390 = vmatprep.subr.bf16.mxu0 0
        %3391 = vmatpush2.bf16.msra.mxu0 0
        %3392 = vmatprep.subr.bf16.mxu0 0
        %3393 = vmatpush2.bf16.msra.mxu0 0
        %3394 = vmatprep.subr.bf16.mxu0 0
        %3395 = vmatpush2.bf16.msra.mxu0 0
        %3396 = vmatprep.subr.bf16.mxu0 0
        %3397 = vmatpush2.bf16.msra.mxu0 0
        %3398 = vmatprep.subr.bf16.mxu0 0
        %3399 = vmatpush2.bf16.msra.mxu0 0
        %3400 = vmatprep.subr.bf16.mxu0 0
        %3401 = vmatpush2.bf16.msra.mxu0 0
        %3402 = vmatprep.subr.bf16.mxu0 0
        %3403 = vmatpush2.bf16.msra.mxu0 0
        %3404 = vmatprep.mubr.bf16.mxu0 0
        %3405 = vmatmul.mubr.bf16.gmra.mxu0 %v3370
        %v3406 = vpop.f32.mrf.mxu0
        %v3407 = vadd.f32 0.0, %v3406
        %v3408 = vpop.f32.mrf.mxu0
        %v3409 = vpop.f32.mrf.mxu0
        %v3410 = vadd.f32 0.0, %v3409
        %v3411 = vpop.f32.mrf.mxu0
        %3412 = vdwg.mxu0
        %3413 = vrot.lane.b32.xlu0 %v2482, 112
        %v3414 = vpop.permute.xlu0 %3413
        %v3417 = vsel %vm1655, %v3083, 0
        %3419 = vmatprep.subr.bf16.mxu0 0
        %3420 = vmatpush1.bf16.msra.mxu0 0
        %3421 = vmatprep.subr.bf16.mxu0 0
        %3422 = vmatpush1.bf16.msra.mxu0 0
        %3423 = vmatprep.subr.bf16.mxu0 0
        %3424 = vmatpush1.bf16.msra.mxu0 0
        %3425 = vmatprep.subr.bf16.mxu0 0
        %3426 = vmatpush1.bf16.msra.mxu0 0
        %3427 = vmatprep.subr.bf16.mxu0 0
        %3428 = vmatpush1.bf16.msra.mxu0 0
        %3429 = vmatprep.subr.bf16.mxu0 0
        %3430 = vmatpush1.bf16.msra.mxu0 0
        %3431 = vmatprep.subr.bf16.mxu0 0
        %3432 = vmatpush1.bf16.msra.mxu0 0
        %3433 = vmatprep.subr.bf16.mxu0 0
        %3434 = vmatpush1.bf16.msra.mxu0 %v3414
        %3435 = vmatprep.subr.bf16.mxu0 0
        %3436 = vmatpush2.bf16.msra.mxu0 0
        %3437 = vmatprep.subr.bf16.mxu0 0
        %3438 = vmatpush2.bf16.msra.mxu0 0
        %3439 = vmatprep.subr.bf16.mxu0 0
        %3440 = vmatpush2.bf16.msra.mxu0 0
        %3441 = vmatprep.subr.bf16.mxu0 0
        %3442 = vmatpush2.bf16.msra.mxu0 0
        %3443 = vmatprep.subr.bf16.mxu0 0
        %3444 = vmatpush2.bf16.msra.mxu0 0
        %3445 = vmatprep.subr.bf16.mxu0 0
        %3446 = vmatpush2.bf16.msra.mxu0 0
        %3447 = vmatprep.subr.bf16.mxu0 0
        %3448 = vmatpush2.bf16.msra.mxu0 0
        %3449 = vmatprep.subr.bf16.mxu0 0
        %3450 = vmatpush2.bf16.msra.mxu0 0
        %3451 = vmatprep.mubr.bf16.mxu0 0
        %3452 = vmatmul.mubr.bf16.gmra.mxu0 %v3417
        %v3453 = vpop.f32.mrf.mxu0
        %v3454 = vadd.f32 0.0, %v3453
        %v3455 = vpop.f32.mrf.mxu0
        %v3456 = vpop.f32.mrf.mxu0
        %v3457 = vadd.f32 0.0, %v3456
        %v3458 = vpop.f32.mrf.mxu0
        %3459 = vdwg.mxu0
        %3460 = vrot.lane.b32.xlu0 %v2475, 126
        %v3461 = vpop.permute.xlu0 %3460
        %3462 = vrot.lane.b32.xlu0 %v2475, 118
        %v3463 = vpop.permute.xlu0 %3462
        %v3465 = vsel %vm2486, %v3461, 0
        %v3468 = vsel %vm2486, %v3463, 0
        %3470 = vmatprep.subr.bf16.mxu0 0
        %3471 = vmatpush1.bf16.xpose.msra.mxu0 0
        %3472 = vmatprep.subr.bf16.mxu0 0
        %3473 = vmatpush1.bf16.xpose.msra.mxu0 0
        %3474 = vmatprep.subr.bf16.mxu0 0
        %3475 = vmatpush1.bf16.xpose.msra.mxu0 0
        %3476 = vmatprep.subr.bf16.mxu0 0
        %3477 = vmatpush1.bf16.xpose.msra.mxu0 0
        %3478 = vmatprep.subr.bf16.mxu0 0
        %3479 = vmatpush1.bf16.xpose.msra.mxu0 0
        %3480 = vmatprep.subr.bf16.mxu0 0
        %3481 = vmatpush1.bf16.xpose.msra.mxu0 0
        %3482 = vmatprep.subr.bf16.mxu0 0
        %3483 = vmatpush1.bf16.xpose.msra.mxu0 0
        %3484 = vmatprep.subr.bf16.mxu0 0
        %3485 = vmatpush1.bf16.xpose.msra.mxu0 %v3468
        %3486 = vmatprep.subr.bf16.mxu0 0
        %3487 = vmatpush2.bf16.xpose.msra.mxu0 0
        %3488 = vmatprep.subr.bf16.mxu0 0
        %3489 = vmatpush2.bf16.xpose.msra.mxu0 0
        %3490 = vmatprep.subr.bf16.mxu0 0
        %3491 = vmatpush2.bf16.xpose.msra.mxu0 0
        %3492 = vmatprep.subr.bf16.mxu0 0
        %3493 = vmatpush2.bf16.xpose.msra.mxu0 0
        %3494 = vmatprep.subr.bf16.mxu0 0
        %3495 = vmatpush2.bf16.xpose.msra.mxu0 0
        %3496 = vmatprep.subr.bf16.mxu0 0
        %3497 = vmatpush2.bf16.xpose.msra.mxu0 0
        %3498 = vmatprep.subr.bf16.mxu0 0
        %3499 = vmatpush2.bf16.xpose.msra.mxu0 0
        %3500 = vmatprep.subr.bf16.mxu0 0
        %3501 = vmatpush2.bf16.xpose.msra.mxu0 0
        %3502 = vmatprep.mubr.bf16.mxu0 0
        %3503 = vmatmul.mubr.bf16.gmra.mxu0 %v3465
        %v3504 = vpop.f32.mrf.mxu0
        %v3505 = vadd.f32 0.0, %v3504
        %v3506 = vpop.f32.mrf.mxu0
        %v3507 = vpop.f32.mrf.mxu0
        %v3508 = vadd.f32 0.0, %v3507
        %v3509 = vpop.f32.mrf.mxu0
        %3510 = vdwg.mxu0
        %3511 = vrot.lane.b32.xlu0 %v2476, 126
        %v3512 = vpop.permute.xlu0 %3511
        %3513 = vrot.lane.b32.xlu0 %v2476, 118
        %v3514 = vpop.permute.xlu0 %3513
        %v3516 = vsel %vm2486, %v3512, 0
        %v3519 = vsel %vm2486, %v3514, 0
        %3521 = vmatprep.subr.bf16.mxu0 0
        %3522 = vmatpush1.bf16.xpose.msra.mxu0 0
        %3523 = vmatprep.subr.bf16.mxu0 0
        %3524 = vmatpush1.bf16.xpose.msra.mxu0 0
        %3525 = vmatprep.subr.bf16.mxu0 0
        %3526 = vmatpush1.bf16.xpose.msra.mxu0 0
        %3527 = vmatprep.subr.bf16.mxu0 0
        %3528 = vmatpush1.bf16.xpose.msra.mxu0 0
        %3529 = vmatprep.subr.bf16.mxu0 0
        %3530 = vmatpush1.bf16.xpose.msra.mxu0 0
        %3531 = vmatprep.subr.bf16.mxu0 0
        %3532 = vmatpush1.bf16.xpose.msra.mxu0 0
        %3533 = vmatprep.subr.bf16.mxu0 0
        %3534 = vmatpush1.bf16.xpose.msra.mxu0 0
        %3535 = vmatprep.subr.bf16.mxu0 0
        %3536 = vmatpush1.bf16.xpose.msra.mxu0 %v3519
        %3537 = vmatprep.subr.bf16.mxu0 0
        %3538 = vmatpush2.bf16.xpose.msra.mxu0 0
        %3539 = vmatprep.subr.bf16.mxu0 0
        %3540 = vmatpush2.bf16.xpose.msra.mxu0 0
        %3541 = vmatprep.subr.bf16.mxu0 0
        %3542 = vmatpush2.bf16.xpose.msra.mxu0 0
        %3543 = vmatprep.subr.bf16.mxu0 0
        %3544 = vmatpush2.bf16.xpose.msra.mxu0 0
        %3545 = vmatprep.subr.bf16.mxu0 0
        %3546 = vmatpush2.bf16.xpose.msra.mxu0 0
        %3547 = vmatprep.subr.bf16.mxu0 0
        %3548 = vmatpush2.bf16.xpose.msra.mxu0 0
        %3549 = vmatprep.subr.bf16.mxu0 0
        %3550 = vmatpush2.bf16.xpose.msra.mxu0 0
        %3551 = vmatprep.subr.bf16.mxu0 0
        %3552 = vmatpush2.bf16.xpose.msra.mxu0 0
        %3553 = vmatprep.mubr.bf16.mxu0 0
        %3554 = vmatmul.mubr.bf16.gmra.mxu0 %v3516
        %v3555 = vpop.f32.mrf.mxu0
        %v3556 = vadd.f32 0.0, %v3555
        %v3557 = vpop.f32.mrf.mxu0
        %v3558 = vpop.f32.mrf.mxu0
        %v3559 = vadd.f32 0.0, %v3558
        %v3560 = vpop.f32.mrf.mxu0
        %3561 = vdwg.mxu0
        %3562 = vrot.lane.b32.xlu0 %v2477, 126
        %v3563 = vpop.permute.xlu0 %3562
        %3564 = vrot.lane.b32.xlu0 %v2477, 118
        %v3565 = vpop.permute.xlu0 %3564
        %v3567 = vsel %vm2486, %v3563, 0
        %v3570 = vsel %vm2486, %v3565, 0
        %3572 = vmatprep.subr.bf16.mxu0 0
        %3573 = vmatpush1.bf16.xpose.msra.mxu0 0
        %3574 = vmatprep.subr.bf16.mxu0 0
        %3575 = vmatpush1.bf16.xpose.msra.mxu0 0
        %3576 = vmatprep.subr.bf16.mxu0 0
        %3577 = vmatpush1.bf16.xpose.msra.mxu0 0
        %3578 = vmatprep.subr.bf16.mxu0 0
        %3579 = vmatpush1.bf16.xpose.msra.mxu0 0
        %3580 = vmatprep.subr.bf16.mxu0 0
        %3581 = vmatpush1.bf16.xpose.msra.mxu0 0
        %3582 = vmatprep.subr.bf16.mxu0 0
        %3583 = vmatpush1.bf16.xpose.msra.mxu0 0
        %3584 = vmatprep.subr.bf16.mxu0 0
        %3585 = vmatpush1.bf16.xpose.msra.mxu0 0
        %3586 = vmatprep.subr.bf16.mxu0 0
        %3587 = vmatpush1.bf16.xpose.msra.mxu0 %v3570
        %3588 = vmatprep.subr.bf16.mxu0 0
        %3589 = vmatpush2.bf16.xpose.msra.mxu0 0
        %3590 = vmatprep.subr.bf16.mxu0 0
        %3591 = vmatpush2.bf16.xpose.msra.mxu0 0
        %3592 = vmatprep.subr.bf16.mxu0 0
        %3593 = vmatpush2.bf16.xpose.msra.mxu0 0
        %3594 = vmatprep.subr.bf16.mxu0 0
        %3595 = vmatpush2.bf16.xpose.msra.mxu0 0
        %3596 = vmatprep.subr.bf16.mxu0 0
        %3597 = vmatpush2.bf16.xpose.msra.mxu0 0
        %3598 = vmatprep.subr.bf16.mxu0 0
        %3599 = vmatpush2.bf16.xpose.msra.mxu0 0
        %3600 = vmatprep.subr.bf16.mxu0 0
        %3601 = vmatpush2.bf16.xpose.msra.mxu0 0
        %3602 = vmatprep.subr.bf16.mxu0 0
        %3603 = vmatpush2.bf16.xpose.msra.mxu0 0
        %3604 = vmatprep.mubr.bf16.mxu0 0
        %3605 = vmatmul.mubr.bf16.gmra.mxu0 %v3567
        %v3606 = vpop.f32.mrf.mxu0
        %v3607 = vadd.f32 0.0, %v3606
        %v3608 = vpop.f32.mrf.mxu0
        %v3609 = vpop.f32.mrf.mxu0
        %v3610 = vadd.f32 0.0, %v3609
        %v3611 = vpop.f32.mrf.mxu0
        %3612 = vdwg.mxu0
        %3613 = vrot.lane.b32.xlu0 %v2478, 126
        %v3614 = vpop.permute.xlu0 %3613
        %3615 = vrot.lane.b32.xlu0 %v2478, 118
        %v3616 = vpop.permute.xlu0 %3615
        %v3618 = vsel %vm2486, %v3614, 0
        %v3621 = vsel %vm2486, %v3616, 0
        %3623 = vmatprep.subr.bf16.mxu0 0
        %3624 = vmatpush1.bf16.xpose.msra.mxu0 0
        %3625 = vmatprep.subr.bf16.mxu0 0
        %3626 = vmatpush1.bf16.xpose.msra.mxu0 0
        %3627 = vmatprep.subr.bf16.mxu0 0
        %3628 = vmatpush1.bf16.xpose.msra.mxu0 0
        %3629 = vmatprep.subr.bf16.mxu0 0
        %3630 = vmatpush1.bf16.xpose.msra.mxu0 0
        %3631 = vmatprep.subr.bf16.mxu0 0
        %3632 = vmatpush1.bf16.xpose.msra.mxu0 0
        %3633 = vmatprep.subr.bf16.mxu0 0
        %3634 = vmatpush1.bf16.xpose.msra.mxu0 0
        %3635 = vmatprep.subr.bf16.mxu0 0
        %3636 = vmatpush1.bf16.xpose.msra.mxu0 0
        %3637 = vmatprep.subr.bf16.mxu0 0
        %3638 = vmatpush1.bf16.xpose.msra.mxu0 %v3621
        %3639 = vmatprep.subr.bf16.mxu0 0
        %3640 = vmatpush2.bf16.xpose.msra.mxu0 0
        %3641 = vmatprep.subr.bf16.mxu0 0
        %3642 = vmatpush2.bf16.xpose.msra.mxu0 0
        %3643 = vmatprep.subr.bf16.mxu0 0
        %3644 = vmatpush2.bf16.xpose.msra.mxu0 0
        %3645 = vmatprep.subr.bf16.mxu0 0
        %3646 = vmatpush2.bf16.xpose.msra.mxu0 0
        %3647 = vmatprep.subr.bf16.mxu0 0
        %3648 = vmatpush2.bf16.xpose.msra.mxu0 0
        %3649 = vmatprep.subr.bf16.mxu0 0
        %3650 = vmatpush2.bf16.xpose.msra.mxu0 0
        %3651 = vmatprep.subr.bf16.mxu0 0
        %3652 = vmatpush2.bf16.xpose.msra.mxu0 0
        %3653 = vmatprep.subr.bf16.mxu0 0
        %3654 = vmatpush2.bf16.xpose.msra.mxu0 0
        %3655 = vmatprep.mubr.bf16.mxu0 0
        %3656 = vmatmul.mubr.bf16.gmra.mxu0 %v3618
        %v3657 = vpop.f32.mrf.mxu0
        %v3658 = vadd.f32 0.0, %v3657
        %v3659 = vpop.f32.mrf.mxu0
        %v3660 = vpop.f32.mrf.mxu0
        %v3661 = vadd.f32 0.0, %v3660
        %v3662 = vpop.f32.mrf.mxu0
        %3663 = vdwg.mxu0
        %3664 = vrot.lane.b32.xlu0 %v2479, 126
        %v3665 = vpop.permute.xlu0 %3664
        %3666 = vrot.lane.b32.xlu0 %v2479, 118
        %v3667 = vpop.permute.xlu0 %3666
        %v3669 = vsel %vm2486, %v3665, 0
        %v3672 = vsel %vm2486, %v3667, 0
        %3674 = vmatprep.subr.bf16.mxu0 0
        %3675 = vmatpush1.bf16.xpose.msra.mxu0 0
        %3676 = vmatprep.subr.bf16.mxu0 0
        %3677 = vmatpush1.bf16.xpose.msra.mxu0 0
        %3678 = vmatprep.subr.bf16.mxu0 0
        %3679 = vmatpush1.bf16.xpose.msra.mxu0 0
        %3680 = vmatprep.subr.bf16.mxu0 0
        %3681 = vmatpush1.bf16.xpose.msra.mxu0 0
        %3682 = vmatprep.subr.bf16.mxu0 0
        %3683 = vmatpush1.bf16.xpose.msra.mxu0 0
        %3684 = vmatprep.subr.bf16.mxu0 0
        %3685 = vmatpush1.bf16.xpose.msra.mxu0 0
        %3686 = vmatprep.subr.bf16.mxu0 0
        %3687 = vmatpush1.bf16.xpose.msra.mxu0 0
        %3688 = vmatprep.subr.bf16.mxu0 0
        %3689 = vmatpush1.bf16.xpose.msra.mxu0 %v3672
        %3690 = vmatprep.subr.bf16.mxu0 0
        %3691 = vmatpush2.bf16.xpose.msra.mxu0 0
        %3692 = vmatprep.subr.bf16.mxu0 0
        %3693 = vmatpush2.bf16.xpose.msra.mxu0 0
        %3694 = vmatprep.subr.bf16.mxu0 0
        %3695 = vmatpush2.bf16.xpose.msra.mxu0 0
        %3696 = vmatprep.subr.bf16.mxu0 0
        %3697 = vmatpush2.bf16.xpose.msra.mxu0 0
        %3698 = vmatprep.subr.bf16.mxu0 0
        %3699 = vmatpush2.bf16.xpose.msra.mxu0 0
        %3700 = vmatprep.subr.bf16.mxu0 0
        %3701 = vmatpush2.bf16.xpose.msra.mxu0 0
        %3702 = vmatprep.subr.bf16.mxu0 0
        %3703 = vmatpush2.bf16.xpose.msra.mxu0 0
        %3704 = vmatprep.subr.bf16.mxu0 0
        %3705 = vmatpush2.bf16.xpose.msra.mxu0 0
        %3706 = vmatprep.mubr.bf16.mxu0 0
        %3707 = vmatmul.mubr.bf16.gmra.mxu0 %v3669
        %v3708 = vpop.f32.mrf.mxu0
        %v3709 = vadd.f32 0.0, %v3708
        %v3710 = vpop.f32.mrf.mxu0
        %v3711 = vpop.f32.mrf.mxu0
        %v3712 = vadd.f32 0.0, %v3711
        %v3713 = vpop.f32.mrf.mxu0
        %3714 = vdwg.mxu0
        %3715 = vrot.lane.b32.xlu0 %v2480, 126
        %v3716 = vpop.permute.xlu0 %3715
        %3717 = vrot.lane.b32.xlu0 %v2480, 118
        %v3718 = vpop.permute.xlu0 %3717
        %v3720 = vsel %vm2486, %v3716, 0
        %v3723 = vsel %vm2486, %v3718, 0
        %3725 = vmatprep.subr.bf16.mxu0 0
        %3726 = vmatpush1.bf16.xpose.msra.mxu0 0
        %3727 = vmatprep.subr.bf16.mxu0 0
        %3728 = vmatpush1.bf16.xpose.msra.mxu0 0
        %3729 = vmatprep.subr.bf16.mxu0 0
        %3730 = vmatpush1.bf16.xpose.msra.mxu0 0
        %3731 = vmatprep.subr.bf16.mxu0 0
        %3732 = vmatpush1.bf16.xpose.msra.mxu0 0
        %3733 = vmatprep.subr.bf16.mxu0 0
        %3734 = vmatpush1.bf16.xpose.msra.mxu0 0
        %3735 = vmatprep.subr.bf16.mxu0 0
        %3736 = vmatpush1.bf16.xpose.msra.mxu0 0
        %3737 = vmatprep.subr.bf16.mxu0 0
        %3738 = vmatpush1.bf16.xpose.msra.mxu0 0
        %3739 = vmatprep.subr.bf16.mxu0 0
        %3740 = vmatpush1.bf16.xpose.msra.mxu0 %v3723
        %3741 = vmatprep.subr.bf16.mxu0 0
        %3742 = vmatpush2.bf16.xpose.msra.mxu0 0
        %3743 = vmatprep.subr.bf16.mxu0 0
        %3744 = vmatpush2.bf16.xpose.msra.mxu0 0
        %3745 = vmatprep.subr.bf16.mxu0 0
        %3746 = vmatpush2.bf16.xpose.msra.mxu0 0
        %3747 = vmatprep.subr.bf16.mxu0 0
        %3748 = vmatpush2.bf16.xpose.msra.mxu0 0
        %3749 = vmatprep.subr.bf16.mxu0 0
        %3750 = vmatpush2.bf16.xpose.msra.mxu0 0
        %3751 = vmatprep.subr.bf16.mxu0 0
        %3752 = vmatpush2.bf16.xpose.msra.mxu0 0
        %3753 = vmatprep.subr.bf16.mxu0 0
        %3754 = vmatpush2.bf16.xpose.msra.mxu0 0
        %3755 = vmatprep.subr.bf16.mxu0 0
        %3756 = vmatpush2.bf16.xpose.msra.mxu0 0
        %3757 = vmatprep.mubr.bf16.mxu0 0
        %3758 = vmatmul.mubr.bf16.gmra.mxu0 %v3720
        %v3759 = vpop.f32.mrf.mxu0
        %v3760 = vadd.f32 0.0, %v3759
        %v3761 = vpop.f32.mrf.mxu0
        %v3762 = vpop.f32.mrf.mxu0
        %v3763 = vadd.f32 0.0, %v3762
        %v3764 = vpop.f32.mrf.mxu0
        %3765 = vdwg.mxu0
        %3766 = vrot.lane.b32.xlu0 %v2481, 126
        %v3767 = vpop.permute.xlu0 %3766
        %3768 = vrot.lane.b32.xlu0 %v2481, 118
        %v3769 = vpop.permute.xlu0 %3768
        %v3771 = vsel %vm2486, %v3767, 0
        %v3774 = vsel %vm2486, %v3769, 0
        %3776 = vmatprep.subr.bf16.mxu0 0
        %3777 = vmatpush1.bf16.xpose.msra.mxu0 0
        %3778 = vmatprep.subr.bf16.mxu0 0
        %3779 = vmatpush1.bf16.xpose.msra.mxu0 0
        %3780 = vmatprep.subr.bf16.mxu0 0
        %3781 = vmatpush1.bf16.xpose.msra.mxu0 0
        %3782 = vmatprep.subr.bf16.mxu0 0
        %3783 = vmatpush1.bf16.xpose.msra.mxu0 0
        %3784 = vmatprep.subr.bf16.mxu0 0
        %3785 = vmatpush1.bf16.xpose.msra.mxu0 0
        %3786 = vmatprep.subr.bf16.mxu0 0
        %3787 = vmatpush1.bf16.xpose.msra.mxu0 0
        %3788 = vmatprep.subr.bf16.mxu0 0
        %3789 = vmatpush1.bf16.xpose.msra.mxu0 0
        %3790 = vmatprep.subr.bf16.mxu0 0
        %3791 = vmatpush1.bf16.xpose.msra.mxu0 %v3774
        %3792 = vmatprep.subr.bf16.mxu0 0
        %3793 = vmatpush2.bf16.xpose.msra.mxu0 0
        %3794 = vmatprep.subr.bf16.mxu0 0
        %3795 = vmatpush2.bf16.xpose.msra.mxu0 0
        %3796 = vmatprep.subr.bf16.mxu0 0
        %3797 = vmatpush2.bf16.xpose.msra.mxu0 0
        %3798 = vmatprep.subr.bf16.mxu0 0
        %3799 = vmatpush2.bf16.xpose.msra.mxu0 0
        %3800 = vmatprep.subr.bf16.mxu0 0
        %3801 = vmatpush2.bf16.xpose.msra.mxu0 0
        %3802 = vmatprep.subr.bf16.mxu0 0
        %3803 = vmatpush2.bf16.xpose.msra.mxu0 0
        %3804 = vmatprep.subr.bf16.mxu0 0
        %3805 = vmatpush2.bf16.xpose.msra.mxu0 0
        %3806 = vmatprep.subr.bf16.mxu0 0
        %3807 = vmatpush2.bf16.xpose.msra.mxu0 0
        %3808 = vmatprep.mubr.bf16.mxu0 0
        %3809 = vmatmul.mubr.bf16.gmra.mxu0 %v3771
        %v3810 = vpop.f32.mrf.mxu0
        %v3811 = vadd.f32 0.0, %v3810
        %v3812 = vpop.f32.mrf.mxu0
        %v3813 = vpop.f32.mrf.mxu0
        %v3814 = vadd.f32 0.0, %v3813
        %v3815 = vpop.f32.mrf.mxu0
        %3816 = vdwg.mxu0
        %3817 = vrot.lane.b32.xlu0 %v2482, 126
        %v3818 = vpop.permute.xlu0 %3817
        %3819 = vrot.lane.b32.xlu0 %v2482, 118
        %v3820 = vpop.permute.xlu0 %3819
        %v3822 = vsel %vm2486, %v3818, 0
        %v3825 = vsel %vm2486, %v3820, 0
        %3827 = vmatprep.subr.bf16.mxu0 0
        %3828 = vmatpush1.bf16.xpose.msra.mxu0 0
        %3829 = vmatprep.subr.bf16.mxu0 0
        %3830 = vmatpush1.bf16.xpose.msra.mxu0 0
        %3831 = vmatprep.subr.bf16.mxu0 0
        %3832 = vmatpush1.bf16.xpose.msra.mxu0 0
        %3833 = vmatprep.subr.bf16.mxu0 0
        %3834 = vmatpush1.bf16.xpose.msra.mxu0 0
        %3835 = vmatprep.subr.bf16.mxu0 0
        %3836 = vmatpush1.bf16.xpose.msra.mxu0 0
        %3837 = vmatprep.subr.bf16.mxu0 0
        %3838 = vmatpush1.bf16.xpose.msra.mxu0 0
        %3839 = vmatprep.subr.bf16.mxu0 0
        %3840 = vmatpush1.bf16.xpose.msra.mxu0 0
        %3841 = vmatprep.subr.bf16.mxu0 0
        %3842 = vmatpush1.bf16.xpose.msra.mxu0 %v3825
        %3843 = vmatprep.subr.bf16.mxu0 0
        %3844 = vmatpush2.bf16.xpose.msra.mxu0 0
        %3845 = vmatprep.subr.bf16.mxu0 0
        %3846 = vmatpush2.bf16.xpose.msra.mxu0 0
        %3847 = vmatprep.subr.bf16.mxu0 0
        %3848 = vmatpush2.bf16.xpose.msra.mxu0 0
        %3849 = vmatprep.subr.bf16.mxu0 0
        %3850 = vmatpush2.bf16.xpose.msra.mxu0 0
        %3851 = vmatprep.subr.bf16.mxu0 0
        %3852 = vmatpush2.bf16.xpose.msra.mxu0 0
        %3853 = vmatprep.subr.bf16.mxu0 0
        %3854 = vmatpush2.bf16.xpose.msra.mxu0 0
        %3855 = vmatprep.subr.bf16.mxu0 0
        %3856 = vmatpush2.bf16.xpose.msra.mxu0 0
        %3857 = vmatprep.subr.bf16.mxu0 0
        %3858 = vmatpush2.bf16.xpose.msra.mxu0 0
        %3859 = vmatprep.mubr.bf16.mxu0 0
        %3860 = vmatmul.mubr.bf16.gmra.mxu0 %v3822
        %v3861 = vpop.f32.mrf.mxu0
        %v3862 = vadd.f32 0.0, %v3861
        %v3863 = vpop.f32.mrf.mxu0
        %v3864 = vpop.f32.mrf.mxu0
        %v3865 = vadd.f32 0.0, %v3864
        %v3866 = vpop.f32.mrf.mxu0
        %3867 = vdwg.mxu0
        %v3868 = vmul.f32 %v3505, 0.70710677
        %v3869 = vmul.f32 %v3508, 0.70710677
        %v3870 = vmul.f32 %v3556, 0.70710677
        %v3871 = vmul.f32 %v3559, 0.70710677
        %v3872 = vmul.f32 %v3607, 0.70710677
        %v3873 = vmul.f32 %v3610, 0.70710677
        %v3874 = vmul.f32 %v3658, 0.70710677
        %v3875 = vmul.f32 %v3661, 0.70710677
        %v3876 = vmul.f32 %v3709, 0.70710677
        %v3877 = vmul.f32 %v3712, 0.70710677
        %v3878 = vmul.f32 %v3760, 0.70710677
        %v3879 = vmul.f32 %v3763, 0.70710677
        %v3880 = vmul.f32 %v3811, 0.70710677
        %v3881 = vmul.f32 %v3814, 0.70710677
        %v3882 = vmul.f32 %v3862, 0.70710677
        %v3883 = vmul.f32 %v3865, 0.70710677
        %v3884 = vsel %vm1655, %v3868, -inf
        %3885 = vmax.xlane.f32.xlu0 %v3884
        %v3886 = vpop.xlane.xlu0 %3885
        %v3887 = vsel %vm1655, %v3869, -inf
        %3888 = vmax.xlane.f32.xlu0 %v3887
        %v3889 = vpop.xlane.xlu0 %3888
        %v3890 = vsel %vm1655, %v3870, -inf
        %3891 = vmax.xlane.f32.xlu0 %v3890
        %v3892 = vpop.xlane.xlu0 %3891
        %v3893 = vsel %vm1655, %v3871, -inf
        %3894 = vmax.xlane.f32.xlu0 %v3893
        %v3895 = vpop.xlane.xlu0 %3894
        %v3896 = vsel %vm1655, %v3872, -inf
        %3897 = vmax.xlane.f32.xlu0 %v3896
        %v3898 = vpop.xlane.xlu0 %3897
        %v3899 = vsel %vm1655, %v3873, -inf
        %3900 = vmax.xlane.f32.xlu0 %v3899
        %v3901 = vpop.xlane.xlu0 %3900
        %v3902 = vsel %vm1655, %v3874, -inf
        %3903 = vmax.xlane.f32.xlu0 %v3902
        %v3904 = vpop.xlane.xlu0 %3903
        %v3905 = vsel %vm1655, %v3875, -inf
        %3906 = vmax.xlane.f32.xlu0 %v3905
        %v3907 = vpop.xlane.xlu0 %3906
        %v3908 = vsel %vm1655, %v3876, -inf
        %3909 = vmax.xlane.f32.xlu0 %v3908
        %v3910 = vpop.xlane.xlu0 %3909
        %v3911 = vsel %vm1655, %v3877, -inf
        %3912 = vmax.xlane.f32.xlu0 %v3911
        %v3913 = vpop.xlane.xlu0 %3912
        %v3914 = vsel %vm1655, %v3878, -inf
        %3915 = vmax.xlane.f32.xlu0 %v3914
        %v3916 = vpop.xlane.xlu0 %3915
        %v3917 = vsel %vm1655, %v3879, -inf
        %3918 = vmax.xlane.f32.xlu0 %v3917
        %v3919 = vpop.xlane.xlu0 %3918
        %v3920 = vsel %vm1655, %v3880, -inf
        %3921 = vmax.xlane.f32.xlu0 %v3920
        %v3922 = vpop.xlane.xlu0 %3921
        %v3923 = vsel %vm1655, %v3881, -inf
        %3924 = vmax.xlane.f32.xlu0 %v3923
        %v3925 = vpop.xlane.xlu0 %3924
        %v3926 = vsel %vm1655, %v3882, -inf
        %3927 = vmax.xlane.f32.xlu0 %v3926
        %v3928 = vpop.xlane.xlu0 %3927
        %v3929 = vsel %vm1655, %v3883, -inf
        %3930 = vmax.xlane.f32.xlu0 %v3929
        %v3931 = vpop.xlane.xlu0 %3930
        %v3932 = vsub.f32 %v3868, %v3886
        %v3933 = vsub.f32 %v3869, %v3889
        %v3934 = vsub.f32 %v3870, %v3892
        %v3935 = vsub.f32 %v3871, %v3895
        %v3936 = vsub.f32 %v3872, %v3898
        %v3937 = vsub.f32 %v3873, %v3901
        %v3938 = vsub.f32 %v3874, %v3904
        %v3939 = vsub.f32 %v3875, %v3907
        %v3940 = vsub.f32 %v3876, %v3910
        %v3941 = vsub.f32 %v3877, %v3913
        %v3942 = vsub.f32 %v3878, %v3916
        %v3943 = vsub.f32 %v3879, %v3919
        %v3944 = vsub.f32 %v3880, %v3922
        %v3945 = vsub.f32 %v3881, %v3925
        %v3946 = vsub.f32 %v3882, %v3928
        %v3947 = vsub.f32 %v3883, %v3931
        %v3948 = vmul.f32 %v3932, 1.442695
        %v3949 = vpow.pop %v3948
        %v3950 = vmul.f32 %v3933, 1.442695
        %v3951 = vpow.pop %v3950
        %v3952 = vmul.f32 %v3934, 1.442695
        %v3953 = vpow.pop %v3952
        %v3954 = vmul.f32 %v3935, 1.442695
        %v3955 = vpow.pop %v3954
        %v3956 = vmul.f32 %v3936, 1.442695
        %v3957 = vpow.pop %v3956
        %v3958 = vmul.f32 %v3937, 1.442695
        %v3959 = vpow.pop %v3958
        %v3960 = vmul.f32 %v3938, 1.442695
        %v3961 = vpow.pop %v3960
        %v3962 = vmul.f32 %v3939, 1.442695
        %v3963 = vpow.pop %v3962
        %v3964 = vmul.f32 %v3940, 1.442695
        %v3965 = vpow.pop %v3964
        %v3966 = vmul.f32 %v3941, 1.442695
        %v3967 = vpow.pop %v3966
        %v3968 = vmul.f32 %v3942, 1.442695
        %v3969 = vpow.pop %v3968
        %v3970 = vmul.f32 %v3943, 1.442695
        %v3971 = vpow.pop %v3970
        %v3972 = vmul.f32 %v3944, 1.442695
        %v3973 = vpow.pop %v3972
        %v3974 = vmul.f32 %v3945, 1.442695
        %v3975 = vpow.pop %v3974
        %v3976 = vmul.f32 %v3946, 1.442695
        %v3977 = vpow.pop %v3976
        %v3978 = vmul.f32 %v3947, 1.442695
        %v3979 = vpow.pop %v3978
        %v3980 = vsel %vm1655, %v3949, 0.0
        %3981 = vadd.xlane.f32.xlu0 %v3980
        %v3982 = vpop.xlane.xlu0 %3981
        %v3983 = vsel %vm1655, %v3951, 0.0
        %3984 = vadd.xlane.f32.xlu0 %v3983
        %v3985 = vpop.xlane.xlu0 %3984
        %v3986 = vsel %vm1655, %v3953, 0.0
        %3987 = vadd.xlane.f32.xlu0 %v3986
        %v3988 = vpop.xlane.xlu0 %3987
        %v3989 = vsel %vm1655, %v3955, 0.0
        %3990 = vadd.xlane.f32.xlu0 %v3989
        %v3991 = vpop.xlane.xlu0 %3990
        %v3992 = vsel %vm1655, %v3957, 0.0
        %3993 = vadd.xlane.f32.xlu0 %v3992
        %v3994 = vpop.xlane.xlu0 %3993
        %v3995 = vsel %vm1655, %v3959, 0.0
        %3996 = vadd.xlane.f32.xlu0 %v3995
        %v3997 = vpop.xlane.xlu0 %3996
        %v3998 = vsel %vm1655, %v3961, 0.0
        %3999 = vadd.xlane.f32.xlu0 %v3998
        %v4000 = vpop.xlane.xlu0 %3999
        %v4001 = vsel %vm1655, %v3963, 0.0
        %4002 = vadd.xlane.f32.xlu0 %v4001
        %v4003 = vpop.xlane.xlu0 %4002
        %v4004 = vsel %vm1655, %v3965, 0.0
        %4005 = vadd.xlane.f32.xlu0 %v4004
        %v4006 = vpop.xlane.xlu0 %4005
        %v4007 = vsel %vm1655, %v3967, 0.0
        %4008 = vadd.xlane.f32.xlu0 %v4007
        %v4009 = vpop.xlane.xlu0 %4008
        %v4010 = vsel %vm1655, %v3969, 0.0
        %4011 = vadd.xlane.f32.xlu0 %v4010
        %v4012 = vpop.xlane.xlu0 %4011
        %v4013 = vsel %vm1655, %v3971, 0.0
        %4014 = vadd.xlane.f32.xlu0 %v4013
        %v4015 = vpop.xlane.xlu0 %4014
        %v4016 = vsel %vm1655, %v3973, 0.0
        %4017 = vadd.xlane.f32.xlu0 %v4016
        %v4018 = vpop.xlane.xlu0 %4017
        %v4019 = vsel %vm1655, %v3975, 0.0
        %4020 = vadd.xlane.f32.xlu0 %v4019
        %v4021 = vpop.xlane.xlu0 %4020
        %v4022 = vsel %vm1655, %v3977, 0.0
        %4023 = vadd.xlane.f32.xlu0 %v4022
        %v4024 = vpop.xlane.xlu0 %4023
        %v4025 = vsel %vm1655, %v3979, 0.0
        %4026 = vadd.xlane.f32.xlu0 %v4025
        %v4027 = vpop.xlane.xlu0 %4026
        %v4028 = vrcp.pop %v3982
        %v4029 = vrcp.pop %v3985
        %v4030 = vrcp.pop %v3988
        %v4031 = vrcp.pop %v3991
        %v4032 = vrcp.pop %v3994
        %v4033 = vrcp.pop %v3997
        %v4034 = vrcp.pop %v4000
        %v4035 = vrcp.pop %v4003
        %v4036 = vrcp.pop %v4006
        %v4037 = vrcp.pop %v4009
        %v4038 = vrcp.pop %v4012
        %v4039 = vrcp.pop %v4015
        %v4040 = vrcp.pop %v4018
        %v4041 = vrcp.pop %v4021
        %v4042 = vrcp.pop %v4024
        %v4043 = vrcp.pop %v4027
        %v4044 = vmul.f32 %v3949, %v4028
        %v4045 = vmul.f32 %v3951, %v4029
        %v4046 = vmul.f32 %v3953, %v4030
        %v4047 = vmul.f32 %v3955, %v4031
        %v4048 = vmul.f32 %v3957, %v4032
        %v4049 = vmul.f32 %v3959, %v4033
        %v4050 = vmul.f32 %v3961, %v4034
        %v4051 = vmul.f32 %v3963, %v4035
        %v4052 = vmul.f32 %v3965, %v4036
        %v4053 = vmul.f32 %v3967, %v4037
        %v4054 = vmul.f32 %v3969, %v4038
        %v4055 = vmul.f32 %v3971, %v4039
        %v4056 = vmul.f32 %v3973, %v4040
        %v4057 = vmul.f32 %v3975, %v4041
        %v4058 = vmul.f32 %v3977, %v4042
        %v4059 = vmul.f32 %v3979, %v4043
        %v4060 = vpack.c.bf16 %v4045, %v4044
        %v4061 = vpack.c.bf16 %v4047, %v4046
        %v4062 = vpack.c.bf16 %v4049, %v4048
        %v4063 = vpack.c.bf16 %v4051, %v4050
        %v4064 = vpack.c.bf16 %v4053, %v4052
        %v4065 = vpack.c.bf16 %v4055, %v4054
        %v4066 = vpack.c.bf16 %v4057, %v4056
        %v4067 = vpack.c.bf16 %v4059, %v4058
        %4068 = vrot.lane.b32.xlu0 %v2475, 110
        %v4069 = vpop.permute.xlu0 %4068
        %v4072 = vsel %vm1655, %v4060, 0
        %4074 = vmatprep.subr.bf16.mxu0 0
        %4075 = vmatpush1.bf16.msra.mxu0 0
        %4076 = vmatprep.subr.bf16.mxu0 0
        %4077 = vmatpush1.bf16.msra.mxu0 0
        %4078 = vmatprep.subr.bf16.mxu0 0
        %4079 = vmatpush1.bf16.msra.mxu0 0
        %4080 = vmatprep.subr.bf16.mxu0 0
        %4081 = vmatpush1.bf16.msra.mxu0 0
        %4082 = vmatprep.subr.bf16.mxu0 0
        %4083 = vmatpush1.bf16.msra.mxu0 0
        %4084 = vmatprep.subr.bf16.mxu0 0
        %4085 = vmatpush1.bf16.msra.mxu0 0
        %4086 = vmatprep.subr.bf16.mxu0 0
        %4087 = vmatpush1.bf16.msra.mxu0 0
        %4088 = vmatprep.subr.bf16.mxu0 0
        %4089 = vmatpush1.bf16.msra.mxu0 %v4069
        %4090 = vmatprep.subr.bf16.mxu0 0
        %4091 = vmatpush2.bf16.msra.mxu0 0
        %4092 = vmatprep.subr.bf16.mxu0 0
        %4093 = vmatpush2.bf16.msra.mxu0 0
        %4094 = vmatprep.subr.bf16.mxu0 0
        %4095 = vmatpush2.bf16.msra.mxu0 0
        %4096 = vmatprep.subr.bf16.mxu0 0
        %4097 = vmatpush2.bf16.msra.mxu0 0
        %4098 = vmatprep.subr.bf16.mxu0 0
        %4099 = vmatpush2.bf16.msra.mxu0 0
        %4100 = vmatprep.subr.bf16.mxu0 0
        %4101 = vmatpush2.bf16.msra.mxu0 0
        %4102 = vmatprep.subr.bf16.mxu0 0
        %4103 = vmatpush2.bf16.msra.mxu0 0
        %4104 = vmatprep.subr.bf16.mxu0 0
        %4105 = vmatpush2.bf16.msra.mxu0 0
        %4106 = vmatprep.mubr.bf16.mxu0 0
        %4107 = vmatmul.mubr.bf16.gmra.mxu0 %v4072
        %v4108 = vpop.f32.mrf.mxu0
        %v4109 = vadd.f32 0.0, %v4108
        %v4110 = vpop.f32.mrf.mxu0
        %v4111 = vpop.f32.mrf.mxu0
        %v4112 = vadd.f32 0.0, %v4111
        %v4113 = vpop.f32.mrf.mxu0
        %4114 = vdwg.mxu0
        %4115 = vrot.lane.b32.xlu0 %v2476, 110
        %v4116 = vpop.permute.xlu0 %4115
        %v4119 = vsel %vm1655, %v4061, 0
        %4121 = vmatprep.subr.bf16.mxu0 0
        %4122 = vmatpush1.bf16.msra.mxu0 0
        %4123 = vmatprep.subr.bf16.mxu0 0
        %4124 = vmatpush1.bf16.msra.mxu0 0
        %4125 = vmatprep.subr.bf16.mxu0 0
        %4126 = vmatpush1.bf16.msra.mxu0 0
        %4127 = vmatprep.subr.bf16.mxu0 0
        %4128 = vmatpush1.bf16.msra.mxu0 0
        %4129 = vmatprep.subr.bf16.mxu0 0
        %4130 = vmatpush1.bf16.msra.mxu0 0
        %4131 = vmatprep.subr.bf16.mxu0 0
        %4132 = vmatpush1.bf16.msra.mxu0 0
        %4133 = vmatprep.subr.bf16.mxu0 0
        %4134 = vmatpush1.bf16.msra.mxu0 0
        %4135 = vmatprep.subr.bf16.mxu0 0
        %4136 = vmatpush1.bf16.msra.mxu0 %v4116
        %4137 = vmatprep.subr.bf16.mxu0 0
        %4138 = vmatpush2.bf16.msra.mxu0 0
        %4139 = vmatprep.subr.bf16.mxu0 0
        %4140 = vmatpush2.bf16.msra.mxu0 0
        %4141 = vmatprep.subr.bf16.mxu0 0
        %4142 = vmatpush2.bf16.msra.mxu0 0
        %4143 = vmatprep.subr.bf16.mxu0 0
        %4144 = vmatpush2.bf16.msra.mxu0 0
        %4145 = vmatprep.subr.bf16.mxu0 0
        %4146 = vmatpush2.bf16.msra.mxu0 0
        %4147 = vmatprep.subr.bf16.mxu0 0
        %4148 = vmatpush2.bf16.msra.mxu0 0
        %4149 = vmatprep.subr.bf16.mxu0 0
        %4150 = vmatpush2.bf16.msra.mxu0 0
        %4151 = vmatprep.subr.bf16.mxu0 0
        %4152 = vmatpush2.bf16.msra.mxu0 0
        %4153 = vmatprep.mubr.bf16.mxu0 0
        %4154 = vmatmul.mubr.bf16.gmra.mxu0 %v4119
        %v4155 = vpop.f32.mrf.mxu0
        %v4156 = vadd.f32 0.0, %v4155
        %v4157 = vpop.f32.mrf.mxu0
        %v4158 = vpop.f32.mrf.mxu0
        %v4159 = vadd.f32 0.0, %v4158
        %v4160 = vpop.f32.mrf.mxu0
        %4161 = vdwg.mxu0
        %4162 = vrot.lane.b32.xlu0 %v2477, 110
        %v4163 = vpop.permute.xlu0 %4162
        %v4166 = vsel %vm1655, %v4062, 0
        %4168 = vmatprep.subr.bf16.mxu0 0
        %4169 = vmatpush1.bf16.msra.mxu0 0
        %4170 = vmatprep.subr.bf16.mxu0 0
        %4171 = vmatpush1.bf16.msra.mxu0 0
        %4172 = vmatprep.subr.bf16.mxu0 0
        %4173 = vmatpush1.bf16.msra.mxu0 0
        %4174 = vmatprep.subr.bf16.mxu0 0
        %4175 = vmatpush1.bf16.msra.mxu0 0
        %4176 = vmatprep.subr.bf16.mxu0 0
        %4177 = vmatpush1.bf16.msra.mxu0 0
        %4178 = vmatprep.subr.bf16.mxu0 0
        %4179 = vmatpush1.bf16.msra.mxu0 0
        %4180 = vmatprep.subr.bf16.mxu0 0
        %4181 = vmatpush1.bf16.msra.mxu0 0
        %4182 = vmatprep.subr.bf16.mxu0 0
        %4183 = vmatpush1.bf16.msra.mxu0 %v4163
        %4184 = vmatprep.subr.bf16.mxu0 0
        %4185 = vmatpush2.bf16.msra.mxu0 0
        %4186 = vmatprep.subr.bf16.mxu0 0
        %4187 = vmatpush2.bf16.msra.mxu0 0
        %4188 = vmatprep.subr.bf16.mxu0 0
        %4189 = vmatpush2.bf16.msra.mxu0 0
        %4190 = vmatprep.subr.bf16.mxu0 0
        %4191 = vmatpush2.bf16.msra.mxu0 0
        %4192 = vmatprep.subr.bf16.mxu0 0
        %4193 = vmatpush2.bf16.msra.mxu0 0
        %4194 = vmatprep.subr.bf16.mxu0 0
        %4195 = vmatpush2.bf16.msra.mxu0 0
        %4196 = vmatprep.subr.bf16.mxu0 0
        %4197 = vmatpush2.bf16.msra.mxu0 0
        %4198 = vmatprep.subr.bf16.mxu0 0
        %4199 = vmatpush2.bf16.msra.mxu0 0
        %4200 = vmatprep.mubr.bf16.mxu0 0
        %4201 = vmatmul.mubr.bf16.gmra.mxu0 %v4166
        %v4202 = vpop.f32.mrf.mxu0
        %v4203 = vadd.f32 0.0, %v4202
        %v4204 = vpop.f32.mrf.mxu0
        %v4205 = vpop.f32.mrf.mxu0
        %v4206 = vadd.f32 0.0, %v4205
        %v4207 = vpop.f32.mrf.mxu0
        %4208 = vdwg.mxu0
        %4209 = vrot.lane.b32.xlu0 %v2478, 110
        %v4210 = vpop.permute.xlu0 %4209
        %v4213 = vsel %vm1655, %v4063, 0
        %4215 = vmatprep.subr.bf16.mxu0 0
        %4216 = vmatpush1.bf16.msra.mxu0 0
        %4217 = vmatprep.subr.bf16.mxu0 0
        %4218 = vmatpush1.bf16.msra.mxu0 0
        %4219 = vmatprep.subr.bf16.mxu0 0
        %4220 = vmatpush1.bf16.msra.mxu0 0
        %4221 = vmatprep.subr.bf16.mxu0 0
        %4222 = vmatpush1.bf16.msra.mxu0 0
        %4223 = vmatprep.subr.bf16.mxu0 0
        %4224 = vmatpush1.bf16.msra.mxu0 0
        %4225 = vmatprep.subr.bf16.mxu0 0
        %4226 = vmatpush1.bf16.msra.mxu0 0
        %4227 = vmatprep.subr.bf16.mxu0 0
        %4228 = vmatpush1.bf16.msra.mxu0 0
        %4229 = vmatprep.subr.bf16.mxu0 0
        %4230 = vmatpush1.bf16.msra.mxu0 %v4210
        %4231 = vmatprep.subr.bf16.mxu0 0
        %4232 = vmatpush2.bf16.msra.mxu0 0
        %4233 = vmatprep.subr.bf16.mxu0 0
        %4234 = vmatpush2.bf16.msra.mxu0 0
        %4235 = vmatprep.subr.bf16.mxu0 0
        %4236 = vmatpush2.bf16.msra.mxu0 0
        %4237 = vmatprep.subr.bf16.mxu0 0
        %4238 = vmatpush2.bf16.msra.mxu0 0
        %4239 = vmatprep.subr.bf16.mxu0 0
        %4240 = vmatpush2.bf16.msra.mxu0 0
        %4241 = vmatprep.subr.bf16.mxu0 0
        %4242 = vmatpush2.bf16.msra.mxu0 0
        %4243 = vmatprep.subr.bf16.mxu0 0
        %4244 = vmatpush2.bf16.msra.mxu0 0
        %4245 = vmatprep.subr.bf16.mxu0 0
        %4246 = vmatpush2.bf16.msra.mxu0 0
        %4247 = vmatprep.mubr.bf16.mxu0 0
        %4248 = vmatmul.mubr.bf16.gmra.mxu0 %v4213
        %v4249 = vpop.f32.mrf.mxu0
        %v4250 = vadd.f32 0.0, %v4249
        %v4251 = vpop.f32.mrf.mxu0
        %v4252 = vpop.f32.mrf.mxu0
        %v4253 = vadd.f32 0.0, %v4252
        %v4254 = vpop.f32.mrf.mxu0
        %4255 = vdwg.mxu0
        %4256 = vrot.lane.b32.xlu0 %v2479, 110
        %v4257 = vpop.permute.xlu0 %4256
        %v4260 = vsel %vm1655, %v4064, 0
        %4262 = vmatprep.subr.bf16.mxu0 0
        %4263 = vmatpush1.bf16.msra.mxu0 0
        %4264 = vmatprep.subr.bf16.mxu0 0
        %4265 = vmatpush1.bf16.msra.mxu0 0
        %4266 = vmatprep.subr.bf16.mxu0 0
        %4267 = vmatpush1.bf16.msra.mxu0 0
        %4268 = vmatprep.subr.bf16.mxu0 0
        %4269 = vmatpush1.bf16.msra.mxu0 0
        %4270 = vmatprep.subr.bf16.mxu0 0
        %4271 = vmatpush1.bf16.msra.mxu0 0
        %4272 = vmatprep.subr.bf16.mxu0 0
        %4273 = vmatpush1.bf16.msra.mxu0 0
        %4274 = vmatprep.subr.bf16.mxu0 0
        %4275 = vmatpush1.bf16.msra.mxu0 0
        %4276 = vmatprep.subr.bf16.mxu0 0
        %4277 = vmatpush1.bf16.msra.mxu0 %v4257
        %4278 = vmatprep.subr.bf16.mxu0 0
        %4279 = vmatpush2.bf16.msra.mxu0 0
        %4280 = vmatprep.subr.bf16.mxu0 0
        %4281 = vmatpush2.bf16.msra.mxu0 0
        %4282 = vmatprep.subr.bf16.mxu0 0
        %4283 = vmatpush2.bf16.msra.mxu0 0
        %4284 = vmatprep.subr.bf16.mxu0 0
        %4285 = vmatpush2.bf16.msra.mxu0 0
        %4286 = vmatprep.subr.bf16.mxu0 0
        %4287 = vmatpush2.bf16.msra.mxu0 0
        %4288 = vmatprep.subr.bf16.mxu0 0
        %4289 = vmatpush2.bf16.msra.mxu0 0
        %4290 = vmatprep.subr.bf16.mxu0 0
        %4291 = vmatpush2.bf16.msra.mxu0 0
        %4292 = vmatprep.subr.bf16.mxu0 0
        %4293 = vmatpush2.bf16.msra.mxu0 0
        %4294 = vmatprep.mubr.bf16.mxu0 0
        %4295 = vmatmul.mubr.bf16.gmra.mxu0 %v4260
        %v4296 = vpop.f32.mrf.mxu0
        %v4297 = vadd.f32 0.0, %v4296
        %v4298 = vpop.f32.mrf.mxu0
        %v4299 = vpop.f32.mrf.mxu0
        %v4300 = vadd.f32 0.0, %v4299
        %v4301 = vpop.f32.mrf.mxu0
        %4302 = vdwg.mxu0
        %4303 = vrot.lane.b32.xlu0 %v2480, 110
        %v4304 = vpop.permute.xlu0 %4303
        %v4307 = vsel %vm1655, %v4065, 0
        %4309 = vmatprep.subr.bf16.mxu0 0
        %4310 = vmatpush1.bf16.msra.mxu0 0
        %4311 = vmatprep.subr.bf16.mxu0 0
        %4312 = vmatpush1.bf16.msra.mxu0 0
        %4313 = vmatprep.subr.bf16.mxu0 0
        %4314 = vmatpush1.bf16.msra.mxu0 0
        %4315 = vmatprep.subr.bf16.mxu0 0
        %4316 = vmatpush1.bf16.msra.mxu0 0
        %4317 = vmatprep.subr.bf16.mxu0 0
        %4318 = vmatpush1.bf16.msra.mxu0 0
        %4319 = vmatprep.subr.bf16.mxu0 0
        %4320 = vmatpush1.bf16.msra.mxu0 0
        %4321 = vmatprep.subr.bf16.mxu0 0
        %4322 = vmatpush1.bf16.msra.mxu0 0
        %4323 = vmatprep.subr.bf16.mxu0 0
        %4324 = vmatpush1.bf16.msra.mxu0 %v4304
        %4325 = vmatprep.subr.bf16.mxu0 0
        %4326 = vmatpush2.bf16.msra.mxu0 0
        %4327 = vmatprep.subr.bf16.mxu0 0
        %4328 = vmatpush2.bf16.msra.mxu0 0
        %4329 = vmatprep.subr.bf16.mxu0 0
        %4330 = vmatpush2.bf16.msra.mxu0 0
        %4331 = vmatprep.subr.bf16.mxu0 0
        %4332 = vmatpush2.bf16.msra.mxu0 0
        %4333 = vmatprep.subr.bf16.mxu0 0
        %4334 = vmatpush2.bf16.msra.mxu0 0
        %4335 = vmatprep.subr.bf16.mxu0 0
        %4336 = vmatpush2.bf16.msra.mxu0 0
        %4337 = vmatprep.subr.bf16.mxu0 0
        %4338 = vmatpush2.bf16.msra.mxu0 0
        %4339 = vmatprep.subr.bf16.mxu0 0
        %4340 = vmatpush2.bf16.msra.mxu0 0
        %4341 = vmatprep.mubr.bf16.mxu0 0
        %4342 = vmatmul.mubr.bf16.gmra.mxu0 %v4307
        %v4343 = vpop.f32.mrf.mxu0
        %v4344 = vadd.f32 0.0, %v4343
        %v4345 = vpop.f32.mrf.mxu0
        %v4346 = vpop.f32.mrf.mxu0
        %v4347 = vadd.f32 0.0, %v4346
        %v4348 = vpop.f32.mrf.mxu0
        %4349 = vdwg.mxu0
        %4350 = vrot.lane.b32.xlu0 %v2481, 110
        %v4351 = vpop.permute.xlu0 %4350
        %v4354 = vsel %vm1655, %v4066, 0
        %4356 = vmatprep.subr.bf16.mxu0 0
        %4357 = vmatpush1.bf16.msra.mxu0 0
        %4358 = vmatprep.subr.bf16.mxu0 0
        %4359 = vmatpush1.bf16.msra.mxu0 0
        %4360 = vmatprep.subr.bf16.mxu0 0
        %4361 = vmatpush1.bf16.msra.mxu0 0
        %4362 = vmatprep.subr.bf16.mxu0 0
        %4363 = vmatpush1.bf16.msra.mxu0 0
        %4364 = vmatprep.subr.bf16.mxu0 0
        %4365 = vmatpush1.bf16.msra.mxu0 0
        %4366 = vmatprep.subr.bf16.mxu0 0
        %4367 = vmatpush1.bf16.msra.mxu0 0
        %4368 = vmatprep.subr.bf16.mxu0 0
        %4369 = vmatpush1.bf16.msra.mxu0 0
        %4370 = vmatprep.subr.bf16.mxu0 0
        %4371 = vmatpush1.bf16.msra.mxu0 %v4351
        %4372 = vmatprep.subr.bf16.mxu0 0
        %4373 = vmatpush2.bf16.msra.mxu0 0
        %4374 = vmatprep.subr.bf16.mxu0 0
        %4375 = vmatpush2.bf16.msra.mxu0 0
        %4376 = vmatprep.subr.bf16.mxu0 0
        %4377 = vmatpush2.bf16.msra.mxu0 0
        %4378 = vmatprep.subr.bf16.mxu0 0
        %4379 = vmatpush2.bf16.msra.mxu0 0
        %4380 = vmatprep.subr.bf16.mxu0 0
        %4381 = vmatpush2.bf16.msra.mxu0 0
        %4382 = vmatprep.subr.bf16.mxu0 0
        %4383 = vmatpush2.bf16.msra.mxu0 0
        %4384 = vmatprep.subr.bf16.mxu0 0
        %4385 = vmatpush2.bf16.msra.mxu0 0
        %4386 = vmatprep.subr.bf16.mxu0 0
        %4387 = vmatpush2.bf16.msra.mxu0 0
        %4388 = vmatprep.mubr.bf16.mxu0 0
        %4389 = vmatmul.mubr.bf16.gmra.mxu0 %v4354
        %v4390 = vpop.f32.mrf.mxu0
        %v4391 = vadd.f32 0.0, %v4390
        %v4392 = vpop.f32.mrf.mxu0
        %v4393 = vpop.f32.mrf.mxu0
        %v4394 = vadd.f32 0.0, %v4393
        %v4395 = vpop.f32.mrf.mxu0
        %4396 = vdwg.mxu0
        %4397 = vrot.lane.b32.xlu0 %v2482, 110
        %v4398 = vpop.permute.xlu0 %4397
        %v4401 = vsel %vm1655, %v4067, 0
        %4403 = vmatprep.subr.bf16.mxu0 0
        %4404 = vmatpush1.bf16.msra.mxu0 0
        %4405 = vmatprep.subr.bf16.mxu0 0
        %4406 = vmatpush1.bf16.msra.mxu0 0
        %4407 = vmatprep.subr.bf16.mxu0 0
        %4408 = vmatpush1.bf16.msra.mxu0 0
        %4409 = vmatprep.subr.bf16.mxu0 0
        %4410 = vmatpush1.bf16.msra.mxu0 0
        %4411 = vmatprep.subr.bf16.mxu0 0
        %4412 = vmatpush1.bf16.msra.mxu0 0
        %4413 = vmatprep.subr.bf16.mxu0 0
        %4414 = vmatpush1.bf16.msra.mxu0 0
        %4415 = vmatprep.subr.bf16.mxu0 0
        %4416 = vmatpush1.bf16.msra.mxu0 0
        %4417 = vmatprep.subr.bf16.mxu0 0
        %4418 = vmatpush1.bf16.msra.mxu0 %v4398
        %4419 = vmatprep.subr.bf16.mxu0 0
        %4420 = vmatpush2.bf16.msra.mxu0 0
        %4421 = vmatprep.subr.bf16.mxu0 0
        %4422 = vmatpush2.bf16.msra.mxu0 0
        %4423 = vmatprep.subr.bf16.mxu0 0
        %4424 = vmatpush2.bf16.msra.mxu0 0
        %4425 = vmatprep.subr.bf16.mxu0 0
        %4426 = vmatpush2.bf16.msra.mxu0 0
        %4427 = vmatprep.subr.bf16.mxu0 0
        %4428 = vmatpush2.bf16.msra.mxu0 0
        %4429 = vmatprep.subr.bf16.mxu0 0
        %4430 = vmatpush2.bf16.msra.mxu0 0
        %4431 = vmatprep.subr.bf16.mxu0 0
        %4432 = vmatpush2.bf16.msra.mxu0 0
        %4433 = vmatprep.subr.bf16.mxu0 0
        %4434 = vmatpush2.bf16.msra.mxu0 0
        %4435 = vmatprep.mubr.bf16.mxu0 0
        %4436 = vmatmul.mubr.bf16.gmra.mxu0 %v4401
        %v4437 = vpop.f32.mrf.mxu0
        %v4438 = vadd.f32 0.0, %v4437
        %v4439 = vpop.f32.mrf.mxu0
        %v4440 = vpop.f32.mrf.mxu0
        %v4441 = vadd.f32 0.0, %v4440
        %v4442 = vpop.f32.mrf.mxu0
        %4443 = vdwg.mxu0
        %4444 = vrot.lane.b32.xlu0 %v2475, 124
        %v4445 = vpop.permute.xlu0 %4444
        %4446 = vrot.lane.b32.xlu0 %v2475, 116
        %v4447 = vpop.permute.xlu0 %4446
        %v4449 = vsel %vm2486, %v4445, 0
        %v4452 = vsel %vm2486, %v4447, 0
        %4454 = vmatprep.subr.bf16.mxu0 0
        %4455 = vmatpush1.bf16.xpose.msra.mxu0 0
        %4456 = vmatprep.subr.bf16.mxu0 0
        %4457 = vmatpush1.bf16.xpose.msra.mxu0 0
        %4458 = vmatprep.subr.bf16.mxu0 0
        %4459 = vmatpush1.bf16.xpose.msra.mxu0 0
        %4460 = vmatprep.subr.bf16.mxu0 0
        %4461 = vmatpush1.bf16.xpose.msra.mxu0 0
        %4462 = vmatprep.subr.bf16.mxu0 0
        %4463 = vmatpush1.bf16.xpose.msra.mxu0 0
        %4464 = vmatprep.subr.bf16.mxu0 0
        %4465 = vmatpush1.bf16.xpose.msra.mxu0 0
        %4466 = vmatprep.subr.bf16.mxu0 0
        %4467 = vmatpush1.bf16.xpose.msra.mxu0 0
        %4468 = vmatprep.subr.bf16.mxu0 0
        %4469 = vmatpush1.bf16.xpose.msra.mxu0 %v4452
        %4470 = vmatprep.subr.bf16.mxu0 0
        %4471 = vmatpush2.bf16.xpose.msra.mxu0 0
        %4472 = vmatprep.subr.bf16.mxu0 0
        %4473 = vmatpush2.bf16.xpose.msra.mxu0 0
        %4474 = vmatprep.subr.bf16.mxu0 0
        %4475 = vmatpush2.bf16.xpose.msra.mxu0 0
        %4476 = vmatprep.subr.bf16.mxu0 0
        %4477 = vmatpush2.bf16.xpose.msra.mxu0 0
        %4478 = vmatprep.subr.bf16.mxu0 0
        %4479 = vmatpush2.bf16.xpose.msra.mxu0 0
        %4480 = vmatprep.subr.bf16.mxu0 0
        %4481 = vmatpush2.bf16.xpose.msra.mxu0 0
        %4482 = vmatprep.subr.bf16.mxu0 0
        %4483 = vmatpush2.bf16.xpose.msra.mxu0 0
        %4484 = vmatprep.subr.bf16.mxu0 0
        %4485 = vmatpush2.bf16.xpose.msra.mxu0 0
        %4486 = vmatprep.mubr.bf16.mxu0 0
        %4487 = vmatmul.mubr.bf16.gmra.mxu0 %v4449
        %v4488 = vpop.f32.mrf.mxu0
        %v4489 = vadd.f32 0.0, %v4488
        %v4490 = vpop.f32.mrf.mxu0
        %v4491 = vpop.f32.mrf.mxu0
        %v4492 = vadd.f32 0.0, %v4491
        %v4493 = vpop.f32.mrf.mxu0
        %4494 = vdwg.mxu0
        %4495 = vrot.lane.b32.xlu0 %v2476, 124
        %v4496 = vpop.permute.xlu0 %4495
        %4497 = vrot.lane.b32.xlu0 %v2476, 116
        %v4498 = vpop.permute.xlu0 %4497
        %v4500 = vsel %vm2486, %v4496, 0
        %v4503 = vsel %vm2486, %v4498, 0
        %4505 = vmatprep.subr.bf16.mxu0 0
        %4506 = vmatpush1.bf16.xpose.msra.mxu0 0
        %4507 = vmatprep.subr.bf16.mxu0 0
        %4508 = vmatpush1.bf16.xpose.msra.mxu0 0
        %4509 = vmatprep.subr.bf16.mxu0 0
        %4510 = vmatpush1.bf16.xpose.msra.mxu0 0
        %4511 = vmatprep.subr.bf16.mxu0 0
        %4512 = vmatpush1.bf16.xpose.msra.mxu0 0
        %4513 = vmatprep.subr.bf16.mxu0 0
        %4514 = vmatpush1.bf16.xpose.msra.mxu0 0
        %4515 = vmatprep.subr.bf16.mxu0 0
        %4516 = vmatpush1.bf16.xpose.msra.mxu0 0
        %4517 = vmatprep.subr.bf16.mxu0 0
        %4518 = vmatpush1.bf16.xpose.msra.mxu0 0
        %4519 = vmatprep.subr.bf16.mxu0 0
        %4520 = vmatpush1.bf16.xpose.msra.mxu0 %v4503
        %4521 = vmatprep.subr.bf16.mxu0 0
        %4522 = vmatpush2.bf16.xpose.msra.mxu0 0
        %4523 = vmatprep.subr.bf16.mxu0 0
        %4524 = vmatpush2.bf16.xpose.msra.mxu0 0
        %4525 = vmatprep.subr.bf16.mxu0 0
        %4526 = vmatpush2.bf16.xpose.msra.mxu0 0
        %4527 = vmatprep.subr.bf16.mxu0 0
        %4528 = vmatpush2.bf16.xpose.msra.mxu0 0
        %4529 = vmatprep.subr.bf16.mxu0 0
        %4530 = vmatpush2.bf16.xpose.msra.mxu0 0
        %4531 = vmatprep.subr.bf16.mxu0 0
        %4532 = vmatpush2.bf16.xpose.msra.mxu0 0
        %4533 = vmatprep.subr.bf16.mxu0 0
        %4534 = vmatpush2.bf16.xpose.msra.mxu0 0
        %4535 = vmatprep.subr.bf16.mxu0 0
        %4536 = vmatpush2.bf16.xpose.msra.mxu0 0
        %4537 = vmatprep.mubr.bf16.mxu0 0
        %4538 = vmatmul.mubr.bf16.gmra.mxu0 %v4500
        %v4539 = vpop.f32.mrf.mxu0
        %v4540 = vadd.f32 0.0, %v4539
        %v4541 = vpop.f32.mrf.mxu0
        %v4542 = vpop.f32.mrf.mxu0
        %v4543 = vadd.f32 0.0, %v4542
        %v4544 = vpop.f32.mrf.mxu0
        %4545 = vdwg.mxu0
        %4546 = vrot.lane.b32.xlu0 %v2477, 124
        %v4547 = vpop.permute.xlu0 %4546
        %4548 = vrot.lane.b32.xlu0 %v2477, 116
        %v4549 = vpop.permute.xlu0 %4548
        %v4551 = vsel %vm2486, %v4547, 0
        %v4554 = vsel %vm2486, %v4549, 0
        %4556 = vmatprep.subr.bf16.mxu0 0
        %4557 = vmatpush1.bf16.xpose.msra.mxu0 0
        %4558 = vmatprep.subr.bf16.mxu0 0
        %4559 = vmatpush1.bf16.xpose.msra.mxu0 0
        %4560 = vmatprep.subr.bf16.mxu0 0
        %4561 = vmatpush1.bf16.xpose.msra.mxu0 0
        %4562 = vmatprep.subr.bf16.mxu0 0
        %4563 = vmatpush1.bf16.xpose.msra.mxu0 0
        %4564 = vmatprep.subr.bf16.mxu0 0
        %4565 = vmatpush1.bf16.xpose.msra.mxu0 0
        %4566 = vmatprep.subr.bf16.mxu0 0
        %4567 = vmatpush1.bf16.xpose.msra.mxu0 0
        %4568 = vmatprep.subr.bf16.mxu0 0
        %4569 = vmatpush1.bf16.xpose.msra.mxu0 0
        %4570 = vmatprep.subr.bf16.mxu0 0
        %4571 = vmatpush1.bf16.xpose.msra.mxu0 %v4554
        %4572 = vmatprep.subr.bf16.mxu0 0
        %4573 = vmatpush2.bf16.xpose.msra.mxu0 0
        %4574 = vmatprep.subr.bf16.mxu0 0
        %4575 = vmatpush2.bf16.xpose.msra.mxu0 0
        %4576 = vmatprep.subr.bf16.mxu0 0
        %4577 = vmatpush2.bf16.xpose.msra.mxu0 0
        %4578 = vmatprep.subr.bf16.mxu0 0
        %4579 = vmatpush2.bf16.xpose.msra.mxu0 0
        %4580 = vmatprep.subr.bf16.mxu0 0
        %4581 = vmatpush2.bf16.xpose.msra.mxu0 0
        %4582 = vmatprep.subr.bf16.mxu0 0
        %4583 = vmatpush2.bf16.xpose.msra.mxu0 0
        %4584 = vmatprep.subr.bf16.mxu0 0
        %4585 = vmatpush2.bf16.xpose.msra.mxu0 0
        %4586 = vmatprep.subr.bf16.mxu0 0
        %4587 = vmatpush2.bf16.xpose.msra.mxu0 0
        %4588 = vmatprep.mubr.bf16.mxu0 0
        %4589 = vmatmul.mubr.bf16.gmra.mxu0 %v4551
        %v4590 = vpop.f32.mrf.mxu0
        %v4591 = vadd.f32 0.0, %v4590
        %v4592 = vpop.f32.mrf.mxu0
        %v4593 = vpop.f32.mrf.mxu0
        %v4594 = vadd.f32 0.0, %v4593
        %v4595 = vpop.f32.mrf.mxu0
        %4596 = vdwg.mxu0
        %4597 = vrot.lane.b32.xlu0 %v2478, 124
        %v4598 = vpop.permute.xlu0 %4597
        %4599 = vrot.lane.b32.xlu0 %v2478, 116
        %v4600 = vpop.permute.xlu0 %4599
        %v4602 = vsel %vm2486, %v4598, 0
        %v4605 = vsel %vm2486, %v4600, 0
        %4607 = vmatprep.subr.bf16.mxu0 0
        %4608 = vmatpush1.bf16.xpose.msra.mxu0 0
        %4609 = vmatprep.subr.bf16.mxu0 0
        %4610 = vmatpush1.bf16.xpose.msra.mxu0 0
        %4611 = vmatprep.subr.bf16.mxu0 0
        %4612 = vmatpush1.bf16.xpose.msra.mxu0 0
        %4613 = vmatprep.subr.bf16.mxu0 0
        %4614 = vmatpush1.bf16.xpose.msra.mxu0 0
        %4615 = vmatprep.subr.bf16.mxu0 0
        %4616 = vmatpush1.bf16.xpose.msra.mxu0 0
        %4617 = vmatprep.subr.bf16.mxu0 0
        %4618 = vmatpush1.bf16.xpose.msra.mxu0 0
        %4619 = vmatprep.subr.bf16.mxu0 0
        %4620 = vmatpush1.bf16.xpose.msra.mxu0 0
        %4621 = vmatprep.subr.bf16.mxu0 0
        %4622 = vmatpush1.bf16.xpose.msra.mxu0 %v4605
        %4623 = vmatprep.subr.bf16.mxu0 0
        %4624 = vmatpush2.bf16.xpose.msra.mxu0 0
        %4625 = vmatprep.subr.bf16.mxu0 0
        %4626 = vmatpush2.bf16.xpose.msra.mxu0 0
        %4627 = vmatprep.subr.bf16.mxu0 0
        %4628 = vmatpush2.bf16.xpose.msra.mxu0 0
        %4629 = vmatprep.subr.bf16.mxu0 0
        %4630 = vmatpush2.bf16.xpose.msra.mxu0 0
        %4631 = vmatprep.subr.bf16.mxu0 0
        %4632 = vmatpush2.bf16.xpose.msra.mxu0 0
        %4633 = vmatprep.subr.bf16.mxu0 0
        %4634 = vmatpush2.bf16.xpose.msra.mxu0 0
        %4635 = vmatprep.subr.bf16.mxu0 0
        %4636 = vmatpush2.bf16.xpose.msra.mxu0 0
        %4637 = vmatprep.subr.bf16.mxu0 0
        %4638 = vmatpush2.bf16.xpose.msra.mxu0 0
        %4639 = vmatprep.mubr.bf16.mxu0 0
        %4640 = vmatmul.mubr.bf16.gmra.mxu0 %v4602
        %v4641 = vpop.f32.mrf.mxu0
        %v4642 = vadd.f32 0.0, %v4641
        %v4643 = vpop.f32.mrf.mxu0
        %v4644 = vpop.f32.mrf.mxu0
        %v4645 = vadd.f32 0.0, %v4644
        %v4646 = vpop.f32.mrf.mxu0
        %4647 = vdwg.mxu0
        %4648 = vrot.lane.b32.xlu0 %v2479, 124
        %v4649 = vpop.permute.xlu0 %4648
        %4650 = vrot.lane.b32.xlu0 %v2479, 116
        %v4651 = vpop.permute.xlu0 %4650
        %v4653 = vsel %vm2486, %v4649, 0
        %v4656 = vsel %vm2486, %v4651, 0
        %4658 = vmatprep.subr.bf16.mxu0 0
        %4659 = vmatpush1.bf16.xpose.msra.mxu0 0
        %4660 = vmatprep.subr.bf16.mxu0 0
        %4661 = vmatpush1.bf16.xpose.msra.mxu0 0
        %4662 = vmatprep.subr.bf16.mxu0 0
        %4663 = vmatpush1.bf16.xpose.msra.mxu0 0
        %4664 = vmatprep.subr.bf16.mxu0 0
        %4665 = vmatpush1.bf16.xpose.msra.mxu0 0
        %4666 = vmatprep.subr.bf16.mxu0 0
        %4667 = vmatpush1.bf16.xpose.msra.mxu0 0
        %4668 = vmatprep.subr.bf16.mxu0 0
        %4669 = vmatpush1.bf16.xpose.msra.mxu0 0
        %4670 = vmatprep.subr.bf16.mxu0 0
        %4671 = vmatpush1.bf16.xpose.msra.mxu0 0
        %4672 = vmatprep.subr.bf16.mxu0 0
        %4673 = vmatpush1.bf16.xpose.msra.mxu0 %v4656
        %4674 = vmatprep.subr.bf16.mxu0 0
        %4675 = vmatpush2.bf16.xpose.msra.mxu0 0
        %4676 = vmatprep.subr.bf16.mxu0 0
        %4677 = vmatpush2.bf16.xpose.msra.mxu0 0
        %4678 = vmatprep.subr.bf16.mxu0 0
        %4679 = vmatpush2.bf16.xpose.msra.mxu0 0
        %4680 = vmatprep.subr.bf16.mxu0 0
        %4681 = vmatpush2.bf16.xpose.msra.mxu0 0
        %4682 = vmatprep.subr.bf16.mxu0 0
        %4683 = vmatpush2.bf16.xpose.msra.mxu0 0
        %4684 = vmatprep.subr.bf16.mxu0 0
        %4685 = vmatpush2.bf16.xpose.msra.mxu0 0
        %4686 = vmatprep.subr.bf16.mxu0 0
        %4687 = vmatpush2.bf16.xpose.msra.mxu0 0
        %4688 = vmatprep.subr.bf16.mxu0 0
        %4689 = vmatpush2.bf16.xpose.msra.mxu0 0
        %4690 = vmatprep.mubr.bf16.mxu0 0
        %4691 = vmatmul.mubr.bf16.gmra.mxu0 %v4653
        %v4692 = vpop.f32.mrf.mxu0
        %v4693 = vadd.f32 0.0, %v4692
        %v4694 = vpop.f32.mrf.mxu0
        %v4695 = vpop.f32.mrf.mxu0
        %v4696 = vadd.f32 0.0, %v4695
        %v4697 = vpop.f32.mrf.mxu0
        %4698 = vdwg.mxu0
        %4699 = vrot.lane.b32.xlu0 %v2480, 124
        %v4700 = vpop.permute.xlu0 %4699
        %4701 = vrot.lane.b32.xlu0 %v2480, 116
        %v4702 = vpop.permute.xlu0 %4701
        %v4704 = vsel %vm2486, %v4700, 0
        %v4707 = vsel %vm2486, %v4702, 0
        %4709 = vmatprep.subr.bf16.mxu0 0
        %4710 = vmatpush1.bf16.xpose.msra.mxu0 0
        %4711 = vmatprep.subr.bf16.mxu0 0
        %4712 = vmatpush1.bf16.xpose.msra.mxu0 0
        %4713 = vmatprep.subr.bf16.mxu0 0
        %4714 = vmatpush1.bf16.xpose.msra.mxu0 0
        %4715 = vmatprep.subr.bf16.mxu0 0
        %4716 = vmatpush1.bf16.xpose.msra.mxu0 0
        %4717 = vmatprep.subr.bf16.mxu0 0
        %4718 = vmatpush1.bf16.xpose.msra.mxu0 0
        %4719 = vmatprep.subr.bf16.mxu0 0
        %4720 = vmatpush1.bf16.xpose.msra.mxu0 0
        %4721 = vmatprep.subr.bf16.mxu0 0
        %4722 = vmatpush1.bf16.xpose.msra.mxu0 0
        %4723 = vmatprep.subr.bf16.mxu0 0
        %4724 = vmatpush1.bf16.xpose.msra.mxu0 %v4707
        %4725 = vmatprep.subr.bf16.mxu0 0
        %4726 = vmatpush2.bf16.xpose.msra.mxu0 0
        %4727 = vmatprep.subr.bf16.mxu0 0
        %4728 = vmatpush2.bf16.xpose.msra.mxu0 0
        %4729 = vmatprep.subr.bf16.mxu0 0
        %4730 = vmatpush2.bf16.xpose.msra.mxu0 0
        %4731 = vmatprep.subr.bf16.mxu0 0
        %4732 = vmatpush2.bf16.xpose.msra.mxu0 0
        %4733 = vmatprep.subr.bf16.mxu0 0
        %4734 = vmatpush2.bf16.xpose.msra.mxu0 0
        %4735 = vmatprep.subr.bf16.mxu0 0
        %4736 = vmatpush2.bf16.xpose.msra.mxu0 0
        %4737 = vmatprep.subr.bf16.mxu0 0
        %4738 = vmatpush2.bf16.xpose.msra.mxu0 0
        %4739 = vmatprep.subr.bf16.mxu0 0
        %4740 = vmatpush2.bf16.xpose.msra.mxu0 0
        %4741 = vmatprep.mubr.bf16.mxu0 0
        %4742 = vmatmul.mubr.bf16.gmra.mxu0 %v4704
        %v4743 = vpop.f32.mrf.mxu0
        %v4744 = vadd.f32 0.0, %v4743
        %v4745 = vpop.f32.mrf.mxu0
        %v4746 = vpop.f32.mrf.mxu0
        %v4747 = vadd.f32 0.0, %v4746
        %v4748 = vpop.f32.mrf.mxu0
        %4749 = vdwg.mxu0
        %4750 = vrot.lane.b32.xlu0 %v2481, 124
        %v4751 = vpop.permute.xlu0 %4750
        %4752 = vrot.lane.b32.xlu0 %v2481, 116
        %v4753 = vpop.permute.xlu0 %4752
        %v4755 = vsel %vm2486, %v4751, 0
        %v4758 = vsel %vm2486, %v4753, 0
        %4760 = vmatprep.subr.bf16.mxu0 0
        %4761 = vmatpush1.bf16.xpose.msra.mxu0 0
        %4762 = vmatprep.subr.bf16.mxu0 0
        %4763 = vmatpush1.bf16.xpose.msra.mxu0 0
        %4764 = vmatprep.subr.bf16.mxu0 0
        %4765 = vmatpush1.bf16.xpose.msra.mxu0 0
        %4766 = vmatprep.subr.bf16.mxu0 0
        %4767 = vmatpush1.bf16.xpose.msra.mxu0 0
        %4768 = vmatprep.subr.bf16.mxu0 0
        %4769 = vmatpush1.bf16.xpose.msra.mxu0 0
        %4770 = vmatprep.subr.bf16.mxu0 0
        %4771 = vmatpush1.bf16.xpose.msra.mxu0 0
        %4772 = vmatprep.subr.bf16.mxu0 0
        %4773 = vmatpush1.bf16.xpose.msra.mxu0 0
        %4774 = vmatprep.subr.bf16.mxu0 0
        %4775 = vmatpush1.bf16.xpose.msra.mxu0 %v4758
        %4776 = vmatprep.subr.bf16.mxu0 0
        %4777 = vmatpush2.bf16.xpose.msra.mxu0 0
        %4778 = vmatprep.subr.bf16.mxu0 0
        %4779 = vmatpush2.bf16.xpose.msra.mxu0 0
        %4780 = vmatprep.subr.bf16.mxu0 0
        %4781 = vmatpush2.bf16.xpose.msra.mxu0 0
        %4782 = vmatprep.subr.bf16.mxu0 0
        %4783 = vmatpush2.bf16.xpose.msra.mxu0 0
        %4784 = vmatprep.subr.bf16.mxu0 0
        %4785 = vmatpush2.bf16.xpose.msra.mxu0 0
        %4786 = vmatprep.subr.bf16.mxu0 0
        %4787 = vmatpush2.bf16.xpose.msra.mxu0 0
        %4788 = vmatprep.subr.bf16.mxu0 0
        %4789 = vmatpush2.bf16.xpose.msra.mxu0 0
        %4790 = vmatprep.subr.bf16.mxu0 0
        %4791 = vmatpush2.bf16.xpose.msra.mxu0 0
        %4792 = vmatprep.mubr.bf16.mxu0 0
        %4793 = vmatmul.mubr.bf16.gmra.mxu0 %v4755
        %v4794 = vpop.f32.mrf.mxu0
        %v4795 = vadd.f32 0.0, %v4794
        %v4796 = vpop.f32.mrf.mxu0
        %v4797 = vpop.f32.mrf.mxu0
        %v4798 = vadd.f32 0.0, %v4797
        %v4799 = vpop.f32.mrf.mxu0
        %4800 = vdwg.mxu0
        %4801 = vrot.lane.b32.xlu0 %v2482, 124
        %v4802 = vpop.permute.xlu0 %4801
        %4803 = vrot.lane.b32.xlu0 %v2482, 116
        %v4804 = vpop.permute.xlu0 %4803
        %v4806 = vsel %vm2486, %v4802, 0
        %v4809 = vsel %vm2486, %v4804, 0
        %4811 = vmatprep.subr.bf16.mxu0 0
        %4812 = vmatpush1.bf16.xpose.msra.mxu0 0
        %4813 = vmatprep.subr.bf16.mxu0 0
        %4814 = vmatpush1.bf16.xpose.msra.mxu0 0
        %4815 = vmatprep.subr.bf16.mxu0 0
        %4816 = vmatpush1.bf16.xpose.msra.mxu0 0
        %4817 = vmatprep.subr.bf16.mxu0 0
        %4818 = vmatpush1.bf16.xpose.msra.mxu0 0
        %4819 = vmatprep.subr.bf16.mxu0 0
        %4820 = vmatpush1.bf16.xpose.msra.mxu0 0
        %4821 = vmatprep.subr.bf16.mxu0 0
        %4822 = vmatpush1.bf16.xpose.msra.mxu0 0
        %4823 = vmatprep.subr.bf16.mxu0 0
        %4824 = vmatpush1.bf16.xpose.msra.mxu0 0
        %4825 = vmatprep.subr.bf16.mxu0 0
        %4826 = vmatpush1.bf16.xpose.msra.mxu0 %v4809
        %4827 = vmatprep.subr.bf16.mxu0 0
        %4828 = vmatpush2.bf16.xpose.msra.mxu0 0
        %4829 = vmatprep.subr.bf16.mxu0 0
        %4830 = vmatpush2.bf16.xpose.msra.mxu0 0
        %4831 = vmatprep.subr.bf16.mxu0 0
        %4832 = vmatpush2.bf16.xpose.msra.mxu0 0
        %4833 = vmatprep.subr.bf16.mxu0 0
        %4834 = vmatpush2.bf16.xpose.msra.mxu0 0
        %4835 = vmatprep.subr.bf16.mxu0 0
        %4836 = vmatpush2.bf16.xpose.msra.mxu0 0
        %4837 = vmatprep.subr.bf16.mxu0 0
        %4838 = vmatpush2.bf16.xpose.msra.mxu0 0
        %4839 = vmatprep.subr.bf16.mxu0 0
        %4840 = vmatpush2.bf16.xpose.msra.mxu0 0
        %4841 = vmatprep.subr.bf16.mxu0 0
        %4842 = vmatpush2.bf16.xpose.msra.mxu0 0
        %4843 = vmatprep.mubr.bf16.mxu0 0
        %4844 = vmatmul.mubr.bf16.gmra.mxu0 %v4806
        %v4845 = vpop.f32.mrf.mxu0
        %v4846 = vadd.f32 0.0, %v4845
        %v4847 = vpop.f32.mrf.mxu0
        %v4848 = vpop.f32.mrf.mxu0
        %v4849 = vadd.f32 0.0, %v4848
        %v4850 = vpop.f32.mrf.mxu0
        %4851 = vdwg.mxu0
        %v4852 = vmul.f32 %v4489, 0.70710677
        %v4853 = vmul.f32 %v4492, 0.70710677
        %v4854 = vmul.f32 %v4540, 0.70710677
        %v4855 = vmul.f32 %v4543, 0.70710677
        %v4856 = vmul.f32 %v4591, 0.70710677
        %v4857 = vmul.f32 %v4594, 0.70710677
        %v4858 = vmul.f32 %v4642, 0.70710677
        %v4859 = vmul.f32 %v4645, 0.70710677
        %v4860 = vmul.f32 %v4693, 0.70710677
        %v4861 = vmul.f32 %v4696, 0.70710677
        %v4862 = vmul.f32 %v4744, 0.70710677
        %v4863 = vmul.f32 %v4747, 0.70710677
        %v4864 = vmul.f32 %v4795, 0.70710677
        %v4865 = vmul.f32 %v4798, 0.70710677
        %v4866 = vmul.f32 %v4846, 0.70710677
        %v4867 = vmul.f32 %v4849, 0.70710677
        %v4868 = vsel %vm1655, %v4852, -inf
        %4869 = vmax.xlane.f32.xlu0 %v4868
        %v4870 = vpop.xlane.xlu0 %4869
        %v4871 = vsel %vm1655, %v4853, -inf
        %4872 = vmax.xlane.f32.xlu0 %v4871
        %v4873 = vpop.xlane.xlu0 %4872
        %v4874 = vsel %vm1655, %v4854, -inf
        %4875 = vmax.xlane.f32.xlu0 %v4874
        %v4876 = vpop.xlane.xlu0 %4875
        %v4877 = vsel %vm1655, %v4855, -inf
        %4878 = vmax.xlane.f32.xlu0 %v4877
        %v4879 = vpop.xlane.xlu0 %4878
        %v4880 = vsel %vm1655, %v4856, -inf
        %4881 = vmax.xlane.f32.xlu0 %v4880
        %v4882 = vpop.xlane.xlu0 %4881
        %v4883 = vsel %vm1655, %v4857, -inf
        %4884 = vmax.xlane.f32.xlu0 %v4883
        %v4885 = vpop.xlane.xlu0 %4884
        %v4886 = vsel %vm1655, %v4858, -inf
        %4887 = vmax.xlane.f32.xlu0 %v4886
        %v4888 = vpop.xlane.xlu0 %4887
        %v4889 = vsel %vm1655, %v4859, -inf
        %4890 = vmax.xlane.f32.xlu0 %v4889
        %v4891 = vpop.xlane.xlu0 %4890
        %v4892 = vsel %vm1655, %v4860, -inf
        %4893 = vmax.xlane.f32.xlu0 %v4892
        %v4894 = vpop.xlane.xlu0 %4893
        %v4895 = vsel %vm1655, %v4861, -inf
        %4896 = vmax.xlane.f32.xlu0 %v4895
        %v4897 = vpop.xlane.xlu0 %4896
        %v4898 = vsel %vm1655, %v4862, -inf
        %4899 = vmax.xlane.f32.xlu0 %v4898
        %v4900 = vpop.xlane.xlu0 %4899
        %v4901 = vsel %vm1655, %v4863, -inf
        %4902 = vmax.xlane.f32.xlu0 %v4901
        %v4903 = vpop.xlane.xlu0 %4902
        %v4904 = vsel %vm1655, %v4864, -inf
        %4905 = vmax.xlane.f32.xlu0 %v4904
        %v4906 = vpop.xlane.xlu0 %4905
        %v4907 = vsel %vm1655, %v4865, -inf
        %4908 = vmax.xlane.f32.xlu0 %v4907
        %v4909 = vpop.xlane.xlu0 %4908
        %v4910 = vsel %vm1655, %v4866, -inf
        %4911 = vmax.xlane.f32.xlu0 %v4910
        %v4912 = vpop.xlane.xlu0 %4911
        %v4913 = vsel %vm1655, %v4867, -inf
        %4914 = vmax.xlane.f32.xlu0 %v4913
        %v4915 = vpop.xlane.xlu0 %4914
        %v4916 = vsub.f32 %v4852, %v4870
        %v4917 = vsub.f32 %v4853, %v4873
        %v4918 = vsub.f32 %v4854, %v4876
        %v4919 = vsub.f32 %v4855, %v4879
        %v4920 = vsub.f32 %v4856, %v4882
        %v4921 = vsub.f32 %v4857, %v4885
        %v4922 = vsub.f32 %v4858, %v4888
        %v4923 = vsub.f32 %v4859, %v4891
        %v4924 = vsub.f32 %v4860, %v4894
        %v4925 = vsub.f32 %v4861, %v4897
        %v4926 = vsub.f32 %v4862, %v4900
        %v4927 = vsub.f32 %v4863, %v4903
        %v4928 = vsub.f32 %v4864, %v4906
        %v4929 = vsub.f32 %v4865, %v4909
        %v4930 = vsub.f32 %v4866, %v4912
        %v4931 = vsub.f32 %v4867, %v4915
        %v4932 = vmul.f32 %v4916, 1.442695
        %v4933 = vpow.pop %v4932
        %v4934 = vmul.f32 %v4917, 1.442695
        %v4935 = vpow.pop %v4934
        %v4936 = vmul.f32 %v4918, 1.442695
        %v4937 = vpow.pop %v4936
        %v4938 = vmul.f32 %v4919, 1.442695
        %v4939 = vpow.pop %v4938
        %v4940 = vmul.f32 %v4920, 1.442695
        %v4941 = vpow.pop %v4940
        %v4942 = vmul.f32 %v4921, 1.442695
        %v4943 = vpow.pop %v4942
        %v4944 = vmul.f32 %v4922, 1.442695
        %v4945 = vpow.pop %v4944
        %v4946 = vmul.f32 %v4923, 1.442695
        %v4947 = vpow.pop %v4946
        %v4948 = vmul.f32 %v4924, 1.442695
        %v4949 = vpow.pop %v4948
        %v4950 = vmul.f32 %v4925, 1.442695
        %v4951 = vpow.pop %v4950
        %v4952 = vmul.f32 %v4926, 1.442695
        %v4953 = vpow.pop %v4952
        %v4954 = vmul.f32 %v4927, 1.442695
        %v4955 = vpow.pop %v4954
        %v4956 = vmul.f32 %v4928, 1.442695
        %v4957 = vpow.pop %v4956
        %v4958 = vmul.f32 %v4929, 1.442695
        %v4959 = vpow.pop %v4958
        %v4960 = vmul.f32 %v4930, 1.442695
        %v4961 = vpow.pop %v4960
        %v4962 = vmul.f32 %v4931, 1.442695
        %v4963 = vpow.pop %v4962
        %v4964 = vsel %vm1655, %v4933, 0.0
        %4965 = vadd.xlane.f32.xlu0 %v4964
        %v4966 = vpop.xlane.xlu0 %4965
        %v4967 = vsel %vm1655, %v4935, 0.0
        %4968 = vadd.xlane.f32.xlu0 %v4967
        %v4969 = vpop.xlane.xlu0 %4968
        %v4970 = vsel %vm1655, %v4937, 0.0
        %4971 = vadd.xlane.f32.xlu0 %v4970
        %v4972 = vpop.xlane.xlu0 %4971
        %v4973 = vsel %vm1655, %v4939, 0.0
        %4974 = vadd.xlane.f32.xlu0 %v4973
        %v4975 = vpop.xlane.xlu0 %4974
        %v4976 = vsel %vm1655, %v4941, 0.0
        %4977 = vadd.xlane.f32.xlu0 %v4976
        %v4978 = vpop.xlane.xlu0 %4977
        %v4979 = vsel %vm1655, %v4943, 0.0
        %4980 = vadd.xlane.f32.xlu0 %v4979
        %v4981 = vpop.xlane.xlu0 %4980
        %v4982 = vsel %vm1655, %v4945, 0.0
        %4983 = vadd.xlane.f32.xlu0 %v4982
        %v4984 = vpop.xlane.xlu0 %4983
        %v4985 = vsel %vm1655, %v4947, 0.0
        %4986 = vadd.xlane.f32.xlu0 %v4985
        %v4987 = vpop.xlane.xlu0 %4986
        %v4988 = vsel %vm1655, %v4949, 0.0
        %4989 = vadd.xlane.f32.xlu0 %v4988
        %v4990 = vpop.xlane.xlu0 %4989
        %v4991 = vsel %vm1655, %v4951, 0.0
        %4992 = vadd.xlane.f32.xlu0 %v4991
        %v4993 = vpop.xlane.xlu0 %4992
        %v4994 = vsel %vm1655, %v4953, 0.0
        %4995 = vadd.xlane.f32.xlu0 %v4994
        %v4996 = vpop.xlane.xlu0 %4995
        %v4997 = vsel %vm1655, %v4955, 0.0
        %4998 = vadd.xlane.f32.xlu0 %v4997
        %v4999 = vpop.xlane.xlu0 %4998
        %v5000 = vsel %vm1655, %v4957, 0.0
        %5001 = vadd.xlane.f32.xlu0 %v5000
        %v5002 = vpop.xlane.xlu0 %5001
        %v5003 = vsel %vm1655, %v4959, 0.0
        %5004 = vadd.xlane.f32.xlu0 %v5003
        %v5005 = vpop.xlane.xlu0 %5004
        %v5006 = vsel %vm1655, %v4961, 0.0
        %5007 = vadd.xlane.f32.xlu0 %v5006
        %v5008 = vpop.xlane.xlu0 %5007
        %v5009 = vsel %vm1655, %v4963, 0.0
        %5010 = vadd.xlane.f32.xlu0 %v5009
        %v5011 = vpop.xlane.xlu0 %5010
        %v5012 = vrcp.pop %v4966
        %v5013 = vrcp.pop %v4969
        %v5014 = vrcp.pop %v4972
        %v5015 = vrcp.pop %v4975
        %v5016 = vrcp.pop %v4978
        %v5017 = vrcp.pop %v4981
        %v5018 = vrcp.pop %v4984
        %v5019 = vrcp.pop %v4987
        %v5020 = vrcp.pop %v4990
        %v5021 = vrcp.pop %v4993
        %v5022 = vrcp.pop %v4996
        %v5023 = vrcp.pop %v4999
        %v5024 = vrcp.pop %v5002
        %v5025 = vrcp.pop %v5005
        %v5026 = vrcp.pop %v5008
        %v5027 = vrcp.pop %v5011
        %v5028 = vmul.f32 %v4933, %v5012
        %v5029 = vmul.f32 %v4935, %v5013
        %v5030 = vmul.f32 %v4937, %v5014
        %v5031 = vmul.f32 %v4939, %v5015
        %v5032 = vmul.f32 %v4941, %v5016
        %v5033 = vmul.f32 %v4943, %v5017
        %v5034 = vmul.f32 %v4945, %v5018
        %v5035 = vmul.f32 %v4947, %v5019
        %v5036 = vmul.f32 %v4949, %v5020
        %v5037 = vmul.f32 %v4951, %v5021
        %v5038 = vmul.f32 %v4953, %v5022
        %v5039 = vmul.f32 %v4955, %v5023
        %v5040 = vmul.f32 %v4957, %v5024
        %v5041 = vmul.f32 %v4959, %v5025
        %v5042 = vmul.f32 %v4961, %v5026
        %v5043 = vmul.f32 %v4963, %v5027
        %v5044 = vpack.c.bf16 %v5029, %v5028
        %v5045 = vpack.c.bf16 %v5031, %v5030
        %v5046 = vpack.c.bf16 %v5033, %v5032
        %v5047 = vpack.c.bf16 %v5035, %v5034
        %v5048 = vpack.c.bf16 %v5037, %v5036
        %v5049 = vpack.c.bf16 %v5039, %v5038
        %v5050 = vpack.c.bf16 %v5041, %v5040
        %v5051 = vpack.c.bf16 %v5043, %v5042
        %5052 = vrot.lane.b32.xlu0 %v2475, 108
        %v5053 = vpop.permute.xlu0 %5052
        %v5056 = vsel %vm1655, %v5044, 0
        %5058 = vmatprep.subr.bf16.mxu0 0
        %5059 = vmatpush1.bf16.msra.mxu0 0
        %5060 = vmatprep.subr.bf16.mxu0 0
        %5061 = vmatpush1.bf16.msra.mxu0 0
        %5062 = vmatprep.subr.bf16.mxu0 0
        %5063 = vmatpush1.bf16.msra.mxu0 0
        %5064 = vmatprep.subr.bf16.mxu0 0
        %5065 = vmatpush1.bf16.msra.mxu0 0
        %5066 = vmatprep.subr.bf16.mxu0 0
        %5067 = vmatpush1.bf16.msra.mxu0 0
        %5068 = vmatprep.subr.bf16.mxu0 0
        %5069 = vmatpush1.bf16.msra.mxu0 0
        %5070 = vmatprep.subr.bf16.mxu0 0
        %5071 = vmatpush1.bf16.msra.mxu0 0
        %5072 = vmatprep.subr.bf16.mxu0 0
        %5073 = vmatpush1.bf16.msra.mxu0 %v5053
        %5074 = vmatprep.subr.bf16.mxu0 0
        %5075 = vmatpush2.bf16.msra.mxu0 0
        %5076 = vmatprep.subr.bf16.mxu0 0
        %5077 = vmatpush2.bf16.msra.mxu0 0
        %5078 = vmatprep.subr.bf16.mxu0 0
        %5079 = vmatpush2.bf16.msra.mxu0 0
        %5080 = vmatprep.subr.bf16.mxu0 0
        %5081 = vmatpush2.bf16.msra.mxu0 0
        %5082 = vmatprep.subr.bf16.mxu0 0
        %5083 = vmatpush2.bf16.msra.mxu0 0
        %5084 = vmatprep.subr.bf16.mxu0 0
        %5085 = vmatpush2.bf16.msra.mxu0 0
        %5086 = vmatprep.subr.bf16.mxu0 0
        %5087 = vmatpush2.bf16.msra.mxu0 0
        %5088 = vmatprep.subr.bf16.mxu0 0
        %5089 = vmatpush2.bf16.msra.mxu0 0
        %5090 = vmatprep.mubr.bf16.mxu0 0
        %5091 = vmatmul.mubr.bf16.gmra.mxu0 %v5056
        %v5092 = vpop.f32.mrf.mxu0
        %v5093 = vadd.f32 0.0, %v5092
        %v5094 = vpop.f32.mrf.mxu0
        %v5095 = vpop.f32.mrf.mxu0
        %v5096 = vadd.f32 0.0, %v5095
        %v5097 = vpop.f32.mrf.mxu0
        %5098 = vdwg.mxu0
        %5099 = vrot.lane.b32.xlu0 %v2476, 108
        %v5100 = vpop.permute.xlu0 %5099
        %v5103 = vsel %vm1655, %v5045, 0
        %5105 = vmatprep.subr.bf16.mxu0 0
        %5106 = vmatpush1.bf16.msra.mxu0 0
        %5107 = vmatprep.subr.bf16.mxu0 0
        %5108 = vmatpush1.bf16.msra.mxu0 0
        %5109 = vmatprep.subr.bf16.mxu0 0
        %5110 = vmatpush1.bf16.msra.mxu0 0
        %5111 = vmatprep.subr.bf16.mxu0 0
        %5112 = vmatpush1.bf16.msra.mxu0 0
        %5113 = vmatprep.subr.bf16.mxu0 0
        %5114 = vmatpush1.bf16.msra.mxu0 0
        %5115 = vmatprep.subr.bf16.mxu0 0
        %5116 = vmatpush1.bf16.msra.mxu0 0
        %5117 = vmatprep.subr.bf16.mxu0 0
        %5118 = vmatpush1.bf16.msra.mxu0 0
        %5119 = vmatprep.subr.bf16.mxu0 0
        %5120 = vmatpush1.bf16.msra.mxu0 %v5100
        %5121 = vmatprep.subr.bf16.mxu0 0
        %5122 = vmatpush2.bf16.msra.mxu0 0
        %5123 = vmatprep.subr.bf16.mxu0 0
        %5124 = vmatpush2.bf16.msra.mxu0 0
        %5125 = vmatprep.subr.bf16.mxu0 0
        %5126 = vmatpush2.bf16.msra.mxu0 0
        %5127 = vmatprep.subr.bf16.mxu0 0
        %5128 = vmatpush2.bf16.msra.mxu0 0
        %5129 = vmatprep.subr.bf16.mxu0 0
        %5130 = vmatpush2.bf16.msra.mxu0 0
        %5131 = vmatprep.subr.bf16.mxu0 0
        %5132 = vmatpush2.bf16.msra.mxu0 0
        %5133 = vmatprep.subr.bf16.mxu0 0
        %5134 = vmatpush2.bf16.msra.mxu0 0
        %5135 = vmatprep.subr.bf16.mxu0 0
        %5136 = vmatpush2.bf16.msra.mxu0 0
        %5137 = vmatprep.mubr.bf16.mxu0 0
        %5138 = vmatmul.mubr.bf16.gmra.mxu0 %v5103
        %v5139 = vpop.f32.mrf.mxu0
        %v5140 = vadd.f32 0.0, %v5139
        %v5141 = vpop.f32.mrf.mxu0
        %v5142 = vpop.f32.mrf.mxu0
        %v5143 = vadd.f32 0.0, %v5142
        %v5144 = vpop.f32.mrf.mxu0
        %5145 = vdwg.mxu0
        %5146 = vrot.lane.b32.xlu0 %v2477, 108
        %v5147 = vpop.permute.xlu0 %5146
        %v5150 = vsel %vm1655, %v5046, 0
        %5152 = vmatprep.subr.bf16.mxu0 0
        %5153 = vmatpush1.bf16.msra.mxu0 0
        %5154 = vmatprep.subr.bf16.mxu0 0
        %5155 = vmatpush1.bf16.msra.mxu0 0
        %5156 = vmatprep.subr.bf16.mxu0 0
        %5157 = vmatpush1.bf16.msra.mxu0 0
        %5158 = vmatprep.subr.bf16.mxu0 0
        %5159 = vmatpush1.bf16.msra.mxu0 0
        %5160 = vmatprep.subr.bf16.mxu0 0
        %5161 = vmatpush1.bf16.msra.mxu0 0
        %5162 = vmatprep.subr.bf16.mxu0 0
        %5163 = vmatpush1.bf16.msra.mxu0 0
        %5164 = vmatprep.subr.bf16.mxu0 0
        %5165 = vmatpush1.bf16.msra.mxu0 0
        %5166 = vmatprep.subr.bf16.mxu0 0
        %5167 = vmatpush1.bf16.msra.mxu0 %v5147
        %5168 = vmatprep.subr.bf16.mxu0 0
        %5169 = vmatpush2.bf16.msra.mxu0 0
        %5170 = vmatprep.subr.bf16.mxu0 0
        %5171 = vmatpush2.bf16.msra.mxu0 0
        %5172 = vmatprep.subr.bf16.mxu0 0
        %5173 = vmatpush2.bf16.msra.mxu0 0
        %5174 = vmatprep.subr.bf16.mxu0 0
        %5175 = vmatpush2.bf16.msra.mxu0 0
        %5176 = vmatprep.subr.bf16.mxu0 0
        %5177 = vmatpush2.bf16.msra.mxu0 0
        %5178 = vmatprep.subr.bf16.mxu0 0
        %5179 = vmatpush2.bf16.msra.mxu0 0
        %5180 = vmatprep.subr.bf16.mxu0 0
        %5181 = vmatpush2.bf16.msra.mxu0 0
        %5182 = vmatprep.subr.bf16.mxu0 0
        %5183 = vmatpush2.bf16.msra.mxu0 0
        %5184 = vmatprep.mubr.bf16.mxu0 0
        %5185 = vmatmul.mubr.bf16.gmra.mxu0 %v5150
        %v5186 = vpop.f32.mrf.mxu0
        %v5187 = vadd.f32 0.0, %v5186
        %v5188 = vpop.f32.mrf.mxu0
        %v5189 = vpop.f32.mrf.mxu0
        %v5190 = vadd.f32 0.0, %v5189
        %v5191 = vpop.f32.mrf.mxu0
        %5192 = vdwg.mxu0
        %5193 = vrot.lane.b32.xlu0 %v2478, 108
        %v5194 = vpop.permute.xlu0 %5193
        %v5197 = vsel %vm1655, %v5047, 0
        %5199 = vmatprep.subr.bf16.mxu0 0
        %5200 = vmatpush1.bf16.msra.mxu0 0
        %5201 = vmatprep.subr.bf16.mxu0 0
        %5202 = vmatpush1.bf16.msra.mxu0 0
        %5203 = vmatprep.subr.bf16.mxu0 0
        %5204 = vmatpush1.bf16.msra.mxu0 0
        %5205 = vmatprep.subr.bf16.mxu0 0
        %5206 = vmatpush1.bf16.msra.mxu0 0
        %5207 = vmatprep.subr.bf16.mxu0 0
        %5208 = vmatpush1.bf16.msra.mxu0 0
        %5209 = vmatprep.subr.bf16.mxu0 0
        %5210 = vmatpush1.bf16.msra.mxu0 0
        %5211 = vmatprep.subr.bf16.mxu0 0
        %5212 = vmatpush1.bf16.msra.mxu0 0
        %5213 = vmatprep.subr.bf16.mxu0 0
        %5214 = vmatpush1.bf16.msra.mxu0 %v5194
        %5215 = vmatprep.subr.bf16.mxu0 0
        %5216 = vmatpush2.bf16.msra.mxu0 0
        %5217 = vmatprep.subr.bf16.mxu0 0
        %5218 = vmatpush2.bf16.msra.mxu0 0
        %5219 = vmatprep.subr.bf16.mxu0 0
        %5220 = vmatpush2.bf16.msra.mxu0 0
        %5221 = vmatprep.subr.bf16.mxu0 0
        %5222 = vmatpush2.bf16.msra.mxu0 0
        %5223 = vmatprep.subr.bf16.mxu0 0
        %5224 = vmatpush2.bf16.msra.mxu0 0
        %5225 = vmatprep.subr.bf16.mxu0 0
        %5226 = vmatpush2.bf16.msra.mxu0 0
        %5227 = vmatprep.subr.bf16.mxu0 0
        %5228 = vmatpush2.bf16.msra.mxu0 0
        %5229 = vmatprep.subr.bf16.mxu0 0
        %5230 = vmatpush2.bf16.msra.mxu0 0
        %5231 = vmatprep.mubr.bf16.mxu0 0
        %5232 = vmatmul.mubr.bf16.gmra.mxu0 %v5197
        %v5233 = vpop.f32.mrf.mxu0
        %v5234 = vadd.f32 0.0, %v5233
        %v5235 = vpop.f32.mrf.mxu0
        %v5236 = vpop.f32.mrf.mxu0
        %v5237 = vadd.f32 0.0, %v5236
        %v5238 = vpop.f32.mrf.mxu0
        %5239 = vdwg.mxu0
        %5240 = vrot.lane.b32.xlu0 %v2479, 108
        %v5241 = vpop.permute.xlu0 %5240
        %v5244 = vsel %vm1655, %v5048, 0
        %5246 = vmatprep.subr.bf16.mxu0 0
        %5247 = vmatpush1.bf16.msra.mxu0 0
        %5248 = vmatprep.subr.bf16.mxu0 0
        %5249 = vmatpush1.bf16.msra.mxu0 0
        %5250 = vmatprep.subr.bf16.mxu0 0
        %5251 = vmatpush1.bf16.msra.mxu0 0
        %5252 = vmatprep.subr.bf16.mxu0 0
        %5253 = vmatpush1.bf16.msra.mxu0 0
        %5254 = vmatprep.subr.bf16.mxu0 0
        %5255 = vmatpush1.bf16.msra.mxu0 0
        %5256 = vmatprep.subr.bf16.mxu0 0
        %5257 = vmatpush1.bf16.msra.mxu0 0
        %5258 = vmatprep.subr.bf16.mxu0 0
        %5259 = vmatpush1.bf16.msra.mxu0 0
        %5260 = vmatprep.subr.bf16.mxu0 0
        %5261 = vmatpush1.bf16.msra.mxu0 %v5241
        %5262 = vmatprep.subr.bf16.mxu0 0
        %5263 = vmatpush2.bf16.msra.mxu0 0
        %5264 = vmatprep.subr.bf16.mxu0 0
        %5265 = vmatpush2.bf16.msra.mxu0 0
        %5266 = vmatprep.subr.bf16.mxu0 0
        %5267 = vmatpush2.bf16.msra.mxu0 0
        %5268 = vmatprep.subr.bf16.mxu0 0
        %5269 = vmatpush2.bf16.msra.mxu0 0
        %5270 = vmatprep.subr.bf16.mxu0 0
        %5271 = vmatpush2.bf16.msra.mxu0 0
        %5272 = vmatprep.subr.bf16.mxu0 0
        %5273 = vmatpush2.bf16.msra.mxu0 0
        %5274 = vmatprep.subr.bf16.mxu0 0
        %5275 = vmatpush2.bf16.msra.mxu0 0
        %5276 = vmatprep.subr.bf16.mxu0 0
        %5277 = vmatpush2.bf16.msra.mxu0 0
        %5278 = vmatprep.mubr.bf16.mxu0 0
        %5279 = vmatmul.mubr.bf16.gmra.mxu0 %v5244
        %v5280 = vpop.f32.mrf.mxu0
        %v5281 = vadd.f32 0.0, %v5280
        %v5282 = vpop.f32.mrf.mxu0
        %v5283 = vpop.f32.mrf.mxu0
        %v5284 = vadd.f32 0.0, %v5283
        %v5285 = vpop.f32.mrf.mxu0
        %5286 = vdwg.mxu0
        %5287 = vrot.lane.b32.xlu0 %v2480, 108
        %v5288 = vpop.permute.xlu0 %5287
        %v5291 = vsel %vm1655, %v5049, 0
        %5293 = vmatprep.subr.bf16.mxu0 0
        %5294 = vmatpush1.bf16.msra.mxu0 0
        %5295 = vmatprep.subr.bf16.mxu0 0
        %5296 = vmatpush1.bf16.msra.mxu0 0
        %5297 = vmatprep.subr.bf16.mxu0 0
        %5298 = vmatpush1.bf16.msra.mxu0 0
        %5299 = vmatprep.subr.bf16.mxu0 0
        %5300 = vmatpush1.bf16.msra.mxu0 0
        %5301 = vmatprep.subr.bf16.mxu0 0
        %5302 = vmatpush1.bf16.msra.mxu0 0
        %5303 = vmatprep.subr.bf16.mxu0 0
        %5304 = vmatpush1.bf16.msra.mxu0 0
        %5305 = vmatprep.subr.bf16.mxu0 0
        %5306 = vmatpush1.bf16.msra.mxu0 0
        %5307 = vmatprep.subr.bf16.mxu0 0
        %5308 = vmatpush1.bf16.msra.mxu0 %v5288
        %5309 = vmatprep.subr.bf16.mxu0 0
        %5310 = vmatpush2.bf16.msra.mxu0 0
        %5311 = vmatprep.subr.bf16.mxu0 0
        %5312 = vmatpush2.bf16.msra.mxu0 0
        %5313 = vmatprep.subr.bf16.mxu0 0
        %5314 = vmatpush2.bf16.msra.mxu0 0
        %5315 = vmatprep.subr.bf16.mxu0 0
        %5316 = vmatpush2.bf16.msra.mxu0 0
        %5317 = vmatprep.subr.bf16.mxu0 0
        %5318 = vmatpush2.bf16.msra.mxu0 0
        %5319 = vmatprep.subr.bf16.mxu0 0
        %5320 = vmatpush2.bf16.msra.mxu0 0
        %5321 = vmatprep.subr.bf16.mxu0 0
        %5322 = vmatpush2.bf16.msra.mxu0 0
        %5323 = vmatprep.subr.bf16.mxu0 0
        %5324 = vmatpush2.bf16.msra.mxu0 0
        %5325 = vmatprep.mubr.bf16.mxu0 0
        %5326 = vmatmul.mubr.bf16.gmra.mxu0 %v5291
        %v5327 = vpop.f32.mrf.mxu0
        %v5328 = vadd.f32 0.0, %v5327
        %v5329 = vpop.f32.mrf.mxu0
        %v5330 = vpop.f32.mrf.mxu0
        %v5331 = vadd.f32 0.0, %v5330
        %v5332 = vpop.f32.mrf.mxu0
        %5333 = vdwg.mxu0
        %5334 = vrot.lane.b32.xlu0 %v2481, 108
        %v5335 = vpop.permute.xlu0 %5334
        %v5338 = vsel %vm1655, %v5050, 0
        %5340 = vmatprep.subr.bf16.mxu0 0
        %5341 = vmatpush1.bf16.msra.mxu0 0
        %5342 = vmatprep.subr.bf16.mxu0 0
        %5343 = vmatpush1.bf16.msra.mxu0 0
        %5344 = vmatprep.subr.bf16.mxu0 0
        %5345 = vmatpush1.bf16.msra.mxu0 0
        %5346 = vmatprep.subr.bf16.mxu0 0
        %5347 = vmatpush1.bf16.msra.mxu0 0
        %5348 = vmatprep.subr.bf16.mxu0 0
        %5349 = vmatpush1.bf16.msra.mxu0 0
        %5350 = vmatprep.subr.bf16.mxu0 0
        %5351 = vmatpush1.bf16.msra.mxu0 0
        %5352 = vmatprep.subr.bf16.mxu0 0
        %5353 = vmatpush1.bf16.msra.mxu0 0
        %5354 = vmatprep.subr.bf16.mxu0 0
        %5355 = vmatpush1.bf16.msra.mxu0 %v5335
        %5356 = vmatprep.subr.bf16.mxu0 0
        %5357 = vmatpush2.bf16.msra.mxu0 0
        %5358 = vmatprep.subr.bf16.mxu0 0
        %5359 = vmatpush2.bf16.msra.mxu0 0
        %5360 = vmatprep.subr.bf16.mxu0 0
        %5361 = vmatpush2.bf16.msra.mxu0 0
        %5362 = vmatprep.subr.bf16.mxu0 0
        %5363 = vmatpush2.bf16.msra.mxu0 0
        %5364 = vmatprep.subr.bf16.mxu0 0
        %5365 = vmatpush2.bf16.msra.mxu0 0
        %5366 = vmatprep.subr.bf16.mxu0 0
        %5367 = vmatpush2.bf16.msra.mxu0 0
        %5368 = vmatprep.subr.bf16.mxu0 0
        %5369 = vmatpush2.bf16.msra.mxu0 0
        %5370 = vmatprep.subr.bf16.mxu0 0
        %5371 = vmatpush2.bf16.msra.mxu0 0
        %5372 = vmatprep.mubr.bf16.mxu0 0
        %5373 = vmatmul.mubr.bf16.gmra.mxu0 %v5338
        %v5374 = vpop.f32.mrf.mxu0
        %v5375 = vadd.f32 0.0, %v5374
        %v5376 = vpop.f32.mrf.mxu0
        %v5377 = vpop.f32.mrf.mxu0
        %v5378 = vadd.f32 0.0, %v5377
        %v5379 = vpop.f32.mrf.mxu0
        %5380 = vdwg.mxu0
        %5381 = vrot.lane.b32.xlu0 %v2482, 108
        %v5382 = vpop.permute.xlu0 %5381
        %v5385 = vsel %vm1655, %v5051, 0
        %5387 = vmatprep.subr.bf16.mxu0 0
        %5388 = vmatpush1.bf16.msra.mxu0 0
        %5389 = vmatprep.subr.bf16.mxu0 0
        %5390 = vmatpush1.bf16.msra.mxu0 0
        %5391 = vmatprep.subr.bf16.mxu0 0
        %5392 = vmatpush1.bf16.msra.mxu0 0
        %5393 = vmatprep.subr.bf16.mxu0 0
        %5394 = vmatpush1.bf16.msra.mxu0 0
        %5395 = vmatprep.subr.bf16.mxu0 0
        %5396 = vmatpush1.bf16.msra.mxu0 0
        %5397 = vmatprep.subr.bf16.mxu0 0
        %5398 = vmatpush1.bf16.msra.mxu0 0
        %5399 = vmatprep.subr.bf16.mxu0 0
        %5400 = vmatpush1.bf16.msra.mxu0 0
        %5401 = vmatprep.subr.bf16.mxu0 0
        %5402 = vmatpush1.bf16.msra.mxu0 %v5382
        %5403 = vmatprep.subr.bf16.mxu0 0
        %5404 = vmatpush2.bf16.msra.mxu0 0
        %5405 = vmatprep.subr.bf16.mxu0 0
        %5406 = vmatpush2.bf16.msra.mxu0 0
        %5407 = vmatprep.subr.bf16.mxu0 0
        %5408 = vmatpush2.bf16.msra.mxu0 0
        %5409 = vmatprep.subr.bf16.mxu0 0
        %5410 = vmatpush2.bf16.msra.mxu0 0
        %5411 = vmatprep.subr.bf16.mxu0 0
        %5412 = vmatpush2.bf16.msra.mxu0 0
        %5413 = vmatprep.subr.bf16.mxu0 0
        %5414 = vmatpush2.bf16.msra.mxu0 0
        %5415 = vmatprep.subr.bf16.mxu0 0
        %5416 = vmatpush2.bf16.msra.mxu0 0
        %5417 = vmatprep.subr.bf16.mxu0 0
        %5418 = vmatpush2.bf16.msra.mxu0 0
        %5419 = vmatprep.mubr.bf16.mxu0 0
        %5420 = vmatmul.mubr.bf16.gmra.mxu0 %v5385
        %v5421 = vpop.f32.mrf.mxu0
        %v5422 = vadd.f32 0.0, %v5421
        %v5423 = vpop.f32.mrf.mxu0
        %v5424 = vpop.f32.mrf.mxu0
        %v5425 = vadd.f32 0.0, %v5424
        %v5426 = vpop.f32.mrf.mxu0
        %5427 = vdwg.mxu0
        %5428 = vrot.lane.b32.xlu0 %v2475, 122
        %v5429 = vpop.permute.xlu0 %5428
        %5430 = vrot.lane.b32.xlu0 %v2475, 114
        %v5431 = vpop.permute.xlu0 %5430
        %v5433 = vsel %vm2486, %v5429, 0
        %v5436 = vsel %vm2486, %v5431, 0
        %5438 = vmatprep.subr.bf16.mxu0 0
        %5439 = vmatpush1.bf16.xpose.msra.mxu0 0
        %5440 = vmatprep.subr.bf16.mxu0 0
        %5441 = vmatpush1.bf16.xpose.msra.mxu0 0
        %5442 = vmatprep.subr.bf16.mxu0 0
        %5443 = vmatpush1.bf16.xpose.msra.mxu0 0
        %5444 = vmatprep.subr.bf16.mxu0 0
        %5445 = vmatpush1.bf16.xpose.msra.mxu0 0
        %5446 = vmatprep.subr.bf16.mxu0 0
        %5447 = vmatpush1.bf16.xpose.msra.mxu0 0
        %5448 = vmatprep.subr.bf16.mxu0 0
        %5449 = vmatpush1.bf16.xpose.msra.mxu0 0
        %5450 = vmatprep.subr.bf16.mxu0 0
        %5451 = vmatpush1.bf16.xpose.msra.mxu0 0
        %5452 = vmatprep.subr.bf16.mxu0 0
        %5453 = vmatpush1.bf16.xpose.msra.mxu0 %v5436
        %5454 = vmatprep.subr.bf16.mxu0 0
        %5455 = vmatpush2.bf16.xpose.msra.mxu0 0
        %5456 = vmatprep.subr.bf16.mxu0 0
        %5457 = vmatpush2.bf16.xpose.msra.mxu0 0
        %5458 = vmatprep.subr.bf16.mxu0 0
        %5459 = vmatpush2.bf16.xpose.msra.mxu0 0
        %5460 = vmatprep.subr.bf16.mxu0 0
        %5461 = vmatpush2.bf16.xpose.msra.mxu0 0
        %5462 = vmatprep.subr.bf16.mxu0 0
        %5463 = vmatpush2.bf16.xpose.msra.mxu0 0
        %5464 = vmatprep.subr.bf16.mxu0 0
        %5465 = vmatpush2.bf16.xpose.msra.mxu0 0
        %5466 = vmatprep.subr.bf16.mxu0 0
        %5467 = vmatpush2.bf16.xpose.msra.mxu0 0
        %5468 = vmatprep.subr.bf16.mxu0 0
        %5469 = vmatpush2.bf16.xpose.msra.mxu0 0
        %5470 = vmatprep.mubr.bf16.mxu0 0
        %5471 = vmatmul.mubr.bf16.gmra.mxu0 %v5433
        %v5472 = vpop.f32.mrf.mxu0
        %v5473 = vadd.f32 0.0, %v5472
        %v5474 = vpop.f32.mrf.mxu0
        %v5475 = vpop.f32.mrf.mxu0
        %v5476 = vadd.f32 0.0, %v5475
        %v5477 = vpop.f32.mrf.mxu0
        %5478 = vdwg.mxu0
        %5479 = vrot.lane.b32.xlu0 %v2476, 122
        %v5480 = vpop.permute.xlu0 %5479
        %5481 = vrot.lane.b32.xlu0 %v2476, 114
        %v5482 = vpop.permute.xlu0 %5481
        %v5484 = vsel %vm2486, %v5480, 0
        %v5487 = vsel %vm2486, %v5482, 0
        %5489 = vmatprep.subr.bf16.mxu0 0
        %5490 = vmatpush1.bf16.xpose.msra.mxu0 0
        %5491 = vmatprep.subr.bf16.mxu0 0
        %5492 = vmatpush1.bf16.xpose.msra.mxu0 0
        %5493 = vmatprep.subr.bf16.mxu0 0
        %5494 = vmatpush1.bf16.xpose.msra.mxu0 0
        %5495 = vmatprep.subr.bf16.mxu0 0
        %5496 = vmatpush1.bf16.xpose.msra.mxu0 0
        %5497 = vmatprep.subr.bf16.mxu0 0
        %5498 = vmatpush1.bf16.xpose.msra.mxu0 0
        %5499 = vmatprep.subr.bf16.mxu0 0
        %5500 = vmatpush1.bf16.xpose.msra.mxu0 0
        %5501 = vmatprep.subr.bf16.mxu0 0
        %5502 = vmatpush1.bf16.xpose.msra.mxu0 0
        %5503 = vmatprep.subr.bf16.mxu0 0
        %5504 = vmatpush1.bf16.xpose.msra.mxu0 %v5487
        %5505 = vmatprep.subr.bf16.mxu0 0
        %5506 = vmatpush2.bf16.xpose.msra.mxu0 0
        %5507 = vmatprep.subr.bf16.mxu0 0
        %5508 = vmatpush2.bf16.xpose.msra.mxu0 0
        %5509 = vmatprep.subr.bf16.mxu0 0
        %5510 = vmatpush2.bf16.xpose.msra.mxu0 0
        %5511 = vmatprep.subr.bf16.mxu0 0
        %5512 = vmatpush2.bf16.xpose.msra.mxu0 0
        %5513 = vmatprep.subr.bf16.mxu0 0
        %5514 = vmatpush2.bf16.xpose.msra.mxu0 0
        %5515 = vmatprep.subr.bf16.mxu0 0
        %5516 = vmatpush2.bf16.xpose.msra.mxu0 0
        %5517 = vmatprep.subr.bf16.mxu0 0
        %5518 = vmatpush2.bf16.xpose.msra.mxu0 0
        %5519 = vmatprep.subr.bf16.mxu0 0
        %5520 = vmatpush2.bf16.xpose.msra.mxu0 0
        %5521 = vmatprep.mubr.bf16.mxu0 0
        %5522 = vmatmul.mubr.bf16.gmra.mxu0 %v5484
        %v5523 = vpop.f32.mrf.mxu0
        %v5524 = vadd.f32 0.0, %v5523
        %v5525 = vpop.f32.mrf.mxu0
        %v5526 = vpop.f32.mrf.mxu0
        %v5527 = vadd.f32 0.0, %v5526
        %v5528 = vpop.f32.mrf.mxu0
        %5529 = vdwg.mxu0
        %5530 = vrot.lane.b32.xlu0 %v2477, 122
        %v5531 = vpop.permute.xlu0 %5530
        %5532 = vrot.lane.b32.xlu0 %v2477, 114
        %v5533 = vpop.permute.xlu0 %5532
        %v5535 = vsel %vm2486, %v5531, 0
        %v5538 = vsel %vm2486, %v5533, 0
        %5540 = vmatprep.subr.bf16.mxu0 0
        %5541 = vmatpush1.bf16.xpose.msra.mxu0 0
        %5542 = vmatprep.subr.bf16.mxu0 0
        %5543 = vmatpush1.bf16.xpose.msra.mxu0 0
        %5544 = vmatprep.subr.bf16.mxu0 0
        %5545 = vmatpush1.bf16.xpose.msra.mxu0 0
        %5546 = vmatprep.subr.bf16.mxu0 0
        %5547 = vmatpush1.bf16.xpose.msra.mxu0 0
        %5548 = vmatprep.subr.bf16.mxu0 0
        %5549 = vmatpush1.bf16.xpose.msra.mxu0 0
        %5550 = vmatprep.subr.bf16.mxu0 0
        %5551 = vmatpush1.bf16.xpose.msra.mxu0 0
        %5552 = vmatprep.subr.bf16.mxu0 0
        %5553 = vmatpush1.bf16.xpose.msra.mxu0 0
        %5554 = vmatprep.subr.bf16.mxu0 0
        %5555 = vmatpush1.bf16.xpose.msra.mxu0 %v5538
        %5556 = vmatprep.subr.bf16.mxu0 0
        %5557 = vmatpush2.bf16.xpose.msra.mxu0 0
        %5558 = vmatprep.subr.bf16.mxu0 0
        %5559 = vmatpush2.bf16.xpose.msra.mxu0 0
        %5560 = vmatprep.subr.bf16.mxu0 0
        %5561 = vmatpush2.bf16.xpose.msra.mxu0 0
        %5562 = vmatprep.subr.bf16.mxu0 0
        %5563 = vmatpush2.bf16.xpose.msra.mxu0 0
        %5564 = vmatprep.subr.bf16.mxu0 0
        %5565 = vmatpush2.bf16.xpose.msra.mxu0 0
        %5566 = vmatprep.subr.bf16.mxu0 0
        %5567 = vmatpush2.bf16.xpose.msra.mxu0 0
        %5568 = vmatprep.subr.bf16.mxu0 0
        %5569 = vmatpush2.bf16.xpose.msra.mxu0 0
        %5570 = vmatprep.subr.bf16.mxu0 0
        %5571 = vmatpush2.bf16.xpose.msra.mxu0 0
        %5572 = vmatprep.mubr.bf16.mxu0 0
        %5573 = vmatmul.mubr.bf16.gmra.mxu0 %v5535
        %v5574 = vpop.f32.mrf.mxu0
        %v5575 = vadd.f32 0.0, %v5574
        %v5576 = vpop.f32.mrf.mxu0
        %v5577 = vpop.f32.mrf.mxu0
        %v5578 = vadd.f32 0.0, %v5577
        %v5579 = vpop.f32.mrf.mxu0
        %5580 = vdwg.mxu0
        %5581 = vrot.lane.b32.xlu0 %v2478, 122
        %v5582 = vpop.permute.xlu0 %5581
        %5583 = vrot.lane.b32.xlu0 %v2478, 114
        %v5584 = vpop.permute.xlu0 %5583
        %v5586 = vsel %vm2486, %v5582, 0
        %v5589 = vsel %vm2486, %v5584, 0
        %5591 = vmatprep.subr.bf16.mxu0 0
        %5592 = vmatpush1.bf16.xpose.msra.mxu0 0
        %5593 = vmatprep.subr.bf16.mxu0 0
        %5594 = vmatpush1.bf16.xpose.msra.mxu0 0
        %5595 = vmatprep.subr.bf16.mxu0 0
        %5596 = vmatpush1.bf16.xpose.msra.mxu0 0
        %5597 = vmatprep.subr.bf16.mxu0 0
        %5598 = vmatpush1.bf16.xpose.msra.mxu0 0
        %5599 = vmatprep.subr.bf16.mxu0 0
        %5600 = vmatpush1.bf16.xpose.msra.mxu0 0
        %5601 = vmatprep.subr.bf16.mxu0 0
        %5602 = vmatpush1.bf16.xpose.msra.mxu0 0
        %5603 = vmatprep.subr.bf16.mxu0 0
        %5604 = vmatpush1.bf16.xpose.msra.mxu0 0
        %5605 = vmatprep.subr.bf16.mxu0 0
        %5606 = vmatpush1.bf16.xpose.msra.mxu0 %v5589
        %5607 = vmatprep.subr.bf16.mxu0 0
        %5608 = vmatpush2.bf16.xpose.msra.mxu0 0
        %5609 = vmatprep.subr.bf16.mxu0 0
        %5610 = vmatpush2.bf16.xpose.msra.mxu0 0
        %5611 = vmatprep.subr.bf16.mxu0 0
        %5612 = vmatpush2.bf16.xpose.msra.mxu0 0
        %5613 = vmatprep.subr.bf16.mxu0 0
        %5614 = vmatpush2.bf16.xpose.msra.mxu0 0
        %5615 = vmatprep.subr.bf16.mxu0 0
        %5616 = vmatpush2.bf16.xpose.msra.mxu0 0
        %5617 = vmatprep.subr.bf16.mxu0 0
        %5618 = vmatpush2.bf16.xpose.msra.mxu0 0
        %5619 = vmatprep.subr.bf16.mxu0 0
        %5620 = vmatpush2.bf16.xpose.msra.mxu0 0
        %5621 = vmatprep.subr.bf16.mxu0 0
        %5622 = vmatpush2.bf16.xpose.msra.mxu0 0
        %5623 = vmatprep.mubr.bf16.mxu0 0
        %5624 = vmatmul.mubr.bf16.gmra.mxu0 %v5586
        %v5625 = vpop.f32.mrf.mxu0
        %v5626 = vadd.f32 0.0, %v5625
        %v5627 = vpop.f32.mrf.mxu0
        %v5628 = vpop.f32.mrf.mxu0
        %v5629 = vadd.f32 0.0, %v5628
        %v5630 = vpop.f32.mrf.mxu0
        %5631 = vdwg.mxu0
        %5632 = vrot.lane.b32.xlu0 %v2479, 122
        %v5633 = vpop.permute.xlu0 %5632
        %5634 = vrot.lane.b32.xlu0 %v2479, 114
        %v5635 = vpop.permute.xlu0 %5634
        %v5637 = vsel %vm2486, %v5633, 0
        %v5640 = vsel %vm2486, %v5635, 0
        %5642 = vmatprep.subr.bf16.mxu0 0
        %5643 = vmatpush1.bf16.xpose.msra.mxu0 0
        %5644 = vmatprep.subr.bf16.mxu0 0
        %5645 = vmatpush1.bf16.xpose.msra.mxu0 0
        %5646 = vmatprep.subr.bf16.mxu0 0
        %5647 = vmatpush1.bf16.xpose.msra.mxu0 0
        %5648 = vmatprep.subr.bf16.mxu0 0
        %5649 = vmatpush1.bf16.xpose.msra.mxu0 0
        %5650 = vmatprep.subr.bf16.mxu0 0
        %5651 = vmatpush1.bf16.xpose.msra.mxu0 0
        %5652 = vmatprep.subr.bf16.mxu0 0
        %5653 = vmatpush1.bf16.xpose.msra.mxu0 0
        %5654 = vmatprep.subr.bf16.mxu0 0
        %5655 = vmatpush1.bf16.xpose.msra.mxu0 0
        %5656 = vmatprep.subr.bf16.mxu0 0
        %5657 = vmatpush1.bf16.xpose.msra.mxu0 %v5640
        %5658 = vmatprep.subr.bf16.mxu0 0
        %5659 = vmatpush2.bf16.xpose.msra.mxu0 0
        %5660 = vmatprep.subr.bf16.mxu0 0
        %5661 = vmatpush2.bf16.xpose.msra.mxu0 0
        %5662 = vmatprep.subr.bf16.mxu0 0
        %5663 = vmatpush2.bf16.xpose.msra.mxu0 0
        %5664 = vmatprep.subr.bf16.mxu0 0
        %5665 = vmatpush2.bf16.xpose.msra.mxu0 0
        %5666 = vmatprep.subr.bf16.mxu0 0
        %5667 = vmatpush2.bf16.xpose.msra.mxu0 0
        %5668 = vmatprep.subr.bf16.mxu0 0
        %5669 = vmatpush2.bf16.xpose.msra.mxu0 0
        %5670 = vmatprep.subr.bf16.mxu0 0
        %5671 = vmatpush2.bf16.xpose.msra.mxu0 0
        %5672 = vmatprep.subr.bf16.mxu0 0
        %5673 = vmatpush2.bf16.xpose.msra.mxu0 0
        %5674 = vmatprep.mubr.bf16.mxu0 0
        %5675 = vmatmul.mubr.bf16.gmra.mxu0 %v5637
        %v5676 = vpop.f32.mrf.mxu0
        %v5677 = vadd.f32 0.0, %v5676
        %v5678 = vpop.f32.mrf.mxu0
        %v5679 = vpop.f32.mrf.mxu0
        %v5680 = vadd.f32 0.0, %v5679
        %v5681 = vpop.f32.mrf.mxu0
        %5682 = vdwg.mxu0
        %5683 = vrot.lane.b32.xlu0 %v2480, 122
        %v5684 = vpop.permute.xlu0 %5683
        %5685 = vrot.lane.b32.xlu0 %v2480, 114
        %v5686 = vpop.permute.xlu0 %5685
        %v5688 = vsel %vm2486, %v5684, 0
        %v5691 = vsel %vm2486, %v5686, 0
        %5693 = vmatprep.subr.bf16.mxu0 0
        %5694 = vmatpush1.bf16.xpose.msra.mxu0 0
        %5695 = vmatprep.subr.bf16.mxu0 0
        %5696 = vmatpush1.bf16.xpose.msra.mxu0 0
        %5697 = vmatprep.subr.bf16.mxu0 0
        %5698 = vmatpush1.bf16.xpose.msra.mxu0 0
        %5699 = vmatprep.subr.bf16.mxu0 0
        %5700 = vmatpush1.bf16.xpose.msra.mxu0 0
        %5701 = vmatprep.subr.bf16.mxu0 0
        %5702 = vmatpush1.bf16.xpose.msra.mxu0 0
        %5703 = vmatprep.subr.bf16.mxu0 0
        %5704 = vmatpush1.bf16.xpose.msra.mxu0 0
        %5705 = vmatprep.subr.bf16.mxu0 0
        %5706 = vmatpush1.bf16.xpose.msra.mxu0 0
        %5707 = vmatprep.subr.bf16.mxu0 0
        %5708 = vmatpush1.bf16.xpose.msra.mxu0 %v5691
        %5709 = vmatprep.subr.bf16.mxu0 0
        %5710 = vmatpush2.bf16.xpose.msra.mxu0 0
        %5711 = vmatprep.subr.bf16.mxu0 0
        %5712 = vmatpush2.bf16.xpose.msra.mxu0 0
        %5713 = vmatprep.subr.bf16.mxu0 0
        %5714 = vmatpush2.bf16.xpose.msra.mxu0 0
        %5715 = vmatprep.subr.bf16.mxu0 0
        %5716 = vmatpush2.bf16.xpose.msra.mxu0 0
        %5717 = vmatprep.subr.bf16.mxu0 0
        %5718 = vmatpush2.bf16.xpose.msra.mxu0 0
        %5719 = vmatprep.subr.bf16.mxu0 0
        %5720 = vmatpush2.bf16.xpose.msra.mxu0 0
        %5721 = vmatprep.subr.bf16.mxu0 0
        %5722 = vmatpush2.bf16.xpose.msra.mxu0 0
        %5723 = vmatprep.subr.bf16.mxu0 0
        %5724 = vmatpush2.bf16.xpose.msra.mxu0 0
        %5725 = vmatprep.mubr.bf16.mxu0 0
        %5726 = vmatmul.mubr.bf16.gmra.mxu0 %v5688
        %v5727 = vpop.f32.mrf.mxu0
        %v5728 = vadd.f32 0.0, %v5727
        %v5729 = vpop.f32.mrf.mxu0
        %v5730 = vpop.f32.mrf.mxu0
        %v5731 = vadd.f32 0.0, %v5730
        %v5732 = vpop.f32.mrf.mxu0
        %5733 = vdwg.mxu0
        %5734 = vrot.lane.b32.xlu0 %v2481, 122
        %v5735 = vpop.permute.xlu0 %5734
        %5736 = vrot.lane.b32.xlu0 %v2481, 114
        %v5737 = vpop.permute.xlu0 %5736
        %v5739 = vsel %vm2486, %v5735, 0
        %v5742 = vsel %vm2486, %v5737, 0
        %5744 = vmatprep.subr.bf16.mxu0 0
        %5745 = vmatpush1.bf16.xpose.msra.mxu0 0
        %5746 = vmatprep.subr.bf16.mxu0 0
        %5747 = vmatpush1.bf16.xpose.msra.mxu0 0
        %5748 = vmatprep.subr.bf16.mxu0 0
        %5749 = vmatpush1.bf16.xpose.msra.mxu0 0
        %5750 = vmatprep.subr.bf16.mxu0 0
        %5751 = vmatpush1.bf16.xpose.msra.mxu0 0
        %5752 = vmatprep.subr.bf16.mxu0 0
        %5753 = vmatpush1.bf16.xpose.msra.mxu0 0
        %5754 = vmatprep.subr.bf16.mxu0 0
        %5755 = vmatpush1.bf16.xpose.msra.mxu0 0
        %5756 = vmatprep.subr.bf16.mxu0 0
        %5757 = vmatpush1.bf16.xpose.msra.mxu0 0
        %5758 = vmatprep.subr.bf16.mxu0 0
        %5759 = vmatpush1.bf16.xpose.msra.mxu0 %v5742
        %5760 = vmatprep.subr.bf16.mxu0 0
        %5761 = vmatpush2.bf16.xpose.msra.mxu0 0
        %5762 = vmatprep.subr.bf16.mxu0 0
        %5763 = vmatpush2.bf16.xpose.msra.mxu0 0
        %5764 = vmatprep.subr.bf16.mxu0 0
        %5765 = vmatpush2.bf16.xpose.msra.mxu0 0
        %5766 = vmatprep.subr.bf16.mxu0 0
        %5767 = vmatpush2.bf16.xpose.msra.mxu0 0
        %5768 = vmatprep.subr.bf16.mxu0 0
        %5769 = vmatpush2.bf16.xpose.msra.mxu0 0
        %5770 = vmatprep.subr.bf16.mxu0 0
        %5771 = vmatpush2.bf16.xpose.msra.mxu0 0
        %5772 = vmatprep.subr.bf16.mxu0 0
        %5773 = vmatpush2.bf16.xpose.msra.mxu0 0
        %5774 = vmatprep.subr.bf16.mxu0 0
        %5775 = vmatpush2.bf16.xpose.msra.mxu0 0
        %5776 = vmatprep.mubr.bf16.mxu0 0
        %5777 = vmatmul.mubr.bf16.gmra.mxu0 %v5739
        %v5778 = vpop.f32.mrf.mxu0
        %v5779 = vadd.f32 0.0, %v5778
        %v5780 = vpop.f32.mrf.mxu0
        %v5781 = vpop.f32.mrf.mxu0
        %v5782 = vadd.f32 0.0, %v5781
        %v5783 = vpop.f32.mrf.mxu0
        %5784 = vdwg.mxu0
        %5785 = vrot.lane.b32.xlu0 %v2482, 122
        %v5786 = vpop.permute.xlu0 %5785
        %5787 = vrot.lane.b32.xlu0 %v2482, 114
        %v5788 = vpop.permute.xlu0 %5787
        %v5790 = vsel %vm2486, %v5786, 0
        %v5793 = vsel %vm2486, %v5788, 0
        %5795 = vmatprep.subr.bf16.mxu0 0
        %5796 = vmatpush1.bf16.xpose.msra.mxu0 0
        %5797 = vmatprep.subr.bf16.mxu0 0
        %5798 = vmatpush1.bf16.xpose.msra.mxu0 0
        %5799 = vmatprep.subr.bf16.mxu0 0
        %5800 = vmatpush1.bf16.xpose.msra.mxu0 0
        %5801 = vmatprep.subr.bf16.mxu0 0
        %5802 = vmatpush1.bf16.xpose.msra.mxu0 0
        %5803 = vmatprep.subr.bf16.mxu0 0
        %5804 = vmatpush1.bf16.xpose.msra.mxu0 0
        %5805 = vmatprep.subr.bf16.mxu0 0
        %5806 = vmatpush1.bf16.xpose.msra.mxu0 0
        %5807 = vmatprep.subr.bf16.mxu0 0
        %5808 = vmatpush1.bf16.xpose.msra.mxu0 0
        %5809 = vmatprep.subr.bf16.mxu0 0
        %5810 = vmatpush1.bf16.xpose.msra.mxu0 %v5793
        %5811 = vmatprep.subr.bf16.mxu0 0
        %5812 = vmatpush2.bf16.xpose.msra.mxu0 0
        %5813 = vmatprep.subr.bf16.mxu0 0
        %5814 = vmatpush2.bf16.xpose.msra.mxu0 0
        %5815 = vmatprep.subr.bf16.mxu0 0
        %5816 = vmatpush2.bf16.xpose.msra.mxu0 0
        %5817 = vmatprep.subr.bf16.mxu0 0
        %5818 = vmatpush2.bf16.xpose.msra.mxu0 0
        %5819 = vmatprep.subr.bf16.mxu0 0
        %5820 = vmatpush2.bf16.xpose.msra.mxu0 0
        %5821 = vmatprep.subr.bf16.mxu0 0
        %5822 = vmatpush2.bf16.xpose.msra.mxu0 0
        %5823 = vmatprep.subr.bf16.mxu0 0
        %5824 = vmatpush2.bf16.xpose.msra.mxu0 0
        %5825 = vmatprep.subr.bf16.mxu0 0
        %5826 = vmatpush2.bf16.xpose.msra.mxu0 0
        %5827 = vmatprep.mubr.bf16.mxu0 0
        %5828 = vmatmul.mubr.bf16.gmra.mxu0 %v5790
        %v5829 = vpop.f32.mrf.mxu0
        %v5830 = vadd.f32 0.0, %v5829
        %v5831 = vpop.f32.mrf.mxu0
        %v5832 = vpop.f32.mrf.mxu0
        %v5833 = vadd.f32 0.0, %v5832
        %v5834 = vpop.f32.mrf.mxu0
        %5835 = vdwg.mxu0
        %v5836 = vmul.f32 %v5473, 0.70710677
        %v5837 = vmul.f32 %v5476, 0.70710677
        %v5838 = vmul.f32 %v5524, 0.70710677
        %v5839 = vmul.f32 %v5527, 0.70710677
        %v5840 = vmul.f32 %v5575, 0.70710677
        %v5841 = vmul.f32 %v5578, 0.70710677
        %v5842 = vmul.f32 %v5626, 0.70710677
        %v5843 = vmul.f32 %v5629, 0.70710677
        %v5844 = vmul.f32 %v5677, 0.70710677
        %v5845 = vmul.f32 %v5680, 0.70710677
        %v5846 = vmul.f32 %v5728, 0.70710677
        %v5847 = vmul.f32 %v5731, 0.70710677
        %v5848 = vmul.f32 %v5779, 0.70710677
        %v5849 = vmul.f32 %v5782, 0.70710677
        %v5850 = vmul.f32 %v5830, 0.70710677
        %v5851 = vmul.f32 %v5833, 0.70710677
        %v5852 = vsel %vm1655, %v5836, -inf
        %5853 = vmax.xlane.f32.xlu0 %v5852
        %v5854 = vpop.xlane.xlu0 %5853
        %v5855 = vsel %vm1655, %v5837, -inf
        %5856 = vmax.xlane.f32.xlu0 %v5855
        %v5857 = vpop.xlane.xlu0 %5856
        %v5858 = vsel %vm1655, %v5838, -inf
        %5859 = vmax.xlane.f32.xlu0 %v5858
        %v5860 = vpop.xlane.xlu0 %5859
        %v5861 = vsel %vm1655, %v5839, -inf
        %5862 = vmax.xlane.f32.xlu0 %v5861
        %v5863 = vpop.xlane.xlu0 %5862
        %v5864 = vsel %vm1655, %v5840, -inf
        %5865 = vmax.xlane.f32.xlu0 %v5864
        %v5866 = vpop.xlane.xlu0 %5865
        %v5867 = vsel %vm1655, %v5841, -inf
        %5868 = vmax.xlane.f32.xlu0 %v5867
        %v5869 = vpop.xlane.xlu0 %5868
        %v5870 = vsel %vm1655, %v5842, -inf
        %5871 = vmax.xlane.f32.xlu0 %v5870
        %v5872 = vpop.xlane.xlu0 %5871
        %v5873 = vsel %vm1655, %v5843, -inf
        %5874 = vmax.xlane.f32.xlu0 %v5873
        %v5875 = vpop.xlane.xlu0 %5874
        %v5876 = vsel %vm1655, %v5844, -inf
        %5877 = vmax.xlane.f32.xlu0 %v5876
        %v5878 = vpop.xlane.xlu0 %5877
        %v5879 = vsel %vm1655, %v5845, -inf
        %5880 = vmax.xlane.f32.xlu0 %v5879
        %v5881 = vpop.xlane.xlu0 %5880
        %v5882 = vsel %vm1655, %v5846, -inf
        %5883 = vmax.xlane.f32.xlu0 %v5882
        %v5884 = vpop.xlane.xlu0 %5883
        %v5885 = vsel %vm1655, %v5847, -inf
        %5886 = vmax.xlane.f32.xlu0 %v5885
        %v5887 = vpop.xlane.xlu0 %5886
        %v5888 = vsel %vm1655, %v5848, -inf
        %5889 = vmax.xlane.f32.xlu0 %v5888
        %v5890 = vpop.xlane.xlu0 %5889
        %v5891 = vsel %vm1655, %v5849, -inf
        %5892 = vmax.xlane.f32.xlu0 %v5891
        %v5893 = vpop.xlane.xlu0 %5892
        %v5894 = vsel %vm1655, %v5850, -inf
        %5895 = vmax.xlane.f32.xlu0 %v5894
        %v5896 = vpop.xlane.xlu0 %5895
        %v5897 = vsel %vm1655, %v5851, -inf
        %5898 = vmax.xlane.f32.xlu0 %v5897
        %v5899 = vpop.xlane.xlu0 %5898
        %v5900 = vsub.f32 %v5836, %v5854
        %v5901 = vsub.f32 %v5837, %v5857
        %v5902 = vsub.f32 %v5838, %v5860
        %v5903 = vsub.f32 %v5839, %v5863
        %v5904 = vsub.f32 %v5840, %v5866
        %v5905 = vsub.f32 %v5841, %v5869
        %v5906 = vsub.f32 %v5842, %v5872
        %v5907 = vsub.f32 %v5843, %v5875
        %v5908 = vsub.f32 %v5844, %v5878
        %v5909 = vsub.f32 %v5845, %v5881
        %v5910 = vsub.f32 %v5846, %v5884
        %v5911 = vsub.f32 %v5847, %v5887
        %v5912 = vsub.f32 %v5848, %v5890
        %v5913 = vsub.f32 %v5849, %v5893
        %v5914 = vsub.f32 %v5850, %v5896
        %v5915 = vsub.f32 %v5851, %v5899
        %v5916 = vmul.f32 %v5900, 1.442695
        %v5917 = vpow.pop %v5916
        %v5918 = vmul.f32 %v5901, 1.442695
        %v5919 = vpow.pop %v5918
        %v5920 = vmul.f32 %v5902, 1.442695
        %v5921 = vpow.pop %v5920
        %v5922 = vmul.f32 %v5903, 1.442695
        %v5923 = vpow.pop %v5922
        %v5924 = vmul.f32 %v5904, 1.442695
        %v5925 = vpow.pop %v5924
        %v5926 = vmul.f32 %v5905, 1.442695
        %v5927 = vpow.pop %v5926
        %v5928 = vmul.f32 %v5906, 1.442695
        %v5929 = vpow.pop %v5928
        %v5930 = vmul.f32 %v5907, 1.442695
        %v5931 = vpow.pop %v5930
        %v5932 = vmul.f32 %v5908, 1.442695
        %v5933 = vpow.pop %v5932
        %v5934 = vmul.f32 %v5909, 1.442695
        %v5935 = vpow.pop %v5934
        %v5936 = vmul.f32 %v5910, 1.442695
        %v5937 = vpow.pop %v5936
        %v5938 = vmul.f32 %v5911, 1.442695
        %v5939 = vpow.pop %v5938
        %v5940 = vmul.f32 %v5912, 1.442695
        %v5941 = vpow.pop %v5940
        %v5942 = vmul.f32 %v5913, 1.442695
        %v5943 = vpow.pop %v5942
        %v5944 = vmul.f32 %v5914, 1.442695
        %v5945 = vpow.pop %v5944
        %v5946 = vmul.f32 %v5915, 1.442695
        %v5947 = vpow.pop %v5946
        %v5948 = vsel %vm1655, %v5917, 0.0
        %5949 = vadd.xlane.f32.xlu0 %v5948
        %v5950 = vpop.xlane.xlu0 %5949
        %v5951 = vsel %vm1655, %v5919, 0.0
        %5952 = vadd.xlane.f32.xlu0 %v5951
        %v5953 = vpop.xlane.xlu0 %5952
        %v5954 = vsel %vm1655, %v5921, 0.0
        %5955 = vadd.xlane.f32.xlu0 %v5954
        %v5956 = vpop.xlane.xlu0 %5955
        %v5957 = vsel %vm1655, %v5923, 0.0
        %5958 = vadd.xlane.f32.xlu0 %v5957
        %v5959 = vpop.xlane.xlu0 %5958
        %v5960 = vsel %vm1655, %v5925, 0.0
        %5961 = vadd.xlane.f32.xlu0 %v5960
        %v5962 = vpop.xlane.xlu0 %5961
        %v5963 = vsel %vm1655, %v5927, 0.0
        %5964 = vadd.xlane.f32.xlu0 %v5963
        %v5965 = vpop.xlane.xlu0 %5964
        %v5966 = vsel %vm1655, %v5929, 0.0
        %5967 = vadd.xlane.f32.xlu0 %v5966
        %v5968 = vpop.xlane.xlu0 %5967
        %v5969 = vsel %vm1655, %v5931, 0.0
        %5970 = vadd.xlane.f32.xlu0 %v5969
        %v5971 = vpop.xlane.xlu0 %5970
        %v5972 = vsel %vm1655, %v5933, 0.0
        %5973 = vadd.xlane.f32.xlu0 %v5972
        %v5974 = vpop.xlane.xlu0 %5973
        %v5975 = vsel %vm1655, %v5935, 0.0
        %5976 = vadd.xlane.f32.xlu0 %v5975
        %v5977 = vpop.xlane.xlu0 %5976
        %v5978 = vsel %vm1655, %v5937, 0.0
        %5979 = vadd.xlane.f32.xlu0 %v5978
        %v5980 = vpop.xlane.xlu0 %5979
        %v5981 = vsel %vm1655, %v5939, 0.0
        %5982 = vadd.xlane.f32.xlu0 %v5981
        %v5983 = vpop.xlane.xlu0 %5982
        %v5984 = vsel %vm1655, %v5941, 0.0
        %5985 = vadd.xlane.f32.xlu0 %v5984
        %v5986 = vpop.xlane.xlu0 %5985
        %v5987 = vsel %vm1655, %v5943, 0.0
        %5988 = vadd.xlane.f32.xlu0 %v5987
        %v5989 = vpop.xlane.xlu0 %5988
        %v5990 = vsel %vm1655, %v5945, 0.0
        %5991 = vadd.xlane.f32.xlu0 %v5990
        %v5992 = vpop.xlane.xlu0 %5991
        %v5993 = vsel %vm1655, %v5947, 0.0
        %5994 = vadd.xlane.f32.xlu0 %v5993
        %v5995 = vpop.xlane.xlu0 %5994
        %v5996 = vrcp.pop %v5950
        %v5997 = vrcp.pop %v5953
        %v5998 = vrcp.pop %v5956
        %v5999 = vrcp.pop %v5959
        %v6000 = vrcp.pop %v5962
        %v6001 = vrcp.pop %v5965
        %v6002 = vrcp.pop %v5968
        %v6003 = vrcp.pop %v5971
        %v6004 = vrcp.pop %v5974
        %v6005 = vrcp.pop %v5977
        %v6006 = vrcp.pop %v5980
        %v6007 = vrcp.pop %v5983
        %v6008 = vrcp.pop %v5986
        %v6009 = vrcp.pop %v5989
        %v6010 = vrcp.pop %v5992
        %v6011 = vrcp.pop %v5995
        %v6012 = vmul.f32 %v5917, %v5996
        %v6013 = vmul.f32 %v5919, %v5997
        %v6014 = vmul.f32 %v5921, %v5998
        %v6015 = vmul.f32 %v5923, %v5999
        %v6016 = vmul.f32 %v5925, %v6000
        %v6017 = vmul.f32 %v5927, %v6001
        %v6018 = vmul.f32 %v5929, %v6002
        %v6019 = vmul.f32 %v5931, %v6003
        %v6020 = vmul.f32 %v5933, %v6004
        %v6021 = vmul.f32 %v5935, %v6005
        %v6022 = vmul.f32 %v5937, %v6006
        %v6023 = vmul.f32 %v5939, %v6007
        %v6024 = vmul.f32 %v5941, %v6008
        %v6025 = vmul.f32 %v5943, %v6009
        %v6026 = vmul.f32 %v5945, %v6010
        %v6027 = vmul.f32 %v5947, %v6011
        %v6028 = vpack.c.bf16 %v6013, %v6012
        %v6029 = vpack.c.bf16 %v6015, %v6014
        %v6030 = vpack.c.bf16 %v6017, %v6016
        %v6031 = vpack.c.bf16 %v6019, %v6018
        %v6032 = vpack.c.bf16 %v6021, %v6020
        %v6033 = vpack.c.bf16 %v6023, %v6022
        %v6034 = vpack.c.bf16 %v6025, %v6024
        %v6035 = vpack.c.bf16 %v6027, %v6026
        %6036 = vrot.lane.b32.xlu0 %v2475, 106
        %v6037 = vpop.permute.xlu0 %6036
        %v6040 = vsel %vm1655, %v6028, 0
        %6042 = vmatprep.subr.bf16.mxu0 0
        %6043 = vmatpush1.bf16.msra.mxu0 0
        %6044 = vmatprep.subr.bf16.mxu0 0
        %6045 = vmatpush1.bf16.msra.mxu0 0
        %6046 = vmatprep.subr.bf16.mxu0 0
        %6047 = vmatpush1.bf16.msra.mxu0 0
        %6048 = vmatprep.subr.bf16.mxu0 0
        %6049 = vmatpush1.bf16.msra.mxu0 0
        %6050 = vmatprep.subr.bf16.mxu0 0
        %6051 = vmatpush1.bf16.msra.mxu0 0
        %6052 = vmatprep.subr.bf16.mxu0 0
        %6053 = vmatpush1.bf16.msra.mxu0 0
        %6054 = vmatprep.subr.bf16.mxu0 0
        %6055 = vmatpush1.bf16.msra.mxu0 0
        %6056 = vmatprep.subr.bf16.mxu0 0
        %6057 = vmatpush1.bf16.msra.mxu0 %v6037
        %6058 = vmatprep.subr.bf16.mxu0 0
        %6059 = vmatpush2.bf16.msra.mxu0 0
        %6060 = vmatprep.subr.bf16.mxu0 0
        %6061 = vmatpush2.bf16.msra.mxu0 0
        %6062 = vmatprep.subr.bf16.mxu0 0
        %6063 = vmatpush2.bf16.msra.mxu0 0
        %6064 = vmatprep.subr.bf16.mxu0 0
        %6065 = vmatpush2.bf16.msra.mxu0 0
        %6066 = vmatprep.subr.bf16.mxu0 0
        %6067 = vmatpush2.bf16.msra.mxu0 0
        %6068 = vmatprep.subr.bf16.mxu0 0
        %6069 = vmatpush2.bf16.msra.mxu0 0
        %6070 = vmatprep.subr.bf16.mxu0 0
        %6071 = vmatpush2.bf16.msra.mxu0 0
        %6072 = vmatprep.subr.bf16.mxu0 0
        %6073 = vmatpush2.bf16.msra.mxu0 0
        %6074 = vmatprep.mubr.bf16.mxu0 0
        %6075 = vmatmul.mubr.bf16.gmra.mxu0 %v6040
        %v6076 = vpop.f32.mrf.mxu0
        %v6077 = vadd.f32 0.0, %v6076
        %v6078 = vpop.f32.mrf.mxu0
        %v6079 = vpop.f32.mrf.mxu0
        %v6080 = vadd.f32 0.0, %v6079
        %v6081 = vpop.f32.mrf.mxu0
        %6082 = vdwg.mxu0
        %6083 = vrot.lane.b32.xlu0 %v2476, 106
        %v6084 = vpop.permute.xlu0 %6083
        %v6087 = vsel %vm1655, %v6029, 0
        %6089 = vmatprep.subr.bf16.mxu0 0
        %6090 = vmatpush1.bf16.msra.mxu0 0
        %6091 = vmatprep.subr.bf16.mxu0 0
        %6092 = vmatpush1.bf16.msra.mxu0 0
        %6093 = vmatprep.subr.bf16.mxu0 0
        %6094 = vmatpush1.bf16.msra.mxu0 0
        %6095 = vmatprep.subr.bf16.mxu0 0
        %6096 = vmatpush1.bf16.msra.mxu0 0
        %6097 = vmatprep.subr.bf16.mxu0 0
        %6098 = vmatpush1.bf16.msra.mxu0 0
        %6099 = vmatprep.subr.bf16.mxu0 0
        %6100 = vmatpush1.bf16.msra.mxu0 0
        %6101 = vmatprep.subr.bf16.mxu0 0
        %6102 = vmatpush1.bf16.msra.mxu0 0
        %6103 = vmatprep.subr.bf16.mxu0 0
        %6104 = vmatpush1.bf16.msra.mxu0 %v6084
        %6105 = vmatprep.subr.bf16.mxu0 0
        %6106 = vmatpush2.bf16.msra.mxu0 0
        %6107 = vmatprep.subr.bf16.mxu0 0
        %6108 = vmatpush2.bf16.msra.mxu0 0
        %6109 = vmatprep.subr.bf16.mxu0 0
        %6110 = vmatpush2.bf16.msra.mxu0 0
        %6111 = vmatprep.subr.bf16.mxu0 0
        %6112 = vmatpush2.bf16.msra.mxu0 0
        %6113 = vmatprep.subr.bf16.mxu0 0
        %6114 = vmatpush2.bf16.msra.mxu0 0
        %6115 = vmatprep.subr.bf16.mxu0 0
        %6116 = vmatpush2.bf16.msra.mxu0 0
        %6117 = vmatprep.subr.bf16.mxu0 0
        %6118 = vmatpush2.bf16.msra.mxu0 0
        %6119 = vmatprep.subr.bf16.mxu0 0
        %6120 = vmatpush2.bf16.msra.mxu0 0
        %6121 = vmatprep.mubr.bf16.mxu0 0
        %6122 = vmatmul.mubr.bf16.gmra.mxu0 %v6087
        %v6123 = vpop.f32.mrf.mxu0
        %v6124 = vadd.f32 0.0, %v6123
        %v6125 = vpop.f32.mrf.mxu0
        %v6126 = vpop.f32.mrf.mxu0
        %v6127 = vadd.f32 0.0, %v6126
        %v6128 = vpop.f32.mrf.mxu0
        %6129 = vdwg.mxu0
        %6130 = vrot.lane.b32.xlu0 %v2477, 106
        %v6131 = vpop.permute.xlu0 %6130
        %v6134 = vsel %vm1655, %v6030, 0
        %6136 = vmatprep.subr.bf16.mxu0 0
        %6137 = vmatpush1.bf16.msra.mxu0 0
        %6138 = vmatprep.subr.bf16.mxu0 0
        %6139 = vmatpush1.bf16.msra.mxu0 0
        %6140 = vmatprep.subr.bf16.mxu0 0
        %6141 = vmatpush1.bf16.msra.mxu0 0
        %6142 = vmatprep.subr.bf16.mxu0 0
        %6143 = vmatpush1.bf16.msra.mxu0 0
        %6144 = vmatprep.subr.bf16.mxu0 0
        %6145 = vmatpush1.bf16.msra.mxu0 0
        %6146 = vmatprep.subr.bf16.mxu0 0
        %6147 = vmatpush1.bf16.msra.mxu0 0
        %6148 = vmatprep.subr.bf16.mxu0 0
        %6149 = vmatpush1.bf16.msra.mxu0 0
        %6150 = vmatprep.subr.bf16.mxu0 0
        %6151 = vmatpush1.bf16.msra.mxu0 %v6131
        %6152 = vmatprep.subr.bf16.mxu0 0
        %6153 = vmatpush2.bf16.msra.mxu0 0
        %6154 = vmatprep.subr.bf16.mxu0 0
        %6155 = vmatpush2.bf16.msra.mxu0 0
        %6156 = vmatprep.subr.bf16.mxu0 0
        %6157 = vmatpush2.bf16.msra.mxu0 0
        %6158 = vmatprep.subr.bf16.mxu0 0
        %6159 = vmatpush2.bf16.msra.mxu0 0
        %6160 = vmatprep.subr.bf16.mxu0 0
        %6161 = vmatpush2.bf16.msra.mxu0 0
        %6162 = vmatprep.subr.bf16.mxu0 0
        %6163 = vmatpush2.bf16.msra.mxu0 0
        %6164 = vmatprep.subr.bf16.mxu0 0
        %6165 = vmatpush2.bf16.msra.mxu0 0
        %6166 = vmatprep.subr.bf16.mxu0 0
        %6167 = vmatpush2.bf16.msra.mxu0 0
        %6168 = vmatprep.mubr.bf16.mxu0 0
        %6169 = vmatmul.mubr.bf16.gmra.mxu0 %v6134
        %v6170 = vpop.f32.mrf.mxu0
        %v6171 = vadd.f32 0.0, %v6170
        %v6172 = vpop.f32.mrf.mxu0
        %v6173 = vpop.f32.mrf.mxu0
        %v6174 = vadd.f32 0.0, %v6173
        %v6175 = vpop.f32.mrf.mxu0
        %6176 = vdwg.mxu0
        %6177 = vrot.lane.b32.xlu0 %v2478, 106
        %v6178 = vpop.permute.xlu0 %6177
        %v6181 = vsel %vm1655, %v6031, 0
        %6183 = vmatprep.subr.bf16.mxu0 0
        %6184 = vmatpush1.bf16.msra.mxu0 0
        %6185 = vmatprep.subr.bf16.mxu0 0
        %6186 = vmatpush1.bf16.msra.mxu0 0
        %6187 = vmatprep.subr.bf16.mxu0 0
        %6188 = vmatpush1.bf16.msra.mxu0 0
        %6189 = vmatprep.subr.bf16.mxu0 0
        %6190 = vmatpush1.bf16.msra.mxu0 0
        %6191 = vmatprep.subr.bf16.mxu0 0
        %6192 = vmatpush1.bf16.msra.mxu0 0
        %6193 = vmatprep.subr.bf16.mxu0 0
        %6194 = vmatpush1.bf16.msra.mxu0 0
        %6195 = vmatprep.subr.bf16.mxu0 0
        %6196 = vmatpush1.bf16.msra.mxu0 0
        %6197 = vmatprep.subr.bf16.mxu0 0
        %6198 = vmatpush1.bf16.msra.mxu0 %v6178
        %6199 = vmatprep.subr.bf16.mxu0 0
        %6200 = vmatpush2.bf16.msra.mxu0 0
        %6201 = vmatprep.subr.bf16.mxu0 0
        %6202 = vmatpush2.bf16.msra.mxu0 0
        %6203 = vmatprep.subr.bf16.mxu0 0
        %6204 = vmatpush2.bf16.msra.mxu0 0
        %6205 = vmatprep.subr.bf16.mxu0 0
        %6206 = vmatpush2.bf16.msra.mxu0 0
        %6207 = vmatprep.subr.bf16.mxu0 0
        %6208 = vmatpush2.bf16.msra.mxu0 0
        %6209 = vmatprep.subr.bf16.mxu0 0
        %6210 = vmatpush2.bf16.msra.mxu0 0
        %6211 = vmatprep.subr.bf16.mxu0 0
        %6212 = vmatpush2.bf16.msra.mxu0 0
        %6213 = vmatprep.subr.bf16.mxu0 0
        %6214 = vmatpush2.bf16.msra.mxu0 0
        %6215 = vmatprep.mubr.bf16.mxu0 0
        %6216 = vmatmul.mubr.bf16.gmra.mxu0 %v6181
        %v6217 = vpop.f32.mrf.mxu0
        %v6218 = vadd.f32 0.0, %v6217
        %v6219 = vpop.f32.mrf.mxu0
        %v6220 = vpop.f32.mrf.mxu0
        %v6221 = vadd.f32 0.0, %v6220
        %v6222 = vpop.f32.mrf.mxu0
        %6223 = vdwg.mxu0
        %6224 = vrot.lane.b32.xlu0 %v2479, 106
        %v6225 = vpop.permute.xlu0 %6224
        %v6228 = vsel %vm1655, %v6032, 0
        %6230 = vmatprep.subr.bf16.mxu0 0
        %6231 = vmatpush1.bf16.msra.mxu0 0
        %6232 = vmatprep.subr.bf16.mxu0 0
        %6233 = vmatpush1.bf16.msra.mxu0 0
        %6234 = vmatprep.subr.bf16.mxu0 0
        %6235 = vmatpush1.bf16.msra.mxu0 0
        %6236 = vmatprep.subr.bf16.mxu0 0
        %6237 = vmatpush1.bf16.msra.mxu0 0
        %6238 = vmatprep.subr.bf16.mxu0 0
        %6239 = vmatpush1.bf16.msra.mxu0 0
        %6240 = vmatprep.subr.bf16.mxu0 0
        %6241 = vmatpush1.bf16.msra.mxu0 0
        %6242 = vmatprep.subr.bf16.mxu0 0
        %6243 = vmatpush1.bf16.msra.mxu0 0
        %6244 = vmatprep.subr.bf16.mxu0 0
        %6245 = vmatpush1.bf16.msra.mxu0 %v6225
        %6246 = vmatprep.subr.bf16.mxu0 0
        %6247 = vmatpush2.bf16.msra.mxu0 0
        %6248 = vmatprep.subr.bf16.mxu0 0
        %6249 = vmatpush2.bf16.msra.mxu0 0
        %6250 = vmatprep.subr.bf16.mxu0 0
        %6251 = vmatpush2.bf16.msra.mxu0 0
        %6252 = vmatprep.subr.bf16.mxu0 0
        %6253 = vmatpush2.bf16.msra.mxu0 0
        %6254 = vmatprep.subr.bf16.mxu0 0
        %6255 = vmatpush2.bf16.msra.mxu0 0
        %6256 = vmatprep.subr.bf16.mxu0 0
        %6257 = vmatpush2.bf16.msra.mxu0 0
        %6258 = vmatprep.subr.bf16.mxu0 0
        %6259 = vmatpush2.bf16.msra.mxu0 0
        %6260 = vmatprep.subr.bf16.mxu0 0
        %6261 = vmatpush2.bf16.msra.mxu0 0
        %6262 = vmatprep.mubr.bf16.mxu0 0
        %6263 = vmatmul.mubr.bf16.gmra.mxu0 %v6228
        %v6264 = vpop.f32.mrf.mxu0
        %v6265 = vadd.f32 0.0, %v6264
        %v6266 = vpop.f32.mrf.mxu0
        %v6267 = vpop.f32.mrf.mxu0
        %v6268 = vadd.f32 0.0, %v6267
        %v6269 = vpop.f32.mrf.mxu0
        %6270 = vdwg.mxu0
        %6271 = vrot.lane.b32.xlu0 %v2480, 106
        %v6272 = vpop.permute.xlu0 %6271
        %v6275 = vsel %vm1655, %v6033, 0
        %6277 = vmatprep.subr.bf16.mxu0 0
        %6278 = vmatpush1.bf16.msra.mxu0 0
        %6279 = vmatprep.subr.bf16.mxu0 0
        %6280 = vmatpush1.bf16.msra.mxu0 0
        %6281 = vmatprep.subr.bf16.mxu0 0
        %6282 = vmatpush1.bf16.msra.mxu0 0
        %6283 = vmatprep.subr.bf16.mxu0 0
        %6284 = vmatpush1.bf16.msra.mxu0 0
        %6285 = vmatprep.subr.bf16.mxu0 0
        %6286 = vmatpush1.bf16.msra.mxu0 0
        %6287 = vmatprep.subr.bf16.mxu0 0
        %6288 = vmatpush1.bf16.msra.mxu0 0
        %6289 = vmatprep.subr.bf16.mxu0 0
        %6290 = vmatpush1.bf16.msra.mxu0 0
        %6291 = vmatprep.subr.bf16.mxu0 0
        %6292 = vmatpush1.bf16.msra.mxu0 %v6272
        %6293 = vmatprep.subr.bf16.mxu0 0
        %6294 = vmatpush2.bf16.msra.mxu0 0
        %6295 = vmatprep.subr.bf16.mxu0 0
        %6296 = vmatpush2.bf16.msra.mxu0 0
        %6297 = vmatprep.subr.bf16.mxu0 0
        %6298 = vmatpush2.bf16.msra.mxu0 0
        %6299 = vmatprep.subr.bf16.mxu0 0
        %6300 = vmatpush2.bf16.msra.mxu0 0
        %6301 = vmatprep.subr.bf16.mxu0 0
        %6302 = vmatpush2.bf16.msra.mxu0 0
        %6303 = vmatprep.subr.bf16.mxu0 0
        %6304 = vmatpush2.bf16.msra.mxu0 0
        %6305 = vmatprep.subr.bf16.mxu0 0
        %6306 = vmatpush2.bf16.msra.mxu0 0
        %6307 = vmatprep.subr.bf16.mxu0 0
        %6308 = vmatpush2.bf16.msra.mxu0 0
        %6309 = vmatprep.mubr.bf16.mxu0 0
        %6310 = vmatmul.mubr.bf16.gmra.mxu0 %v6275
        %v6311 = vpop.f32.mrf.mxu0
        %v6312 = vadd.f32 0.0, %v6311
        %v6313 = vpop.f32.mrf.mxu0
        %v6314 = vpop.f32.mrf.mxu0
        %v6315 = vadd.f32 0.0, %v6314
        %v6316 = vpop.f32.mrf.mxu0
        %6317 = vdwg.mxu0
        %6318 = vrot.lane.b32.xlu0 %v2481, 106
        %v6319 = vpop.permute.xlu0 %6318
        %v6322 = vsel %vm1655, %v6034, 0
        %6324 = vmatprep.subr.bf16.mxu0 0
        %6325 = vmatpush1.bf16.msra.mxu0 0
        %6326 = vmatprep.subr.bf16.mxu0 0
        %6327 = vmatpush1.bf16.msra.mxu0 0
        %6328 = vmatprep.subr.bf16.mxu0 0
        %6329 = vmatpush1.bf16.msra.mxu0 0
        %6330 = vmatprep.subr.bf16.mxu0 0
        %6331 = vmatpush1.bf16.msra.mxu0 0
        %6332 = vmatprep.subr.bf16.mxu0 0
        %6333 = vmatpush1.bf16.msra.mxu0 0
        %6334 = vmatprep.subr.bf16.mxu0 0
        %6335 = vmatpush1.bf16.msra.mxu0 0
        %6336 = vmatprep.subr.bf16.mxu0 0
        %6337 = vmatpush1.bf16.msra.mxu0 0
        %6338 = vmatprep.subr.bf16.mxu0 0
        %6339 = vmatpush1.bf16.msra.mxu0 %v6319
        %6340 = vmatprep.subr.bf16.mxu0 0
        %6341 = vmatpush2.bf16.msra.mxu0 0
        %6342 = vmatprep.subr.bf16.mxu0 0
        %6343 = vmatpush2.bf16.msra.mxu0 0
        %6344 = vmatprep.subr.bf16.mxu0 0
        %6345 = vmatpush2.bf16.msra.mxu0 0
        %6346 = vmatprep.subr.bf16.mxu0 0
        %6347 = vmatpush2.bf16.msra.mxu0 0
        %6348 = vmatprep.subr.bf16.mxu0 0
        %6349 = vmatpush2.bf16.msra.mxu0 0
        %6350 = vmatprep.subr.bf16.mxu0 0
        %6351 = vmatpush2.bf16.msra.mxu0 0
        %6352 = vmatprep.subr.bf16.mxu0 0
        %6353 = vmatpush2.bf16.msra.mxu0 0
        %6354 = vmatprep.subr.bf16.mxu0 0
        %6355 = vmatpush2.bf16.msra.mxu0 0
        %6356 = vmatprep.mubr.bf16.mxu0 0
        %6357 = vmatmul.mubr.bf16.gmra.mxu0 %v6322
        %v6358 = vpop.f32.mrf.mxu0
        %v6359 = vadd.f32 0.0, %v6358
        %v6360 = vpop.f32.mrf.mxu0
        %v6361 = vpop.f32.mrf.mxu0
        %v6362 = vadd.f32 0.0, %v6361
        %v6363 = vpop.f32.mrf.mxu0
        %6364 = vdwg.mxu0
        %6365 = vrot.lane.b32.xlu0 %v2482, 106
        %v6366 = vpop.permute.xlu0 %6365
        %v6369 = vsel %vm1655, %v6035, 0
        %6371 = vmatprep.subr.bf16.mxu0 0
        %6372 = vmatpush1.bf16.msra.mxu0 0
        %6373 = vmatprep.subr.bf16.mxu0 0
        %6374 = vmatpush1.bf16.msra.mxu0 0
        %6375 = vmatprep.subr.bf16.mxu0 0
        %6376 = vmatpush1.bf16.msra.mxu0 0
        %6377 = vmatprep.subr.bf16.mxu0 0
        %6378 = vmatpush1.bf16.msra.mxu0 0
        %6379 = vmatprep.subr.bf16.mxu0 0
        %6380 = vmatpush1.bf16.msra.mxu0 0
        %6381 = vmatprep.subr.bf16.mxu0 0
        %6382 = vmatpush1.bf16.msra.mxu0 0
        %6383 = vmatprep.subr.bf16.mxu0 0
        %6384 = vmatpush1.bf16.msra.mxu0 0
        %6385 = vmatprep.subr.bf16.mxu0 0
        %6386 = vmatpush1.bf16.msra.mxu0 %v6366
        %6387 = vmatprep.subr.bf16.mxu0 0
        %6388 = vmatpush2.bf16.msra.mxu0 0
        %6389 = vmatprep.subr.bf16.mxu0 0
        %6390 = vmatpush2.bf16.msra.mxu0 0
        %6391 = vmatprep.subr.bf16.mxu0 0
        %6392 = vmatpush2.bf16.msra.mxu0 0
        %6393 = vmatprep.subr.bf16.mxu0 0
        %6394 = vmatpush2.bf16.msra.mxu0 0
        %6395 = vmatprep.subr.bf16.mxu0 0
        %6396 = vmatpush2.bf16.msra.mxu0 0
        %6397 = vmatprep.subr.bf16.mxu0 0
        %6398 = vmatpush2.bf16.msra.mxu0 0
        %6399 = vmatprep.subr.bf16.mxu0 0
        %6400 = vmatpush2.bf16.msra.mxu0 0
        %6401 = vmatprep.subr.bf16.mxu0 0
        %6402 = vmatpush2.bf16.msra.mxu0 0
        %6403 = vmatprep.mubr.bf16.mxu0 0
        %6404 = vmatmul.mubr.bf16.gmra.mxu0 %v6369
        %v6405 = vpop.f32.mrf.mxu0
        %v6406 = vadd.f32 0.0, %v6405
        %v6407 = vpop.f32.mrf.mxu0
        %v6408 = vpop.f32.mrf.mxu0
        %v6409 = vadd.f32 0.0, %v6408
        %v6410 = vpop.f32.mrf.mxu0
        %6411 = vdwg.mxu0
        %6428 = vrot.lane.b32.xlu0 %v4109, 2
        %v6429 = vpop.permute.xlu0 %6428
        %6430 = vrot.lane.b32.xlu0 %v4112, 2
        %v6431 = vpop.permute.xlu0 %6430
        %6432 = vrot.lane.b32.xlu0 %v4156, 2
        %v6433 = vpop.permute.xlu0 %6432
        %6434 = vrot.lane.b32.xlu0 %v4159, 2
        %v6435 = vpop.permute.xlu0 %6434
        %6436 = vrot.lane.b32.xlu0 %v4203, 2
        %v6437 = vpop.permute.xlu0 %6436
        %6438 = vrot.lane.b32.xlu0 %v4206, 2
        %v6439 = vpop.permute.xlu0 %6438
        %6440 = vrot.lane.b32.xlu0 %v4250, 2
        %v6441 = vpop.permute.xlu0 %6440
        %6442 = vrot.lane.b32.xlu0 %v4253, 2
        %v6443 = vpop.permute.xlu0 %6442
        %6444 = vrot.lane.b32.xlu0 %v4297, 2
        %v6445 = vpop.permute.xlu0 %6444
        %6446 = vrot.lane.b32.xlu0 %v4300, 2
        %v6447 = vpop.permute.xlu0 %6446
        %6448 = vrot.lane.b32.xlu0 %v4344, 2
        %v6449 = vpop.permute.xlu0 %6448
        %6450 = vrot.lane.b32.xlu0 %v4347, 2
        %v6451 = vpop.permute.xlu0 %6450
        %6452 = vrot.lane.b32.xlu0 %v4391, 2
        %v6453 = vpop.permute.xlu0 %6452
        %6454 = vrot.lane.b32.xlu0 %v4394, 2
        %v6455 = vpop.permute.xlu0 %6454
        %6456 = vrot.lane.b32.xlu0 %v4438, 2
        %v6457 = vpop.permute.xlu0 %6456
        %6458 = vrot.lane.b32.xlu0 %v4441, 2
        %v6459 = vpop.permute.xlu0 %6458
        %6492 = vrot.lane.b32.xlu0 %v5093, 4
        %v6493 = vpop.permute.xlu0 %6492
        %6494 = vrot.lane.b32.xlu0 %v5096, 4
        %v6495 = vpop.permute.xlu0 %6494
        %6496 = vrot.lane.b32.xlu0 %v5140, 4
        %v6497 = vpop.permute.xlu0 %6496
        %6498 = vrot.lane.b32.xlu0 %v5143, 4
        %v6499 = vpop.permute.xlu0 %6498
        %6500 = vrot.lane.b32.xlu0 %v5187, 4
        %v6501 = vpop.permute.xlu0 %6500
        %6502 = vrot.lane.b32.xlu0 %v5190, 4
        %v6503 = vpop.permute.xlu0 %6502
        %6504 = vrot.lane.b32.xlu0 %v5234, 4
        %v6505 = vpop.permute.xlu0 %6504
        %6506 = vrot.lane.b32.xlu0 %v5237, 4
        %v6507 = vpop.permute.xlu0 %6506
        %6508 = vrot.lane.b32.xlu0 %v5281, 4
        %v6509 = vpop.permute.xlu0 %6508
        %6510 = vrot.lane.b32.xlu0 %v5284, 4
        %v6511 = vpop.permute.xlu0 %6510
        %6512 = vrot.lane.b32.xlu0 %v5328, 4
        %v6513 = vpop.permute.xlu0 %6512
        %6514 = vrot.lane.b32.xlu0 %v5331, 4
        %v6515 = vpop.permute.xlu0 %6514
        %6516 = vrot.lane.b32.xlu0 %v5375, 4
        %v6517 = vpop.permute.xlu0 %6516
        %6518 = vrot.lane.b32.xlu0 %v5378, 4
        %v6519 = vpop.permute.xlu0 %6518
        %6520 = vrot.lane.b32.xlu0 %v5422, 4
        %v6521 = vpop.permute.xlu0 %6520
        %6522 = vrot.lane.b32.xlu0 %v5425, 4
        %v6523 = vpop.permute.xlu0 %6522
        %6556 = vrot.lane.b32.xlu0 %v6077, 6
        %v6557 = vpop.permute.xlu0 %6556
        %6558 = vrot.lane.b32.xlu0 %v6080, 6
        %v6559 = vpop.permute.xlu0 %6558
        %6560 = vrot.lane.b32.xlu0 %v6124, 6
        %v6561 = vpop.permute.xlu0 %6560
        %6562 = vrot.lane.b32.xlu0 %v6127, 6
        %v6563 = vpop.permute.xlu0 %6562
        %6564 = vrot.lane.b32.xlu0 %v6171, 6
        %v6565 = vpop.permute.xlu0 %6564
        %6566 = vrot.lane.b32.xlu0 %v6174, 6
        %v6567 = vpop.permute.xlu0 %6566
        %6568 = vrot.lane.b32.xlu0 %v6218, 6
        %v6569 = vpop.permute.xlu0 %6568
        %6570 = vrot.lane.b32.xlu0 %v6221, 6
        %v6571 = vpop.permute.xlu0 %6570
        %6572 = vrot.lane.b32.xlu0 %v6265, 6
        %v6573 = vpop.permute.xlu0 %6572
        %6574 = vrot.lane.b32.xlu0 %v6268, 6
        %v6575 = vpop.permute.xlu0 %6574
        %6576 = vrot.lane.b32.xlu0 %v6312, 6
        %v6577 = vpop.permute.xlu0 %6576
        %6578 = vrot.lane.b32.xlu0 %v6315, 6
        %v6579 = vpop.permute.xlu0 %6578
        %6580 = vrot.lane.b32.xlu0 %v6359, 6
        %v6581 = vpop.permute.xlu0 %6580
        %6582 = vrot.lane.b32.xlu0 %v6362, 6
        %v6583 = vpop.permute.xlu0 %6582
        %6584 = vrot.lane.b32.xlu0 %v6406, 6
        %v6585 = vpop.permute.xlu0 %6584
        %6586 = vrot.lane.b32.xlu0 %v6409, 6
        %v6587 = vpop.permute.xlu0 %6586
        %v6604 = vsel %vm2486, %v3125, %v6429
        %v6605 = vsel %vm2486, %v3128, %v6431
        %v6606 = vsel %vm2486, %v3172, %v6433
        %v6607 = vsel %vm2486, %v3175, %v6435
        %v6608 = vsel %vm2486, %v3219, %v6437
        %v6609 = vsel %vm2486, %v3222, %v6439
        %v6610 = vsel %vm2486, %v3266, %v6441
        %v6611 = vsel %vm2486, %v3269, %v6443
        %v6612 = vsel %vm2486, %v3313, %v6445
        %v6613 = vsel %vm2486, %v3316, %v6447
        %v6614 = vsel %vm2486, %v3360, %v6449
        %v6615 = vsel %vm2486, %v3363, %v6451
        %v6616 = vsel %vm2486, %v3407, %v6453
        %v6617 = vsel %vm2486, %v3410, %v6455
        %v6618 = vsel %vm2486, %v3454, %v6457
        %v6619 = vsel %vm2486, %v3457, %v6459
        %v6620 = vsel %vm1314, %v6604, %v6493
        %v6621 = vsel %vm1314, %v6605, %v6495
        %v6622 = vsel %vm1314, %v6606, %v6497
        %v6623 = vsel %vm1314, %v6607, %v6499
        %v6624 = vsel %vm1314, %v6608, %v6501
        %v6625 = vsel %vm1314, %v6609, %v6503
        %v6626 = vsel %vm1314, %v6610, %v6505
        %v6627 = vsel %vm1314, %v6611, %v6507
        %v6628 = vsel %vm1314, %v6612, %v6509
        %v6629 = vsel %vm1314, %v6613, %v6511
        %v6630 = vsel %vm1314, %v6614, %v6513
        %v6631 = vsel %vm1314, %v6615, %v6515
        %v6632 = vsel %vm1314, %v6616, %v6517
        %v6633 = vsel %vm1314, %v6617, %v6519
        %v6634 = vsel %vm1314, %v6618, %v6521
        %v6635 = vsel %vm1314, %v6619, %v6523
        %vm6636 = vcmask 48128
        %v6637 = vsel %vm6636, %v6620, %v6557
        %v6638 = vsel %vm6636, %v6621, %v6559
        %v6639 = vsel %vm6636, %v6622, %v6561
        %v6640 = vsel %vm6636, %v6623, %v6563
        %v6641 = vsel %vm6636, %v6624, %v6565
        %v6642 = vsel %vm6636, %v6625, %v6567
        %v6643 = vsel %vm6636, %v6626, %v6569
        %v6644 = vsel %vm6636, %v6627, %v6571
        %v6645 = vsel %vm6636, %v6628, %v6573
        %v6646 = vsel %vm6636, %v6629, %v6575
        %v6647 = vsel %vm6636, %v6630, %v6577
        %v6648 = vsel %vm6636, %v6631, %v6579
        %v6649 = vsel %vm6636, %v6632, %v6581
        %v6650 = vsel %vm6636, %v6633, %v6583
        %v6651 = vsel %vm6636, %v6634, %v6585
        %v6652 = vsel %vm6636, %v6635, %v6587
        %v6653 = vpack.c.bf16 %v6638, %v6637
        %v6654 = vpack.c.bf16 %v6640, %v6639
        %v6655 = vpack.c.bf16 %v6642, %v6641
        %v6656 = vpack.c.bf16 %v6644, %v6643
        %v6657 = vpack.c.bf16 %v6646, %v6645
        %v6658 = vpack.c.bf16 %v6648, %v6647
        %v6659 = vpack.c.bf16 %v6650, %v6649
        %v6660 = vpack.c.bf16 %v6652, %v6651
        %v6661 = vld [vmem:[%s6] sm:$0xf]
        %v6662 = vld [vmem:[%s7] sm:$0x1]
        %v6664 = vlaneseq
        %v6665 = vshrl.u32 %v6664, 7
        %v6666 = vsub.s32 0, %v6665
        %v6667 = vrot.slane %v6662, %v6666
        %v6670 = vsel %vm1649, %v6653, 0
        %v6673 = vsel %vm1649, %v6654, 0
        %v6676 = vsel %vm1649, %v6655, 0
        %v6679 = vsel %vm1649, %v6656, 0
        %v6682 = vsel %vm1649, %v6657, 0
        %v6685 = vsel %vm1649, %v6658, 0
        %v6688 = vsel %vm1649, %v6659, 0
        %v6691 = vsel %vm1649, %v6660, 0
        %v6694 = vsel %vm1818, %v6661, 0
        %6696 = vmatprep.subr.bf16.mxu0 0
        %6697 = vmatpush1.bf16.msra.mxu0 0
        %6698 = vmatprep.subr.bf16.mxu0 0
        %6699 = vmatpush1.bf16.msra.mxu0 0
        %6700 = vmatprep.subr.bf16.mxu0 0
        %6701 = vmatpush1.bf16.msra.mxu0 0
        %6702 = vmatprep.subr.bf16.mxu0 0
        %6703 = vmatpush1.bf16.msra.mxu0 0
        %6704 = vmatprep.subr.bf16.mxu0 0
        %6705 = vmatpush1.bf16.msra.mxu0 0
        %6706 = vmatprep.subr.bf16.mxu0 0
        %6707 = vmatpush1.bf16.msra.mxu0 0
        %6708 = vmatprep.subr.bf16.mxu0 0
        %6709 = vmatpush1.bf16.msra.mxu0 0
        %6710 = vmatprep.subr.bf16.mxu0 0
        %6711 = vmatpush1.bf16.msra.mxu0 %v6694
        %6712 = vmatprep.subr.bf16.mxu0 0
        %6713 = vmatpush2.bf16.msra.mxu0 0
        %6714 = vmatprep.subr.bf16.mxu0 0
        %6715 = vmatpush2.bf16.msra.mxu0 0
        %6716 = vmatprep.subr.bf16.mxu0 0
        %6717 = vmatpush2.bf16.msra.mxu0 0
        %6718 = vmatprep.subr.bf16.mxu0 0
        %6719 = vmatpush2.bf16.msra.mxu0 0
        %6720 = vmatprep.subr.bf16.mxu0 0
        %6721 = vmatpush2.bf16.msra.mxu0 0
        %6722 = vmatprep.subr.bf16.mxu0 0
        %6723 = vmatpush2.bf16.msra.mxu0 0
        %6724 = vmatprep.subr.bf16.mxu0 0
        %6725 = vmatpush2.bf16.msra.mxu0 0
        %6726 = vmatprep.subr.bf16.mxu0 0
        %6727 = vmatpush2.bf16.msra.mxu0 0
        %6728 = vmatprep.mubr.bf16.mxu0 0
        %6729 = vmatmul.mubr.bf16.gmra.mxu0 %v6670
        %v6730 = vpop.f32.mrf.mxu0
        %v6731 = vadd.f32 %v6667, %v6730
        %v6732 = vpop.f32.mrf.mxu0
        %v6733 = vpop.f32.mrf.mxu0
        %v6734 = vadd.f32 %v6667, %v6733
        %v6735 = vpop.f32.mrf.mxu0
        %6736 = vmatprep.mubr.bf16.mxu0 0
        %6737 = vmatmul.mubr.bf16.gmra.mxu0 %v6673
        %v6738 = vpop.f32.mrf.mxu0
        %v6739 = vadd.f32 %v6667, %v6738
        %v6740 = vpop.f32.mrf.mxu0
        %v6741 = vpop.f32.mrf.mxu0
        %v6742 = vadd.f32 %v6667, %v6741
        %v6743 = vpop.f32.mrf.mxu0
        %6744 = vmatprep.mubr.bf16.mxu0 0
        %6745 = vmatmul.mubr.bf16.gmra.mxu0 %v6676
        %v6746 = vpop.f32.mrf.mxu0
        %v6747 = vadd.f32 %v6667, %v6746
        %v6748 = vpop.f32.mrf.mxu0
        %v6749 = vpop.f32.mrf.mxu0
        %v6750 = vadd.f32 %v6667, %v6749
        %v6751 = vpop.f32.mrf.mxu0
        %6752 = vmatprep.mubr.bf16.mxu0 0
        %6753 = vmatmul.mubr.bf16.gmra.mxu0 %v6679
        %v6754 = vpop.f32.mrf.mxu0
        %v6755 = vadd.f32 %v6667, %v6754
        %v6756 = vpop.f32.mrf.mxu0
        %v6757 = vpop.f32.mrf.mxu0
        %v6758 = vadd.f32 %v6667, %v6757
        %v6759 = vpop.f32.mrf.mxu0
        %6760 = vmatprep.mubr.bf16.mxu0 0
        %6761 = vmatmul.mubr.bf16.gmra.mxu0 %v6682
        %v6762 = vpop.f32.mrf.mxu0
        %v6763 = vadd.f32 %v6667, %v6762
        %v6764 = vpop.f32.mrf.mxu0
        %v6765 = vpop.f32.mrf.mxu0
        %v6766 = vadd.f32 %v6667, %v6765
        %v6767 = vpop.f32.mrf.mxu0
        %6768 = vmatprep.mubr.bf16.mxu0 0
        %6769 = vmatmul.mubr.bf16.gmra.mxu0 %v6685
        %v6770 = vpop.f32.mrf.mxu0
        %v6771 = vadd.f32 %v6667, %v6770
        %v6772 = vpop.f32.mrf.mxu0
        %v6773 = vpop.f32.mrf.mxu0
        %v6774 = vadd.f32 %v6667, %v6773
        %v6775 = vpop.f32.mrf.mxu0
        %6776 = vmatprep.mubr.bf16.mxu0 0
        %6777 = vmatmul.mubr.bf16.gmra.mxu0 %v6688
        %v6778 = vpop.f32.mrf.mxu0
        %v6779 = vadd.f32 %v6667, %v6778
        %v6780 = vpop.f32.mrf.mxu0
        %v6781 = vpop.f32.mrf.mxu0
        %v6782 = vadd.f32 %v6667, %v6781
        %v6783 = vpop.f32.mrf.mxu0
        %6784 = vmatprep.mubr.bf16.mxu0 0
        %6785 = vmatmul.mubr.bf16.gmra.mxu0 %v6691
        %v6786 = vpop.f32.mrf.mxu0
        %v6787 = vadd.f32 %v6667, %v6786
        %v6788 = vpop.f32.mrf.mxu0
        %v6789 = vpop.f32.mrf.mxu0
        %v6790 = vadd.f32 %v6667, %v6789
        %v6791 = vpop.f32.mrf.mxu0
        %6792 = vdwg.mxu0
        %v6809 = vrot.slane %v6731, 4
        %v6810 = vrot.slane %v6734, 4
        %v6811 = vsel %vm1818, %v6809, %v6810
        %v6812 = vrot.slane %v6739, 4
        %v6813 = vrot.slane %v6742, 4
        %v6814 = vsel %vm1818, %v6812, %v6813
        %v6815 = vrot.slane %v6747, 4
        %v6816 = vrot.slane %v6750, 4
        %v6817 = vsel %vm1818, %v6815, %v6816
        %v6818 = vrot.slane %v6755, 4
        %v6819 = vrot.slane %v6758, 4
        %v6820 = vsel %vm1818, %v6818, %v6819
        %v6821 = vrot.slane %v6763, 4
        %v6822 = vrot.slane %v6766, 4
        %v6823 = vsel %vm1818, %v6821, %v6822
        %v6824 = vrot.slane %v6771, 4
        %v6825 = vrot.slane %v6774, 4
        %v6826 = vsel %vm1818, %v6824, %v6825
        %v6827 = vrot.slane %v6779, 4
        %v6828 = vrot.slane %v6782, 4
        %v6829 = vsel %vm1818, %v6827, %v6828
        %v6830 = vrot.slane %v6787, 4
        %v6831 = vrot.slane %v6790, 4
        %v6832 = vsel %vm1818, %v6830, %v6831
        %v6857 = vsel %vm1818, 0.0, %v6809
        %v6858 = vsel %vm1818, 0.0, %v6812
        %v6859 = vsel %vm1818, 0.0, %v6815
        %v6860 = vsel %vm1818, 0.0, %v6818
        %v6861 = vsel %vm1818, 0.0, %v6821
        %v6862 = vsel %vm1818, 0.0, %v6824
        %v6863 = vsel %vm1818, 0.0, %v6827
        %v6864 = vsel %vm1818, 0.0, %v6830
        %v6865 = vsel %vm1818, %v6810, 0.0
        %v6866 = vsel %vm1818, %v6813, 0.0
        %v6867 = vsel %vm1818, %v6816, 0.0
        %v6868 = vsel %vm1818, %v6819, 0.0
        %v6869 = vsel %vm1818, %v6822, 0.0
        %v6870 = vsel %vm1818, %v6825, 0.0
        %v6871 = vsel %vm1818, %v6828, 0.0
        %v6872 = vsel %vm1818, %v6831, 0.0
        %v6873 = vpack.c.bf16 %v6811, %v6857
        %v6874 = vpack.c.bf16 %v6814, %v6858
        %v6875 = vpack.c.bf16 %v6817, %v6859
        %v6876 = vpack.c.bf16 %v6820, %v6860
        %v6877 = vpack.c.bf16 %v6823, %v6861
        %v6878 = vpack.c.bf16 %v6826, %v6862
        %v6879 = vpack.c.bf16 %v6829, %v6863
        %v6880 = vpack.c.bf16 %v6832, %v6864
        %v6881 = vld [vmem:[%s8] sm:$0xf]
        %vm6898 = vcmask 1046528
        %v6899 = vrot.slane %v6857, 1
        %v6900 = vrot.slane %v6811, 1
        %v6901 = vsel %vm6898, %v6899, %v6900
        %v6902 = vrot.slane %v6865, 1
        %v6903 = vsel %vm6898, %v6900, %v6902
        %v6904 = vrot.slane %v6858, 1
        %v6905 = vrot.slane %v6814, 1
        %v6906 = vsel %vm6898, %v6904, %v6905
        %v6907 = vrot.slane %v6866, 1
        %v6908 = vsel %vm6898, %v6905, %v6907
        %v6909 = vrot.slane %v6859, 1
        %v6910 = vrot.slane %v6817, 1
        %v6911 = vsel %vm6898, %v6909, %v6910
        %v6912 = vrot.slane %v6867, 1
        %v6913 = vsel %vm6898, %v6910, %v6912
        %v6914 = vrot.slane %v6860, 1
        %v6915 = vrot.slane %v6820, 1
        %v6916 = vsel %vm6898, %v6914, %v6915
        %v6917 = vrot.slane %v6868, 1
        %v6918 = vsel %vm6898, %v6915, %v6917
        %v6919 = vrot.slane %v6861, 1
        %v6920 = vrot.slane %v6823, 1
        %v6921 = vsel %vm6898, %v6919, %v6920
        %v6922 = vrot.slane %v6869, 1
        %v6923 = vsel %vm6898, %v6920, %v6922
        %v6924 = vrot.slane %v6862, 1
        %v6925 = vrot.slane %v6826, 1
        %v6926 = vsel %vm6898, %v6924, %v6925
        %v6927 = vrot.slane %v6870, 1
        %v6928 = vsel %vm6898, %v6925, %v6927
        %v6929 = vrot.slane %v6863, 1
        %v6930 = vrot.slane %v6829, 1
        %v6931 = vsel %vm6898, %v6929, %v6930
        %v6932 = vrot.slane %v6871, 1
        %v6933 = vsel %vm6898, %v6930, %v6932
        %v6934 = vrot.slane %v6864, 1
        %v6935 = vrot.slane %v6832, 1
        %v6936 = vsel %vm6898, %v6934, %v6935
        %v6937 = vrot.slane %v6872, 1
        %v6938 = vsel %vm6898, %v6935, %v6937
        %v6955 = vpack.c.bf16 %v6903, %v6901
        %v6956 = vpack.c.bf16 %v6908, %v6906
        %v6957 = vpack.c.bf16 %v6913, %v6911
        %v6958 = vpack.c.bf16 %v6918, %v6916
        %v6959 = vpack.c.bf16 %v6923, %v6921
        %v6960 = vpack.c.bf16 %v6928, %v6926
        %v6961 = vpack.c.bf16 %v6933, %v6931
        %v6962 = vpack.c.bf16 %v6938, %v6936
        %s6963 = scalar_lea.vmem %s8, 4
        %v6964 = vld [vmem:[%s6963] sm:$0xf]
        %v6966 = vsel %vm1649, %v6955, 0
        %v6969 = vsel %vm1649, %v6956, 0
        %v6972 = vsel %vm1649, %v6957, 0
        %v6975 = vsel %vm1649, %v6958, 0
        %v6978 = vsel %vm1649, %v6959, 0
        %v6981 = vsel %vm1649, %v6960, 0
        %v6984 = vsel %vm1649, %v6961, 0
        %v6987 = vsel %vm1649, %v6962, 0
        %v6990 = vsel %vm1818, %v6964, 0
        %6992 = vmatprep.subr.bf16.mxu0 0
        %6993 = vmatpush1.bf16.msra.mxu0 0
        %6994 = vmatprep.subr.bf16.mxu0 0
        %6995 = vmatpush1.bf16.msra.mxu0 0
        %6996 = vmatprep.subr.bf16.mxu0 0
        %6997 = vmatpush1.bf16.msra.mxu0 0
        %6998 = vmatprep.subr.bf16.mxu0 0
        %6999 = vmatpush1.bf16.msra.mxu0 0
        %7000 = vmatprep.subr.bf16.mxu0 0
        %7001 = vmatpush1.bf16.msra.mxu0 0
        %7002 = vmatprep.subr.bf16.mxu0 0
        %7003 = vmatpush1.bf16.msra.mxu0 0
        %7004 = vmatprep.subr.bf16.mxu0 0
        %7005 = vmatpush1.bf16.msra.mxu0 0
        %7006 = vmatprep.subr.bf16.mxu0 0
        %7007 = vmatpush1.bf16.msra.mxu0 %v6990
        %7008 = vmatprep.subr.bf16.mxu0 0
        %7009 = vmatpush2.bf16.msra.mxu0 0
        %7010 = vmatprep.subr.bf16.mxu0 0
        %7011 = vmatpush2.bf16.msra.mxu0 0
        %7012 = vmatprep.subr.bf16.mxu0 0
        %7013 = vmatpush2.bf16.msra.mxu0 0
        %7014 = vmatprep.subr.bf16.mxu0 0
        %7015 = vmatpush2.bf16.msra.mxu0 0
        %7016 = vmatprep.subr.bf16.mxu0 0
        %7017 = vmatpush2.bf16.msra.mxu0 0
        %7018 = vmatprep.subr.bf16.mxu0 0
        %7019 = vmatpush2.bf16.msra.mxu0 0
        %7020 = vmatprep.subr.bf16.mxu0 0
        %7021 = vmatpush2.bf16.msra.mxu0 0
        %7022 = vmatprep.subr.bf16.mxu0 0
        %7023 = vmatpush2.bf16.msra.mxu0 0
        %7024 = vmatprep.mubr.bf16.mxu0 0
        %7025 = vmatmul.mubr.bf16.gmra.mxu0 %v6966
        %v7026 = vpop.f32.mrf.mxu0
        %v7027 = vadd.f32 0.0, %v7026
        %v7028 = vpop.f32.mrf.mxu0
        %v7029 = vpop.f32.mrf.mxu0
        %v7030 = vadd.f32 0.0, %v7029
        %v7031 = vpop.f32.mrf.mxu0
        %7032 = vmatprep.mubr.bf16.mxu0 0
        %7033 = vmatmul.mubr.bf16.gmra.mxu0 %v6969
        %v7034 = vpop.f32.mrf.mxu0
        %v7035 = vadd.f32 0.0, %v7034
        %v7036 = vpop.f32.mrf.mxu0
        %v7037 = vpop.f32.mrf.mxu0
        %v7038 = vadd.f32 0.0, %v7037
        %v7039 = vpop.f32.mrf.mxu0
        %7040 = vmatprep.mubr.bf16.mxu0 0
        %7041 = vmatmul.mubr.bf16.gmra.mxu0 %v6972
        %v7042 = vpop.f32.mrf.mxu0
        %v7043 = vadd.f32 0.0, %v7042
        %v7044 = vpop.f32.mrf.mxu0
        %v7045 = vpop.f32.mrf.mxu0
        %v7046 = vadd.f32 0.0, %v7045
        %v7047 = vpop.f32.mrf.mxu0
        %7048 = vmatprep.mubr.bf16.mxu0 0
        %7049 = vmatmul.mubr.bf16.gmra.mxu0 %v6975
        %v7050 = vpop.f32.mrf.mxu0
        %v7051 = vadd.f32 0.0, %v7050
        %v7052 = vpop.f32.mrf.mxu0
        %v7053 = vpop.f32.mrf.mxu0
        %v7054 = vadd.f32 0.0, %v7053
        %v7055 = vpop.f32.mrf.mxu0
        %7056 = vmatprep.mubr.bf16.mxu0 0
        %7057 = vmatmul.mubr.bf16.gmra.mxu0 %v6978
        %v7058 = vpop.f32.mrf.mxu0
        %v7059 = vadd.f32 0.0, %v7058
        %v7060 = vpop.f32.mrf.mxu0
        %v7061 = vpop.f32.mrf.mxu0
        %v7062 = vadd.f32 0.0, %v7061
        %v7063 = vpop.f32.mrf.mxu0
        %7064 = vmatprep.mubr.bf16.mxu0 0
        %7065 = vmatmul.mubr.bf16.gmra.mxu0 %v6981
        %v7066 = vpop.f32.mrf.mxu0
        %v7067 = vadd.f32 0.0, %v7066
        %v7068 = vpop.f32.mrf.mxu0
        %v7069 = vpop.f32.mrf.mxu0
        %v7070 = vadd.f32 0.0, %v7069
        %v7071 = vpop.f32.mrf.mxu0
        %7072 = vmatprep.mubr.bf16.mxu0 0
        %7073 = vmatmul.mubr.bf16.gmra.mxu0 %v6984
        %v7074 = vpop.f32.mrf.mxu0
        %v7075 = vadd.f32 0.0, %v7074
        %v7076 = vpop.f32.mrf.mxu0
        %v7077 = vpop.f32.mrf.mxu0
        %v7078 = vadd.f32 0.0, %v7077
        %v7079 = vpop.f32.mrf.mxu0
        %7080 = vmatprep.mubr.bf16.mxu0 0
        %7081 = vmatmul.mubr.bf16.gmra.mxu0 %v6987
        %v7082 = vpop.f32.mrf.mxu0
        %v7083 = vadd.f32 0.0, %v7082
        %v7084 = vpop.f32.mrf.mxu0
        %v7085 = vpop.f32.mrf.mxu0
        %v7086 = vadd.f32 0.0, %v7085
        %v7087 = vpop.f32.mrf.mxu0
        %7088 = vdwg.mxu0
        %v7090 = vsel %vm1649, %v6873, 0
        %v7093 = vsel %vm1649, %v6874, 0
        %v7096 = vsel %vm1649, %v6875, 0
        %v7099 = vsel %vm1649, %v6876, 0
        %v7102 = vsel %vm1649, %v6877, 0
        %v7105 = vsel %vm1649, %v6878, 0
        %v7108 = vsel %vm1649, %v6879, 0
        %v7111 = vsel %vm1649, %v6880, 0
        %v7114 = vsel %vm1818, %v6881, 0
        %7116 = vmatprep.subr.bf16.mxu0 0
        %7117 = vmatpush1.bf16.msra.mxu0 0
        %7118 = vmatprep.subr.bf16.mxu0 0
        %7119 = vmatpush1.bf16.msra.mxu0 0
        %7120 = vmatprep.subr.bf16.mxu0 0
        %7121 = vmatpush1.bf16.msra.mxu0 0
        %7122 = vmatprep.subr.bf16.mxu0 0
        %7123 = vmatpush1.bf16.msra.mxu0 0
        %7124 = vmatprep.subr.bf16.mxu0 0
        %7125 = vmatpush1.bf16.msra.mxu0 0
        %7126 = vmatprep.subr.bf16.mxu0 0
        %7127 = vmatpush1.bf16.msra.mxu0 0
        %7128 = vmatprep.subr.bf16.mxu0 0
        %7129 = vmatpush1.bf16.msra.mxu0 0
        %7130 = vmatprep.subr.bf16.mxu0 0
        %7131 = vmatpush1.bf16.msra.mxu0 %v7114
        %7132 = vmatprep.subr.bf16.mxu0 0
        %7133 = vmatpush2.bf16.msra.mxu0 0
        %7134 = vmatprep.subr.bf16.mxu0 0
        %7135 = vmatpush2.bf16.msra.mxu0 0
        %7136 = vmatprep.subr.bf16.mxu0 0
        %7137 = vmatpush2.bf16.msra.mxu0 0
        %7138 = vmatprep.subr.bf16.mxu0 0
        %7139 = vmatpush2.bf16.msra.mxu0 0
        %7140 = vmatprep.subr.bf16.mxu0 0
        %7141 = vmatpush2.bf16.msra.mxu0 0
        %7142 = vmatprep.subr.bf16.mxu0 0
        %7143 = vmatpush2.bf16.msra.mxu0 0
        %7144 = vmatprep.subr.bf16.mxu0 0
        %7145 = vmatpush2.bf16.msra.mxu0 0
        %7146 = vmatprep.subr.bf16.mxu0 0
        %7147 = vmatpush2.bf16.msra.mxu0 0
        %7148 = vmatprep.mubr.bf16.mxu0 0
        %7149 = vmatmul.mubr.bf16.gmra.mxu0 %v7090
        %v7150 = vpop.f32.mrf.mxu0
        %v7151 = vadd.f32 %v7027, %v7150
        %v7152 = vpop.f32.mrf.mxu0
        %v7153 = vpop.f32.mrf.mxu0
        %v7154 = vadd.f32 %v7030, %v7153
        %v7155 = vpop.f32.mrf.mxu0
        %7156 = vmatprep.mubr.bf16.mxu0 0
        %7157 = vmatmul.mubr.bf16.gmra.mxu0 %v7093
        %v7158 = vpop.f32.mrf.mxu0
        %v7159 = vadd.f32 %v7035, %v7158
        %v7160 = vpop.f32.mrf.mxu0
        %v7161 = vpop.f32.mrf.mxu0
        %v7162 = vadd.f32 %v7038, %v7161
        %v7163 = vpop.f32.mrf.mxu0
        %7164 = vmatprep.mubr.bf16.mxu0 0
        %7165 = vmatmul.mubr.bf16.gmra.mxu0 %v7096
        %v7166 = vpop.f32.mrf.mxu0
        %v7167 = vadd.f32 %v7043, %v7166
        %v7168 = vpop.f32.mrf.mxu0
        %v7169 = vpop.f32.mrf.mxu0
        %v7170 = vadd.f32 %v7046, %v7169
        %v7171 = vpop.f32.mrf.mxu0
        %7172 = vmatprep.mubr.bf16.mxu0 0
        %7173 = vmatmul.mubr.bf16.gmra.mxu0 %v7099
        %v7174 = vpop.f32.mrf.mxu0
        %v7175 = vadd.f32 %v7051, %v7174
        %v7176 = vpop.f32.mrf.mxu0
        %v7177 = vpop.f32.mrf.mxu0
        %v7178 = vadd.f32 %v7054, %v7177
        %v7179 = vpop.f32.mrf.mxu0
        %7180 = vmatprep.mubr.bf16.mxu0 0
        %7181 = vmatmul.mubr.bf16.gmra.mxu0 %v7102
        %v7182 = vpop.f32.mrf.mxu0
        %v7183 = vadd.f32 %v7059, %v7182
        %v7184 = vpop.f32.mrf.mxu0
        %v7185 = vpop.f32.mrf.mxu0
        %v7186 = vadd.f32 %v7062, %v7185
        %v7187 = vpop.f32.mrf.mxu0
        %7188 = vmatprep.mubr.bf16.mxu0 0
        %7189 = vmatmul.mubr.bf16.gmra.mxu0 %v7105
        %v7190 = vpop.f32.mrf.mxu0
        %v7191 = vadd.f32 %v7067, %v7190
        %v7192 = vpop.f32.mrf.mxu0
        %v7193 = vpop.f32.mrf.mxu0
        %v7194 = vadd.f32 %v7070, %v7193
        %v7195 = vpop.f32.mrf.mxu0
        %7196 = vmatprep.mubr.bf16.mxu0 0
        %7197 = vmatmul.mubr.bf16.gmra.mxu0 %v7108
        %v7198 = vpop.f32.mrf.mxu0
        %v7199 = vadd.f32 %v7075, %v7198
        %v7200 = vpop.f32.mrf.mxu0
        %v7201 = vpop.f32.mrf.mxu0
        %v7202 = vadd.f32 %v7078, %v7201
        %v7203 = vpop.f32.mrf.mxu0
        %7204 = vmatprep.mubr.bf16.mxu0 0
        %7205 = vmatmul.mubr.bf16.gmra.mxu0 %v7111
        %v7206 = vpop.f32.mrf.mxu0
        %v7207 = vadd.f32 %v7083, %v7206
        %v7208 = vpop.f32.mrf.mxu0
        %v7209 = vpop.f32.mrf.mxu0
        %v7210 = vadd.f32 %v7086, %v7209
        %v7211 = vpop.f32.mrf.mxu0
        %7212 = vdwg.mxu0
        %vm7213 = vcmask 1045504
        %v7214 = vrot.slane %v6857, 2
        %v7215 = vrot.slane %v6811, 2
        %v7216 = vsel %vm7213, %v7214, %v7215
        %v7217 = vrot.slane %v6865, 2
        %v7218 = vsel %vm7213, %v7215, %v7217
        %v7219 = vrot.slane %v6858, 2
        %v7220 = vrot.slane %v6814, 2
        %v7221 = vsel %vm7213, %v7219, %v7220
        %v7222 = vrot.slane %v6866, 2
        %v7223 = vsel %vm7213, %v7220, %v7222
        %v7224 = vrot.slane %v6859, 2
        %v7225 = vrot.slane %v6817, 2
        %v7226 = vsel %vm7213, %v7224, %v7225
        %v7227 = vrot.slane %v6867, 2
        %v7228 = vsel %vm7213, %v7225, %v7227
        %v7229 = vrot.slane %v6860, 2
        %v7230 = vrot.slane %v6820, 2
        %v7231 = vsel %vm7213, %v7229, %v7230
        %v7232 = vrot.slane %v6868, 2
        %v7233 = vsel %vm7213, %v7230, %v7232
        %v7234 = vrot.slane %v6861, 2
        %v7235 = vrot.slane %v6823, 2
        %v7236 = vsel %vm7213, %v7234, %v7235
        %v7237 = vrot.slane %v6869, 2
        %v7238 = vsel %vm7213, %v7235, %v7237
        %v7239 = vrot.slane %v6862, 2
        %v7240 = vrot.slane %v6826, 2
        %v7241 = vsel %vm7213, %v7239, %v7240
        %v7242 = vrot.slane %v6870, 2
        %v7243 = vsel %vm7213, %v7240, %v7242
        %v7244 = vrot.slane %v6863, 2
        %v7245 = vrot.slane %v6829, 2
        %v7246 = vsel %vm7213, %v7244, %v7245
        %v7247 = vrot.slane %v6871, 2
        %v7248 = vsel %vm7213, %v7245, %v7247
        %v7249 = vrot.slane %v6864, 2
        %v7250 = vrot.slane %v6832, 2
        %v7251 = vsel %vm7213, %v7249, %v7250
        %v7252 = vrot.slane %v6872, 2
        %v7253 = vsel %vm7213, %v7250, %v7252
        %v7270 = vpack.c.bf16 %v7218, %v7216
        %v7271 = vpack.c.bf16 %v7223, %v7221
        %v7272 = vpack.c.bf16 %v7228, %v7226
        %v7273 = vpack.c.bf16 %v7233, %v7231
        %v7274 = vpack.c.bf16 %v7238, %v7236
        %v7275 = vpack.c.bf16 %v7243, %v7241
        %v7276 = vpack.c.bf16 %v7248, %v7246
        %v7277 = vpack.c.bf16 %v7253, %v7251
        %s7278 = scalar_lea.vmem %s8, 8
        %v7279 = vld [vmem:[%s7278] sm:$0xf]
        %v7281 = vsel %vm1649, %v7270, 0
        %v7284 = vsel %vm1649, %v7271, 0
        %v7287 = vsel %vm1649, %v7272, 0
        %v7290 = vsel %vm1649, %v7273, 0
        %v7293 = vsel %vm1649, %v7274, 0
        %v7296 = vsel %vm1649, %v7275, 0
        %v7299 = vsel %vm1649, %v7276, 0
        %v7302 = vsel %vm1649, %v7277, 0
        %v7305 = vsel %vm1818, %v7279, 0
        %7307 = vmatprep.subr.bf16.mxu0 0
        %7308 = vmatpush1.bf16.msra.mxu0 0
        %7309 = vmatprep.subr.bf16.mxu0 0
        %7310 = vmatpush1.bf16.msra.mxu0 0
        %7311 = vmatprep.subr.bf16.mxu0 0
        %7312 = vmatpush1.bf16.msra.mxu0 0
        %7313 = vmatprep.subr.bf16.mxu0 0
        %7314 = vmatpush1.bf16.msra.mxu0 0
        %7315 = vmatprep.subr.bf16.mxu0 0
        %7316 = vmatpush1.bf16.msra.mxu0 0
        %7317 = vmatprep.subr.bf16.mxu0 0
        %7318 = vmatpush1.bf16.msra.mxu0 0
        %7319 = vmatprep.subr.bf16.mxu0 0
        %7320 = vmatpush1.bf16.msra.mxu0 0
        %7321 = vmatprep.subr.bf16.mxu0 0
        %7322 = vmatpush1.bf16.msra.mxu0 %v7305
        %7323 = vmatprep.subr.bf16.mxu0 0
        %7324 = vmatpush2.bf16.msra.mxu0 0
        %7325 = vmatprep.subr.bf16.mxu0 0
        %7326 = vmatpush2.bf16.msra.mxu0 0
        %7327 = vmatprep.subr.bf16.mxu0 0
        %7328 = vmatpush2.bf16.msra.mxu0 0
        %7329 = vmatprep.subr.bf16.mxu0 0
        %7330 = vmatpush2.bf16.msra.mxu0 0
        %7331 = vmatprep.subr.bf16.mxu0 0
        %7332 = vmatpush2.bf16.msra.mxu0 0
        %7333 = vmatprep.subr.bf16.mxu0 0
        %7334 = vmatpush2.bf16.msra.mxu0 0
        %7335 = vmatprep.subr.bf16.mxu0 0
        %7336 = vmatpush2.bf16.msra.mxu0 0
        %7337 = vmatprep.subr.bf16.mxu0 0
        %7338 = vmatpush2.bf16.msra.mxu0 0
        %7339 = vmatprep.mubr.bf16.mxu0 0
        %7340 = vmatmul.mubr.bf16.gmra.mxu0 %v7281
        %v7341 = vpop.f32.mrf.mxu0
        %v7342 = vadd.f32 0.0, %v7341
        %v7343 = vpop.f32.mrf.mxu0
        %v7344 = vpop.f32.mrf.mxu0
        %v7345 = vadd.f32 0.0, %v7344
        %v7346 = vpop.f32.mrf.mxu0
        %7347 = vmatprep.mubr.bf16.mxu0 0
        %7348 = vmatmul.mubr.bf16.gmra.mxu0 %v7284
        %v7349 = vpop.f32.mrf.mxu0
        %v7350 = vadd.f32 0.0, %v7349
        %v7351 = vpop.f32.mrf.mxu0
        %v7352 = vpop.f32.mrf.mxu0
        %v7353 = vadd.f32 0.0, %v7352
        %v7354 = vpop.f32.mrf.mxu0
        %7355 = vmatprep.mubr.bf16.mxu0 0
        %7356 = vmatmul.mubr.bf16.gmra.mxu0 %v7287
        %v7357 = vpop.f32.mrf.mxu0
        %v7358 = vadd.f32 0.0, %v7357
        %v7359 = vpop.f32.mrf.mxu0
        %v7360 = vpop.f32.mrf.mxu0
        %v7361 = vadd.f32 0.0, %v7360
        %v7362 = vpop.f32.mrf.mxu0
        %7363 = vmatprep.mubr.bf16.mxu0 0
        %7364 = vmatmul.mubr.bf16.gmra.mxu0 %v7290
        %v7365 = vpop.f32.mrf.mxu0
        %v7366 = vadd.f32 0.0, %v7365
        %v7367 = vpop.f32.mrf.mxu0
        %v7368 = vpop.f32.mrf.mxu0
        %v7369 = vadd.f32 0.0, %v7368
        %v7370 = vpop.f32.mrf.mxu0
        %7371 = vmatprep.mubr.bf16.mxu0 0
        %7372 = vmatmul.mubr.bf16.gmra.mxu0 %v7293
        %v7373 = vpop.f32.mrf.mxu0
        %v7374 = vadd.f32 0.0, %v7373
        %v7375 = vpop.f32.mrf.mxu0
        %v7376 = vpop.f32.mrf.mxu0
        %v7377 = vadd.f32 0.0, %v7376
        %v7378 = vpop.f32.mrf.mxu0
        %7379 = vmatprep.mubr.bf16.mxu0 0
        %7380 = vmatmul.mubr.bf16.gmra.mxu0 %v7296
        %v7381 = vpop.f32.mrf.mxu0
        %v7382 = vadd.f32 0.0, %v7381
        %v7383 = vpop.f32.mrf.mxu0
        %v7384 = vpop.f32.mrf.mxu0
        %v7385 = vadd.f32 0.0, %v7384
        %v7386 = vpop.f32.mrf.mxu0
        %7387 = vmatprep.mubr.bf16.mxu0 0
        %7388 = vmatmul.mubr.bf16.gmra.mxu0 %v7299
        %v7389 = vpop.f32.mrf.mxu0
        %v7390 = vadd.f32 0.0, %v7389
        %v7391 = vpop.f32.mrf.mxu0
        %v7392 = vpop.f32.mrf.mxu0
        %v7393 = vadd.f32 0.0, %v7392
        %v7394 = vpop.f32.mrf.mxu0
        %7395 = vmatprep.mubr.bf16.mxu0 0
        %7396 = vmatmul.mubr.bf16.gmra.mxu0 %v7302
        %v7397 = vpop.f32.mrf.mxu0
        %v7398 = vadd.f32 0.0, %v7397
        %v7399 = vpop.f32.mrf.mxu0
        %v7400 = vpop.f32.mrf.mxu0
        %v7401 = vadd.f32 0.0, %v7400
        %v7402 = vpop.f32.mrf.mxu0
        %7403 = vdwg.mxu0
        %v7404 = vadd.f32 %v7151, %v7342
        %v7405 = vadd.f32 %v7154, %v7345
        %v7406 = vadd.f32 %v7159, %v7350
        %v7407 = vadd.f32 %v7162, %v7353
        %v7408 = vadd.f32 %v7167, %v7358
        %v7409 = vadd.f32 %v7170, %v7361
        %v7410 = vadd.f32 %v7175, %v7366
        %v7411 = vadd.f32 %v7178, %v7369
        %v7412 = vadd.f32 %v7183, %v7374
        %v7413 = vadd.f32 %v7186, %v7377
        %v7414 = vadd.f32 %v7191, %v7382
        %v7415 = vadd.f32 %v7194, %v7385
        %v7416 = vadd.f32 %v7199, %v7390
        %v7417 = vadd.f32 %v7202, %v7393
        %v7418 = vadd.f32 %v7207, %v7398
        %v7419 = vadd.f32 %v7210, %v7401
        %vm7420 = vcmask 1044480
        %v7421 = vrot.slane %v6857, 3
        %v7422 = vrot.slane %v6811, 3
        %v7423 = vsel %vm7420, %v7421, %v7422
        %v7424 = vrot.slane %v6865, 3
        %v7425 = vsel %vm7420, %v7422, %v7424
        %v7426 = vrot.slane %v6858, 3
        %v7427 = vrot.slane %v6814, 3
        %v7428 = vsel %vm7420, %v7426, %v7427
        %v7429 = vrot.slane %v6866, 3
        %v7430 = vsel %vm7420, %v7427, %v7429
        %v7431 = vrot.slane %v6859, 3
        %v7432 = vrot.slane %v6817, 3
        %v7433 = vsel %vm7420, %v7431, %v7432
        %v7434 = vrot.slane %v6867, 3
        %v7435 = vsel %vm7420, %v7432, %v7434
        %v7436 = vrot.slane %v6860, 3
        %v7437 = vrot.slane %v6820, 3
        %v7438 = vsel %vm7420, %v7436, %v7437
        %v7439 = vrot.slane %v6868, 3
        %v7440 = vsel %vm7420, %v7437, %v7439
        %v7441 = vrot.slane %v6861, 3
        %v7442 = vrot.slane %v6823, 3
        %v7443 = vsel %vm7420, %v7441, %v7442
        %v7444 = vrot.slane %v6869, 3
        %v7445 = vsel %vm7420, %v7442, %v7444
        %v7446 = vrot.slane %v6862, 3
        %v7447 = vrot.slane %v6826, 3
        %v7448 = vsel %vm7420, %v7446, %v7447
        %v7449 = vrot.slane %v6870, 3
        %v7450 = vsel %vm7420, %v7447, %v7449
        %v7451 = vrot.slane %v6863, 3
        %v7452 = vrot.slane %v6829, 3
        %v7453 = vsel %vm7420, %v7451, %v7452
        %v7454 = vrot.slane %v6871, 3
        %v7455 = vsel %vm7420, %v7452, %v7454
        %v7456 = vrot.slane %v6864, 3
        %v7457 = vrot.slane %v6832, 3
        %v7458 = vsel %vm7420, %v7456, %v7457
        %v7459 = vrot.slane %v6872, 3
        %v7460 = vsel %vm7420, %v7457, %v7459
        %v7477 = vpack.c.bf16 %v7425, %v7423
        %v7478 = vpack.c.bf16 %v7430, %v7428
        %v7479 = vpack.c.bf16 %v7435, %v7433
        %v7480 = vpack.c.bf16 %v7440, %v7438
        %v7481 = vpack.c.bf16 %v7445, %v7443
        %v7482 = vpack.c.bf16 %v7450, %v7448
        %v7483 = vpack.c.bf16 %v7455, %v7453
        %v7484 = vpack.c.bf16 %v7460, %v7458
        %s7485 = scalar_lea.vmem %s8, 12
        %v7486 = vld [vmem:[%s7485] sm:$0xf]
        %v7488 = vsel %vm1649, %v7477, 0
        %v7491 = vsel %vm1649, %v7478, 0
        %v7494 = vsel %vm1649, %v7479, 0
        %v7497 = vsel %vm1649, %v7480, 0
        %v7500 = vsel %vm1649, %v7481, 0
        %v7503 = vsel %vm1649, %v7482, 0
        %v7506 = vsel %vm1649, %v7483, 0
        %v7509 = vsel %vm1649, %v7484, 0
        %v7512 = vsel %vm1818, %v7486, 0
        %7514 = vmatprep.subr.bf16.mxu0 0
        %7515 = vmatpush1.bf16.msra.mxu0 0
        %7516 = vmatprep.subr.bf16.mxu0 0
        %7517 = vmatpush1.bf16.msra.mxu0 0
        %7518 = vmatprep.subr.bf16.mxu0 0
        %7519 = vmatpush1.bf16.msra.mxu0 0
        %7520 = vmatprep.subr.bf16.mxu0 0
        %7521 = vmatpush1.bf16.msra.mxu0 0
        %7522 = vmatprep.subr.bf16.mxu0 0
        %7523 = vmatpush1.bf16.msra.mxu0 0
        %7524 = vmatprep.subr.bf16.mxu0 0
        %7525 = vmatpush1.bf16.msra.mxu0 0
        %7526 = vmatprep.subr.bf16.mxu0 0
        %7527 = vmatpush1.bf16.msra.mxu0 0
        %7528 = vmatprep.subr.bf16.mxu0 0
        %7529 = vmatpush1.bf16.msra.mxu0 %v7512
        %7530 = vmatprep.subr.bf16.mxu0 0
        %7531 = vmatpush2.bf16.msra.mxu0 0
        %7532 = vmatprep.subr.bf16.mxu0 0
        %7533 = vmatpush2.bf16.msra.mxu0 0
        %7534 = vmatprep.subr.bf16.mxu0 0
        %7535 = vmatpush2.bf16.msra.mxu0 0
        %7536 = vmatprep.subr.bf16.mxu0 0
        %7537 = vmatpush2.bf16.msra.mxu0 0
        %7538 = vmatprep.subr.bf16.mxu0 0
        %7539 = vmatpush2.bf16.msra.mxu0 0
        %7540 = vmatprep.subr.bf16.mxu0 0
        %7541 = vmatpush2.bf16.msra.mxu0 0
        %7542 = vmatprep.subr.bf16.mxu0 0
        %7543 = vmatpush2.bf16.msra.mxu0 0
        %7544 = vmatprep.subr.bf16.mxu0 0
        %7545 = vmatpush2.bf16.msra.mxu0 0
        %7546 = vmatprep.mubr.bf16.mxu0 0
        %7547 = vmatmul.mubr.bf16.gmra.mxu0 %v7488
        %v7548 = vpop.f32.mrf.mxu0
        %v7549 = vadd.f32 0.0, %v7548
        %v7550 = vpop.f32.mrf.mxu0
        %v7551 = vpop.f32.mrf.mxu0
        %v7552 = vadd.f32 0.0, %v7551
        %v7553 = vpop.f32.mrf.mxu0
        %7554 = vmatprep.mubr.bf16.mxu0 0
        %7555 = vmatmul.mubr.bf16.gmra.mxu0 %v7491
        %v7556 = vpop.f32.mrf.mxu0
        %v7557 = vadd.f32 0.0, %v7556
        %v7558 = vpop.f32.mrf.mxu0
        %v7559 = vpop.f32.mrf.mxu0
        %v7560 = vadd.f32 0.0, %v7559
        %v7561 = vpop.f32.mrf.mxu0
        %7562 = vmatprep.mubr.bf16.mxu0 0
        %7563 = vmatmul.mubr.bf16.gmra.mxu0 %v7494
        %v7564 = vpop.f32.mrf.mxu0
        %v7565 = vadd.f32 0.0, %v7564
        %v7566 = vpop.f32.mrf.mxu0
        %v7567 = vpop.f32.mrf.mxu0
        %v7568 = vadd.f32 0.0, %v7567
        %v7569 = vpop.f32.mrf.mxu0
        %7570 = vmatprep.mubr.bf16.mxu0 0
        %7571 = vmatmul.mubr.bf16.gmra.mxu0 %v7497
        %v7572 = vpop.f32.mrf.mxu0
        %v7573 = vadd.f32 0.0, %v7572
        %v7574 = vpop.f32.mrf.mxu0
        %v7575 = vpop.f32.mrf.mxu0
        %v7576 = vadd.f32 0.0, %v7575
        %v7577 = vpop.f32.mrf.mxu0
        %7578 = vmatprep.mubr.bf16.mxu0 0
        %7579 = vmatmul.mubr.bf16.gmra.mxu0 %v7500
        %v7580 = vpop.f32.mrf.mxu0
        %v7581 = vadd.f32 0.0, %v7580
        %v7582 = vpop.f32.mrf.mxu0
        %v7583 = vpop.f32.mrf.mxu0
        %v7584 = vadd.f32 0.0, %v7583
        %v7585 = vpop.f32.mrf.mxu0
        %7586 = vmatprep.mubr.bf16.mxu0 0
        %7587 = vmatmul.mubr.bf16.gmra.mxu0 %v7503
        %v7588 = vpop.f32.mrf.mxu0
        %v7589 = vadd.f32 0.0, %v7588
        %v7590 = vpop.f32.mrf.mxu0
        %v7591 = vpop.f32.mrf.mxu0
        %v7592 = vadd.f32 0.0, %v7591
        %v7593 = vpop.f32.mrf.mxu0
        %7594 = vmatprep.mubr.bf16.mxu0 0
        %7595 = vmatmul.mubr.bf16.gmra.mxu0 %v7506
        %v7596 = vpop.f32.mrf.mxu0
        %v7597 = vadd.f32 0.0, %v7596
        %v7598 = vpop.f32.mrf.mxu0
        %v7599 = vpop.f32.mrf.mxu0
        %v7600 = vadd.f32 0.0, %v7599
        %v7601 = vpop.f32.mrf.mxu0
        %7602 = vmatprep.mubr.bf16.mxu0 0
        %7603 = vmatmul.mubr.bf16.gmra.mxu0 %v7509
        %v7604 = vpop.f32.mrf.mxu0
        %v7605 = vadd.f32 0.0, %v7604
        %v7606 = vpop.f32.mrf.mxu0
        %v7607 = vpop.f32.mrf.mxu0
        %v7608 = vadd.f32 0.0, %v7607
        %v7609 = vpop.f32.mrf.mxu0
        %7610 = vdwg.mxu0
        %v7611 = vadd.f32 %v7404, %v7549
        %v7612 = vadd.f32 %v7405, %v7552
        %v7613 = vadd.f32 %v7406, %v7557
        %v7614 = vadd.f32 %v7407, %v7560
        %v7615 = vadd.f32 %v7408, %v7565
        %v7616 = vadd.f32 %v7409, %v7568
        %v7617 = vadd.f32 %v7410, %v7573
        %v7618 = vadd.f32 %v7411, %v7576
        %v7619 = vadd.f32 %v7412, %v7581
        %v7620 = vadd.f32 %v7413, %v7584
        %v7621 = vadd.f32 %v7414, %v7589
        %v7622 = vadd.f32 %v7415, %v7592
        %v7623 = vadd.f32 %v7416, %v7597
        %v7624 = vadd.f32 %v7417, %v7600
        %v7625 = vadd.f32 %v7418, %v7605
        %v7626 = vadd.f32 %v7419, %v7608
        %v7627 = vrot.slane %v6857, 4
        %v7628 = vrot.slane %v6811, 4
        %v7629 = vsel %vm1818, %v7627, %v7628
        %v7630 = vrot.slane %v6865, 4
        %v7631 = vsel %vm1818, %v7628, %v7630
        %v7632 = vrot.slane %v6858, 4
        %v7633 = vrot.slane %v6814, 4
        %v7634 = vsel %vm1818, %v7632, %v7633
        %v7635 = vrot.slane %v6866, 4
        %v7636 = vsel %vm1818, %v7633, %v7635
        %v7637 = vrot.slane %v6859, 4
        %v7638 = vrot.slane %v6817, 4
        %v7639 = vsel %vm1818, %v7637, %v7638
        %v7640 = vrot.slane %v6867, 4
        %v7641 = vsel %vm1818, %v7638, %v7640
        %v7642 = vrot.slane %v6860, 4
        %v7643 = vrot.slane %v6820, 4
        %v7644 = vsel %vm1818, %v7642, %v7643
        %v7645 = vrot.slane %v6868, 4
        %v7646 = vsel %vm1818, %v7643, %v7645
        %v7647 = vrot.slane %v6861, 4
        %v7648 = vrot.slane %v6823, 4
        %v7649 = vsel %vm1818, %v7647, %v7648
        %v7650 = vrot.slane %v6869, 4
        %v7651 = vsel %vm1818, %v7648, %v7650
        %v7652 = vrot.slane %v6862, 4
        %v7653 = vrot.slane %v6826, 4
        %v7654 = vsel %vm1818, %v7652, %v7653
        %v7655 = vrot.slane %v6870, 4
        %v7656 = vsel %vm1818, %v7653, %v7655
        %v7657 = vrot.slane %v6863, 4
        %v7658 = vrot.slane %v6829, 4
        %v7659 = vsel %vm1818, %v7657, %v7658
        %v7660 = vrot.slane %v6871, 4
        %v7661 = vsel %vm1818, %v7658, %v7660
        %v7662 = vrot.slane %v6864, 4
        %v7663 = vrot.slane %v6832, 4
        %v7664 = vsel %vm1818, %v7662, %v7663
        %v7665 = vrot.slane %v6872, 4
        %v7666 = vsel %vm1818, %v7663, %v7665
        %v7683 = vpack.c.bf16 %v7631, %v7629
        %v7684 = vpack.c.bf16 %v7636, %v7634
        %v7685 = vpack.c.bf16 %v7641, %v7639
        %v7686 = vpack.c.bf16 %v7646, %v7644
        %v7687 = vpack.c.bf16 %v7651, %v7649
        %v7688 = vpack.c.bf16 %v7656, %v7654
        %v7689 = vpack.c.bf16 %v7661, %v7659
        %v7690 = vpack.c.bf16 %v7666, %v7664
        %s7691 = scalar_lea.vmem %s8, 16
        %v7692 = vld [vmem:[%s7691] sm:$0xf]
        %v7694 = vsel %vm1649, %v7683, 0
        %v7697 = vsel %vm1649, %v7684, 0
        %v7700 = vsel %vm1649, %v7685, 0
        %v7703 = vsel %vm1649, %v7686, 0
        %v7706 = vsel %vm1649, %v7687, 0
        %v7709 = vsel %vm1649, %v7688, 0
        %v7712 = vsel %vm1649, %v7689, 0
        %v7715 = vsel %vm1649, %v7690, 0
        %v7718 = vsel %vm1818, %v7692, 0
        %7720 = vmatprep.subr.bf16.mxu0 0
        %7721 = vmatpush1.bf16.msra.mxu0 0
        %7722 = vmatprep.subr.bf16.mxu0 0
        %7723 = vmatpush1.bf16.msra.mxu0 0
        %7724 = vmatprep.subr.bf16.mxu0 0
        %7725 = vmatpush1.bf16.msra.mxu0 0
        %7726 = vmatprep.subr.bf16.mxu0 0
        %7727 = vmatpush1.bf16.msra.mxu0 0
        %7728 = vmatprep.subr.bf16.mxu0 0
        %7729 = vmatpush1.bf16.msra.mxu0 0
        %7730 = vmatprep.subr.bf16.mxu0 0
        %7731 = vmatpush1.bf16.msra.mxu0 0
        %7732 = vmatprep.subr.bf16.mxu0 0
        %7733 = vmatpush1.bf16.msra.mxu0 0
        %7734 = vmatprep.subr.bf16.mxu0 0
        %7735 = vmatpush1.bf16.msra.mxu0 %v7718
        %7736 = vmatprep.subr.bf16.mxu0 0
        %7737 = vmatpush2.bf16.msra.mxu0 0
        %7738 = vmatprep.subr.bf16.mxu0 0
        %7739 = vmatpush2.bf16.msra.mxu0 0
        %7740 = vmatprep.subr.bf16.mxu0 0
        %7741 = vmatpush2.bf16.msra.mxu0 0
        %7742 = vmatprep.subr.bf16.mxu0 0
        %7743 = vmatpush2.bf16.msra.mxu0 0
        %7744 = vmatprep.subr.bf16.mxu0 0
        %7745 = vmatpush2.bf16.msra.mxu0 0
        %7746 = vmatprep.subr.bf16.mxu0 0
        %7747 = vmatpush2.bf16.msra.mxu0 0
        %7748 = vmatprep.subr.bf16.mxu0 0
        %7749 = vmatpush2.bf16.msra.mxu0 0
        %7750 = vmatprep.subr.bf16.mxu0 0
        %7751 = vmatpush2.bf16.msra.mxu0 0
        %7752 = vmatprep.mubr.bf16.mxu0 0
        %7753 = vmatmul.mubr.bf16.gmra.mxu0 %v7694
        %v7754 = vpop.f32.mrf.mxu0
        %v7755 = vadd.f32 0.0, %v7754
        %v7756 = vpop.f32.mrf.mxu0
        %v7757 = vpop.f32.mrf.mxu0
        %v7758 = vadd.f32 0.0, %v7757
        %v7759 = vpop.f32.mrf.mxu0
        %7760 = vmatprep.mubr.bf16.mxu0 0
        %7761 = vmatmul.mubr.bf16.gmra.mxu0 %v7697
        %v7762 = vpop.f32.mrf.mxu0
        %v7763 = vadd.f32 0.0, %v7762
        %v7764 = vpop.f32.mrf.mxu0
        %v7765 = vpop.f32.mrf.mxu0
        %v7766 = vadd.f32 0.0, %v7765
        %v7767 = vpop.f32.mrf.mxu0
        %7768 = vmatprep.mubr.bf16.mxu0 0
        %7769 = vmatmul.mubr.bf16.gmra.mxu0 %v7700
        %v7770 = vpop.f32.mrf.mxu0
        %v7771 = vadd.f32 0.0, %v7770
        %v7772 = vpop.f32.mrf.mxu0
        %v7773 = vpop.f32.mrf.mxu0
        %v7774 = vadd.f32 0.0, %v7773
        %v7775 = vpop.f32.mrf.mxu0
        %7776 = vmatprep.mubr.bf16.mxu0 0
        %7777 = vmatmul.mubr.bf16.gmra.mxu0 %v7703
        %v7778 = vpop.f32.mrf.mxu0
        %v7779 = vadd.f32 0.0, %v7778
        %v7780 = vpop.f32.mrf.mxu0
        %v7781 = vpop.f32.mrf.mxu0
        %v7782 = vadd.f32 0.0, %v7781
        %v7783 = vpop.f32.mrf.mxu0
        %7784 = vmatprep.mubr.bf16.mxu0 0
        %7785 = vmatmul.mubr.bf16.gmra.mxu0 %v7706
        %v7786 = vpop.f32.mrf.mxu0
        %v7787 = vadd.f32 0.0, %v7786
        %v7788 = vpop.f32.mrf.mxu0
        %v7789 = vpop.f32.mrf.mxu0
        %v7790 = vadd.f32 0.0, %v7789
        %v7791 = vpop.f32.mrf.mxu0
        %7792 = vmatprep.mubr.bf16.mxu0 0
        %7793 = vmatmul.mubr.bf16.gmra.mxu0 %v7709
        %v7794 = vpop.f32.mrf.mxu0
        %v7795 = vadd.f32 0.0, %v7794
        %v7796 = vpop.f32.mrf.mxu0
        %v7797 = vpop.f32.mrf.mxu0
        %v7798 = vadd.f32 0.0, %v7797
        %v7799 = vpop.f32.mrf.mxu0
        %7800 = vmatprep.mubr.bf16.mxu0 0
        %7801 = vmatmul.mubr.bf16.gmra.mxu0 %v7712
        %v7802 = vpop.f32.mrf.mxu0
        %v7803 = vadd.f32 0.0, %v7802
        %v7804 = vpop.f32.mrf.mxu0
        %v7805 = vpop.f32.mrf.mxu0
        %v7806 = vadd.f32 0.0, %v7805
        %v7807 = vpop.f32.mrf.mxu0
        %7808 = vmatprep.mubr.bf16.mxu0 0
        %7809 = vmatmul.mubr.bf16.gmra.mxu0 %v7715
        %v7810 = vpop.f32.mrf.mxu0
        %v7811 = vadd.f32 0.0, %v7810
        %v7812 = vpop.f32.mrf.mxu0
        %v7813 = vpop.f32.mrf.mxu0
        %v7814 = vadd.f32 0.0, %v7813
        %v7815 = vpop.f32.mrf.mxu0
        %7816 = vdwg.mxu0
        %v7817 = vadd.f32 %v7611, %v7755
        %v7818 = vadd.f32 %v7612, %v7758
        %v7819 = vadd.f32 %v7613, %v7763
        %v7820 = vadd.f32 %v7614, %v7766
        %v7821 = vadd.f32 %v7615, %v7771
        %v7822 = vadd.f32 %v7616, %v7774
        %v7823 = vadd.f32 %v7617, %v7779
        %v7824 = vadd.f32 %v7618, %v7782
        %v7825 = vadd.f32 %v7619, %v7787
        %v7826 = vadd.f32 %v7620, %v7790
        %v7827 = vadd.f32 %v7621, %v7795
        %v7828 = vadd.f32 %v7622, %v7798
        %v7829 = vadd.f32 %v7623, %v7803
        %v7830 = vadd.f32 %v7624, %v7806
        %v7831 = vadd.f32 %v7625, %v7811
        %v7832 = vadd.f32 %v7626, %v7814
        %vm7833 = vcmask 1042432
        %v7834 = vrot.slane %v6857, 5
        %v7835 = vrot.slane %v6811, 5
        %v7836 = vsel %vm7833, %v7834, %v7835
        %v7837 = vrot.slane %v6865, 5
        %v7838 = vsel %vm7833, %v7835, %v7837
        %v7839 = vrot.slane %v6858, 5
        %v7840 = vrot.slane %v6814, 5
        %v7841 = vsel %vm7833, %v7839, %v7840
        %v7842 = vrot.slane %v6866, 5
        %v7843 = vsel %vm7833, %v7840, %v7842
        %v7844 = vrot.slane %v6859, 5
        %v7845 = vrot.slane %v6817, 5
        %v7846 = vsel %vm7833, %v7844, %v7845
        %v7847 = vrot.slane %v6867, 5
        %v7848 = vsel %vm7833, %v7845, %v7847
        %v7849 = vrot.slane %v6860, 5
        %v7850 = vrot.slane %v6820, 5
        %v7851 = vsel %vm7833, %v7849, %v7850
        %v7852 = vrot.slane %v6868, 5
        %v7853 = vsel %vm7833, %v7850, %v7852
        %v7854 = vrot.slane %v6861, 5
        %v7855 = vrot.slane %v6823, 5
        %v7856 = vsel %vm7833, %v7854, %v7855
        %v7857 = vrot.slane %v6869, 5
        %v7858 = vsel %vm7833, %v7855, %v7857
        %v7859 = vrot.slane %v6862, 5
        %v7860 = vrot.slane %v6826, 5
        %v7861 = vsel %vm7833, %v7859, %v7860
        %v7862 = vrot.slane %v6870, 5
        %v7863 = vsel %vm7833, %v7860, %v7862
        %v7864 = vrot.slane %v6863, 5
        %v7865 = vrot.slane %v6829, 5
        %v7866 = vsel %vm7833, %v7864, %v7865
        %v7867 = vrot.slane %v6871, 5
        %v7868 = vsel %vm7833, %v7865, %v7867
        %v7869 = vrot.slane %v6864, 5
        %v7870 = vrot.slane %v6832, 5
        %v7871 = vsel %vm7833, %v7869, %v7870
        %v7872 = vrot.slane %v6872, 5
        %v7873 = vsel %vm7833, %v7870, %v7872
        %v7890 = vpack.c.bf16 %v7838, %v7836
        %v7891 = vpack.c.bf16 %v7843, %v7841
        %v7892 = vpack.c.bf16 %v7848, %v7846
        %v7893 = vpack.c.bf16 %v7853, %v7851
        %v7894 = vpack.c.bf16 %v7858, %v7856
        %v7895 = vpack.c.bf16 %v7863, %v7861
        %v7896 = vpack.c.bf16 %v7868, %v7866
        %v7897 = vpack.c.bf16 %v7873, %v7871
        %s7898 = scalar_lea.vmem %s8, 20
        %v7899 = vld [vmem:[%s7898] sm:$0xf]
        %v7901 = vsel %vm1649, %v7890, 0
        %v7904 = vsel %vm1649, %v7891, 0
        %v7907 = vsel %vm1649, %v7892, 0
        %v7910 = vsel %vm1649, %v7893, 0
        %v7913 = vsel %vm1649, %v7894, 0
        %v7916 = vsel %vm1649, %v7895, 0
        %v7919 = vsel %vm1649, %v7896, 0
        %v7922 = vsel %vm1649, %v7897, 0
        %v7925 = vsel %vm1818, %v7899, 0
        %7927 = vmatprep.subr.bf16.mxu0 0
        %7928 = vmatpush1.bf16.msra.mxu0 0
        %7929 = vmatprep.subr.bf16.mxu0 0
        %7930 = vmatpush1.bf16.msra.mxu0 0
        %7931 = vmatprep.subr.bf16.mxu0 0
        %7932 = vmatpush1.bf16.msra.mxu0 0
        %7933 = vmatprep.subr.bf16.mxu0 0
        %7934 = vmatpush1.bf16.msra.mxu0 0
        %7935 = vmatprep.subr.bf16.mxu0 0
        %7936 = vmatpush1.bf16.msra.mxu0 0
        %7937 = vmatprep.subr.bf16.mxu0 0
        %7938 = vmatpush1.bf16.msra.mxu0 0
        %7939 = vmatprep.subr.bf16.mxu0 0
        %7940 = vmatpush1.bf16.msra.mxu0 0
        %7941 = vmatprep.subr.bf16.mxu0 0
        %7942 = vmatpush1.bf16.msra.mxu0 %v7925
        %7943 = vmatprep.subr.bf16.mxu0 0
        %7944 = vmatpush2.bf16.msra.mxu0 0
        %7945 = vmatprep.subr.bf16.mxu0 0
        %7946 = vmatpush2.bf16.msra.mxu0 0
        %7947 = vmatprep.subr.bf16.mxu0 0
        %7948 = vmatpush2.bf16.msra.mxu0 0
        %7949 = vmatprep.subr.bf16.mxu0 0
        %7950 = vmatpush2.bf16.msra.mxu0 0
        %7951 = vmatprep.subr.bf16.mxu0 0
        %7952 = vmatpush2.bf16.msra.mxu0 0
        %7953 = vmatprep.subr.bf16.mxu0 0
        %7954 = vmatpush2.bf16.msra.mxu0 0
        %7955 = vmatprep.subr.bf16.mxu0 0
        %7956 = vmatpush2.bf16.msra.mxu0 0
        %7957 = vmatprep.subr.bf16.mxu0 0
        %7958 = vmatpush2.bf16.msra.mxu0 0
        %7959 = vmatprep.mubr.bf16.mxu0 0
        %7960 = vmatmul.mubr.bf16.gmra.mxu0 %v7901
        %v7961 = vpop.f32.mrf.mxu0
        %v7962 = vadd.f32 0.0, %v7961
        %v7963 = vpop.f32.mrf.mxu0
        %v7964 = vpop.f32.mrf.mxu0
        %v7965 = vadd.f32 0.0, %v7964
        %v7966 = vpop.f32.mrf.mxu0
        %7967 = vmatprep.mubr.bf16.mxu0 0
        %7968 = vmatmul.mubr.bf16.gmra.mxu0 %v7904
        %v7969 = vpop.f32.mrf.mxu0
        %v7970 = vadd.f32 0.0, %v7969
        %v7971 = vpop.f32.mrf.mxu0
        %v7972 = vpop.f32.mrf.mxu0
        %v7973 = vadd.f32 0.0, %v7972
        %v7974 = vpop.f32.mrf.mxu0
        %7975 = vmatprep.mubr.bf16.mxu0 0
        %7976 = vmatmul.mubr.bf16.gmra.mxu0 %v7907
        %v7977 = vpop.f32.mrf.mxu0
        %v7978 = vadd.f32 0.0, %v7977
        %v7979 = vpop.f32.mrf.mxu0
        %v7980 = vpop.f32.mrf.mxu0
        %v7981 = vadd.f32 0.0, %v7980
        %v7982 = vpop.f32.mrf.mxu0
        %7983 = vmatprep.mubr.bf16.mxu0 0
        %7984 = vmatmul.mubr.bf16.gmra.mxu0 %v7910
        %v7985 = vpop.f32.mrf.mxu0
        %v7986 = vadd.f32 0.0, %v7985
        %v7987 = vpop.f32.mrf.mxu0
        %v7988 = vpop.f32.mrf.mxu0
        %v7989 = vadd.f32 0.0, %v7988
        %v7990 = vpop.f32.mrf.mxu0
        %7991 = vmatprep.mubr.bf16.mxu0 0
        %7992 = vmatmul.mubr.bf16.gmra.mxu0 %v7913
        %v7993 = vpop.f32.mrf.mxu0
        %v7994 = vadd.f32 0.0, %v7993
        %v7995 = vpop.f32.mrf.mxu0
        %v7996 = vpop.f32.mrf.mxu0
        %v7997 = vadd.f32 0.0, %v7996
        %v7998 = vpop.f32.mrf.mxu0
        %7999 = vmatprep.mubr.bf16.mxu0 0
        %8000 = vmatmul.mubr.bf16.gmra.mxu0 %v7916
        %v8001 = vpop.f32.mrf.mxu0
        %v8002 = vadd.f32 0.0, %v8001
        %v8003 = vpop.f32.mrf.mxu0
        %v8004 = vpop.f32.mrf.mxu0
        %v8005 = vadd.f32 0.0, %v8004
        %v8006 = vpop.f32.mrf.mxu0
        %8007 = vmatprep.mubr.bf16.mxu0 0
        %8008 = vmatmul.mubr.bf16.gmra.mxu0 %v7919
        %v8009 = vpop.f32.mrf.mxu0
        %v8010 = vadd.f32 0.0, %v8009
        %v8011 = vpop.f32.mrf.mxu0
        %v8012 = vpop.f32.mrf.mxu0
        %v8013 = vadd.f32 0.0, %v8012
        %v8014 = vpop.f32.mrf.mxu0
        %8015 = vmatprep.mubr.bf16.mxu0 0
        %8016 = vmatmul.mubr.bf16.gmra.mxu0 %v7922
        %v8017 = vpop.f32.mrf.mxu0
        %v8018 = vadd.f32 0.0, %v8017
        %v8019 = vpop.f32.mrf.mxu0
        %v8020 = vpop.f32.mrf.mxu0
        %v8021 = vadd.f32 0.0, %v8020
        %v8022 = vpop.f32.mrf.mxu0
        %8023 = vdwg.mxu0
        %v8024 = vadd.f32 %v7817, %v7962
        %v8025 = vadd.f32 %v7818, %v7965
        %v8026 = vadd.f32 %v7819, %v7970
        %v8027 = vadd.f32 %v7820, %v7973
        %v8028 = vadd.f32 %v7821, %v7978
        %v8029 = vadd.f32 %v7822, %v7981
        %v8030 = vadd.f32 %v7823, %v7986
        %v8031 = vadd.f32 %v7824, %v7989
        %v8032 = vadd.f32 %v7825, %v7994
        %v8033 = vadd.f32 %v7826, %v7997
        %v8034 = vadd.f32 %v7827, %v8002
        %v8035 = vadd.f32 %v7828, %v8005
        %v8036 = vadd.f32 %v7829, %v8010
        %v8037 = vadd.f32 %v7830, %v8013
        %v8038 = vadd.f32 %v7831, %v8018
        %v8039 = vadd.f32 %v7832, %v8021
        %v8040 = vrot.slane %v6857, 6
        %v8041 = vrot.slane %v6811, 6
        %v8042 = vsel %vm1339, %v8040, %v8041
        %v8043 = vrot.slane %v6865, 6
        %v8044 = vsel %vm1339, %v8041, %v8043
        %v8045 = vrot.slane %v6858, 6
        %v8046 = vrot.slane %v6814, 6
        %v8047 = vsel %vm1339, %v8045, %v8046
        %v8048 = vrot.slane %v6866, 6
        %v8049 = vsel %vm1339, %v8046, %v8048
        %v8050 = vrot.slane %v6859, 6
        %v8051 = vrot.slane %v6817, 6
        %v8052 = vsel %vm1339, %v8050, %v8051
        %v8053 = vrot.slane %v6867, 6
        %v8054 = vsel %vm1339, %v8051, %v8053
        %v8055 = vrot.slane %v6860, 6
        %v8056 = vrot.slane %v6820, 6
        %v8057 = vsel %vm1339, %v8055, %v8056
        %v8058 = vrot.slane %v6868, 6
        %v8059 = vsel %vm1339, %v8056, %v8058
        %v8060 = vrot.slane %v6861, 6
        %v8061 = vrot.slane %v6823, 6
        %v8062 = vsel %vm1339, %v8060, %v8061
        %v8063 = vrot.slane %v6869, 6
        %v8064 = vsel %vm1339, %v8061, %v8063
        %v8065 = vrot.slane %v6862, 6
        %v8066 = vrot.slane %v6826, 6
        %v8067 = vsel %vm1339, %v8065, %v8066
        %v8068 = vrot.slane %v6870, 6
        %v8069 = vsel %vm1339, %v8066, %v8068
        %v8070 = vrot.slane %v6863, 6
        %v8071 = vrot.slane %v6829, 6
        %v8072 = vsel %vm1339, %v8070, %v8071
        %v8073 = vrot.slane %v6871, 6
        %v8074 = vsel %vm1339, %v8071, %v8073
        %v8075 = vrot.slane %v6864, 6
        %v8076 = vrot.slane %v6832, 6
        %v8077 = vsel %vm1339, %v8075, %v8076
        %v8078 = vrot.slane %v6872, 6
        %v8079 = vsel %vm1339, %v8076, %v8078
        %v8096 = vpack.c.bf16 %v8044, %v8042
        %v8097 = vpack.c.bf16 %v8049, %v8047
        %v8098 = vpack.c.bf16 %v8054, %v8052
        %v8099 = vpack.c.bf16 %v8059, %v8057
        %v8100 = vpack.c.bf16 %v8064, %v8062
        %v8101 = vpack.c.bf16 %v8069, %v8067
        %v8102 = vpack.c.bf16 %v8074, %v8072
        %v8103 = vpack.c.bf16 %v8079, %v8077
        %s8104 = scalar_lea.vmem %s8, 24
        %v8105 = vld [vmem:[%s8104] sm:$0xf]
        %v8107 = vsel %vm1649, %v8096, 0
        %v8110 = vsel %vm1649, %v8097, 0
        %v8113 = vsel %vm1649, %v8098, 0
        %v8116 = vsel %vm1649, %v8099, 0
        %v8119 = vsel %vm1649, %v8100, 0
        %v8122 = vsel %vm1649, %v8101, 0
        %v8125 = vsel %vm1649, %v8102, 0
        %v8128 = vsel %vm1649, %v8103, 0
        %v8131 = vsel %vm1818, %v8105, 0
        %8133 = vmatprep.subr.bf16.mxu0 0
        %8134 = vmatpush1.bf16.msra.mxu0 0
        %8135 = vmatprep.subr.bf16.mxu0 0
        %8136 = vmatpush1.bf16.msra.mxu0 0
        %8137 = vmatprep.subr.bf16.mxu0 0
        %8138 = vmatpush1.bf16.msra.mxu0 0
        %8139 = vmatprep.subr.bf16.mxu0 0
        %8140 = vmatpush1.bf16.msra.mxu0 0
        %8141 = vmatprep.subr.bf16.mxu0 0
        %8142 = vmatpush1.bf16.msra.mxu0 0
        %8143 = vmatprep.subr.bf16.mxu0 0
        %8144 = vmatpush1.bf16.msra.mxu0 0
        %8145 = vmatprep.subr.bf16.mxu0 0
        %8146 = vmatpush1.bf16.msra.mxu0 0
        %8147 = vmatprep.subr.bf16.mxu0 0
        %8148 = vmatpush1.bf16.msra.mxu0 %v8131
        %8149 = vmatprep.subr.bf16.mxu0 0
        %8150 = vmatpush2.bf16.msra.mxu0 0
        %8151 = vmatprep.subr.bf16.mxu0 0
        %8152 = vmatpush2.bf16.msra.mxu0 0
        %8153 = vmatprep.subr.bf16.mxu0 0
        %8154 = vmatpush2.bf16.msra.mxu0 0
        %8155 = vmatprep.subr.bf16.mxu0 0
        %8156 = vmatpush2.bf16.msra.mxu0 0
        %8157 = vmatprep.subr.bf16.mxu0 0
        %8158 = vmatpush2.bf16.msra.mxu0 0
        %8159 = vmatprep.subr.bf16.mxu0 0
        %8160 = vmatpush2.bf16.msra.mxu0 0
        %8161 = vmatprep.subr.bf16.mxu0 0
        %8162 = vmatpush2.bf16.msra.mxu0 0
        %8163 = vmatprep.subr.bf16.mxu0 0
        %8164 = vmatpush2.bf16.msra.mxu0 0
        %8165 = vmatprep.mubr.bf16.mxu0 0
        %8166 = vmatmul.mubr.bf16.gmra.mxu0 %v8107
        %v8167 = vpop.f32.mrf.mxu0
        %v8168 = vadd.f32 0.0, %v8167
        %v8169 = vpop.f32.mrf.mxu0
        %v8170 = vpop.f32.mrf.mxu0
        %v8171 = vadd.f32 0.0, %v8170
        %v8172 = vpop.f32.mrf.mxu0
        %8173 = vmatprep.mubr.bf16.mxu0 0
        %8174 = vmatmul.mubr.bf16.gmra.mxu0 %v8110
        %v8175 = vpop.f32.mrf.mxu0
        %v8176 = vadd.f32 0.0, %v8175
        %v8177 = vpop.f32.mrf.mxu0
        %v8178 = vpop.f32.mrf.mxu0
        %v8179 = vadd.f32 0.0, %v8178
        %v8180 = vpop.f32.mrf.mxu0
        %8181 = vmatprep.mubr.bf16.mxu0 0
        %8182 = vmatmul.mubr.bf16.gmra.mxu0 %v8113
        %v8183 = vpop.f32.mrf.mxu0
        %v8184 = vadd.f32 0.0, %v8183
        %v8185 = vpop.f32.mrf.mxu0
        %v8186 = vpop.f32.mrf.mxu0
        %v8187 = vadd.f32 0.0, %v8186
        %v8188 = vpop.f32.mrf.mxu0
        %8189 = vmatprep.mubr.bf16.mxu0 0
        %8190 = vmatmul.mubr.bf16.gmra.mxu0 %v8116
        %v8191 = vpop.f32.mrf.mxu0
        %v8192 = vadd.f32 0.0, %v8191
        %v8193 = vpop.f32.mrf.mxu0
        %v8194 = vpop.f32.mrf.mxu0
        %v8195 = vadd.f32 0.0, %v8194
        %v8196 = vpop.f32.mrf.mxu0
        %8197 = vmatprep.mubr.bf16.mxu0 0
        %8198 = vmatmul.mubr.bf16.gmra.mxu0 %v8119
        %v8199 = vpop.f32.mrf.mxu0
        %v8200 = vadd.f32 0.0, %v8199
        %v8201 = vpop.f32.mrf.mxu0
        %v8202 = vpop.f32.mrf.mxu0
        %v8203 = vadd.f32 0.0, %v8202
        %v8204 = vpop.f32.mrf.mxu0
        %8205 = vmatprep.mubr.bf16.mxu0 0
        %8206 = vmatmul.mubr.bf16.gmra.mxu0 %v8122
        %v8207 = vpop.f32.mrf.mxu0
        %v8208 = vadd.f32 0.0, %v8207
        %v8209 = vpop.f32.mrf.mxu0
        %v8210 = vpop.f32.mrf.mxu0
        %v8211 = vadd.f32 0.0, %v8210
        %v8212 = vpop.f32.mrf.mxu0
        %8213 = vmatprep.mubr.bf16.mxu0 0
        %8214 = vmatmul.mubr.bf16.gmra.mxu0 %v8125
        %v8215 = vpop.f32.mrf.mxu0
        %v8216 = vadd.f32 0.0, %v8215
        %v8217 = vpop.f32.mrf.mxu0
        %v8218 = vpop.f32.mrf.mxu0
        %v8219 = vadd.f32 0.0, %v8218
        %v8220 = vpop.f32.mrf.mxu0
        %8221 = vmatprep.mubr.bf16.mxu0 0
        %8222 = vmatmul.mubr.bf16.gmra.mxu0 %v8128
        %v8223 = vpop.f32.mrf.mxu0
        %v8224 = vadd.f32 0.0, %v8223
        %v8225 = vpop.f32.mrf.mxu0
        %v8226 = vpop.f32.mrf.mxu0
        %v8227 = vadd.f32 0.0, %v8226
        %v8228 = vpop.f32.mrf.mxu0
        %8229 = vdwg.mxu0
        %v8230 = vadd.f32 %v8024, %v8168
        %v8231 = vadd.f32 %v8025, %v8171
        %v8232 = vadd.f32 %v8026, %v8176
        %v8233 = vadd.f32 %v8027, %v8179
        %v8234 = vadd.f32 %v8028, %v8184
        %v8235 = vadd.f32 %v8029, %v8187
        %v8236 = vadd.f32 %v8030, %v8192
        %v8237 = vadd.f32 %v8031, %v8195
        %v8238 = vadd.f32 %v8032, %v8200
        %v8239 = vadd.f32 %v8033, %v8203
        %v8240 = vadd.f32 %v8034, %v8208
        %v8241 = vadd.f32 %v8035, %v8211
        %v8242 = vadd.f32 %v8036, %v8216
        %v8243 = vadd.f32 %v8037, %v8219
        %v8244 = vadd.f32 %v8038, %v8224
        %v8245 = vadd.f32 %v8039, %v8227
        %vm8246 = vcmask 1040384
        %v8247 = vrot.slane %v6857, 7
        %v8248 = vrot.slane %v6811, 7
        %v8249 = vsel %vm8246, %v8247, %v8248
        %v8250 = vrot.slane %v6865, 7
        %v8251 = vsel %vm8246, %v8248, %v8250
        %v8252 = vrot.slane %v6858, 7
        %v8253 = vrot.slane %v6814, 7
        %v8254 = vsel %vm8246, %v8252, %v8253
        %v8255 = vrot.slane %v6866, 7
        %v8256 = vsel %vm8246, %v8253, %v8255
        %v8257 = vrot.slane %v6859, 7
        %v8258 = vrot.slane %v6817, 7
        %v8259 = vsel %vm8246, %v8257, %v8258
        %v8260 = vrot.slane %v6867, 7
        %v8261 = vsel %vm8246, %v8258, %v8260
        %v8262 = vrot.slane %v6860, 7
        %v8263 = vrot.slane %v6820, 7
        %v8264 = vsel %vm8246, %v8262, %v8263
        %v8265 = vrot.slane %v6868, 7
        %v8266 = vsel %vm8246, %v8263, %v8265
        %v8267 = vrot.slane %v6861, 7
        %v8268 = vrot.slane %v6823, 7
        %v8269 = vsel %vm8246, %v8267, %v8268
        %v8270 = vrot.slane %v6869, 7
        %v8271 = vsel %vm8246, %v8268, %v8270
        %v8272 = vrot.slane %v6862, 7
        %v8273 = vrot.slane %v6826, 7
        %v8274 = vsel %vm8246, %v8272, %v8273
        %v8275 = vrot.slane %v6870, 7
        %v8276 = vsel %vm8246, %v8273, %v8275
        %v8277 = vrot.slane %v6863, 7
        %v8278 = vrot.slane %v6829, 7
        %v8279 = vsel %vm8246, %v8277, %v8278
        %v8280 = vrot.slane %v6871, 7
        %v8281 = vsel %vm8246, %v8278, %v8280
        %v8282 = vrot.slane %v6864, 7
        %v8283 = vrot.slane %v6832, 7
        %v8284 = vsel %vm8246, %v8282, %v8283
        %v8285 = vrot.slane %v6872, 7
        %v8286 = vsel %vm8246, %v8283, %v8285
        %v8303 = vpack.c.bf16 %v8251, %v8249
        %v8304 = vpack.c.bf16 %v8256, %v8254
        %v8305 = vpack.c.bf16 %v8261, %v8259
        %v8306 = vpack.c.bf16 %v8266, %v8264
        %v8307 = vpack.c.bf16 %v8271, %v8269
        %v8308 = vpack.c.bf16 %v8276, %v8274
        %v8309 = vpack.c.bf16 %v8281, %v8279
        %v8310 = vpack.c.bf16 %v8286, %v8284
        %s8311 = scalar_lea.vmem %s8, 28
        %v8312 = vld [vmem:[%s8311] sm:$0xf]
        %v8314 = vsel %vm1649, %v8303, 0
        %v8317 = vsel %vm1649, %v8304, 0
        %v8320 = vsel %vm1649, %v8305, 0
        %v8323 = vsel %vm1649, %v8306, 0
        %v8326 = vsel %vm1649, %v8307, 0
        %v8329 = vsel %vm1649, %v8308, 0
        %v8332 = vsel %vm1649, %v8309, 0
        %v8335 = vsel %vm1649, %v8310, 0
        %v8338 = vsel %vm1818, %v8312, 0
        %8340 = vmatprep.subr.bf16.mxu0 0
        %8341 = vmatpush1.bf16.msra.mxu0 0
        %8342 = vmatprep.subr.bf16.mxu0 0
        %8343 = vmatpush1.bf16.msra.mxu0 0
        %8344 = vmatprep.subr.bf16.mxu0 0
        %8345 = vmatpush1.bf16.msra.mxu0 0
        %8346 = vmatprep.subr.bf16.mxu0 0
        %8347 = vmatpush1.bf16.msra.mxu0 0
        %8348 = vmatprep.subr.bf16.mxu0 0
        %8349 = vmatpush1.bf16.msra.mxu0 0
        %8350 = vmatprep.subr.bf16.mxu0 0
        %8351 = vmatpush1.bf16.msra.mxu0 0
        %8352 = vmatprep.subr.bf16.mxu0 0
        %8353 = vmatpush1.bf16.msra.mxu0 0
        %8354 = vmatprep.subr.bf16.mxu0 0
        %8355 = vmatpush1.bf16.msra.mxu0 %v8338
        %8356 = vmatprep.subr.bf16.mxu0 0
        %8357 = vmatpush2.bf16.msra.mxu0 0
        %8358 = vmatprep.subr.bf16.mxu0 0
        %8359 = vmatpush2.bf16.msra.mxu0 0
        %8360 = vmatprep.subr.bf16.mxu0 0
        %8361 = vmatpush2.bf16.msra.mxu0 0
        %8362 = vmatprep.subr.bf16.mxu0 0
        %8363 = vmatpush2.bf16.msra.mxu0 0
        %8364 = vmatprep.subr.bf16.mxu0 0
        %8365 = vmatpush2.bf16.msra.mxu0 0
        %8366 = vmatprep.subr.bf16.mxu0 0
        %8367 = vmatpush2.bf16.msra.mxu0 0
        %8368 = vmatprep.subr.bf16.mxu0 0
        %8369 = vmatpush2.bf16.msra.mxu0 0
        %8370 = vmatprep.subr.bf16.mxu0 0
        %8371 = vmatpush2.bf16.msra.mxu0 0
        %8372 = vmatprep.mubr.bf16.mxu0 0
        %8373 = vmatmul.mubr.bf16.gmra.mxu0 %v8314
        %v8374 = vpop.f32.mrf.mxu0
        %v8375 = vadd.f32 0.0, %v8374
        %v8376 = vpop.f32.mrf.mxu0
        %v8377 = vpop.f32.mrf.mxu0
        %v8378 = vadd.f32 0.0, %v8377
        %v8379 = vpop.f32.mrf.mxu0
        %8380 = vmatprep.mubr.bf16.mxu0 0
        %8381 = vmatmul.mubr.bf16.gmra.mxu0 %v8317
        %v8382 = vpop.f32.mrf.mxu0
        %v8383 = vadd.f32 0.0, %v8382
        %v8384 = vpop.f32.mrf.mxu0
        %v8385 = vpop.f32.mrf.mxu0
        %v8386 = vadd.f32 0.0, %v8385
        %v8387 = vpop.f32.mrf.mxu0
        %8388 = vmatprep.mubr.bf16.mxu0 0
        %8389 = vmatmul.mubr.bf16.gmra.mxu0 %v8320
        %v8390 = vpop.f32.mrf.mxu0
        %v8391 = vadd.f32 0.0, %v8390
        %v8392 = vpop.f32.mrf.mxu0
        %v8393 = vpop.f32.mrf.mxu0
        %v8394 = vadd.f32 0.0, %v8393
        %v8395 = vpop.f32.mrf.mxu0
        %8396 = vmatprep.mubr.bf16.mxu0 0
        %8397 = vmatmul.mubr.bf16.gmra.mxu0 %v8323
        %v8398 = vpop.f32.mrf.mxu0
        %v8399 = vadd.f32 0.0, %v8398
        %v8400 = vpop.f32.mrf.mxu0
        %v8401 = vpop.f32.mrf.mxu0
        %v8402 = vadd.f32 0.0, %v8401
        %v8403 = vpop.f32.mrf.mxu0
        %8404 = vmatprep.mubr.bf16.mxu0 0
        %8405 = vmatmul.mubr.bf16.gmra.mxu0 %v8326
        %v8406 = vpop.f32.mrf.mxu0
        %v8407 = vadd.f32 0.0, %v8406
        %v8408 = vpop.f32.mrf.mxu0
        %v8409 = vpop.f32.mrf.mxu0
        %v8410 = vadd.f32 0.0, %v8409
        %v8411 = vpop.f32.mrf.mxu0
        %8412 = vmatprep.mubr.bf16.mxu0 0
        %8413 = vmatmul.mubr.bf16.gmra.mxu0 %v8329
        %v8414 = vpop.f32.mrf.mxu0
        %v8415 = vadd.f32 0.0, %v8414
        %v8416 = vpop.f32.mrf.mxu0
        %v8417 = vpop.f32.mrf.mxu0
        %v8418 = vadd.f32 0.0, %v8417
        %v8419 = vpop.f32.mrf.mxu0
        %8420 = vmatprep.mubr.bf16.mxu0 0
        %8421 = vmatmul.mubr.bf16.gmra.mxu0 %v8332
        %v8422 = vpop.f32.mrf.mxu0
        %v8423 = vadd.f32 0.0, %v8422
        %v8424 = vpop.f32.mrf.mxu0
        %v8425 = vpop.f32.mrf.mxu0
        %v8426 = vadd.f32 0.0, %v8425
        %v8427 = vpop.f32.mrf.mxu0
        %8428 = vmatprep.mubr.bf16.mxu0 0
        %8429 = vmatmul.mubr.bf16.gmra.mxu0 %v8335
        %v8430 = vpop.f32.mrf.mxu0
        %v8431 = vadd.f32 0.0, %v8430
        %v8432 = vpop.f32.mrf.mxu0
        %v8433 = vpop.f32.mrf.mxu0
        %v8434 = vadd.f32 0.0, %v8433
        %v8435 = vpop.f32.mrf.mxu0
        %8436 = vdwg.mxu0
        %v8437 = vadd.f32 %v8230, %v8375
        %v8438 = vadd.f32 %v8231, %v8378
        %v8439 = vadd.f32 %v8232, %v8383
        %v8440 = vadd.f32 %v8233, %v8386
        %v8441 = vadd.f32 %v8234, %v8391
        %v8442 = vadd.f32 %v8235, %v8394
        %v8443 = vadd.f32 %v8236, %v8399
        %v8444 = vadd.f32 %v8237, %v8402
        %v8445 = vadd.f32 %v8238, %v8407
        %v8446 = vadd.f32 %v8239, %v8410
        %v8447 = vadd.f32 %v8240, %v8415
        %v8448 = vadd.f32 %v8241, %v8418
        %v8449 = vadd.f32 %v8242, %v8423
        %v8450 = vadd.f32 %v8243, %v8426
        %v8451 = vadd.f32 %v8244, %v8431
        %v8452 = vadd.f32 %v8245, %v8434
        %v8453 = vpack.c.bf16 %v6865, %v6811
        %v8454 = vpack.c.bf16 %v6866, %v6814
        %v8455 = vpack.c.bf16 %v6867, %v6817
        %v8456 = vpack.c.bf16 %v6868, %v6820
        %v8457 = vpack.c.bf16 %v6869, %v6823
        %v8458 = vpack.c.bf16 %v6870, %v6826
        %v8459 = vpack.c.bf16 %v6871, %v6829
        %v8460 = vpack.c.bf16 %v6872, %v6832
        %s8461 = scalar_lea.vmem %s8, 32
        %v8462 = vld [vmem:[%s8461] sm:$0xf]
        %v8464 = vsel %vm1649, %v8453, 0
        %v8467 = vsel %vm1649, %v8454, 0
        %v8470 = vsel %vm1649, %v8455, 0
        %v8473 = vsel %vm1649, %v8456, 0
        %v8476 = vsel %vm1649, %v8457, 0
        %v8479 = vsel %vm1649, %v8458, 0
        %v8482 = vsel %vm1649, %v8459, 0
        %v8485 = vsel %vm1649, %v8460, 0
        %v8488 = vsel %vm1818, %v8462, 0
        %8490 = vmatprep.subr.bf16.mxu0 0
        %8491 = vmatpush1.bf16.msra.mxu0 0
        %8492 = vmatprep.subr.bf16.mxu0 0
        %8493 = vmatpush1.bf16.msra.mxu0 0
        %8494 = vmatprep.subr.bf16.mxu0 0
        %8495 = vmatpush1.bf16.msra.mxu0 0
        %8496 = vmatprep.subr.bf16.mxu0 0
        %8497 = vmatpush1.bf16.msra.mxu0 0
        %8498 = vmatprep.subr.bf16.mxu0 0
        %8499 = vmatpush1.bf16.msra.mxu0 0
        %8500 = vmatprep.subr.bf16.mxu0 0
        %8501 = vmatpush1.bf16.msra.mxu0 0
        %8502 = vmatprep.subr.bf16.mxu0 0
        %8503 = vmatpush1.bf16.msra.mxu0 0
        %8504 = vmatprep.subr.bf16.mxu0 0
        %8505 = vmatpush1.bf16.msra.mxu0 %v8488
        %8506 = vmatprep.subr.bf16.mxu0 0
        %8507 = vmatpush2.bf16.msra.mxu0 0
        %8508 = vmatprep.subr.bf16.mxu0 0
        %8509 = vmatpush2.bf16.msra.mxu0 0
        %8510 = vmatprep.subr.bf16.mxu0 0
        %8511 = vmatpush2.bf16.msra.mxu0 0
        %8512 = vmatprep.subr.bf16.mxu0 0
        %8513 = vmatpush2.bf16.msra.mxu0 0
        %8514 = vmatprep.subr.bf16.mxu0 0
        %8515 = vmatpush2.bf16.msra.mxu0 0
        %8516 = vmatprep.subr.bf16.mxu0 0
        %8517 = vmatpush2.bf16.msra.mxu0 0
        %8518 = vmatprep.subr.bf16.mxu0 0
        %8519 = vmatpush2.bf16.msra.mxu0 0
        %8520 = vmatprep.subr.bf16.mxu0 0
        %8521 = vmatpush2.bf16.msra.mxu0 0
        %8522 = vmatprep.mubr.bf16.mxu0 0
        %8523 = vmatmul.mubr.bf16.gmra.mxu0 %v8464
        %v8524 = vpop.f32.mrf.mxu0
        %v8525 = vadd.f32 0.0, %v8524
        %v8526 = vpop.f32.mrf.mxu0
        %v8527 = vpop.f32.mrf.mxu0
        %v8528 = vadd.f32 0.0, %v8527
        %v8529 = vpop.f32.mrf.mxu0
        %8530 = vmatprep.mubr.bf16.mxu0 0
        %8531 = vmatmul.mubr.bf16.gmra.mxu0 %v8467
        %v8532 = vpop.f32.mrf.mxu0
        %v8533 = vadd.f32 0.0, %v8532
        %v8534 = vpop.f32.mrf.mxu0
        %v8535 = vpop.f32.mrf.mxu0
        %v8536 = vadd.f32 0.0, %v8535
        %v8537 = vpop.f32.mrf.mxu0
        %8538 = vmatprep.mubr.bf16.mxu0 0
        %8539 = vmatmul.mubr.bf16.gmra.mxu0 %v8470
        %v8540 = vpop.f32.mrf.mxu0
        %v8541 = vadd.f32 0.0, %v8540
        %v8542 = vpop.f32.mrf.mxu0
        %v8543 = vpop.f32.mrf.mxu0
        %v8544 = vadd.f32 0.0, %v8543
        %v8545 = vpop.f32.mrf.mxu0
        %8546 = vmatprep.mubr.bf16.mxu0 0
        %8547 = vmatmul.mubr.bf16.gmra.mxu0 %v8473
        %v8548 = vpop.f32.mrf.mxu0
        %v8549 = vadd.f32 0.0, %v8548
        %v8550 = vpop.f32.mrf.mxu0
        %v8551 = vpop.f32.mrf.mxu0
        %v8552 = vadd.f32 0.0, %v8551
        %v8553 = vpop.f32.mrf.mxu0
        %8554 = vmatprep.mubr.bf16.mxu0 0
        %8555 = vmatmul.mubr.bf16.gmra.mxu0 %v8476
        %v8556 = vpop.f32.mrf.mxu0
        %v8557 = vadd.f32 0.0, %v8556
        %v8558 = vpop.f32.mrf.mxu0
        %v8559 = vpop.f32.mrf.mxu0
        %v8560 = vadd.f32 0.0, %v8559
        %v8561 = vpop.f32.mrf.mxu0
        %8562 = vmatprep.mubr.bf16.mxu0 0
        %8563 = vmatmul.mubr.bf16.gmra.mxu0 %v8479
        %v8564 = vpop.f32.mrf.mxu0
        %v8565 = vadd.f32 0.0, %v8564
        %v8566 = vpop.f32.mrf.mxu0
        %v8567 = vpop.f32.mrf.mxu0
        %v8568 = vadd.f32 0.0, %v8567
        %v8569 = vpop.f32.mrf.mxu0
        %8570 = vmatprep.mubr.bf16.mxu0 0
        %8571 = vmatmul.mubr.bf16.gmra.mxu0 %v8482
        %v8572 = vpop.f32.mrf.mxu0
        %v8573 = vadd.f32 0.0, %v8572
        %v8574 = vpop.f32.mrf.mxu0
        %v8575 = vpop.f32.mrf.mxu0
        %v8576 = vadd.f32 0.0, %v8575
        %v8577 = vpop.f32.mrf.mxu0
        %8578 = vmatprep.mubr.bf16.mxu0 0
        %8579 = vmatmul.mubr.bf16.gmra.mxu0 %v8485
        %v8580 = vpop.f32.mrf.mxu0
        %v8581 = vadd.f32 0.0, %v8580
        %v8582 = vpop.f32.mrf.mxu0
        %v8583 = vpop.f32.mrf.mxu0
        %v8584 = vadd.f32 0.0, %v8583
        %v8585 = vpop.f32.mrf.mxu0
        %8586 = vdwg.mxu0
        %v8587 = vadd.f32 %v8437, %v8525
        %v8588 = vadd.f32 %v8438, %v8528
        %v8589 = vadd.f32 %v8439, %v8533
        %v8590 = vadd.f32 %v8440, %v8536
        %v8591 = vadd.f32 %v8441, %v8541
        %v8592 = vadd.f32 %v8442, %v8544
        %v8593 = vadd.f32 %v8443, %v8549
        %v8594 = vadd.f32 %v8444, %v8552
        %v8595 = vadd.f32 %v8445, %v8557
        %v8596 = vadd.f32 %v8446, %v8560
        %v8597 = vadd.f32 %v8447, %v8565
        %v8598 = vadd.f32 %v8448, %v8568
        %v8599 = vadd.f32 %v8449, %v8573
        %v8600 = vadd.f32 %v8450, %v8576
        %v8601 = vadd.f32 %v8451, %v8581
        %v8602 = vadd.f32 %v8452, %v8584
        %v8603 = vld [vmem:[%s9] sm:$0x1]
        %v8605 = vlaneseq
        %v8606 = vshrl.u32 %v8605, 7
        %v8607 = vsub.s32 0, %v8606
        %v8608 = vrot.slane %v8603, %v8607
        %v8610 = vadd.f32 %v8587, %v8608
        %v8611 = vadd.f32 %v8588, %v8608
        %v8612 = vadd.f32 %v8589, %v8608
        %v8613 = vadd.f32 %v8590, %v8608
        %v8614 = vadd.f32 %v8591, %v8608
        %v8615 = vadd.f32 %v8592, %v8608
        %v8616 = vadd.f32 %v8593, %v8608
        %v8617 = vadd.f32 %v8594, %v8608
        %v8618 = vadd.f32 %v8595, %v8608
        %v8619 = vadd.f32 %v8596, %v8608
        %v8620 = vadd.f32 %v8597, %v8608
        %v8621 = vadd.f32 %v8598, %v8608
        %v8622 = vadd.f32 %v8599, %v8608
        %v8623 = vadd.f32 %v8600, %v8608
        %v8624 = vadd.f32 %v8601, %v8608
        %v8625 = vadd.f32 %v8602, %v8608
        %v8626 = vmax.f32 %v8610, 0.0
        %v8627 = vmax.f32 %v8611, 0.0
        %v8628 = vmax.f32 %v8612, 0.0
        %v8629 = vmax.f32 %v8613, 0.0
        %v8630 = vmax.f32 %v8614, 0.0
        %v8631 = vmax.f32 %v8615, 0.0
        %v8632 = vmax.f32 %v8616, 0.0
        %v8633 = vmax.f32 %v8617, 0.0
        %v8634 = vmax.f32 %v8618, 0.0
        %v8635 = vmax.f32 %v8619, 0.0
        %v8636 = vmax.f32 %v8620, 0.0
        %v8637 = vmax.f32 %v8621, 0.0
        %v8638 = vmax.f32 %v8622, 0.0
        %v8639 = vmax.f32 %v8623, 0.0
        %v8640 = vmax.f32 %v8624, 0.0
        %v8641 = vmax.f32 %v8625, 0.0
        %v8642 = vadd.f32 %v8626, %v1378
        %v8643 = vadd.f32 %v8627, %v1381
        %v8644 = vadd.f32 %v8628, %v1386
        %v8645 = vadd.f32 %v8629, %v1389
        %v8646 = vadd.f32 %v8630, %v1394
        %v8647 = vadd.f32 %v8631, %v1397
        %v8648 = vadd.f32 %v8632, %v1402
        %v8649 = vadd.f32 %v8633, %v1405
        %v8650 = vadd.f32 %v8634, %v1410
        %v8651 = vadd.f32 %v8635, %v1413
        %v8652 = vadd.f32 %v8636, %v1418
        %v8653 = vadd.f32 %v8637, %v1421
        %v8654 = vadd.f32 %v8638, %v1426
        %v8655 = vadd.f32 %v8639, %v1429
        %v8656 = vadd.f32 %v8640, %v1434
        %v8657 = vadd.f32 %v8641, %v1437
        %v8666 = vrot.slane %v8642, 1
        %v8667 = vrot.slane %v8644, 1
        %v8668 = vrot.slane %v8646, 1
        %v8669 = vrot.slane %v8648, 1
        %v8670 = vrot.slane %v8650, 1
        %v8671 = vrot.slane %v8652, 1
        %v8672 = vrot.slane %v8654, 1
        %v8673 = vrot.slane %v8656, 1
        %v8674 = vrot.slane %v8642, 2
        %v8675 = vrot.slane %v8644, 2
        %v8676 = vrot.slane %v8646, 2
        %v8677 = vrot.slane %v8648, 2
        %v8678 = vrot.slane %v8650, 2
        %v8679 = vrot.slane %v8652, 2
        %v8680 = vrot.slane %v8654, 2
        %v8681 = vrot.slane %v8656, 2
        %v8682 = vrot.slane %v8642, 3
        %v8683 = vrot.slane %v8644, 3
        %v8684 = vrot.slane %v8646, 3
        %v8685 = vrot.slane %v8648, 3
        %v8686 = vrot.slane %v8650, 3
        %v8687 = vrot.slane %v8652, 3
        %v8688 = vrot.slane %v8654, 3
        %v8689 = vrot.slane %v8656, 3
        %v8690 = vrot.slane %v8642, 4
        %v8691 = vrot.slane %v8644, 4
        %v8692 = vrot.slane %v8646, 4
        %v8693 = vrot.slane %v8648, 4
        %v8694 = vrot.slane %v8650, 4
        %v8695 = vrot.slane %v8652, 4
        %v8696 = vrot.slane %v8654, 4
        %v8697 = vrot.slane %v8656, 4
        %v8698 = vrot.slane %v8642, 5
        %v8699 = vrot.slane %v8644, 5
        %v8700 = vrot.slane %v8646, 5
        %v8701 = vrot.slane %v8648, 5
        %v8702 = vrot.slane %v8650, 5
        %v8703 = vrot.slane %v8652, 5
        %v8704 = vrot.slane %v8654, 5
        %v8705 = vrot.slane %v8656, 5
        %v8706 = vrot.slane %v8642, 6
        %v8707 = vrot.slane %v8644, 6
        %v8708 = vrot.slane %v8646, 6
        %v8709 = vrot.slane %v8648, 6
        %v8710 = vrot.slane %v8650, 6
        %v8711 = vrot.slane %v8652, 6
        %v8712 = vrot.slane %v8654, 6
        %v8713 = vrot.slane %v8656, 6
        %v8714 = vrot.slane %v8642, 7
        %v8715 = vrot.slane %v8644, 7
        %v8716 = vrot.slane %v8646, 7
        %v8717 = vrot.slane %v8648, 7
        %v8718 = vrot.slane %v8650, 7
        %v8719 = vrot.slane %v8652, 7
        %v8720 = vrot.slane %v8654, 7
        %v8721 = vrot.slane %v8656, 7
        %v8730 = vrot.slane %v8643, 1
        %v8731 = vrot.slane %v8645, 1
        %v8732 = vrot.slane %v8647, 1
        %v8733 = vrot.slane %v8649, 1
        %v8734 = vrot.slane %v8651, 1
        %v8735 = vrot.slane %v8653, 1
        %v8736 = vrot.slane %v8655, 1
        %v8737 = vrot.slane %v8657, 1
        %v8738 = vrot.slane %v8643, 2
        %v8739 = vrot.slane %v8645, 2
        %v8740 = vrot.slane %v8647, 2
        %v8741 = vrot.slane %v8649, 2
        %v8742 = vrot.slane %v8651, 2
        %v8743 = vrot.slane %v8653, 2
        %v8744 = vrot.slane %v8655, 2
        %v8745 = vrot.slane %v8657, 2
        %v8746 = vrot.slane %v8643, 3
        %v8747 = vrot.slane %v8645, 3
        %v8748 = vrot.slane %v8647, 3
        %v8749 = vrot.slane %v8649, 3
        %v8750 = vrot.slane %v8651, 3
        %v8751 = vrot.slane %v8653, 3
        %v8752 = vrot.slane %v8655, 3
        %v8753 = vrot.slane %v8657, 3
        %v8754 = vrot.slane %v8643, 4
        %v8755 = vrot.slane %v8645, 4
        %v8756 = vrot.slane %v8647, 4
        %v8757 = vrot.slane %v8649, 4
        %v8758 = vrot.slane %v8651, 4
        %v8759 = vrot.slane %v8653, 4
        %v8760 = vrot.slane %v8655, 4
        %v8761 = vrot.slane %v8657, 4
        %v8762 = vrot.slane %v8643, 5
        %v8763 = vrot.slane %v8645, 5
        %v8764 = vrot.slane %v8647, 5
        %v8765 = vrot.slane %v8649, 5
        %v8766 = vrot.slane %v8651, 5
        %v8767 = vrot.slane %v8653, 5
        %v8768 = vrot.slane %v8655, 5
        %v8769 = vrot.slane %v8657, 5
        %v8770 = vrot.slane %v8643, 6
        %v8771 = vrot.slane %v8645, 6
        %v8772 = vrot.slane %v8647, 6
        %v8773 = vrot.slane %v8649, 6
        %v8774 = vrot.slane %v8651, 6
        %v8775 = vrot.slane %v8653, 6
        %v8776 = vrot.slane %v8655, 6
        %v8777 = vrot.slane %v8657, 6
        %v8778 = vrot.slane %v8643, 7
        %v8779 = vrot.slane %v8645, 7
        %v8780 = vrot.slane %v8647, 7
        %v8781 = vrot.slane %v8649, 7
        %v8782 = vrot.slane %v8651, 7
        %v8783 = vrot.slane %v8653, 7
        %v8784 = vrot.slane %v8655, 7
        %v8785 = vrot.slane %v8657, 7
        %v8786 = vsel %vm1076, %v8715, %v8642
        %v8787 = vsel %vm1079, %v8708, %v8786
        %v8788 = vsel %vm1082, %v8701, %v8787
        %v8789 = vsel %vm1085, %v8694, %v8788
        %v8790 = vsel %vm1088, %v8687, %v8789
        %v8791 = vsel %vm1091, %v8680, %v8790
        %v8792 = vsel %vm1094, %v8673, %v8791
        %v8793 = vrot.slane %v8667, 7
        %v8794 = vsel %vm1076, %v8793, %v8666
        %v8795 = vrot.slane %v8668, 6
        %v8796 = vsel %vm1079, %v8795, %v8794
        %v8797 = vrot.slane %v8669, 5
        %v8798 = vsel %vm1082, %v8797, %v8796
        %v8799 = vrot.slane %v8670, 4
        %v8800 = vsel %vm1085, %v8799, %v8798
        %v8801 = vrot.slane %v8671, 3
        %v8802 = vsel %vm1088, %v8801, %v8800
        %v8803 = vrot.slane %v8672, 2
        %v8804 = vsel %vm1091, %v8803, %v8802
        %v8805 = vrot.slane %v8673, 1
        %v8806 = vsel %vm1094, %v8805, %v8804
        %v8807 = vrot.slane %v8675, 7
        %v8808 = vsel %vm1076, %v8807, %v8674
        %v8809 = vrot.slane %v8676, 6
        %v8810 = vsel %vm1079, %v8809, %v8808
        %v8811 = vrot.slane %v8677, 5
        %v8812 = vsel %vm1082, %v8811, %v8810
        %v8813 = vrot.slane %v8678, 4
        %v8814 = vsel %vm1085, %v8813, %v8812
        %v8815 = vrot.slane %v8679, 3
        %v8816 = vsel %vm1088, %v8815, %v8814
        %v8817 = vrot.slane %v8680, 2
        %v8818 = vsel %vm1091, %v8817, %v8816
        %v8819 = vrot.slane %v8681, 1
        %v8820 = vsel %vm1094, %v8819, %v8818
        %v8821 = vrot.slane %v8683, 7
        %v8822 = vsel %vm1076, %v8821, %v8682
        %v8823 = vrot.slane %v8684, 6
        %v8824 = vsel %vm1079, %v8823, %v8822
        %v8825 = vrot.slane %v8685, 5
        %v8826 = vsel %vm1082, %v8825, %v8824
        %v8827 = vrot.slane %v8686, 4
        %v8828 = vsel %vm1085, %v8827, %v8826
        %v8829 = vrot.slane %v8687, 3
        %v8830 = vsel %vm1088, %v8829, %v8828
        %v8831 = vrot.slane %v8688, 2
        %v8832 = vsel %vm1091, %v8831, %v8830
        %v8833 = vrot.slane %v8689, 1
        %v8834 = vsel %vm1094, %v8833, %v8832
        %v8835 = vrot.slane %v8691, 7
        %v8836 = vsel %vm1076, %v8835, %v8690
        %v8837 = vrot.slane %v8692, 6
        %v8838 = vsel %vm1079, %v8837, %v8836
        %v8839 = vrot.slane %v8693, 5
        %v8840 = vsel %vm1082, %v8839, %v8838
        %v8841 = vrot.slane %v8694, 4
        %v8842 = vsel %vm1085, %v8841, %v8840
        %v8843 = vrot.slane %v8695, 3
        %v8844 = vsel %vm1088, %v8843, %v8842
        %v8845 = vrot.slane %v8696, 2
        %v8846 = vsel %vm1091, %v8845, %v8844
        %v8847 = vrot.slane %v8697, 1
        %v8848 = vsel %vm1094, %v8847, %v8846
        %v8849 = vrot.slane %v8699, 7
        %v8850 = vsel %vm1076, %v8849, %v8698
        %v8851 = vrot.slane %v8700, 6
        %v8852 = vsel %vm1079, %v8851, %v8850
        %v8853 = vrot.slane %v8701, 5
        %v8854 = vsel %vm1082, %v8853, %v8852
        %v8855 = vrot.slane %v8702, 4
        %v8856 = vsel %vm1085, %v8855, %v8854
        %v8857 = vrot.slane %v8703, 3
        %v8858 = vsel %vm1088, %v8857, %v8856
        %v8859 = vrot.slane %v8704, 2
        %v8860 = vsel %vm1091, %v8859, %v8858
        %v8861 = vrot.slane %v8705, 1
        %v8862 = vsel %vm1094, %v8861, %v8860
        %v8863 = vrot.slane %v8707, 7
        %v8864 = vsel %vm1076, %v8863, %v8706
        %v8865 = vrot.slane %v8708, 6
        %v8866 = vsel %vm1079, %v8865, %v8864
        %v8867 = vrot.slane %v8709, 5
        %v8868 = vsel %vm1082, %v8867, %v8866
        %v8869 = vrot.slane %v8710, 4
        %v8870 = vsel %vm1085, %v8869, %v8868
        %v8871 = vrot.slane %v8711, 3
        %v8872 = vsel %vm1088, %v8871, %v8870
        %v8873 = vrot.slane %v8712, 2
        %v8874 = vsel %vm1091, %v8873, %v8872
        %v8875 = vrot.slane %v8713, 1
        %v8876 = vsel %vm1094, %v8875, %v8874
        %v8877 = vrot.slane %v8715, 7
        %v8878 = vsel %vm1076, %v8877, %v8714
        %v8879 = vrot.slane %v8716, 6
        %v8880 = vsel %vm1079, %v8879, %v8878
        %v8881 = vrot.slane %v8717, 5
        %v8882 = vsel %vm1082, %v8881, %v8880
        %v8883 = vrot.slane %v8718, 4
        %v8884 = vsel %vm1085, %v8883, %v8882
        %v8885 = vrot.slane %v8719, 3
        %v8886 = vsel %vm1088, %v8885, %v8884
        %v8887 = vrot.slane %v8720, 2
        %v8888 = vsel %vm1091, %v8887, %v8886
        %v8889 = vrot.slane %v8721, 1
        %v8890 = vsel %vm1094, %v8889, %v8888
        %v8891 = vsel %vm1076, %v8779, %v8643
        %v8892 = vsel %vm1079, %v8772, %v8891
        %v8893 = vsel %vm1082, %v8765, %v8892
        %v8894 = vsel %vm1085, %v8758, %v8893
        %v8895 = vsel %vm1088, %v8751, %v8894
        %v8896 = vsel %vm1091, %v8744, %v8895
        %v8897 = vsel %vm1094, %v8737, %v8896
        %v8898 = vrot.slane %v8731, 7
        %v8899 = vsel %vm1076, %v8898, %v8730
        %v8900 = vrot.slane %v8732, 6
        %v8901 = vsel %vm1079, %v8900, %v8899
        %v8902 = vrot.slane %v8733, 5
        %v8903 = vsel %vm1082, %v8902, %v8901
        %v8904 = vrot.slane %v8734, 4
        %v8905 = vsel %vm1085, %v8904, %v8903
        %v8906 = vrot.slane %v8735, 3
        %v8907 = vsel %vm1088, %v8906, %v8905
        %v8908 = vrot.slane %v8736, 2
        %v8909 = vsel %vm1091, %v8908, %v8907
        %v8910 = vrot.slane %v8737, 1
        %v8911 = vsel %vm1094, %v8910, %v8909
        %v8912 = vrot.slane %v8739, 7
        %v8913 = vsel %vm1076, %v8912, %v8738
        %v8914 = vrot.slane %v8740, 6
        %v8915 = vsel %vm1079, %v8914, %v8913
        %v8916 = vrot.slane %v8741, 5
        %v8917 = vsel %vm1082, %v8916, %v8915
        %v8918 = vrot.slane %v8742, 4
        %v8919 = vsel %vm1085, %v8918, %v8917
        %v8920 = vrot.slane %v8743, 3
        %v8921 = vsel %vm1088, %v8920, %v8919
        %v8922 = vrot.slane %v8744, 2
        %v8923 = vsel %vm1091, %v8922, %v8921
        %v8924 = vrot.slane %v8745, 1
        %v8925 = vsel %vm1094, %v8924, %v8923
        %v8926 = vrot.slane %v8747, 7
        %v8927 = vsel %vm1076, %v8926, %v8746
        %v8928 = vrot.slane %v8748, 6
        %v8929 = vsel %vm1079, %v8928, %v8927
        %v8930 = vrot.slane %v8749, 5
        %v8931 = vsel %vm1082, %v8930, %v8929
        %v8932 = vrot.slane %v8750, 4
        %v8933 = vsel %vm1085, %v8932, %v8931
        %v8934 = vrot.slane %v8751, 3
        %v8935 = vsel %vm1088, %v8934, %v8933
        %v8936 = vrot.slane %v8752, 2
        %v8937 = vsel %vm1091, %v8936, %v8935
        %v8938 = vrot.slane %v8753, 1
        %v8939 = vsel %vm1094, %v8938, %v8937
        %v8940 = vrot.slane %v8755, 7
        %v8941 = vsel %vm1076, %v8940, %v8754
        %v8942 = vrot.slane %v8756, 6
        %v8943 = vsel %vm1079, %v8942, %v8941
        %v8944 = vrot.slane %v8757, 5
        %v8945 = vsel %vm1082, %v8944, %v8943
        %v8946 = vrot.slane %v8758, 4
        %v8947 = vsel %vm1085, %v8946, %v8945
        %v8948 = vrot.slane %v8759, 3
        %v8949 = vsel %vm1088, %v8948, %v8947
        %v8950 = vrot.slane %v8760, 2
        %v8951 = vsel %vm1091, %v8950, %v8949
        %v8952 = vrot.slane %v8761, 1
        %v8953 = vsel %vm1094, %v8952, %v8951
        %v8954 = vrot.slane %v8763, 7
        %v8955 = vsel %vm1076, %v8954, %v8762
        %v8956 = vrot.slane %v8764, 6
        %v8957 = vsel %vm1079, %v8956, %v8955
        %v8958 = vrot.slane %v8765, 5
        %v8959 = vsel %vm1082, %v8958, %v8957
        %v8960 = vrot.slane %v8766, 4
        %v8961 = vsel %vm1085, %v8960, %v8959
        %v8962 = vrot.slane %v8767, 3
        %v8963 = vsel %vm1088, %v8962, %v8961
        %v8964 = vrot.slane %v8768, 2
        %v8965 = vsel %vm1091, %v8964, %v8963
        %v8966 = vrot.slane %v8769, 1
        %v8967 = vsel %vm1094, %v8966, %v8965
        %v8968 = vrot.slane %v8771, 7
        %v8969 = vsel %vm1076, %v8968, %v8770
        %v8970 = vrot.slane %v8772, 6
        %v8971 = vsel %vm1079, %v8970, %v8969
        %v8972 = vrot.slane %v8773, 5
        %v8973 = vsel %vm1082, %v8972, %v8971
        %v8974 = vrot.slane %v8774, 4
        %v8975 = vsel %vm1085, %v8974, %v8973
        %v8976 = vrot.slane %v8775, 3
        %v8977 = vsel %vm1088, %v8976, %v8975
        %v8978 = vrot.slane %v8776, 2
        %v8979 = vsel %vm1091, %v8978, %v8977
        %v8980 = vrot.slane %v8777, 1
        %v8981 = vsel %vm1094, %v8980, %v8979
        %v8982 = vrot.slane %v8779, 7
        %v8983 = vsel %vm1076, %v8982, %v8778
        %v8984 = vrot.slane %v8780, 6
        %v8985 = vsel %vm1079, %v8984, %v8983
        %v8986 = vrot.slane %v8781, 5
        %v8987 = vsel %vm1082, %v8986, %v8985
        %v8988 = vrot.slane %v8782, 4
        %v8989 = vsel %vm1085, %v8988, %v8987
        %v8990 = vrot.slane %v8783, 3
        %v8991 = vsel %vm1088, %v8990, %v8989
        %v8992 = vrot.slane %v8784, 2
        %v8993 = vsel %vm1091, %v8992, %v8991
        %v8994 = vrot.slane %v8785, 1
        %v8995 = vsel %vm1094, %v8994, %v8993
        %9012 = vxpose.xlu0.b32.start [1/16] %v8792, 128
        %9013 = vxpose.xlu0.b32.cont [2/16] %v8806, 128
        %9014 = vxpose.xlu0.b32.cont [3/16] %v8820, 128
        %9015 = vxpose.xlu0.b32.cont [4/16] %v8834, 128
        %9016 = vxpose.xlu0.b32.cont [5/16] %v8848, 128
        %9017 = vxpose.xlu0.b32.cont [6/16] %v8862, 128
        %9018 = vxpose.xlu0.b32.cont [7/16] %v8876, 128
        %9019 = vxpose.xlu0.b32.cont [8/16] %v8890, 128
        %9020 = vxpose.xlu0.b32.cont [9/16] %v8897, 128
        %9021 = vxpose.xlu0.b32.cont [10/16] %v8911, 128
        %9022 = vxpose.xlu0.b32.cont [11/16] %v8925, 128
        %9023 = vxpose.xlu0.b32.cont [12/16] %v8939, 128
        %9024 = vxpose.xlu0.b32.cont [13/16] %v8953, 128
        %9025 = vxpose.xlu0.b32.cont [14/16] %v8967, 128
        %9026 = vxpose.xlu0.b32.cont [15/16] %v8981, 128
        %9027 = vxpose.xlu0.b32.end [16/16] %v8995, 128
        %v9028 = vpop.trf.xlu0
        %v9029 = vpop.trf.xlu0
        %v9030 = vpop.trf.xlu0
        %v9031 = vpop.trf.xlu0
        %v9032 = vpop.trf.xlu0
        %v9033 = vpop.trf.xlu0
        %v9034 = vpop.trf.xlu0
        %v9035 = vpop.trf.xlu0
        %v9036 = vpop.trf.xlu0
        %v9037 = vpop.trf.xlu0
        %v9038 = vpop.trf.xlu0
        %v9039 = vpop.trf.xlu0
        %v9040 = vpop.trf.xlu0
        %v9041 = vpop.trf.xlu0
        %v9042 = vpop.trf.xlu0
        %v9043 = vpop.trf.xlu0
        %9044 = vst [vmem:[%s404] sm:$0xff] %v9028
        %s9045 = sand.u32 %s291, 1
        %s9046 = scalar_lea.sflag [#allocation3], %s9045
        %s9047 = sand.u32 %s291, 1
        %s9048 = smul.addr %s9047, 8
        %s9049 = scalar_lea.vmem [#allocation2], %s9048
        // Predicated region
        $region69: #{tpu_custom_call.1} parent=67 // pred_check
          %p9050 = pneg %p301
        $region70: #{tpu_custom_call.1} parent=67 // pred_check_branch
          %9052 = sbr.rel (%p9050) target = $region72
        $region71: #{tpu_custom_call.1} parent=67 // pred_region
          %s9054 = ssub.s32 128, 128
          %9055 = vsyncadd %s9046, %s9054
          %s9056 = smul.addr %s26, 128
          %s9057 = scalar_lea.hbm %s12, %s9056
          %s9059 = sshll.u32 %s9049, 4
          %s9060 = int_to_ptr.vmem [resolvable:$true] %s9059
          %9062 = dma.vmem_to_hbm [thread:$0]  %s9060, 128, %s9057, %s9046
        $region72: #{tpu_custom_call.1} parent=67 // pred_fallthru
          _
      $region68: #{tpu_custom_call.1} parent=5 // pred_fallthru
        _
      %p9063 = scmp.le.s32.totalorder 2, %s21
      // Predicated region
      $region73: #{tpu_custom_call.1} parent=5 // pred_check
        %p9064 = pneg %p9063
      $region74: #{tpu_custom_call.1} parent=5 // pred_check_branch
        %9066 = sbr.rel (%p9064) target = $region76
      $region75: #{tpu_custom_call.1} parent=5 // pred_region
        %s9067 = ssub.s32 %s21, 2
        // Predicated region
        $region77: #{tpu_custom_call.1} parent=75 // pred_check
          %p9068 = pneg %p307
        $region78: #{tpu_custom_call.1} parent=75 // pred_check_branch
          %9070 = sbr.rel (%p9068) target = $region80
        $region79: #{tpu_custom_call.1} parent=75 // pred_region
          %s9071 = sand.u32 %s292, 1
          %s9072 = scalar_lea.sflag [#allocation3], %s9071
          %s9073 = sand.u32 %s292, 1
          %s9074 = smul.addr %s9073, 8
          %s9075 = scalar_lea.vmem [#allocation2], %s9074
          %9076 = dma.done %s9072, 128
        $region80: #{tpu_custom_call.1} parent=75 // pred_fallthru
          _
      $region76: #{tpu_custom_call.1} parent=5 // pred_fallthru
        _
    $region6: #{tpu_custom_call.1} parent=1 // loop_footer
      %s25 = sadd.s32 1, %s21
    $region7: #{tpu_custom_call.1} parent=1 // loop_footer_branch
      %20 = sbr.rel target = $region3
    $region8: #{tpu_custom_call.1} parent=1 // loop_exit
      _
    %9077 = vsyncpa [#allocation3], 1
    %s9078 = scalar_lea.sflag [#allocation3], 1
    %9079 = vsyncpa %s9078, 1

</llo_original>
